<compile_context>
chip_gen: v5e
topology: v5e:2x2
jax: 0.10.0
libtpu: 0.0.40
codegen_flags: <defaults>
</compile_context>

<pallas_src>
import functools

import jax
import jax.numpy as jnp
from jax import lax
from jax.experimental import pallas as pl
from jax.experimental.pallas import tpu as pltpu


# ----------------------------------------------------------------------------
# Fused TDID kernel: single invocation handles the whole batch (M = B*H*W).
# ----------------------------------------------------------------------------
def tdid_fused_kernel(img_ref, pooled_ref,
                      w_cd_ref, b_cd_ref,
                      w_emb_ref, b_emb_ref,
                      w_head_ref, b_head_ref,
                      out_ref,
                      pad_in, pad_mid,
                      *, B, H, W, ntc, n_score):
    CIN = w_cd_ref.shape[-1]          # fused channels = 2*NT*C (=128)
    EMB = w_emb_ref.shape[-1]         # 512
    OUT_C = w_head_ref.shape[-1]      # 128 lane-dense output slab
    M = B * H * W

    # Zero the 1-pixel-halo scratches. Single grid step => this runs once.
    pad_in[...] = jnp.zeros_like(pad_in)
    pad_mid[...] = jnp.zeros_like(pad_mid)

    # ---- stage 1: target fusion (VPU) -------------------------------------
    # Fused channel layout: [corr_t0..corr_t{NT-1} | diff_t0..diff_t{NT-1}]
    #   corr_t = img * pooled_t   (depthwise 1x1 conv with pooled target)
    #   diff_t = img - pooled_t
    img = img_ref[...]                                     # (B,H,W,C) f32
    nrep = CIN // img.shape[-1]
    img_rep = jnp.concatenate([img] * nrep, axis=-1)       # (B,H,W,CIN)
    pooled = pooled_ref[...][:, None, None, :]             # (B,1,1,CIN)
    lane = lax.broadcasted_iota(jnp.int32, (B, H, W, CIN), 3)
    fused = jnp.where(lane < ntc, img_rep * pooled, img_rep - pooled)
    # interior write: full 128-lane unmasked store, cast once to bf16 for MXU
    pad_in[:, 1:H + 1, 1:W + 1, :] = fused.astype(jnp.bfloat16)

    taps = [(dy, dx) for dy in range(3) for dx in range(3)]

    # ---- stage 2: corr_conv + diff_conv as ONE block-diagonal 3x3 conv ----
    # 9-tap MXU accumulate; each tap is a lane-dense (M, 128) bf16 slab.
    acc_cd = jnp.zeros((M, CIN), jnp.float32)
    for t, (dy, dx) in enumerate(taps):
        x_tap = pad_in[:, dy:dy + H, dx:dx + W, :].reshape(M, CIN)     # bf16
        acc_cd = acc_cd + jnp.dot(x_tap, w_cd_ref[t],
                                  preferred_element_type=jnp.float32)
    # ReLU(bias + acc): cols [0:C]=corr, [C:2C]=diff, [2C:CIN]=0 -> this IS
    # the (zero-padded) embedding-conv input, no concat needed.
    hid = jnp.maximum(acc_cd + b_cd_ref[...], 0.0)
    pad_mid[:, 1:H + 1, 1:W + 1, :] = (
        hid.astype(jnp.bfloat16).reshape(B, H, W, CIN))

    # ---- stage 3: embedding 3x3 conv (relu=False) --------------------------
    acc_emb = jnp.zeros((M, EMB), jnp.float32)
    for t, (dy, dx) in enumerate(taps):
        x_tap = pad_mid[:, dy:dy + H, dx:dx + W, :].reshape(M, CIN)    # bf16
        acc_emb = acc_emb + jnp.dot(x_tap, w_emb_ref[t],
                                    preferred_element_type=jnp.float32)
    emb = (acc_emb + b_emb_ref[...]).astype(jnp.bfloat16)              # (M,EMB)

    # ---- stage 4: fused 1x1 score + 1x1 bbox head --------------------------
    # Head weight columns are already at their final slab lane offsets:
    #   [ (prob goes at 0:18) | score 18:36 | bbox 36:72 | zero pad 72:128 ]
    head = jnp.dot(emb, w_head_ref[...],
                   preferred_element_type=jnp.float32) + b_head_ref[...]

    # reshape_layer(2) + F.softmax: pairs channel c (bg) with channel c+9 (fg)
    na = n_score // 2
    score = head[:, n_score:2 * n_score]                   # (M, 18)
    bg, fg = score[:, :na], score[:, na:]
    m = jnp.maximum(bg, fg)
    ebg = jnp.exp(bg - m)
    efg = jnp.exp(fg - m)
    inv = 1.0 / (ebg + efg)                                # exact division
    prob = jnp.concatenate([ebg * inv, efg * inv], axis=-1)  # (M, 18)

    # Single 2-piece lane concat: [prob | score | bbox | pad] stays position-
    # preserving because head[:, 18:] lands back at lanes 18:128.
    slab = jnp.concatenate([prob, head[:, n_score:]], axis=-1)   # (M, 128)
    out_ref[...] = slab.reshape(B, H, W, OUT_C)            # dense 128-lane store


# ----------------------------------------------------------------------------
# Full TDID forward (features_given=True path).
# ----------------------------------------------------------------------------
@functools.partial(jax.jit, static_argnames=("num_targets",))
def tdid_forward(target_data_nchw, img_data_nchw, params, *, num_targets):
    """
    target_data_nchw: (B*NUM_TARGETS, C, Ht, Wt) target feature maps (NCHW)
    img_data_nchw:    (B, C, H, W) scene feature maps (NCHW)
    Returns (class_prob_reshape, bbox_pred, class_score) in NCHW -- the tensors
    fed to proposal_layer in the PyTorch module.
    """
    B, C, H, W = img_data_nchw.shape
    BT = target_data_nchw.shape[0]
    assert BT == B * num_targets

    NTC = num_targets * C
    CIN = 2 * NTC                              # fused corr|diff channels (128)
    EMB = params["w_emb"].shape[-1]            # 512
    n_score = params["w_score"].shape[-1]      # 18
    n_bbox = params["w_bbox"].shape[-1]        # 36
    OUT_C = 128                                # lane-dense output slab width
    assert 2 * n_score + n_bbox <= OUT_C

    # NCHW -> NHWC glue for the scene features.
    img_nhwc = jnp.transpose(img_data_nchw, (0, 2, 3, 1))

    # Hoisted per-target global max-pool (tiny XLA reduce); lane-dense (B, CIN)
    # vector ordered [p_0..p_{NT-1}, p_0..p_{NT-1}] to match the fused layout.
    pooled = jnp.max(target_data_nchw, axis=(2, 3)).reshape(B, NTC)
    pooled2 = jnp.concatenate([pooled, pooled], axis=-1)             # (B, CIN)

    # ---- one-time weight prep (tiny XLA ops) -------------------------------
    # Weights here are HWIO; real PyTorch OIHW weights need .transpose(2,3,1,0).
    # Fused block-diagonal corr+diff conv: one matmul emits [corr|diff|zeros].
    w_cd = jnp.zeros((3, 3, CIN, CIN), jnp.float32)
    w_cd = w_cd.at[:, :, :NTC, :C].set(params["w_corr"])
    w_cd = w_cd.at[:, :, NTC:, C:2 * C].set(params["w_diff"])
    w_cd = w_cd.reshape(9, CIN, CIN).astype(jnp.bfloat16)
    b_cd = jnp.zeros((1, CIN), jnp.float32)
    b_cd = b_cd.at[:, :C].set(params["b_corr"])
    b_cd = b_cd.at[:, C:2 * C].set(params["b_diff"])

    # Embedding conv: pad K rows per tap from 2C to CIN (keeps taps 128-lane).
    w_emb = jnp.zeros((3, 3, CIN, EMB), jnp.float32)
    w_emb = w_emb.at[:, :, :2 * C, :].set(params["w_emb"])
    w_emb = w_emb.reshape(9, CIN, EMB).astype(jnp.bfloat16)

    # Fused score+bbox head: columns pre-placed at final slab lane offsets
    #   [ prob 0:18 | score 18:36 | bbox 36:72 | pad 72:128 ]
    w_head = jnp.zeros((EMB, OUT_C), jnp.float32)
    w_head = w_head.at[:, n_score:2 * n_score].set(params["w_score"])
    w_head = w_head.at[:, 2 * n_score:2 * n_score + n_bbox].set(params["w_bbox"])
    w_head = w_head.astype(jnp.bfloat16)
    b_head = jnp.zeros((1, OUT_C), jnp.float32)
    b_head = b_head.at[:, n_score:2 * n_score].set(params["b_score"])
    b_head = b_head.at[:, 2 * n_score:2 * n_score + n_bbox].set(params["b_bbox"])

    kernel = functools.partial(tdid_fused_kernel, B=B, H=H, W=W,
                               ntc=NTC, n_score=n_score)

    slab = pl.pallas_call(
        kernel,
        out_shape=jax.ShapeDtypeStruct((B, H, W, OUT_C), jnp.float32),
        grid=(1,),
        in_specs=[
            pl.BlockSpec((B, H, W, C), lambda i: (0, 0, 0, 0)),
            pl.BlockSpec((B, CIN), lambda i: (0, 0)),
            pl.BlockSpec((9, CIN, CIN), lambda i: (0, 0, 0)),
            pl.BlockSpec((1, CIN), lambda i: (0, 0)),
            pl.BlockSpec((9, CIN, EMB), lambda i: (0, 0, 0)),
            pl.BlockSpec((1, EMB), lambda i: (0, 0)),
            pl.BlockSpec((EMB, OUT_C), lambda i: (0, 0)),
            pl.BlockSpec((1, OUT_C), lambda i: (0, 0)),
        ],
        out_specs=pl.BlockSpec((B, H, W, OUT_C), lambda i: (0, 0, 0, 0)),
        scratch_shapes=[
            pltpu.VMEM((B, H + 2, W + 2, CIN), jnp.bfloat16),   # padded fused in
            pltpu.VMEM((B, H + 2, W + 2, CIN), jnp.bfloat16),   # padded corr|diff
        ],
        compiler_params=pltpu.CompilerParams(
            dimension_semantics=("arbitrary",)),
    )(img_nhwc, pooled2, w_cd, b_cd, w_emb, params["b_emb"], w_head, b_head)

    # Split the lane-dense slab and go back to NCHW.
    to_nchw = lambda t: jnp.transpose(t, (0, 3, 1, 2))
    class_prob = to_nchw(slab[..., :n_score])
    class_score = to_nchw(slab[..., n_score:2 * n_score])
    bbox_pred = to_nchw(slab[..., 2 * n_score:2 * n_score + n_bbox])
    # TODO(synk): proposal_layer_py / anchor_target_layer_py (NMS, anchor
    # generation) are external numpy host code and are not translated.
    return class_prob, bbox_pred, class_score


# ----------------------------------------------------------------------------
# Deterministic parameter init + driver
# ----------------------------------------------------------------------------
def init_params(key, C, num_targets, emb_dim, n_scales):
    n_score = n_scales * 3 * 2   # 18
    n_bbox = n_scales * 3 * 4    # 36
    ks = jax.random.split(key, 10)
    s = 0.05
    return {
        "w_corr": s * jax.random.normal(ks[0], (3, 3, num_targets * C, C), jnp.float32),
        "b_corr": s * jax.random.normal(ks[1], (1, C), jnp.float32),
        "w_diff": s * jax.random.normal(ks[2], (3, 3, num_targets * C, C), jnp.float32),
        "b_diff": s * jax.random.normal(ks[3], (1, C), jnp.float32),
        "w_emb": s * jax.random.normal(ks[4], (3, 3, 2 * C, emb_dim), jnp.float32),
        "b_emb": s * jax.random.normal(ks[5], (1, emb_dim), jnp.float32),
        "w_score": s * jax.random.normal(ks[6], (emb_dim, n_score), jnp.float32),
        "b_score": s * jax.random.normal(ks[7], (1, n_score), jnp.float32),
        "w_bbox": s * jax.random.normal(ks[8], (emb_dim, n_bbox), jnp.float32),
        "b_bbox": s * jax.random.normal(ks[9], (1, n_bbox), jnp.float32),
    }


if __name__ == "__main__":
    B, C, H, W = 2, 32, 8, 8          # scene feature maps
    NT, Ht, Wt = 2, 4, 4              # NUM_TARGETS target feature maps
    EMB = 512                         # embedding_conv output channels
    N_SCALES = 3                      # len(cfg.ANCHOR_SCALES)

    key = jax.random.PRNGKey(0)
    k_img, k_tgt, k_par = jax.random.split(key, 3)

    img_data = jax.random.normal(k_img, (B, C, H, W), jnp.float32)
    target_data = jax.random.normal(k_tgt, (B * NT, C, Ht, Wt), jnp.float32)
    params = init_params(k_par, C, NT, EMB, N_SCALES)

    class_prob, bbox_pred, class_score = tdid_forward(
        target_data, img_data, params, num_targets=NT)
    jax.block_until_ready((class_prob, bbox_pred, class_score))

    assert class_prob.shape == (B, N_SCALES * 3 * 2, H, W)
    assert bbox_pred.shape == (B, N_SCALES * 3 * 4, H, W)
    assert class_score.shape == (B, N_SCALES * 3 * 2, H, W)
    # softmax sanity: bg + fg probabilities sum to ~1 per anchor (exact divide)
    assert bool(jnp.allclose(class_prob[:, :9] + class_prob[:, 9:], 1.0,
                             atol=1e-3))
    print("KERNEL_OK")
</pallas_src>

<mosaic_0001>
module attributes {stable_mosaic.version = 11 : i64} {
  func.func @tdid_fused_kernel(%arg0: i32, %arg1: memref<2x8x8x32xf32, #tpu.memory_space<vmem>>, %arg2: memref<2x128xf32, #tpu.memory_space<vmem>>, %arg3: memref<9x128x128xbf16, #tpu.memory_space<vmem>>, %arg4: memref<1x128xf32, #tpu.memory_space<vmem>>, %arg5: memref<9x128x512xbf16, #tpu.memory_space<vmem>>, %arg6: memref<1x512xf32, #tpu.memory_space<vmem>>, %arg7: memref<512x128xbf16, #tpu.memory_space<vmem>>, %arg8: memref<1x128xf32, #tpu.memory_space<vmem>>, %arg9: memref<2x8x8x128xf32, #tpu.memory_space<vmem>>, %arg10: memref<2x10x10x128xbf16, #tpu.memory_space<vmem>>, %arg11: memref<2x10x10x128xbf16, #tpu.memory_space<vmem>>) attributes {dimension_semantics = [#tpu.dimension_semantics<arbitrary>], iteration_bounds = array<i64: 1>, scalar_prefetch = 0 : i64, scratch_operands = 2 : i64, tpu.core_type = #tpu.core_type<tc>, window_params = [{pipeline_mode = #tpu.pipeline_mode<synchronous>, transform_indices = @transform_0, window_bounds = array<i64: 2, 8, 8, 32>}, {pipeline_mode = #tpu.pipeline_mode<synchronous>, transform_indices = @transform_1, window_bounds = array<i64: 2, 128>}, {pipeline_mode = #tpu.pipeline_mode<synchronous>, transform_indices = @transform_2, window_bounds = array<i64: 9, 128, 128>}, {pipeline_mode = #tpu.pipeline_mode<synchronous>, transform_indices = @transform_3, window_bounds = array<i64: 1, 128>}, {pipeline_mode = #tpu.pipeline_mode<synchronous>, transform_indices = @transform_4, window_bounds = array<i64: 9, 128, 512>}, {pipeline_mode = #tpu.pipeline_mode<synchronous>, transform_indices = @transform_5, window_bounds = array<i64: 1, 512>}, {pipeline_mode = #tpu.pipeline_mode<synchronous>, transform_indices = @transform_6, window_bounds = array<i64: 512, 128>}, {pipeline_mode = #tpu.pipeline_mode<synchronous>, transform_indices = @transform_7, window_bounds = array<i64: 1, 128>}, {pipeline_mode = #tpu.pipeline_mode<synchronous>, transform_indices = @transform_8, window_bounds = array<i64: 2, 8, 8, 128>}]} {
    %cst = arith.constant 0.000000e+00 : bf16
    %0 = vector.broadcast %cst : bf16 to vector<2x10x10x128xbf16>
    %c0 = arith.constant 0 : index
    %c0_0 = arith.constant 0 : index
    %c0_1 = arith.constant 0 : index
    %c0_2 = arith.constant 0 : index
    %1 = vector.load %arg10[%c0, %c0_0, %c0_1, %c0_2] : memref<2x10x10x128xbf16, #tpu.memory_space<vmem>>, vector<2x10x10x128xbf16>
    tpu.vector_store %arg10[%c0, %c0_0, %c0_1, %c0_2], %0 {strides = array<i32>} : memref<2x10x10x128xbf16, #tpu.memory_space<vmem>>, vector<2x10x10x128xbf16>,
    %cst_3 = arith.constant 0.000000e+00 : bf16
    %2 = vector.broadcast %cst_3 : bf16 to vector<2x10x10x128xbf16>
    %c0_4 = arith.constant 0 : index
    %c0_5 = arith.constant 0 : index
    %c0_6 = arith.constant 0 : index
    %c0_7 = arith.constant 0 : index
    %3 = vector.load %arg11[%c0_4, %c0_5, %c0_6, %c0_7] : memref<2x10x10x128xbf16, #tpu.memory_space<vmem>>, vector<2x10x10x128xbf16>
    tpu.vector_store %arg11[%c0_4, %c0_5, %c0_6, %c0_7], %2 {strides = array<i32>} : memref<2x10x10x128xbf16, #tpu.memory_space<vmem>>, vector<2x10x10x128xbf16>,
    %c0_8 = arith.constant 0 : index
    %c0_9 = arith.constant 0 : index
    %c0_10 = arith.constant 0 : index
    %c0_11 = arith.constant 0 : index
    %4 = vector.load %arg1[%c0_8, %c0_9, %c0_10, %c0_11] : memref<2x8x8x32xf32, #tpu.memory_space<vmem>>, vector<2x8x8x32xf32>
    %5 = tpu.concatenate %4, %4, %4, %4 in 3 : vector<2x8x8x32xf32>, vector<2x8x8x32xf32>, vector<2x8x8x32xf32>, vector<2x8x8x32xf32> -> vector<2x8x8x128xf32>
    %c0_12 = arith.constant 0 : index
    %c0_13 = arith.constant 0 : index
    %6 = vector.load %arg2[%c0_12, %c0_13] : memref<2x128xf32, #tpu.memory_space<vmem>>, vector<2x128xf32>
    %7 = vector.shape_cast %6 : vector<2x128xf32> to vector<2x1x1x128xf32>
    %8 = tpu.iota {dimensions = array<i32: 3>} : vector<2x8x8x128xi32>
    %c64_i32 = arith.constant 64 : i32
    %9 = vector.broadcast %c64_i32 : i32 to vector<2x8x8x128xi32>
    %10 = arith.cmpi slt, %8, %9 : vector<2x8x8x128xi32>
    %11 = vector.broadcast %7 : vector<2x1x1x128xf32> to vector<2x8x8x128xf32>
    %12 = arith.mulf %5, %11 : vector<2x8x8x128xf32>
    %13 = vector.broadcast %7 : vector<2x1x1x128xf32> to vector<2x8x8x128xf32>
    %14 = arith.subf %5, %13 : vector<2x8x8x128xf32>
    %15 = arith.select %10, %12, %14 : vector<2x8x8x128xi1>, vector<2x8x8x128xf32>
    %16 = arith.truncf %15 : vector<2x8x8x128xf32> to vector<2x8x8x128xbf16>
    %c0_14 = arith.constant 0 : index
    %c1 = arith.constant 1 : index
    %c1_15 = arith.constant 1 : index
    %c0_16 = arith.constant 0 : index
    %17 = vector.load %arg10[%c0_14, %c1, %c1_15, %c0_16] : memref<2x10x10x128xbf16, #tpu.memory_space<vmem>>, vector<2x8x8x128xbf16>
    tpu.vector_store %arg10[%c0_14, %c1, %c1_15, %c0_16], %16 {strides = array<i32>} : memref<2x10x10x128xbf16, #tpu.memory_space<vmem>>, vector<2x8x8x128xbf16>,
    %cst_17 = arith.constant 0.000000e+00 : f32
    %18 = vector.broadcast %cst_17 : f32 to vector<128x128xf32>
    %c0_18 = arith.constant 0 : index
    %c0_19 = arith.constant 0 : index
    %c0_20 = arith.constant 0 : index
    %c0_21 = arith.constant 0 : index
    %19 = vector.load %arg10[%c0_18, %c0_19, %c0_20, %c0_21] : memref<2x10x10x128xbf16, #tpu.memory_space<vmem>>, vector<2x8x8x128xbf16>
    %20 = vector.shape_cast %19 : vector<2x8x8x128xbf16> to vector<128x128xbf16>
    %c0_22 = arith.constant 0 : index
    %c0_23 = arith.constant 0 : index
    %c0_24 = arith.constant 0 : index
    %21 = vector.load %arg3[%c0_22, %c0_23, %c0_24] : memref<9x128x128xbf16, #tpu.memory_space<vmem>>, vector<1x128x128xbf16>
    %22 = vector.shape_cast %21 : vector<1x128x128xbf16> to vector<128x128xbf16>
    %cst_25 = arith.constant dense<0.000000e+00> : vector<128x128xf32>
    %23 = tpu.matmul %20, %22, %cst_25 {dimension_numbers = #tpu.dot_dimension_numbers<[1], [0], [0], [1], [0, 0, 1, 1], [], []>} : vector<128x128xbf16>, vector<128x128xbf16>, vector<128x128xf32> -> vector<128x128xf32>
    %24 = arith.addf %18, %23 : vector<128x128xf32>
    %c0_26 = arith.constant 0 : index
    %c0_27 = arith.constant 0 : index
    %c1_28 = arith.constant 1 : index
    %c0_29 = arith.constant 0 : index
    %25 = vector.load %arg10[%c0_26, %c0_27, %c1_28, %c0_29] : memref<2x10x10x128xbf16, #tpu.memory_space<vmem>>, vector<2x8x8x128xbf16>
    %26 = vector.shape_cast %25 : vector<2x8x8x128xbf16> to vector<128x128xbf16>
    %c1_30 = arith.constant 1 : index
    %c0_31 = arith.constant 0 : index
    %c0_32 = arith.constant 0 : index
    %27 = vector.load %arg3[%c1_30, %c0_31, %c0_32] : memref<9x128x128xbf16, #tpu.memory_space<vmem>>, vector<1x128x128xbf16>
    %28 = vector.shape_cast %27 : vector<1x128x128xbf16> to vector<128x128xbf16>
    %cst_33 = arith.constant dense<0.000000e+00> : vector<128x128xf32>
    %29 = tpu.matmul %26, %28, %cst_33 {dimension_numbers = #tpu.dot_dimension_numbers<[1], [0], [0], [1], [0, 0, 1, 1], [], []>} : vector<128x128xbf16>, vector<128x128xbf16>, vector<128x128xf32> -> vector<128x128xf32>
    %30 = arith.addf %24, %29 : vector<128x128xf32>
    %c0_34 = arith.constant 0 : index
    %c0_35 = arith.constant 0 : index
    %c2 = arith.constant 2 : index
    %c0_36 = arith.constant 0 : index
    %31 = vector.load %arg10[%c0_34, %c0_35, %c2, %c0_36] : memref<2x10x10x128xbf16, #tpu.memory_space<vmem>>, vector<2x8x8x128xbf16>
    %32 = vector.shape_cast %31 : vector<2x8x8x128xbf16> to vector<128x128xbf16>
    %c2_37 = arith.constant 2 : index
    %c0_38 = arith.constant 0 : index
    %c0_39 = arith.constant 0 : index
    %33 = vector.load %arg3[%c2_37, %c0_38, %c0_39] : memref<9x128x128xbf16, #tpu.memory_space<vmem>>, vector<1x128x128xbf16>
    %34 = vector.shape_cast %33 : vector<1x128x128xbf16> to vector<128x128xbf16>
    %cst_40 = arith.constant dense<0.000000e+00> : vector<128x128xf32>
    %35 = tpu.matmul %32, %34, %cst_40 {dimension_numbers = #tpu.dot_dimension_numbers<[1], [0], [0], [1], [0, 0, 1, 1], [], []>} : vector<128x128xbf16>, vector<128x128xbf16>, vector<128x128xf32> -> vector<128x128xf32>
    %36 = arith.addf %30, %35 : vector<128x128xf32>
    %c0_41 = arith.constant 0 : index
    %c1_42 = arith.constant 1 : index
    %c0_43 = arith.constant 0 : index
    %c0_44 = arith.constant 0 : index
    %37 = vector.load %arg10[%c0_41, %c1_42, %c0_43, %c0_44] : memref<2x10x10x128xbf16, #tpu.memory_space<vmem>>, vector<2x8x8x128xbf16>
    %38 = vector.shape_cast %37 : vector<2x8x8x128xbf16> to vector<128x128xbf16>
    %c3 = arith.constant 3 : index
    %c0_45 = arith.constant 0 : index
    %c0_46 = arith.constant 0 : index
    %39 = vector.load %arg3[%c3, %c0_45, %c0_46] : memref<9x128x128xbf16, #tpu.memory_space<vmem>>, vector<1x128x128xbf16>
    %40 = vector.shape_cast %39 : vector<1x128x128xbf16> to vector<128x128xbf16>
    %cst_47 = arith.constant dense<0.000000e+00> : vector<128x128xf32>
    %41 = tpu.matmul %38, %40, %cst_47 {dimension_numbers = #tpu.dot_dimension_numbers<[1], [0], [0], [1], [0, 0, 1, 1], [], []>} : vector<128x128xbf16>, vector<128x128xbf16>, vector<128x128xf32> -> vector<128x128xf32>
    %42 = arith.addf %36, %41 : vector<128x128xf32>
    %c0_48 = arith.constant 0 : index
    %c1_49 = arith.constant 1 : index
    %c1_50 = arith.constant 1 : index
    %c0_51 = arith.constant 0 : index
    %43 = vector.load %arg10[%c0_48, %c1_49, %c1_50, %c0_51] : memref<2x10x10x128xbf16, #tpu.memory_space<vmem>>, vector<2x8x8x128xbf16>
    %44 = vector.shape_cast %43 : vector<2x8x8x128xbf16> to vector<128x128xbf16>
    %c4 = arith.constant 4 : index
    %c0_52 = arith.constant 0 : index
    %c0_53 = arith.constant 0 : index
    %45 = vector.load %arg3[%c4, %c0_52, %c0_53] : memref<9x128x128xbf16, #tpu.memory_space<vmem>>, vector<1x128x128xbf16>
    %46 = vector.shape_cast %45 : vector<1x128x128xbf16> to vector<128x128xbf16>
    %cst_54 = arith.constant dense<0.000000e+00> : vector<128x128xf32>
    %47 = tpu.matmul %44, %46, %cst_54 {dimension_numbers = #tpu.dot_dimension_numbers<[1], [0], [0], [1], [0, 0, 1, 1], [], []>} : vector<128x128xbf16>, vector<128x128xbf16>, vector<128x128xf32> -> vector<128x128xf32>
    %48 = arith.addf %42, %47 : vector<128x128xf32>
    %c0_55 = arith.constant 0 : index
    %c1_56 = arith.constant 1 : index
    %c2_57 = arith.constant 2 : index
    %c0_58 = arith.constant 0 : index
    %49 = vector.load %arg10[%c0_55, %c1_56, %c2_57, %c0_58] : memref<2x10x10x128xbf16, #tpu.memory_space<vmem>>, vector<2x8x8x128xbf16>
    %50 = vector.shape_cast %49 : vector<2x8x8x128xbf16> to vector<128x128xbf16>
    %c5 = arith.constant 5 : index
    %c0_59 = arith.constant 0 : index
    %c0_60 = arith.constant 0 : index
    %51 = vector.load %arg3[%c5, %c0_59, %c0_60] : memref<9x128x128xbf16, #tpu.memory_space<vmem>>, vector<1x128x128xbf16>
    %52 = vector.shape_cast %51 : vector<1x128x128xbf16> to vector<128x128xbf16>
    %cst_61 = arith.constant dense<0.000000e+00> : vector<128x128xf32>
    %53 = tpu.matmul %50, %52, %cst_61 {dimension_numbers = #tpu.dot_dimension_numbers<[1], [0], [0], [1], [0, 0, 1, 1], [], []>} : vector<128x128xbf16>, vector<128x128xbf16>, vector<128x128xf32> -> vector<128x128xf32>
    %54 = arith.addf %48, %53 : vector<128x128xf32>
    %c0_62 = arith.constant 0 : index
    %c2_63 = arith.constant 2 : index
    %c0_64 = arith.constant 0 : index
    %c0_65 = arith.constant 0 : index
    %55 = vector.load %arg10[%c0_62, %c2_63, %c0_64, %c0_65] : memref<2x10x10x128xbf16, #tpu.memory_space<vmem>>, vector<2x8x8x128xbf16>
    %56 = vector.shape_cast %55 : vector<2x8x8x128xbf16> to vector<128x128xbf16>
    %c6 = arith.constant 6 : index
    %c0_66 = arith.constant 0 : index
    %c0_67 = arith.constant 0 : index
    %57 = vector.load %arg3[%c6, %c0_66, %c0_67] : memref<9x128x128xbf16, #tpu.memory_space<vmem>>, vector<1x128x128xbf16>
    %58 = vector.shape_cast %57 : vector<1x128x128xbf16> to vector<128x128xbf16>
    %cst_68 = arith.constant dense<0.000000e+00> : vector<128x128xf32>
    %59 = tpu.matmul %56, %58, %cst_68 {dimension_numbers = #tpu.dot_dimension_numbers<[1], [0], [0], [1], [0, 0, 1, 1], [], []>} : vector<128x128xbf16>, vector<128x128xbf16>, vector<128x128xf32> -> vector<128x128xf32>
    %60 = arith.addf %54, %59 : vector<128x128xf32>
    %c0_69 = arith.constant 0 : index
    %c2_70 = arith.constant 2 : index
    %c1_71 = arith.constant 1 : index
    %c0_72 = arith.constant 0 : index
    %61 = vector.load %arg10[%c0_69, %c2_70, %c1_71, %c0_72] : memref<2x10x10x128xbf16, #tpu.memory_space<vmem>>, vector<2x8x8x128xbf16>
    %62 = vector.shape_cast %61 : vector<2x8x8x128xbf16> to vector<128x128xbf16>
    %c7 = arith.constant 7 : index
    %c0_73 = arith.constant 0 : index
    %c0_74 = arith.constant 0 : index
    %63 = vector.load %arg3[%c7, %c0_73, %c0_74] : memref<9x128x128xbf16, #tpu.memory_space<vmem>>, vector<1x128x128xbf16>
    %64 = vector.shape_cast %63 : vector<1x128x128xbf16> to vector<128x128xbf16>
    %cst_75 = arith.constant dense<0.000000e+00> : vector<128x128xf32>
    %65 = tpu.matmul %62, %64, %cst_75 {dimension_numbers = #tpu.dot_dimension_numbers<[1], [0], [0], [1], [0, 0, 1, 1], [], []>} : vector<128x128xbf16>, vector<128x128xbf16>, vector<128x128xf32> -> vector<128x128xf32>
    %66 = arith.addf %60, %65 : vector<128x128xf32>
    %c0_76 = arith.constant 0 : index
    %c2_77 = arith.constant 2 : index
    %c2_78 = arith.constant 2 : index
    %c0_79 = arith.constant 0 : index
    %67 = vector.load %arg10[%c0_76, %c2_77, %c2_78, %c0_79] : memref<2x10x10x128xbf16, #tpu.memory_space<vmem>>, vector<2x8x8x128xbf16>
    %68 = vector.shape_cast %67 : vector<2x8x8x128xbf16> to vector<128x128xbf16>
    %c8 = arith.constant 8 : index
    %c0_80 = arith.constant 0 : index
    %c0_81 = arith.constant 0 : index
    %69 = vector.load %arg3[%c8, %c0_80, %c0_81] : memref<9x128x128xbf16, #tpu.memory_space<vmem>>, vector<1x128x128xbf16>
    %70 = vector.shape_cast %69 : vector<1x128x128xbf16> to vector<128x128xbf16>
    %cst_82 = arith.constant dense<0.000000e+00> : vector<128x128xf32>
    %71 = tpu.matmul %68, %70, %cst_82 {dimension_numbers = #tpu.dot_dimension_numbers<[1], [0], [0], [1], [0, 0, 1, 1], [], []>} : vector<128x128xbf16>, vector<128x128xbf16>, vector<128x128xf32> -> vector<128x128xf32>
    %72 = arith.addf %66, %71 : vector<128x128xf32>
    %c0_83 = arith.constant 0 : index
    %c0_84 = arith.constant 0 : index
    %73 = vector.load %arg4[%c0_83, %c0_84] : memref<1x128xf32, #tpu.memory_space<vmem>>, vector<1x128xf32>
    %74 = vector.broadcast %73 : vector<1x128xf32> to vector<128x128xf32>
    %75 = arith.addf %72, %74 : vector<128x128xf32>
    %cst_85 = arith.constant 0.000000e+00 : f32
    %76 = vector.broadcast %cst_85 : f32 to vector<128x128xf32>
    %77 = arith.maximumf %75, %76 : vector<128x128xf32>
    %78 = arith.truncf %77 : vector<128x128xf32> to vector<128x128xbf16>
    %79 = vector.shape_cast %78 : vector<128x128xbf16> to vector<2x8x8x128xbf16>
    %c0_86 = arith.constant 0 : index
    %c1_87 = arith.constant 1 : index
    %c1_88 = arith.constant 1 : index
    %c0_89 = arith.constant 0 : index
    %80 = vector.load %arg11[%c0_86, %c1_87, %c1_88, %c0_89] : memref<2x10x10x128xbf16, #tpu.memory_space<vmem>>, vector<2x8x8x128xbf16>
    tpu.vector_store %arg11[%c0_86, %c1_87, %c1_88, %c0_89], %79 {strides = array<i32>} : memref<2x10x10x128xbf16, #tpu.memory_space<vmem>>, vector<2x8x8x128xbf16>,
    %cst_90 = arith.constant 0.000000e+00 : f32
    %81 = vector.broadcast %cst_90 : f32 to vector<128x512xf32>
    %c0_91 = arith.constant 0 : index
    %c0_92 = arith.constant 0 : index
    %c0_93 = arith.constant 0 : index
    %c0_94 = arith.constant 0 : index
    %82 = vector.load %arg11[%c0_91, %c0_92, %c0_93, %c0_94] : memref<2x10x10x128xbf16, #tpu.memory_space<vmem>>, vector<2x8x8x128xbf16>
    %83 = vector.shape_cast %82 : vector<2x8x8x128xbf16> to vector<128x128xbf16>
    %c0_95 = arith.constant 0 : index
    %c0_96 = arith.constant 0 : index
    %c0_97 = arith.constant 0 : index
    %84 = vector.load %arg5[%c0_95, %c0_96, %c0_97] : memref<9x128x512xbf16, #tpu.memory_space<vmem>>, vector<1x128x512xbf16>
    %85 = vector.shape_cast %84 : vector<1x128x512xbf16> to vector<128x512xbf16>
    %cst_98 = arith.constant dense<0.000000e+00> : vector<128x512xf32>
    %86 = tpu.matmul %83, %85, %cst_98 {dimension_numbers = #tpu.dot_dimension_numbers<[1], [0], [0], [1], [0, 0, 1, 1], [], []>} : vector<128x128xbf16>, vector<128x512xbf16>, vector<128x512xf32> -> vector<128x512xf32>
    %87 = arith.addf %81, %86 : vector<128x512xf32>
    %c0_99 = arith.constant 0 : index
    %c0_100 = arith.constant 0 : index
    %c1_101 = arith.constant 1 : index
    %c0_102 = arith.constant 0 : index
    %88 = vector.load %arg11[%c0_99, %c0_100, %c1_101, %c0_102] : memref<2x10x10x128xbf16, #tpu.memory_space<vmem>>, vector<2x8x8x128xbf16>
    %89 = vector.shape_cast %88 : vector<2x8x8x128xbf16> to vector<128x128xbf16>
    %c1_103 = arith.constant 1 : index
    %c0_104 = arith.constant 0 : index
    %c0_105 = arith.constant 0 : index
    %90 = vector.load %arg5[%c1_103, %c0_104, %c0_105] : memref<9x128x512xbf16, #tpu.memory_space<vmem>>, vector<1x128x512xbf16>
    %91 = vector.shape_cast %90 : vector<1x128x512xbf16> to vector<128x512xbf16>
    %cst_106 = arith.constant dense<0.000000e+00> : vector<128x512xf32>
    %92 = tpu.matmul %89, %91, %cst_106 {dimension_numbers = #tpu.dot_dimension_numbers<[1], [0], [0], [1], [0, 0, 1, 1], [], []>} : vector<128x128xbf16>, vector<128x512xbf16>, vector<128x512xf32> -> vector<128x512xf32>
    %93 = arith.addf %87, %92 : vector<128x512xf32>
    %c0_107 = arith.constant 0 : index
    %c0_108 = arith.constant 0 : index
    %c2_109 = arith.constant 2 : index
    %c0_110 = arith.constant 0 : index
    %94 = vector.load %arg11[%c0_107, %c0_108, %c2_109, %c0_110] : memref<2x10x10x128xbf16, #tpu.memory_space<vmem>>, vector<2x8x8x128xbf16>
    %95 = vector.shape_cast %94 : vector<2x8x8x128xbf16> to vector<128x128xbf16>
    %c2_111 = arith.constant 2 : index
    %c0_112 = arith.constant 0 : index
    %c0_113 = arith.constant 0 : index
    %96 = vector.load %arg5[%c2_111, %c0_112, %c0_113] : memref<9x128x512xbf16, #tpu.memory_space<vmem>>, vector<1x128x512xbf16>
    %97 = vector.shape_cast %96 : vector<1x128x512xbf16> to vector<128x512xbf16>
    %cst_114 = arith.constant dense<0.000000e+00> : vector<128x512xf32>
    %98 = tpu.matmul %95, %97, %cst_114 {dimension_numbers = #tpu.dot_dimension_numbers<[1], [0], [0], [1], [0, 0, 1, 1], [], []>} : vector<128x128xbf16>, vector<128x512xbf16>, vector<128x512xf32> -> vector<128x512xf32>
    %99 = arith.addf %93, %98 : vector<128x512xf32>
    %c0_115 = arith.constant 0 : index
    %c1_116 = arith.constant 1 : index
    %c0_117 = arith.constant 0 : index
    %c0_118 = arith.constant 0 : index
    %100 = vector.load %arg11[%c0_115, %c1_116, %c0_117, %c0_118] : memref<2x10x10x128xbf16, #tpu.memory_space<vmem>>, vector<2x8x8x128xbf16>
    %101 = vector.shape_cast %100 : vector<2x8x8x128xbf16> to vector<128x128xbf16>
    %c3_119 = arith.constant 3 : index
    %c0_120 = arith.constant 0 : index
    %c0_121 = arith.constant 0 : index
    %102 = vector.load %arg5[%c3_119, %c0_120, %c0_121] : memref<9x128x512xbf16, #tpu.memory_space<vmem>>, vector<1x128x512xbf16>
    %103 = vector.shape_cast %102 : vector<1x128x512xbf16> to vector<128x512xbf16>
    %cst_122 = arith.constant dense<0.000000e+00> : vector<128x512xf32>
    %104 = tpu.matmul %101, %103, %cst_122 {dimension_numbers = #tpu.dot_dimension_numbers<[1], [0], [0], [1], [0, 0, 1, 1], [], []>} : vector<128x128xbf16>, vector<128x512xbf16>, vector<128x512xf32> -> vector<128x512xf32>
    %105 = arith.addf %99, %104 : vector<128x512xf32>
    %c0_123 = arith.constant 0 : index
    %c1_124 = arith.constant 1 : index
    %c1_125 = arith.constant 1 : index
    %c0_126 = arith.constant 0 : index
    %106 = vector.load %arg11[%c0_123, %c1_124, %c1_125, %c0_126] : memref<2x10x10x128xbf16, #tpu.memory_space<vmem>>, vector<2x8x8x128xbf16>
    %107 = vector.shape_cast %106 : vector<2x8x8x128xbf16> to vector<128x128xbf16>
    %c4_127 = arith.constant 4 : index
    %c0_128 = arith.constant 0 : index
    %c0_129 = arith.constant 0 : index
    %108 = vector.load %arg5[%c4_127, %c0_128, %c0_129] : memref<9x128x512xbf16, #tpu.memory_space<vmem>>, vector<1x128x512xbf16>
    %109 = vector.shape_cast %108 : vector<1x128x512xbf16> to vector<128x512xbf16>
    %cst_130 = arith.constant dense<0.000000e+00> : vector<128x512xf32>
    %110 = tpu.matmul %107, %109, %cst_130 {dimension_numbers = #tpu.dot_dimension_numbers<[1], [0], [0], [1], [0, 0, 1, 1], [], []>} : vector<128x128xbf16>, vector<128x512xbf16>, vector<128x512xf32> -> vector<128x512xf32>
    %111 = arith.addf %105, %110 : vector<128x512xf32>
    %c0_131 = arith.constant 0 : index
    %c1_132 = arith.constant 1 : index
    %c2_133 = arith.constant 2 : index
    %c0_134 = arith.constant 0 : index
    %112 = vector.load %arg11[%c0_131, %c1_132, %c2_133, %c0_134] : memref<2x10x10x128xbf16, #tpu.memory_space<vmem>>, vector<2x8x8x128xbf16>
    %113 = vector.shape_cast %112 : vector<2x8x8x128xbf16> to vector<128x128xbf16>
    %c5_135 = arith.constant 5 : index
    %c0_136 = arith.constant 0 : index
    %c0_137 = arith.constant 0 : index
    %114 = vector.load %arg5[%c5_135, %c0_136, %c0_137] : memref<9x128x512xbf16, #tpu.memory_space<vmem>>, vector<1x128x512xbf16>
    %115 = vector.shape_cast %114 : vector<1x128x512xbf16> to vector<128x512xbf16>
    %cst_138 = arith.constant dense<0.000000e+00> : vector<128x512xf32>
    %116 = tpu.matmul %113, %115, %cst_138 {dimension_numbers = #tpu.dot_dimension_numbers<[1], [0], [0], [1], [0, 0, 1, 1], [], []>} : vector<128x128xbf16>, vector<128x512xbf16>, vector<128x512xf32> -> vector<128x512xf32>
    %117 = arith.addf %111, %116 : vector<128x512xf32>
    %c0_139 = arith.constant 0 : index
    %c2_140 = arith.constant 2 : index
    %c0_141 = arith.constant 0 : index
    %c0_142 = arith.constant 0 : index
    %118 = vector.load %arg11[%c0_139, %c2_140, %c0_141, %c0_142] : memref<2x10x10x128xbf16, #tpu.memory_space<vmem>>, vector<2x8x8x128xbf16>
    %119 = vector.shape_cast %118 : vector<2x8x8x128xbf16> to vector<128x128xbf16>
    %c6_143 = arith.constant 6 : index
    %c0_144 = arith.constant 0 : index
    %c0_145 = arith.constant 0 : index
    %120 = vector.load %arg5[%c6_143, %c0_144, %c0_145] : memref<9x128x512xbf16, #tpu.memory_space<vmem>>, vector<1x128x512xbf16>
    %121 = vector.shape_cast %120 : vector<1x128x512xbf16> to vector<128x512xbf16>
    %cst_146 = arith.constant dense<0.000000e+00> : vector<128x512xf32>
    %122 = tpu.matmul %119, %121, %cst_146 {dimension_numbers = #tpu.dot_dimension_numbers<[1], [0], [0], [1], [0, 0, 1, 1], [], []>} : vector<128x128xbf16>, vector<128x512xbf16>, vector<128x512xf32> -> vector<128x512xf32>
    %123 = arith.addf %117, %122 : vector<128x512xf32>
    %c0_147 = arith.constant 0 : index
    %c2_148 = arith.constant 2 : index
    %c1_149 = arith.constant 1 : index
    %c0_150 = arith.constant 0 : index
    %124 = vector.load %arg11[%c0_147, %c2_148, %c1_149, %c0_150] : memref<2x10x10x128xbf16, #tpu.memory_space<vmem>>, vector<2x8x8x128xbf16>
    %125 = vector.shape_cast %124 : vector<2x8x8x128xbf16> to vector<128x128xbf16>
    %c7_151 = arith.constant 7 : index
    %c0_152 = arith.constant 0 : index
    %c0_153 = arith.constant 0 : index
    %126 = vector.load %arg5[%c7_151, %c0_152, %c0_153] : memref<9x128x512xbf16, #tpu.memory_space<vmem>>, vector<1x128x512xbf16>
    %127 = vector.shape_cast %126 : vector<1x128x512xbf16> to vector<128x512xbf16>
    %cst_154 = arith.constant dense<0.000000e+00> : vector<128x512xf32>
    %128 = tpu.matmul %125, %127, %cst_154 {dimension_numbers = #tpu.dot_dimension_numbers<[1], [0], [0], [1], [0, 0, 1, 1], [], []>} : vector<128x128xbf16>, vector<128x512xbf16>, vector<128x512xf32> -> vector<128x512xf32>
    %129 = arith.addf %123, %128 : vector<128x512xf32>
    %c0_155 = arith.constant 0 : index
    %c2_156 = arith.constant 2 : index
    %c2_157 = arith.constant 2 : index
    %c0_158 = arith.constant 0 : index
    %130 = vector.load %arg11[%c0_155, %c2_156, %c2_157, %c0_158] : memref<2x10x10x128xbf16, #tpu.memory_space<vmem>>, vector<2x8x8x128xbf16>
    %131 = vector.shape_cast %130 : vector<2x8x8x128xbf16> to vector<128x128xbf16>
    %c8_159 = arith.constant 8 : index
    %c0_160 = arith.constant 0 : index
    %c0_161 = arith.constant 0 : index
    %132 = vector.load %arg5[%c8_159, %c0_160, %c0_161] : memref<9x128x512xbf16, #tpu.memory_space<vmem>>, vector<1x128x512xbf16>
    %133 = vector.shape_cast %132 : vector<1x128x512xbf16> to vector<128x512xbf16>
    %cst_162 = arith.constant dense<0.000000e+00> : vector<128x512xf32>
    %134 = tpu.matmul %131, %133, %cst_162 {dimension_numbers = #tpu.dot_dimension_numbers<[1], [0], [0], [1], [0, 0, 1, 1], [], []>} : vector<128x128xbf16>, vector<128x512xbf16>, vector<128x512xf32> -> vector<128x512xf32>
    %135 = arith.addf %129, %134 : vector<128x512xf32>
    %c0_163 = arith.constant 0 : index
    %c0_164 = arith.constant 0 : index
    %136 = vector.load %arg6[%c0_163, %c0_164] : memref<1x512xf32, #tpu.memory_space<vmem>>, vector<1x512xf32>
    %137 = vector.broadcast %136 : vector<1x512xf32> to vector<128x512xf32>
    %138 = arith.addf %135, %137 : vector<128x512xf32>
    %139 = arith.truncf %138 : vector<128x512xf32> to vector<128x512xbf16>
    %c0_165 = arith.constant 0 : index
    %c0_166 = arith.constant 0 : index
    %140 = vector.load %arg7[%c0_165, %c0_166] : memref<512x128xbf16, #tpu.memory_space<vmem>>, vector<512x128xbf16>
    %cst_167 = arith.constant dense<0.000000e+00> : vector<128x128xf32>
    %141 = tpu.matmul %139, %140, %cst_167 {dimension_numbers = #tpu.dot_dimension_numbers<[1], [0], [0], [1], [0, 0, 1, 1], [], []>} : vector<128x512xbf16>, vector<512x128xbf16>, vector<128x128xf32> -> vector<128x128xf32>
    %c0_168 = arith.constant 0 : index
    %c0_169 = arith.constant 0 : index
    %142 = vector.load %arg8[%c0_168, %c0_169] : memref<1x128xf32, #tpu.memory_space<vmem>>, vector<1x128xf32>
    %143 = vector.broadcast %142 : vector<1x128xf32> to vector<128x128xf32>
    %144 = arith.addf %141, %143 : vector<128x128xf32>
    %145 = vector.extract_strided_slice %144 {offsets = [0, 18], sizes = [128, 18], strides = [1, 1]} : vector<128x128xf32> to vector<128x18xf32>
    %146 = vector.extract_strided_slice %145 {offsets = [0, 0], sizes = [128, 9], strides = [1, 1]} : vector<128x18xf32> to vector<128x9xf32>
    %147 = vector.extract_strided_slice %145 {offsets = [0, 9], sizes = [128, 9], strides = [1, 1]} : vector<128x18xf32> to vector<128x9xf32>
    %148 = arith.maximumf %146, %147 : vector<128x9xf32>
    %149 = arith.subf %146, %148 : vector<128x9xf32>
    %150 = math.exp %149 : vector<128x9xf32>
    %151 = arith.subf %147, %148 : vector<128x9xf32>
    %152 = math.exp %151 : vector<128x9xf32>
    %153 = arith.addf %150, %152 : vector<128x9xf32>
    %cst_170 = arith.constant 1.000000e+00 : f32
    %154 = vector.broadcast %cst_170 : f32 to vector<128x9xf32>
    %155 = arith.divf %154, %153 : vector<128x9xf32>
    %156 = arith.mulf %150, %155 : vector<128x9xf32>
    %157 = arith.mulf %152, %155 : vector<128x9xf32>
    %158 = tpu.concatenate %156, %157 in 1 : vector<128x9xf32>, vector<128x9xf32> -> vector<128x18xf32>
    %159 = vector.extract_strided_slice %144 {offsets = [0, 18], sizes = [128, 110], strides = [1, 1]} : vector<128x128xf32> to vector<128x110xf32>
    %160 = tpu.concatenate %158, %159 in 1 : vector<128x18xf32>, vector<128x110xf32> -> vector<128x128xf32>
    %161 = vector.shape_cast %160 : vector<128x128xf32> to vector<2x8x8x128xf32>
    %c0_171 = arith.constant 0 : index
    %c0_172 = arith.constant 0 : index
    %c0_173 = arith.constant 0 : index
    %c0_174 = arith.constant 0 : index
    %162 = vector.load %arg9[%c0_171, %c0_172, %c0_173, %c0_174] : memref<2x8x8x128xf32, #tpu.memory_space<vmem>>, vector<2x8x8x128xf32>
    tpu.vector_store %arg9[%c0_171, %c0_172, %c0_173, %c0_174], %161 {strides = array<i32>} : memref<2x8x8x128xf32, #tpu.memory_space<vmem>>, vector<2x8x8x128xf32>,
    return
  }
  func.func @transform_0(%arg0: i32) -> (i32, i32, i32, i32) {
    %c0_i32 = arith.constant 0 : i32
    %c0_i32_0 = arith.constant 0 : i32
    %c0_i32_1 = arith.constant 0 : i32
    %c0_i32_2 = arith.constant 0 : i32
    %c0_i32_3 = arith.constant 0 : i32
    return %c0_i32, %c0_i32_0, %c0_i32_1, %c0_i32_2 : i32, i32, i32, i32
  }
  func.func @transform_1(%arg0: i32) -> (i32, i32) {
    %c0_i32 = arith.constant 0 : i32
    %c0_i32_0 = arith.constant 0 : i32
    %c0_i32_1 = arith.constant 0 : i32
    return %c0_i32, %c0_i32_0 : i32, i32
  }
  func.func @transform_2(%arg0: i32) -> (i32, i32, i32) {
    %c0_i32 = arith.constant 0 : i32
    %c0_i32_0 = arith.constant 0 : i32
    %c0_i32_1 = arith.constant 0 : i32
    %c0_i32_2 = arith.constant 0 : i32
    return %c0_i32, %c0_i32_0, %c0_i32_1 : i32, i32, i32
  }
  func.func @transform_3(%arg0: i32) -> (i32, i32) {
    %c0_i32 = arith.constant 0 : i32
    %c0_i32_0 = arith.constant 0 : i32
    %c0_i32_1 = arith.constant 0 : i32
    return %c0_i32, %c0_i32_0 : i32, i32
  }
  func.func @transform_4(%arg0: i32) -> (i32, i32, i32) {
    %c0_i32 = arith.constant 0 : i32
    %c0_i32_0 = arith.constant 0 : i32
    %c0_i32_1 = arith.constant 0 : i32
    %c0_i32_2 = arith.constant 0 : i32
    return %c0_i32, %c0_i32_0, %c0_i32_1 : i32, i32, i32
  }
  func.func @transform_5(%arg0: i32) -> (i32, i32) {
    %c0_i32 = arith.constant 0 : i32
    %c0_i32_0 = arith.constant 0 : i32
    %c0_i32_1 = arith.constant 0 : i32
    return %c0_i32, %c0_i32_0 : i32, i32
  }
  func.func @transform_6(%arg0: i32) -> (i32, i32) {
    %c0_i32 = arith.constant 0 : i32
    %c0_i32_0 = arith.constant 0 : i32
    %c0_i32_1 = arith.constant 0 : i32
    return %c0_i32, %c0_i32_0 : i32, i32
  }
  func.func @transform_7(%arg0: i32) -> (i32, i32) {
    %c0_i32 = arith.constant 0 : i32
    %c0_i32_0 = arith.constant 0 : i32
    %c0_i32_1 = arith.constant 0 : i32
    return %c0_i32, %c0_i32_0 : i32, i32
  }
  func.func @transform_8(%arg0: i32) -> (i32, i32, i32, i32) {
    %c0_i32 = arith.constant 0 : i32
    %c0_i32_0 = arith.constant 0 : i32
    %c0_i32_1 = arith.constant 0 : i32
    %c0_i32_2 = arith.constant 0 : i32
    %c0_i32_3 = arith.constant 0 : i32
    return %c0_i32, %c0_i32_0, %c0_i32_1, %c0_i32_2 : i32, i32, i32, i32
  }
}

</mosaic_0001>

<llo_original>
// kernel: tdid_forward.1
$region0: #{tdid_forward.1}
  #allocation0 [shape = 'u32[]', space=smem, size = 0x4, offset = 0x4, fixed_abs, tag = 'smem constant byte address 0x4 - core index']
  #allocation1 [shape = 'u32[72,128]{1,0:T(1,128)}', space=vmem, size = 0x9000, scoped, tag = 'internal scratch']
  #allocation2 [shape = 'bf16[2,10,10,128]{3,2,1,0:T(8,128)(2,1)}', space=vmem, size = 0x14000, scoped, tag = 'scratch operand']
  #allocation3 [shape = 'bf16[2,10,10,128]{3,2,1,0:T(8,128)(2,1)}', space=vmem, size = 0x14000, scoped, tag = 'scratch operand']
  %s0 = inlined_call_operand.vmem [shape: f32[2,8,8,32], index: 0, kind: input, shape index: {}]
  %s1 = inlined_call_operand.vmem [shape: f32[2,128], index: 1, kind: input, shape index: {}]
  %s2 = inlined_call_operand.vmem [shape: bf16[9,128,128], index: 2, kind: input, shape index: {}]
  %s3 = inlined_call_operand.vmem [shape: f32[1,128], index: 3, kind: input, shape index: {}]
  %s4 = inlined_call_operand.vmem [shape: bf16[9,128,512], index: 4, kind: input, shape index: {}]
  %s5 = inlined_call_operand.vmem [shape: f32[1,512], index: 5, kind: input, shape index: {}]
  %s6 = inlined_call_operand.vmem [shape: bf16[512,128], index: 6, kind: input, shape index: {}]
  %s7 = inlined_call_operand.vmem [shape: f32[1,128], index: 7, kind: input, shape index: {}]
  %s8 = inlined_call_operand.vmem [shape: f32[2,8,8,128], index: 8, kind: output, shape index: {}]
  %s9 = sld [smem:[#allocation0]]
  $region42: #{tdid_forward.1} parent=0
    _
  %s11 = ssub.s32 1, %s9
  %s12 = scalar_select 0, %s11, %s9
  // Predicated region
  $region2: #{tdid_forward.1} parent=0 // pred_check
    _
  $region3: #{tdid_forward.1} parent=0 // pred_check_branch
    %14 = sbr.rel (0) target = $region5
  $region4: #{tdid_forward.1} parent=0 // pred_region
    _
  $region5: #{tdid_forward.1} parent=0 // pred_fallthru
    _
  // Predicated region
  $region6: #{tdid_forward.1} parent=0 // pred_check
    _
  $region7: #{tdid_forward.1} parent=0 // pred_check_branch
    %16 = sbr.rel (0) target = $region9
  $region8: #{tdid_forward.1} parent=0 // pred_region
    _
  $region9: #{tdid_forward.1} parent=0 // pred_fallthru
    _
  // Predicated region
  $region10: #{tdid_forward.1} parent=0 // pred_check
    _
  $region11: #{tdid_forward.1} parent=0 // pred_check_branch
    %18 = sbr.rel (0) target = $region13
  $region12: #{tdid_forward.1} parent=0 // pred_region
    _
  $region13: #{tdid_forward.1} parent=0 // pred_fallthru
    _
  // Predicated region
  $region14: #{tdid_forward.1} parent=0 // pred_check
    _
  $region15: #{tdid_forward.1} parent=0 // pred_check_branch
    %20 = sbr.rel (0) target = $region17
  $region16: #{tdid_forward.1} parent=0 // pred_region
    _
  $region17: #{tdid_forward.1} parent=0 // pred_fallthru
    _
  // Predicated region
  $region18: #{tdid_forward.1} parent=0 // pred_check
    _
  $region19: #{tdid_forward.1} parent=0 // pred_check_branch
    %22 = sbr.rel (0) target = $region21
  $region20: #{tdid_forward.1} parent=0 // pred_region
    _
  $region21: #{tdid_forward.1} parent=0 // pred_fallthru
    _
  // Predicated region
  $region22: #{tdid_forward.1} parent=0 // pred_check
    _
  $region23: #{tdid_forward.1} parent=0 // pred_check_branch
    %24 = sbr.rel (0) target = $region25
  $region24: #{tdid_forward.1} parent=0 // pred_region
    _
  $region25: #{tdid_forward.1} parent=0 // pred_fallthru
    _
  // Predicated region
  $region26: #{tdid_forward.1} parent=0 // pred_check
    _
  $region27: #{tdid_forward.1} parent=0 // pred_check_branch
    %26 = sbr.rel (0) target = $region29
  $region28: #{tdid_forward.1} parent=0 // pred_region
    _
  $region29: #{tdid_forward.1} parent=0 // pred_fallthru
    _
  // Predicated region
  $region30: #{tdid_forward.1} parent=0 // pred_check
    _
  $region31: #{tdid_forward.1} parent=0 // pred_check_branch
    %28 = sbr.rel (0) target = $region33
  $region32: #{tdid_forward.1} parent=0 // pred_region
    _
  $region33: #{tdid_forward.1} parent=0 // pred_fallthru
    _
  %30 = vst [vmem:[#allocation2] sm:$0xf] 0
  %31 = vst [vmem:[#allocation2 + $0x4] sm:$0x1] 0
  %32 = vst [vmem:[#allocation2 + $0x8] sm:$0xf] 0
  %33 = vst [vmem:[#allocation2 + $0xc] sm:$0x1] 0
  %34 = vst [vmem:[#allocation2 + $0x10] sm:$0xf] 0
  %35 = vst [vmem:[#allocation2 + $0x14] sm:$0x1] 0
  %36 = vst [vmem:[#allocation2 + $0x18] sm:$0xf] 0
  %37 = vst [vmem:[#allocation2 + $0x1c] sm:$0x1] 0
  %38 = vst [vmem:[#allocation2 + $0x20] sm:$0xf] 0
  %39 = vst [vmem:[#allocation2 + $0x24] sm:$0x1] 0
  %40 = vst [vmem:[#allocation2 + $0x28] sm:$0xf] 0
  %41 = vst [vmem:[#allocation2 + $0x2c] sm:$0x1] 0
  %42 = vst [vmem:[#allocation2 + $0x30] sm:$0xf] 0
  %43 = vst [vmem:[#allocation2 + $0x34] sm:$0x1] 0
  %44 = vst [vmem:[#allocation2 + $0x38] sm:$0xf] 0
  %45 = vst [vmem:[#allocation2 + $0x3c] sm:$0x1] 0
  %46 = vst [vmem:[#allocation2 + $0x40] sm:$0xf] 0
  %47 = vst [vmem:[#allocation2 + $0x44] sm:$0x1] 0
  %48 = vst [vmem:[#allocation2 + $0x48] sm:$0xf] 0
  %49 = vst [vmem:[#allocation2 + $0x4c] sm:$0x1] 0
  %50 = vst [vmem:[#allocation2 + $0x50] sm:$0xf] 0
  %51 = vst [vmem:[#allocation2 + $0x54] sm:$0x1] 0
  %52 = vst [vmem:[#allocation2 + $0x58] sm:$0xf] 0
  %53 = vst [vmem:[#allocation2 + $0x5c] sm:$0x1] 0
  %54 = vst [vmem:[#allocation2 + $0x60] sm:$0xf] 0
  %55 = vst [vmem:[#allocation2 + $0x64] sm:$0x1] 0
  %56 = vst [vmem:[#allocation2 + $0x68] sm:$0xf] 0
  %57 = vst [vmem:[#allocation2 + $0x6c] sm:$0x1] 0
  %58 = vst [vmem:[#allocation2 + $0x70] sm:$0xf] 0
  %59 = vst [vmem:[#allocation2 + $0x74] sm:$0x1] 0
  %60 = vst [vmem:[#allocation2 + $0x78] sm:$0xf] 0
  %61 = vst [vmem:[#allocation2 + $0x7c] sm:$0x1] 0
  %62 = vst [vmem:[#allocation2 + $0x80] sm:$0xf] 0
  %63 = vst [vmem:[#allocation2 + $0x84] sm:$0x1] 0
  %64 = vst [vmem:[#allocation2 + $0x88] sm:$0xf] 0
  %65 = vst [vmem:[#allocation2 + $0x8c] sm:$0x1] 0
  %66 = vst [vmem:[#allocation2 + $0x90] sm:$0xf] 0
  %67 = vst [vmem:[#allocation2 + $0x94] sm:$0x1] 0
  %68 = vst [vmem:[#allocation2 + $0x98] sm:$0xf] 0
  %69 = vst [vmem:[#allocation2 + $0x9c] sm:$0x1] 0
  %70 = vst [vmem:[#allocation3] sm:$0xf] 0
  %71 = vst [vmem:[#allocation3 + $0x4] sm:$0x1] 0
  %72 = vst [vmem:[#allocation3 + $0x8] sm:$0xf] 0
  %73 = vst [vmem:[#allocation3 + $0xc] sm:$0x1] 0
  %74 = vst [vmem:[#allocation3 + $0x10] sm:$0xf] 0
  %75 = vst [vmem:[#allocation3 + $0x14] sm:$0x1] 0
  %76 = vst [vmem:[#allocation3 + $0x18] sm:$0xf] 0
  %77 = vst [vmem:[#allocation3 + $0x1c] sm:$0x1] 0
  %78 = vst [vmem:[#allocation3 + $0x20] sm:$0xf] 0
  %79 = vst [vmem:[#allocation3 + $0x24] sm:$0x1] 0
  %80 = vst [vmem:[#allocation3 + $0x28] sm:$0xf] 0
  %81 = vst [vmem:[#allocation3 + $0x2c] sm:$0x1] 0
  %82 = vst [vmem:[#allocation3 + $0x30] sm:$0xf] 0
  %83 = vst [vmem:[#allocation3 + $0x34] sm:$0x1] 0
  %84 = vst [vmem:[#allocation3 + $0x38] sm:$0xf] 0
  %85 = vst [vmem:[#allocation3 + $0x3c] sm:$0x1] 0
  %86 = vst [vmem:[#allocation3 + $0x40] sm:$0xf] 0
  %87 = vst [vmem:[#allocation3 + $0x44] sm:$0x1] 0
  %88 = vst [vmem:[#allocation3 + $0x48] sm:$0xf] 0
  %89 = vst [vmem:[#allocation3 + $0x4c] sm:$0x1] 0
  %90 = vst [vmem:[#allocation3 + $0x50] sm:$0xf] 0
  %91 = vst [vmem:[#allocation3 + $0x54] sm:$0x1] 0
  %92 = vst [vmem:[#allocation3 + $0x58] sm:$0xf] 0
  %93 = vst [vmem:[#allocation3 + $0x5c] sm:$0x1] 0
  %94 = vst [vmem:[#allocation3 + $0x60] sm:$0xf] 0
  %95 = vst [vmem:[#allocation3 + $0x64] sm:$0x1] 0
  %96 = vst [vmem:[#allocation3 + $0x68] sm:$0xf] 0
  %97 = vst [vmem:[#allocation3 + $0x6c] sm:$0x1] 0
  %98 = vst [vmem:[#allocation3 + $0x70] sm:$0xf] 0
  %99 = vst [vmem:[#allocation3 + $0x74] sm:$0x1] 0
  %100 = vst [vmem:[#allocation3 + $0x78] sm:$0xf] 0
  %101 = vst [vmem:[#allocation3 + $0x7c] sm:$0x1] 0
  %102 = vst [vmem:[#allocation3 + $0x80] sm:$0xf] 0
  %103 = vst [vmem:[#allocation3 + $0x84] sm:$0x1] 0
  %104 = vst [vmem:[#allocation3 + $0x88] sm:$0xf] 0
  %105 = vst [vmem:[#allocation3 + $0x8c] sm:$0x1] 0
  %106 = vst [vmem:[#allocation3 + $0x90] sm:$0xf] 0
  %107 = vst [vmem:[#allocation3 + $0x94] sm:$0x1] 0
  %108 = vst [vmem:[#allocation3 + $0x98] sm:$0xf] 0
  %109 = vst [vmem:[#allocation3 + $0x9c] sm:$0x1] 0
  %v110 = vld [vmem:[%s0] sm:$0xff]
  %v111 = vld [vmem:[%s0 + $0x8] sm:$0xff]
  %v112 = vld [vmem:[%s0 + $0x10] sm:$0xff]
  %v113 = vld [vmem:[%s0 + $0x18] sm:$0xff]
  %v114 = vld [vmem:[%s0 + $0x20] sm:$0xff]
  %v115 = vld [vmem:[%s0 + $0x28] sm:$0xff]
  %v116 = vld [vmem:[%s0 + $0x30] sm:$0xff]
  %v117 = vld [vmem:[%s0 + $0x38] sm:$0xff]
  %v118 = vld [vmem:[%s0 + $0x40] sm:$0xff]
  %v119 = vld [vmem:[%s0 + $0x48] sm:$0xff]
  %v120 = vld [vmem:[%s0 + $0x50] sm:$0xff]
  %v121 = vld [vmem:[%s0 + $0x58] sm:$0xff]
  %v122 = vld [vmem:[%s0 + $0x60] sm:$0xff]
  %v123 = vld [vmem:[%s0 + $0x68] sm:$0xff]
  %v124 = vld [vmem:[%s0 + $0x70] sm:$0xff]
  %v125 = vld [vmem:[%s0 + $0x78] sm:$0xff]
  %142 = vrot.lane.b32.xlu0 %v110, 32
  %v143 = vpop.permute.xlu0 %142
  %144 = vrot.lane.b32.xlu0 %v111, 32
  %v145 = vpop.permute.xlu0 %144
  %146 = vrot.lane.b32.xlu0 %v112, 32
  %v147 = vpop.permute.xlu0 %146
  %148 = vrot.lane.b32.xlu0 %v113, 32
  %v149 = vpop.permute.xlu0 %148
  %150 = vrot.lane.b32.xlu0 %v114, 32
  %v151 = vpop.permute.xlu0 %150
  %152 = vrot.lane.b32.xlu0 %v115, 32
  %v153 = vpop.permute.xlu0 %152
  %154 = vrot.lane.b32.xlu0 %v116, 32
  %v155 = vpop.permute.xlu0 %154
  %156 = vrot.lane.b32.xlu0 %v117, 32
  %v157 = vpop.permute.xlu0 %156
  %158 = vrot.lane.b32.xlu0 %v118, 32
  %v159 = vpop.permute.xlu0 %158
  %160 = vrot.lane.b32.xlu0 %v119, 32
  %v161 = vpop.permute.xlu0 %160
  %162 = vrot.lane.b32.xlu0 %v120, 32
  %v163 = vpop.permute.xlu0 %162
  %164 = vrot.lane.b32.xlu0 %v121, 32
  %v165 = vpop.permute.xlu0 %164
  %166 = vrot.lane.b32.xlu0 %v122, 32
  %v167 = vpop.permute.xlu0 %166
  %168 = vrot.lane.b32.xlu0 %v123, 32
  %v169 = vpop.permute.xlu0 %168
  %170 = vrot.lane.b32.xlu0 %v124, 32
  %v171 = vpop.permute.xlu0 %170
  %172 = vrot.lane.b32.xlu0 %v125, 32
  %v173 = vpop.permute.xlu0 %172
  %190 = vrot.lane.b32.xlu0 %v110, 64
  %v191 = vpop.permute.xlu0 %190
  %192 = vrot.lane.b32.xlu0 %v111, 64
  %v193 = vpop.permute.xlu0 %192
  %194 = vrot.lane.b32.xlu0 %v112, 64
  %v195 = vpop.permute.xlu0 %194
  %196 = vrot.lane.b32.xlu0 %v113, 64
  %v197 = vpop.permute.xlu0 %196
  %198 = vrot.lane.b32.xlu0 %v114, 64
  %v199 = vpop.permute.xlu0 %198
  %200 = vrot.lane.b32.xlu0 %v115, 64
  %v201 = vpop.permute.xlu0 %200
  %202 = vrot.lane.b32.xlu0 %v116, 64
  %v203 = vpop.permute.xlu0 %202
  %204 = vrot.lane.b32.xlu0 %v117, 64
  %v205 = vpop.permute.xlu0 %204
  %206 = vrot.lane.b32.xlu0 %v118, 64
  %v207 = vpop.permute.xlu0 %206
  %208 = vrot.lane.b32.xlu0 %v119, 64
  %v209 = vpop.permute.xlu0 %208
  %210 = vrot.lane.b32.xlu0 %v120, 64
  %v211 = vpop.permute.xlu0 %210
  %212 = vrot.lane.b32.xlu0 %v121, 64
  %v213 = vpop.permute.xlu0 %212
  %214 = vrot.lane.b32.xlu0 %v122, 64
  %v215 = vpop.permute.xlu0 %214
  %216 = vrot.lane.b32.xlu0 %v123, 64
  %v217 = vpop.permute.xlu0 %216
  %218 = vrot.lane.b32.xlu0 %v124, 64
  %v219 = vpop.permute.xlu0 %218
  %220 = vrot.lane.b32.xlu0 %v125, 64
  %v221 = vpop.permute.xlu0 %220
  %238 = vrot.lane.b32.xlu0 %v110, 96
  %v239 = vpop.permute.xlu0 %238
  %240 = vrot.lane.b32.xlu0 %v111, 96
  %v241 = vpop.permute.xlu0 %240
  %242 = vrot.lane.b32.xlu0 %v112, 96
  %v243 = vpop.permute.xlu0 %242
  %244 = vrot.lane.b32.xlu0 %v113, 96
  %v245 = vpop.permute.xlu0 %244
  %246 = vrot.lane.b32.xlu0 %v114, 96
  %v247 = vpop.permute.xlu0 %246
  %248 = vrot.lane.b32.xlu0 %v115, 96
  %v249 = vpop.permute.xlu0 %248
  %250 = vrot.lane.b32.xlu0 %v116, 96
  %v251 = vpop.permute.xlu0 %250
  %252 = vrot.lane.b32.xlu0 %v117, 96
  %v253 = vpop.permute.xlu0 %252
  %254 = vrot.lane.b32.xlu0 %v118, 96
  %v255 = vpop.permute.xlu0 %254
  %256 = vrot.lane.b32.xlu0 %v119, 96
  %v257 = vpop.permute.xlu0 %256
  %258 = vrot.lane.b32.xlu0 %v120, 96
  %v259 = vpop.permute.xlu0 %258
  %260 = vrot.lane.b32.xlu0 %v121, 96
  %v261 = vpop.permute.xlu0 %260
  %262 = vrot.lane.b32.xlu0 %v122, 96
  %v263 = vpop.permute.xlu0 %262
  %264 = vrot.lane.b32.xlu0 %v123, 96
  %v265 = vpop.permute.xlu0 %264
  %266 = vrot.lane.b32.xlu0 %v124, 96
  %v267 = vpop.permute.xlu0 %266
  %268 = vrot.lane.b32.xlu0 %v125, 96
  %v269 = vpop.permute.xlu0 %268
  %vm286 = vcmask 261120
  %v287 = vsel %vm286, %v110, %v143
  %v288 = vsel %vm286, %v111, %v145
  %v289 = vsel %vm286, %v112, %v147
  %v290 = vsel %vm286, %v113, %v149
  %v291 = vsel %vm286, %v114, %v151
  %v292 = vsel %vm286, %v115, %v153
  %v293 = vsel %vm286, %v116, %v155
  %v294 = vsel %vm286, %v117, %v157
  %v295 = vsel %vm286, %v118, %v159
  %v296 = vsel %vm286, %v119, %v161
  %v297 = vsel %vm286, %v120, %v163
  %v298 = vsel %vm286, %v121, %v165
  %v299 = vsel %vm286, %v122, %v167
  %v300 = vsel %vm286, %v123, %v169
  %v301 = vsel %vm286, %v124, %v171
  %v302 = vsel %vm286, %v125, %v173
  %vm303 = vcmask 523264
  %v304 = vsel %vm303, %v287, %v191
  %v305 = vsel %vm303, %v288, %v193
  %v306 = vsel %vm303, %v289, %v195
  %v307 = vsel %vm303, %v290, %v197
  %v308 = vsel %vm303, %v291, %v199
  %v309 = vsel %vm303, %v292, %v201
  %v310 = vsel %vm303, %v293, %v203
  %v311 = vsel %vm303, %v294, %v205
  %v312 = vsel %vm303, %v295, %v207
  %v313 = vsel %vm303, %v296, %v209
  %v314 = vsel %vm303, %v297, %v211
  %v315 = vsel %vm303, %v298, %v213
  %v316 = vsel %vm303, %v299, %v215
  %v317 = vsel %vm303, %v300, %v217
  %v318 = vsel %vm303, %v301, %v219
  %v319 = vsel %vm303, %v302, %v221
  %vm320 = vcmask 785408
  %v321 = vsel %vm320, %v304, %v239
  %v322 = vsel %vm320, %v305, %v241
  %v323 = vsel %vm320, %v306, %v243
  %v324 = vsel %vm320, %v307, %v245
  %v325 = vsel %vm320, %v308, %v247
  %v326 = vsel %vm320, %v309, %v249
  %v327 = vsel %vm320, %v310, %v251
  %v328 = vsel %vm320, %v311, %v253
  %v329 = vsel %vm320, %v312, %v255
  %v330 = vsel %vm320, %v313, %v257
  %v331 = vsel %vm320, %v314, %v259
  %v332 = vsel %vm320, %v315, %v261
  %v333 = vsel %vm320, %v316, %v263
  %v334 = vsel %vm320, %v317, %v265
  %v335 = vsel %vm320, %v318, %v267
  %v336 = vsel %vm320, %v319, %v269
  %v337 = vld [vmem:[%s1] sm:$0x3]
  %v339 = vrot.slane %v337, 1
  %v340 = vlaneseq
  %v341 = vand.u32 %v340, 127
  %vm342 = vcmp.lt.s32.totalorder %v341, 64
  %v343 = vperm.slane %v337, 0
  %v344 = vperm.slane %v339, 0
  %v347 = vmul.f32 %v321, %v343
  %v348 = vmul.f32 %v322, %v343
  %v349 = vmul.f32 %v323, %v343
  %v350 = vmul.f32 %v324, %v343
  %v351 = vmul.f32 %v325, %v343
  %v352 = vmul.f32 %v326, %v343
  %v353 = vmul.f32 %v327, %v343
  %v354 = vmul.f32 %v328, %v343
  %v355 = vmul.f32 %v329, %v344
  %v356 = vmul.f32 %v330, %v344
  %v357 = vmul.f32 %v331, %v344
  %v358 = vmul.f32 %v332, %v344
  %v359 = vmul.f32 %v333, %v344
  %v360 = vmul.f32 %v334, %v344
  %v361 = vmul.f32 %v335, %v344
  %v362 = vmul.f32 %v336, %v344
  %v363 = vsub.f32 %v321, %v343
  %v364 = vsub.f32 %v322, %v343
  %v365 = vsub.f32 %v323, %v343
  %v366 = vsub.f32 %v324, %v343
  %v367 = vsub.f32 %v325, %v343
  %v368 = vsub.f32 %v326, %v343
  %v369 = vsub.f32 %v327, %v343
  %v370 = vsub.f32 %v328, %v343
  %v371 = vsub.f32 %v329, %v344
  %v372 = vsub.f32 %v330, %v344
  %v373 = vsub.f32 %v331, %v344
  %v374 = vsub.f32 %v332, %v344
  %v375 = vsub.f32 %v333, %v344
  %v376 = vsub.f32 %v334, %v344
  %v377 = vsub.f32 %v335, %v344
  %v378 = vsub.f32 %v336, %v344
  %v379 = vsel %vm342, %v347, %v363
  %v380 = vsel %vm342, %v348, %v364
  %v381 = vsel %vm342, %v349, %v365
  %v382 = vsel %vm342, %v350, %v366
  %v383 = vsel %vm342, %v351, %v367
  %v384 = vsel %vm342, %v352, %v368
  %v385 = vsel %vm342, %v353, %v369
  %v386 = vsel %vm342, %v354, %v370
  %v387 = vsel %vm342, %v355, %v371
  %v388 = vsel %vm342, %v356, %v372
  %v389 = vsel %vm342, %v357, %v373
  %v390 = vsel %vm342, %v358, %v374
  %v391 = vsel %vm342, %v359, %v375
  %v392 = vsel %vm342, %v360, %v376
  %v393 = vsel %vm342, %v361, %v377
  %v394 = vsel %vm342, %v362, %v378
  %v395 = vpack.c.bf16 %v379, %v379
  %v396 = vpack.c.bf16 %v380, %v380
  %v397 = vpack.c.bf16 %v381, %v381
  %v398 = vpack.c.bf16 %v382, %v382
  %v399 = vpack.c.bf16 %v383, %v383
  %v400 = vpack.c.bf16 %v384, %v384
  %v401 = vpack.c.bf16 %v385, %v385
  %v402 = vpack.c.bf16 %v386, %v386
  %v403 = vpack.c.bf16 %v387, %v387
  %v404 = vpack.c.bf16 %v388, %v388
  %v405 = vpack.c.bf16 %v389, %v389
  %v406 = vpack.c.bf16 %v390, %v390
  %v407 = vpack.c.bf16 %v391, %v391
  %v408 = vpack.c.bf16 %v392, %v392
  %v409 = vpack.c.bf16 %v393, %v393
  %v410 = vpack.c.bf16 %v394, %v394
  %v412 = vshrl.u32 %v395, 16
  %v414 = vrot.slane %v412, 7
  %v415 = vshll.u32 %v395, 16
  %v417 = vor.u32 %v414, %v415
  %v418 = vrot.slane %v414, 4
  %v420 = vshrl.u32 %v396, 16
  %v422 = vrot.slane %v420, 7
  %v423 = vshll.u32 %v396, 16
  %v425 = vor.u32 %v422, %v423
  %v426 = vrot.slane %v422, 4
  %v428 = vshrl.u32 %v397, 16
  %v430 = vrot.slane %v428, 7
  %v431 = vshll.u32 %v397, 16
  %v433 = vor.u32 %v430, %v431
  %v434 = vrot.slane %v430, 4
  %v436 = vshrl.u32 %v398, 16
  %v438 = vrot.slane %v436, 7
  %v439 = vshll.u32 %v398, 16
  %v441 = vor.u32 %v438, %v439
  %v442 = vrot.slane %v438, 4
  %v444 = vshrl.u32 %v399, 16
  %v446 = vrot.slane %v444, 7
  %v447 = vshll.u32 %v399, 16
  %v449 = vor.u32 %v446, %v447
  %v450 = vrot.slane %v446, 4
  %v452 = vshrl.u32 %v400, 16
  %v454 = vrot.slane %v452, 7
  %v455 = vshll.u32 %v400, 16
  %v457 = vor.u32 %v454, %v455
  %v458 = vrot.slane %v454, 4
  %v460 = vshrl.u32 %v401, 16
  %v462 = vrot.slane %v460, 7
  %v463 = vshll.u32 %v401, 16
  %v465 = vor.u32 %v462, %v463
  %v466 = vrot.slane %v462, 4
  %v468 = vshrl.u32 %v402, 16
  %v470 = vrot.slane %v468, 7
  %v471 = vshll.u32 %v402, 16
  %v473 = vor.u32 %v470, %v471
  %v474 = vrot.slane %v470, 4
  %v476 = vshrl.u32 %v403, 16
  %v478 = vrot.slane %v476, 7
  %v479 = vshll.u32 %v403, 16
  %v481 = vor.u32 %v478, %v479
  %v482 = vrot.slane %v478, 4
  %v484 = vshrl.u32 %v404, 16
  %v486 = vrot.slane %v484, 7
  %v487 = vshll.u32 %v404, 16
  %v489 = vor.u32 %v486, %v487
  %v490 = vrot.slane %v486, 4
  %v492 = vshrl.u32 %v405, 16
  %v494 = vrot.slane %v492, 7
  %v495 = vshll.u32 %v405, 16
  %v497 = vor.u32 %v494, %v495
  %v498 = vrot.slane %v494, 4
  %v500 = vshrl.u32 %v406, 16
  %v502 = vrot.slane %v500, 7
  %v503 = vshll.u32 %v406, 16
  %v505 = vor.u32 %v502, %v503
  %v506 = vrot.slane %v502, 4
  %v508 = vshrl.u32 %v407, 16
  %v510 = vrot.slane %v508, 7
  %v511 = vshll.u32 %v407, 16
  %v513 = vor.u32 %v510, %v511
  %v514 = vrot.slane %v510, 4
  %v516 = vshrl.u32 %v408, 16
  %v518 = vrot.slane %v516, 7
  %v519 = vshll.u32 %v408, 16
  %v521 = vor.u32 %v518, %v519
  %v522 = vrot.slane %v518, 4
  %v524 = vshrl.u32 %v409, 16
  %v526 = vrot.slane %v524, 7
  %v527 = vshll.u32 %v409, 16
  %v529 = vor.u32 %v526, %v527
  %v530 = vrot.slane %v526, 4
  %v532 = vshrl.u32 %v410, 16
  %v534 = vrot.slane %v532, 7
  %v535 = vshll.u32 %v410, 16
  %v537 = vor.u32 %v534, %v535
  %v538 = vrot.slane %v534, 4
  %s571 = scalar_lea.vmem [#allocation2], 8
  %vm572 = vcmask 1043456
  %vm573 = vsmask.f32 7938
  %vm574 = vmand %vm572, %vm573
  %v575 = vld [vmem:[%s571] sm:$0xf]
  %v576 = vsel %vm574, %v417, %v575
  %577 = vst [vmem:[%s571] sm:$0xf] %v576
  %vm578 = vcmask 1040384
  %vm579 = vsmask.f32 256
  %vm580 = vmand %vm578, %vm579
  %v581 = vld [vmem:[%s571 + $0x4] sm:$0x1]
  %v582 = vsel %vm580, %v418, %v581
  %583 = vst [vmem:[%s571 + $0x4] sm:$0x1] %v582
  %v584 = vld [vmem:[%s571 + $0x8] sm:$0xf]
  %v585 = vsel %vm574, %v425, %v584
  %586 = vst [vmem:[%s571 + $0x8] sm:$0xf] %v585
  %v587 = vld [vmem:[%s571 + $0xc] sm:$0x1]
  %v588 = vsel %vm580, %v426, %v587
  %589 = vst [vmem:[%s571 + $0xc] sm:$0x1] %v588
  %v590 = vld [vmem:[%s571 + $0x10] sm:$0xf]
  %v591 = vsel %vm574, %v433, %v590
  %592 = vst [vmem:[%s571 + $0x10] sm:$0xf] %v591
  %v593 = vld [vmem:[%s571 + $0x14] sm:$0x1]
  %v594 = vsel %vm580, %v434, %v593
  %595 = vst [vmem:[%s571 + $0x14] sm:$0x1] %v594
  %v596 = vld [vmem:[%s571 + $0x18] sm:$0xf]
  %v597 = vsel %vm574, %v441, %v596
  %598 = vst [vmem:[%s571 + $0x18] sm:$0xf] %v597
  %v599 = vld [vmem:[%s571 + $0x1c] sm:$0x1]
  %v600 = vsel %vm580, %v442, %v599
  %601 = vst [vmem:[%s571 + $0x1c] sm:$0x1] %v600
  %v602 = vld [vmem:[%s571 + $0x20] sm:$0xf]
  %v603 = vsel %vm574, %v449, %v602
  %604 = vst [vmem:[%s571 + $0x20] sm:$0xf] %v603
  %v605 = vld [vmem:[%s571 + $0x24] sm:$0x1]
  %v606 = vsel %vm580, %v450, %v605
  %607 = vst [vmem:[%s571 + $0x24] sm:$0x1] %v606
  %v608 = vld [vmem:[%s571 + $0x28] sm:$0xf]
  %v609 = vsel %vm574, %v457, %v608
  %610 = vst [vmem:[%s571 + $0x28] sm:$0xf] %v609
  %v611 = vld [vmem:[%s571 + $0x2c] sm:$0x1]
  %v612 = vsel %vm580, %v458, %v611
  %613 = vst [vmem:[%s571 + $0x2c] sm:$0x1] %v612
  %v614 = vld [vmem:[%s571 + $0x30] sm:$0xf]
  %v615 = vsel %vm574, %v465, %v614
  %616 = vst [vmem:[%s571 + $0x30] sm:$0xf] %v615
  %v617 = vld [vmem:[%s571 + $0x34] sm:$0x1]
  %v618 = vsel %vm580, %v466, %v617
  %619 = vst [vmem:[%s571 + $0x34] sm:$0x1] %v618
  %v620 = vld [vmem:[%s571 + $0x38] sm:$0xf]
  %v621 = vsel %vm574, %v473, %v620
  %622 = vst [vmem:[%s571 + $0x38] sm:$0xf] %v621
  %v623 = vld [vmem:[%s571 + $0x3c] sm:$0x1]
  %v624 = vsel %vm580, %v474, %v623
  %625 = vst [vmem:[%s571 + $0x3c] sm:$0x1] %v624
  %v626 = vld [vmem:[%s571 + $0x50] sm:$0xf]
  %v627 = vsel %vm574, %v481, %v626
  %628 = vst [vmem:[%s571 + $0x50] sm:$0xf] %v627
  %v629 = vld [vmem:[%s571 + $0x54] sm:$0x1]
  %v630 = vsel %vm580, %v482, %v629
  %631 = vst [vmem:[%s571 + $0x54] sm:$0x1] %v630
  %v632 = vld [vmem:[%s571 + $0x58] sm:$0xf]
  %v633 = vsel %vm574, %v489, %v632
  %634 = vst [vmem:[%s571 + $0x58] sm:$0xf] %v633
  %v635 = vld [vmem:[%s571 + $0x5c] sm:$0x1]
  %v636 = vsel %vm580, %v490, %v635
  %637 = vst [vmem:[%s571 + $0x5c] sm:$0x1] %v636
  %v638 = vld [vmem:[%s571 + $0x60] sm:$0xf]
  %v639 = vsel %vm574, %v497, %v638
  %640 = vst [vmem:[%s571 + $0x60] sm:$0xf] %v639
  %v641 = vld [vmem:[%s571 + $0x64] sm:$0x1]
  %v642 = vsel %vm580, %v498, %v641
  %643 = vst [vmem:[%s571 + $0x64] sm:$0x1] %v642
  %v644 = vld [vmem:[%s571 + $0x68] sm:$0xf]
  %v645 = vsel %vm574, %v505, %v644
  %646 = vst [vmem:[%s571 + $0x68] sm:$0xf] %v645
  %v647 = vld [vmem:[%s571 + $0x6c] sm:$0x1]
  %v648 = vsel %vm580, %v506, %v647
  %649 = vst [vmem:[%s571 + $0x6c] sm:$0x1] %v648
  %v650 = vld [vmem:[%s571 + $0x70] sm:$0xf]
  %v651 = vsel %vm574, %v513, %v650
  %652 = vst [vmem:[%s571 + $0x70] sm:$0xf] %v651
  %v653 = vld [vmem:[%s571 + $0x74] sm:$0x1]
  %v654 = vsel %vm580, %v514, %v653
  %655 = vst [vmem:[%s571 + $0x74] sm:$0x1] %v654
  %v656 = vld [vmem:[%s571 + $0x78] sm:$0xf]
  %v657 = vsel %vm574, %v521, %v656
  %658 = vst [vmem:[%s571 + $0x78] sm:$0xf] %v657
  %v659 = vld [vmem:[%s571 + $0x7c] sm:$0x1]
  %v660 = vsel %vm580, %v522, %v659
  %661 = vst [vmem:[%s571 + $0x7c] sm:$0x1] %v660
  %v662 = vld [vmem:[%s571 + $0x80] sm:$0xf]
  %v663 = vsel %vm574, %v529, %v662
  %664 = vst [vmem:[%s571 + $0x80] sm:$0xf] %v663
  %v665 = vld [vmem:[%s571 + $0x84] sm:$0x1]
  %v666 = vsel %vm580, %v530, %v665
  %667 = vst [vmem:[%s571 + $0x84] sm:$0x1] %v666
  %v668 = vld [vmem:[%s571 + $0x88] sm:$0xf]
  %v669 = vsel %vm574, %v537, %v668
  %670 = vst [vmem:[%s571 + $0x88] sm:$0xf] %v669
  %v671 = vld [vmem:[%s571 + $0x8c] sm:$0x1]
  %v672 = vsel %vm580, %v538, %v671
  %673 = vst [vmem:[%s571 + $0x8c] sm:$0x1] %v672
  %v674 = vld [vmem:[#allocation2] sm:$0xf]
  %v675 = vld [vmem:[#allocation2 + $0x8] sm:$0xf]
  %v676 = vld [vmem:[#allocation2 + $0x10] sm:$0xf]
  %v677 = vld [vmem:[#allocation2 + $0x18] sm:$0xf]
  %v678 = vld [vmem:[#allocation2 + $0x20] sm:$0xf]
  %v679 = vld [vmem:[#allocation2 + $0x28] sm:$0xf]
  %v680 = vld [vmem:[#allocation2 + $0x30] sm:$0xf]
  %v681 = vld [vmem:[#allocation2 + $0x38] sm:$0xf]
  %v682 = vld [vmem:[#allocation2 + $0x50] sm:$0xf]
  %v683 = vld [vmem:[#allocation2 + $0x58] sm:$0xf]
  %v684 = vld [vmem:[#allocation2 + $0x60] sm:$0xf]
  %v685 = vld [vmem:[#allocation2 + $0x68] sm:$0xf]
  %v686 = vld [vmem:[#allocation2 + $0x70] sm:$0xf]
  %v687 = vld [vmem:[#allocation2 + $0x78] sm:$0xf]
  %v688 = vld [vmem:[#allocation2 + $0x80] sm:$0xf]
  %v689 = vld [vmem:[#allocation2 + $0x88] sm:$0xf]
  %v690 = vld [vmem:[%s2] sm:$0xf]
  %v691 = vld [vmem:[%s2 + $0x4] sm:$0xf]
  %v692 = vld [vmem:[%s2 + $0x8] sm:$0xf]
  %v693 = vld [vmem:[%s2 + $0xc] sm:$0xf]
  %v694 = vld [vmem:[%s2 + $0x10] sm:$0xf]
  %v695 = vld [vmem:[%s2 + $0x14] sm:$0xf]
  %v696 = vld [vmem:[%s2 + $0x18] sm:$0xf]
  %v697 = vld [vmem:[%s2 + $0x1c] sm:$0xf]
  %v698 = vld [vmem:[%s2 + $0x20] sm:$0xf]
  %v699 = vld [vmem:[%s2 + $0x24] sm:$0xf]
  %v700 = vld [vmem:[%s2 + $0x28] sm:$0xf]
  %v701 = vld [vmem:[%s2 + $0x2c] sm:$0xf]
  %v702 = vld [vmem:[%s2 + $0x30] sm:$0xf]
  %v703 = vld [vmem:[%s2 + $0x34] sm:$0xf]
  %v704 = vld [vmem:[%s2 + $0x38] sm:$0xf]
  %v705 = vld [vmem:[%s2 + $0x3c] sm:$0xf]
  %v706 = vld [vmem:[#allocation2 + $0x4] sm:$0x1]
  %v707 = vld [vmem:[#allocation2 + $0xc] sm:$0x1]
  %v708 = vld [vmem:[#allocation2 + $0x14] sm:$0x1]
  %v709 = vld [vmem:[#allocation2 + $0x1c] sm:$0x1]
  %v710 = vld [vmem:[#allocation2 + $0x24] sm:$0x1]
  %v711 = vld [vmem:[#allocation2 + $0x2c] sm:$0x1]
  %v712 = vld [vmem:[#allocation2 + $0x34] sm:$0x1]
  %v713 = vld [vmem:[#allocation2 + $0x3c] sm:$0x1]
  %v714 = vld [vmem:[#allocation2 + $0x54] sm:$0x1]
  %v715 = vld [vmem:[#allocation2 + $0x5c] sm:$0x1]
  %v716 = vld [vmem:[#allocation2 + $0x64] sm:$0x1]
  %v717 = vld [vmem:[#allocation2 + $0x6c] sm:$0x1]
  %v718 = vld [vmem:[#allocation2 + $0x74] sm:$0x1]
  %v719 = vld [vmem:[#allocation2 + $0x7c] sm:$0x1]
  %v720 = vld [vmem:[#allocation2 + $0x84] sm:$0x1]
  %v721 = vld [vmem:[#allocation2 + $0x8c] sm:$0x1]
  %vm722 = vsmask.f32 3328
  %vm723 = vsmask.f32 7440
  %vm724 = vmor %vm722, %vm723
  %v726 = vshrl.u32 %v674, 16
  %v728 = vrot.slane %v726, 4
  %v729 = vshll.u32 %v674, 16
  %v731 = vrot.slane %v729, 5
  %v732 = vor.u32 %v728, %v731
  %v733 = vrot.slane %v732, 4
  %v735 = vshll.u32 %v706, 16
  %v737 = vrot.slane %v735, 5
  %v738 = vsel %vm724, %v733, %v737
  %v740 = vshrl.u32 %v675, 16
  %v742 = vrot.slane %v740, 4
  %v743 = vshll.u32 %v675, 16
  %v745 = vrot.slane %v743, 5
  %v746 = vor.u32 %v742, %v745
  %v747 = vrot.slane %v746, 4
  %v749 = vshll.u32 %v707, 16
  %v751 = vrot.slane %v749, 5
  %v752 = vsel %vm724, %v747, %v751
  %v754 = vshrl.u32 %v676, 16
  %v756 = vrot.slane %v754, 4
  %v757 = vshll.u32 %v676, 16
  %v759 = vrot.slane %v757, 5
  %v760 = vor.u32 %v756, %v759
  %v761 = vrot.slane %v760, 4
  %v763 = vshll.u32 %v708, 16
  %v765 = vrot.slane %v763, 5
  %v766 = vsel %vm724, %v761, %v765
  %v768 = vshrl.u32 %v677, 16
  %v770 = vrot.slane %v768, 4
  %v771 = vshll.u32 %v677, 16
  %v773 = vrot.slane %v771, 5
  %v774 = vor.u32 %v770, %v773
  %v775 = vrot.slane %v774, 4
  %v777 = vshll.u32 %v709, 16
  %v779 = vrot.slane %v777, 5
  %v780 = vsel %vm724, %v775, %v779
  %v782 = vshrl.u32 %v678, 16
  %v784 = vrot.slane %v782, 4
  %v785 = vshll.u32 %v678, 16
  %v787 = vrot.slane %v785, 5
  %v788 = vor.u32 %v784, %v787
  %v789 = vrot.slane %v788, 4
  %v791 = vshll.u32 %v710, 16
  %v793 = vrot.slane %v791, 5
  %v794 = vsel %vm724, %v789, %v793
  %v796 = vshrl.u32 %v679, 16
  %v798 = vrot.slane %v796, 4
  %v799 = vshll.u32 %v679, 16
  %v801 = vrot.slane %v799, 5
  %v802 = vor.u32 %v798, %v801
  %v803 = vrot.slane %v802, 4
  %v805 = vshll.u32 %v711, 16
  %v807 = vrot.slane %v805, 5
  %v808 = vsel %vm724, %v803, %v807
  %v810 = vshrl.u32 %v680, 16
  %v812 = vrot.slane %v810, 4
  %v813 = vshll.u32 %v680, 16
  %v815 = vrot.slane %v813, 5
  %v816 = vor.u32 %v812, %v815
  %v817 = vrot.slane %v816, 4
  %v819 = vshll.u32 %v712, 16
  %v821 = vrot.slane %v819, 5
  %v822 = vsel %vm724, %v817, %v821
  %v824 = vshrl.u32 %v681, 16
  %v826 = vrot.slane %v824, 4
  %v827 = vshll.u32 %v681, 16
  %v829 = vrot.slane %v827, 5
  %v830 = vor.u32 %v826, %v829
  %v831 = vrot.slane %v830, 4
  %v833 = vshll.u32 %v713, 16
  %v835 = vrot.slane %v833, 5
  %v836 = vsel %vm724, %v831, %v835
  %v838 = vshrl.u32 %v682, 16
  %v840 = vrot.slane %v838, 4
  %v841 = vshll.u32 %v682, 16
  %v843 = vrot.slane %v841, 5
  %v844 = vor.u32 %v840, %v843
  %v845 = vrot.slane %v844, 4
  %v847 = vshll.u32 %v714, 16
  %v849 = vrot.slane %v847, 5
  %v850 = vsel %vm724, %v845, %v849
  %v852 = vshrl.u32 %v683, 16
  %v854 = vrot.slane %v852, 4
  %v855 = vshll.u32 %v683, 16
  %v857 = vrot.slane %v855, 5
  %v858 = vor.u32 %v854, %v857
  %v859 = vrot.slane %v858, 4
  %v861 = vshll.u32 %v715, 16
  %v863 = vrot.slane %v861, 5
  %v864 = vsel %vm724, %v859, %v863
  %v866 = vshrl.u32 %v684, 16
  %v868 = vrot.slane %v866, 4
  %v869 = vshll.u32 %v684, 16
  %v871 = vrot.slane %v869, 5
  %v872 = vor.u32 %v868, %v871
  %v873 = vrot.slane %v872, 4
  %v875 = vshll.u32 %v716, 16
  %v877 = vrot.slane %v875, 5
  %v878 = vsel %vm724, %v873, %v877
  %v880 = vshrl.u32 %v685, 16
  %v882 = vrot.slane %v880, 4
  %v883 = vshll.u32 %v685, 16
  %v885 = vrot.slane %v883, 5
  %v886 = vor.u32 %v882, %v885
  %v887 = vrot.slane %v886, 4
  %v889 = vshll.u32 %v717, 16
  %v891 = vrot.slane %v889, 5
  %v892 = vsel %vm724, %v887, %v891
  %v894 = vshrl.u32 %v686, 16
  %v896 = vrot.slane %v894, 4
  %v897 = vshll.u32 %v686, 16
  %v899 = vrot.slane %v897, 5
  %v900 = vor.u32 %v896, %v899
  %v901 = vrot.slane %v900, 4
  %v903 = vshll.u32 %v718, 16
  %v905 = vrot.slane %v903, 5
  %v906 = vsel %vm724, %v901, %v905
  %v908 = vshrl.u32 %v687, 16
  %v910 = vrot.slane %v908, 4
  %v911 = vshll.u32 %v687, 16
  %v913 = vrot.slane %v911, 5
  %v914 = vor.u32 %v910, %v913
  %v915 = vrot.slane %v914, 4
  %v917 = vshll.u32 %v719, 16
  %v919 = vrot.slane %v917, 5
  %v920 = vsel %vm724, %v915, %v919
  %v922 = vshrl.u32 %v688, 16
  %v924 = vrot.slane %v922, 4
  %v925 = vshll.u32 %v688, 16
  %v927 = vrot.slane %v925, 5
  %v928 = vor.u32 %v924, %v927
  %v929 = vrot.slane %v928, 4
  %v931 = vshll.u32 %v720, 16
  %v933 = vrot.slane %v931, 5
  %v934 = vsel %vm724, %v929, %v933
  %v936 = vshrl.u32 %v689, 16
  %v938 = vrot.slane %v936, 4
  %v939 = vshll.u32 %v689, 16
  %v941 = vrot.slane %v939, 5
  %v942 = vor.u32 %v938, %v941
  %v943 = vrot.slane %v942, 4
  %v945 = vshll.u32 %v721, 16
  %v947 = vrot.slane %v945, 5
  %v948 = vsel %vm724, %v943, %v947
  %s949 = scalar_lea.vmem %s2, 64
  %v950 = vld [vmem:[%s949] sm:$0xf]
  %v951 = vld [vmem:[%s949 + $0x4] sm:$0xf]
  %v952 = vld [vmem:[%s949 + $0x8] sm:$0xf]
  %v953 = vld [vmem:[%s949 + $0xc] sm:$0xf]
  %v954 = vld [vmem:[%s949 + $0x10] sm:$0xf]
  %v955 = vld [vmem:[%s949 + $0x14] sm:$0xf]
  %v956 = vld [vmem:[%s949 + $0x18] sm:$0xf]
  %v957 = vld [vmem:[%s949 + $0x1c] sm:$0xf]
  %v958 = vld [vmem:[%s949 + $0x20] sm:$0xf]
  %v959 = vld [vmem:[%s949 + $0x24] sm:$0xf]
  %v960 = vld [vmem:[%s949 + $0x28] sm:$0xf]
  %v961 = vld [vmem:[%s949 + $0x2c] sm:$0xf]
  %v962 = vld [vmem:[%s949 + $0x30] sm:$0xf]
  %v963 = vld [vmem:[%s949 + $0x34] sm:$0xf]
  %v964 = vld [vmem:[%s949 + $0x38] sm:$0xf]
  %v965 = vld [vmem:[%s949 + $0x3c] sm:$0xf]
  %v966 = vunpack.c.l.b16 %v738
  %v967 = vunpack.c.l.b16 %v752
  %v968 = vunpack.c.l.b16 %v766
  %v969 = vunpack.c.l.b16 %v780
  %v970 = vunpack.c.l.b16 %v794
  %v971 = vunpack.c.l.b16 %v808
  %v972 = vunpack.c.l.b16 %v822
  %v973 = vunpack.c.l.b16 %v836
  %v974 = vunpack.c.l.b16 %v850
  %v975 = vunpack.c.l.b16 %v864
  %v976 = vunpack.c.l.b16 %v878
  %v977 = vunpack.c.l.b16 %v892
  %v978 = vunpack.c.l.b16 %v906
  %v979 = vunpack.c.l.b16 %v920
  %v980 = vunpack.c.l.b16 %v934
  %v981 = vunpack.c.l.b16 %v948
  %v982 = vpack.c.b16 %v967, %v966
  %v983 = vpack.c.b16 %v969, %v968
  %v984 = vpack.c.b16 %v971, %v970
  %v985 = vpack.c.b16 %v973, %v972
  %v986 = vpack.c.b16 %v975, %v974
  %v987 = vpack.c.b16 %v977, %v976
  %v988 = vpack.c.b16 %v979, %v978
  %v989 = vpack.c.b16 %v981, %v980
  %v1014 = vunpack.c.l.b16 %v950
  %v1015 = vunpack.c.l.b16 %v951
  %v1016 = vunpack.c.l.b16 %v952
  %v1017 = vunpack.c.l.b16 %v953
  %v1018 = vunpack.c.l.b16 %v954
  %v1019 = vunpack.c.l.b16 %v955
  %v1020 = vunpack.c.l.b16 %v956
  %v1021 = vunpack.c.l.b16 %v957
  %v1022 = vunpack.c.l.b16 %v958
  %v1023 = vunpack.c.l.b16 %v959
  %v1024 = vunpack.c.l.b16 %v960
  %v1025 = vunpack.c.l.b16 %v961
  %v1026 = vunpack.c.l.b16 %v962
  %v1027 = vunpack.c.l.b16 %v963
  %v1028 = vunpack.c.l.b16 %v964
  %v1029 = vunpack.c.l.b16 %v965
  %v1030 = vpack.c.b16 %v1015, %v1014
  %v1031 = vpack.c.b16 %v1017, %v1016
  %v1032 = vpack.c.b16 %v1019, %v1018
  %v1033 = vpack.c.b16 %v1021, %v1020
  %v1034 = vpack.c.b16 %v1023, %v1022
  %v1035 = vpack.c.b16 %v1025, %v1024
  %v1036 = vpack.c.b16 %v1027, %v1026
  %v1037 = vpack.c.b16 %v1029, %v1028
  %1046 = vmatpush.bf16.msra.mxu0 %v1037
  %1047 = vmatpush.bf16.msra.mxu0 %v1036
  %1048 = vmatpush.bf16.msra.mxu0 %v1035
  %1049 = vmatpush.bf16.msra.mxu0 %v1034
  %1050 = vmatpush.bf16.msra.mxu0 %v1033
  %1051 = vmatpush.bf16.msra.mxu0 %v1032
  %1052 = vmatpush.bf16.msra.mxu0 %v1031
  %1053 = vmatpush.bf16.msra.mxu0 %v1030
  %1054 = vmatmul.bf16.gmra.mxu0 %v982
  %v1055 = vpop.f32.mrf.mxu0
  %v1056 = vadd.f32 0.0, %v1055
  %v1057 = vpop.f32.mrf.mxu0
  %v1058 = vadd.f32 0.0, %v1057
  %1059 = vmatmul.bf16.gmra.mxu0 %v983
  %v1060 = vpop.f32.mrf.mxu0
  %v1061 = vadd.f32 0.0, %v1060
  %v1062 = vpop.f32.mrf.mxu0
  %v1063 = vadd.f32 0.0, %v1062
  %1064 = vmatmul.bf16.gmra.mxu0 %v984
  %v1065 = vpop.f32.mrf.mxu0
  %v1066 = vadd.f32 0.0, %v1065
  %v1067 = vpop.f32.mrf.mxu0
  %v1068 = vadd.f32 0.0, %v1067
  %1069 = vmatmul.bf16.gmra.mxu0 %v985
  %v1070 = vpop.f32.mrf.mxu0
  %v1071 = vadd.f32 0.0, %v1070
  %v1072 = vpop.f32.mrf.mxu0
  %v1073 = vadd.f32 0.0, %v1072
  %1074 = vmatmul.bf16.gmra.mxu0 %v986
  %v1075 = vpop.f32.mrf.mxu0
  %v1076 = vadd.f32 0.0, %v1075
  %v1077 = vpop.f32.mrf.mxu0
  %v1078 = vadd.f32 0.0, %v1077
  %1079 = vmatmul.bf16.gmra.mxu0 %v987
  %v1080 = vpop.f32.mrf.mxu0
  %v1081 = vadd.f32 0.0, %v1080
  %v1082 = vpop.f32.mrf.mxu0
  %v1083 = vadd.f32 0.0, %v1082
  %1084 = vmatmul.bf16.gmra.mxu0 %v988
  %v1085 = vpop.f32.mrf.mxu0
  %v1086 = vadd.f32 0.0, %v1085
  %v1087 = vpop.f32.mrf.mxu0
  %v1088 = vadd.f32 0.0, %v1087
  %1089 = vmatmul.bf16.gmra.mxu0 %v989
  %v1090 = vpop.f32.mrf.mxu0
  %v1091 = vadd.f32 0.0, %v1090
  %v1092 = vpop.f32.mrf.mxu0
  %v1093 = vadd.f32 0.0, %v1092
  %1094 = vdwg.mxu0
  %v1111 = vunpack.c.l.b16 %v674
  %v1112 = vunpack.c.l.b16 %v675
  %v1113 = vunpack.c.l.b16 %v676
  %v1114 = vunpack.c.l.b16 %v677
  %v1115 = vunpack.c.l.b16 %v678
  %v1116 = vunpack.c.l.b16 %v679
  %v1117 = vunpack.c.l.b16 %v680
  %v1118 = vunpack.c.l.b16 %v681
  %v1119 = vunpack.c.l.b16 %v682
  %v1120 = vunpack.c.l.b16 %v683
  %v1121 = vunpack.c.l.b16 %v684
  %v1122 = vunpack.c.l.b16 %v685
  %v1123 = vunpack.c.l.b16 %v686
  %v1124 = vunpack.c.l.b16 %v687
  %v1125 = vunpack.c.l.b16 %v688
  %v1126 = vunpack.c.l.b16 %v689
  %v1127 = vpack.c.b16 %v1112, %v1111
  %v1128 = vpack.c.b16 %v1114, %v1113
  %v1129 = vpack.c.b16 %v1116, %v1115
  %v1130 = vpack.c.b16 %v1118, %v1117
  %v1131 = vpack.c.b16 %v1120, %v1119
  %v1132 = vpack.c.b16 %v1122, %v1121
  %v1133 = vpack.c.b16 %v1124, %v1123
  %v1134 = vpack.c.b16 %v1126, %v1125
  %v1159 = vunpack.c.l.b16 %v690
  %v1160 = vunpack.c.l.b16 %v691
  %v1161 = vunpack.c.l.b16 %v692
  %v1162 = vunpack.c.l.b16 %v693
  %v1163 = vunpack.c.l.b16 %v694
  %v1164 = vunpack.c.l.b16 %v695
  %v1165 = vunpack.c.l.b16 %v696
  %v1166 = vunpack.c.l.b16 %v697
  %v1167 = vunpack.c.l.b16 %v698
  %v1168 = vunpack.c.l.b16 %v699
  %v1169 = vunpack.c.l.b16 %v700
  %v1170 = vunpack.c.l.b16 %v701
  %v1171 = vunpack.c.l.b16 %v702
  %v1172 = vunpack.c.l.b16 %v703
  %v1173 = vunpack.c.l.b16 %v704
  %v1174 = vunpack.c.l.b16 %v705
  %v1175 = vpack.c.b16 %v1160, %v1159
  %v1176 = vpack.c.b16 %v1162, %v1161
  %v1177 = vpack.c.b16 %v1164, %v1163
  %v1178 = vpack.c.b16 %v1166, %v1165
  %v1179 = vpack.c.b16 %v1168, %v1167
  %v1180 = vpack.c.b16 %v1170, %v1169
  %v1181 = vpack.c.b16 %v1172, %v1171
  %v1182 = vpack.c.b16 %v1174, %v1173
  %1191 = vmatpush.bf16.msra.mxu0 %v1182
  %1192 = vmatpush.bf16.msra.mxu0 %v1181
  %1193 = vmatpush.bf16.msra.mxu0 %v1180
  %1194 = vmatpush.bf16.msra.mxu0 %v1179
  %1195 = vmatpush.bf16.msra.mxu0 %v1178
  %1196 = vmatpush.bf16.msra.mxu0 %v1177
  %1197 = vmatpush.bf16.msra.mxu0 %v1176
  %1198 = vmatpush.bf16.msra.mxu0 %v1175
  %1199 = vmatmul.bf16.gmra.mxu0 %v1127
  %v1200 = vpop.f32.mrf.mxu0
  %v1201 = vadd.f32 %v1056, %v1200
  %v1202 = vpop.f32.mrf.mxu0
  %v1203 = vadd.f32 %v1058, %v1202
  %1204 = vmatmul.bf16.gmra.mxu0 %v1128
  %v1205 = vpop.f32.mrf.mxu0
  %v1206 = vadd.f32 %v1061, %v1205
  %v1207 = vpop.f32.mrf.mxu0
  %v1208 = vadd.f32 %v1063, %v1207
  %1209 = vmatmul.bf16.gmra.mxu0 %v1129
  %v1210 = vpop.f32.mrf.mxu0
  %v1211 = vadd.f32 %v1066, %v1210
  %v1212 = vpop.f32.mrf.mxu0
  %v1213 = vadd.f32 %v1068, %v1212
  %1214 = vmatmul.bf16.gmra.mxu0 %v1130
  %v1215 = vpop.f32.mrf.mxu0
  %v1216 = vadd.f32 %v1071, %v1215
  %v1217 = vpop.f32.mrf.mxu0
  %v1218 = vadd.f32 %v1073, %v1217
  %1219 = vmatmul.bf16.gmra.mxu0 %v1131
  %v1220 = vpop.f32.mrf.mxu0
  %v1221 = vadd.f32 %v1076, %v1220
  %v1222 = vpop.f32.mrf.mxu0
  %v1223 = vadd.f32 %v1078, %v1222
  %1224 = vmatmul.bf16.gmra.mxu0 %v1132
  %v1225 = vpop.f32.mrf.mxu0
  %v1226 = vadd.f32 %v1081, %v1225
  %v1227 = vpop.f32.mrf.mxu0
  %v1228 = vadd.f32 %v1083, %v1227
  %1229 = vmatmul.bf16.gmra.mxu0 %v1133
  %v1230 = vpop.f32.mrf.mxu0
  %v1231 = vadd.f32 %v1086, %v1230
  %v1232 = vpop.f32.mrf.mxu0
  %v1233 = vadd.f32 %v1088, %v1232
  %1234 = vmatmul.bf16.gmra.mxu0 %v1134
  %v1235 = vpop.f32.mrf.mxu0
  %v1236 = vadd.f32 %v1091, %v1235
  %v1237 = vpop.f32.mrf.mxu0
  %v1238 = vadd.f32 %v1093, %v1237
  %1239 = vdwg.mxu0
  %v1240 = vld [vmem:[#allocation2] sm:$0xe]
  %v1241 = vld [vmem:[#allocation2 + $0x8] sm:$0xe]
  %v1242 = vld [vmem:[#allocation2 + $0x10] sm:$0xe]
  %v1243 = vld [vmem:[#allocation2 + $0x18] sm:$0xe]
  %v1244 = vld [vmem:[#allocation2 + $0x20] sm:$0xe]
  %v1245 = vld [vmem:[#allocation2 + $0x28] sm:$0xe]
  %v1246 = vld [vmem:[#allocation2 + $0x30] sm:$0xe]
  %v1247 = vld [vmem:[#allocation2 + $0x38] sm:$0xe]
  %v1248 = vld [vmem:[#allocation2 + $0x50] sm:$0xe]
  %v1249 = vld [vmem:[#allocation2 + $0x58] sm:$0xe]
  %v1250 = vld [vmem:[#allocation2 + $0x60] sm:$0xe]
  %v1251 = vld [vmem:[#allocation2 + $0x68] sm:$0xe]
  %v1252 = vld [vmem:[#allocation2 + $0x70] sm:$0xe]
  %v1253 = vld [vmem:[#allocation2 + $0x78] sm:$0xe]
  %v1254 = vld [vmem:[#allocation2 + $0x80] sm:$0xe]
  %v1255 = vld [vmem:[#allocation2 + $0x88] sm:$0xe]
  %vm1288 = vcmask 1042432
  %vm1289 = vcmask 1046532
  %vm1290 = vmor %vm1288, %vm1289
  %v1291 = vrot.slane %v1240, 5
  %v1292 = vrot.slane %v1291, 4
  %v1293 = vrot.slane %v706, 5
  %v1294 = vsel %vm1290, %v1292, %v1293
  %v1295 = vrot.slane %v1241, 5
  %v1296 = vrot.slane %v1295, 4
  %v1297 = vrot.slane %v707, 5
  %v1298 = vsel %vm1290, %v1296, %v1297
  %v1299 = vrot.slane %v1242, 5
  %v1300 = vrot.slane %v1299, 4
  %v1301 = vrot.slane %v708, 5
  %v1302 = vsel %vm1290, %v1300, %v1301
  %v1303 = vrot.slane %v1243, 5
  %v1304 = vrot.slane %v1303, 4
  %v1305 = vrot.slane %v709, 5
  %v1306 = vsel %vm1290, %v1304, %v1305
  %v1307 = vrot.slane %v1244, 5
  %v1308 = vrot.slane %v1307, 4
  %v1309 = vrot.slane %v710, 5
  %v1310 = vsel %vm1290, %v1308, %v1309
  %v1311 = vrot.slane %v1245, 5
  %v1312 = vrot.slane %v1311, 4
  %v1313 = vrot.slane %v711, 5
  %v1314 = vsel %vm1290, %v1312, %v1313
  %v1315 = vrot.slane %v1246, 5
  %v1316 = vrot.slane %v1315, 4
  %v1317 = vrot.slane %v712, 5
  %v1318 = vsel %vm1290, %v1316, %v1317
  %v1319 = vrot.slane %v1247, 5
  %v1320 = vrot.slane %v1319, 4
  %v1321 = vrot.slane %v713, 5
  %v1322 = vsel %vm1290, %v1320, %v1321
  %v1323 = vrot.slane %v1248, 5
  %v1324 = vrot.slane %v1323, 4
  %v1325 = vrot.slane %v714, 5
  %v1326 = vsel %vm1290, %v1324, %v1325
  %v1327 = vrot.slane %v1249, 5
  %v1328 = vrot.slane %v1327, 4
  %v1329 = vrot.slane %v715, 5
  %v1330 = vsel %vm1290, %v1328, %v1329
  %v1331 = vrot.slane %v1250, 5
  %v1332 = vrot.slane %v1331, 4
  %v1333 = vrot.slane %v716, 5
  %v1334 = vsel %vm1290, %v1332, %v1333
  %v1335 = vrot.slane %v1251, 5
  %v1336 = vrot.slane %v1335, 4
  %v1337 = vrot.slane %v717, 5
  %v1338 = vsel %vm1290, %v1336, %v1337
  %v1339 = vrot.slane %v1252, 5
  %v1340 = vrot.slane %v1339, 4
  %v1341 = vrot.slane %v718, 5
  %v1342 = vsel %vm1290, %v1340, %v1341
  %v1343 = vrot.slane %v1253, 5
  %v1344 = vrot.slane %v1343, 4
  %v1345 = vrot.slane %v719, 5
  %v1346 = vsel %vm1290, %v1344, %v1345
  %v1347 = vrot.slane %v1254, 5
  %v1348 = vrot.slane %v1347, 4
  %v1349 = vrot.slane %v720, 5
  %v1350 = vsel %vm1290, %v1348, %v1349
  %v1351 = vrot.slane %v1255, 5
  %v1352 = vrot.slane %v1351, 4
  %v1353 = vrot.slane %v721, 5
  %v1354 = vsel %vm1290, %v1352, %v1353
  %s1355 = scalar_lea.vmem %s2, 128
  %v1356 = vld [vmem:[%s1355] sm:$0xf]
  %v1357 = vld [vmem:[%s1355 + $0x4] sm:$0xf]
  %v1358 = vld [vmem:[%s1355 + $0x8] sm:$0xf]
  %v1359 = vld [vmem:[%s1355 + $0xc] sm:$0xf]
  %v1360 = vld [vmem:[%s1355 + $0x10] sm:$0xf]
  %v1361 = vld [vmem:[%s1355 + $0x14] sm:$0xf]
  %v1362 = vld [vmem:[%s1355 + $0x18] sm:$0xf]
  %v1363 = vld [vmem:[%s1355 + $0x1c] sm:$0xf]
  %v1364 = vld [vmem:[%s1355 + $0x20] sm:$0xf]
  %v1365 = vld [vmem:[%s1355 + $0x24] sm:$0xf]
  %v1366 = vld [vmem:[%s1355 + $0x28] sm:$0xf]
  %v1367 = vld [vmem:[%s1355 + $0x2c] sm:$0xf]
  %v1368 = vld [vmem:[%s1355 + $0x30] sm:$0xf]
  %v1369 = vld [vmem:[%s1355 + $0x34] sm:$0xf]
  %v1370 = vld [vmem:[%s1355 + $0x38] sm:$0xf]
  %v1371 = vld [vmem:[%s1355 + $0x3c] sm:$0xf]
  %v1372 = vunpack.c.l.b16 %v1294
  %v1373 = vunpack.c.l.b16 %v1298
  %v1374 = vunpack.c.l.b16 %v1302
  %v1375 = vunpack.c.l.b16 %v1306
  %v1376 = vunpack.c.l.b16 %v1310
  %v1377 = vunpack.c.l.b16 %v1314
  %v1378 = vunpack.c.l.b16 %v1318
  %v1379 = vunpack.c.l.b16 %v1322
  %v1380 = vunpack.c.l.b16 %v1326
  %v1381 = vunpack.c.l.b16 %v1330
  %v1382 = vunpack.c.l.b16 %v1334
  %v1383 = vunpack.c.l.b16 %v1338
  %v1384 = vunpack.c.l.b16 %v1342
  %v1385 = vunpack.c.l.b16 %v1346
  %v1386 = vunpack.c.l.b16 %v1350
  %v1387 = vunpack.c.l.b16 %v1354
  %v1388 = vpack.c.b16 %v1373, %v1372
  %v1389 = vpack.c.b16 %v1375, %v1374
  %v1390 = vpack.c.b16 %v1377, %v1376
  %v1391 = vpack.c.b16 %v1379, %v1378
  %v1392 = vpack.c.b16 %v1381, %v1380
  %v1393 = vpack.c.b16 %v1383, %v1382
  %v1394 = vpack.c.b16 %v1385, %v1384
  %v1395 = vpack.c.b16 %v1387, %v1386
  %v1420 = vunpack.c.l.b16 %v1356
  %v1421 = vunpack.c.l.b16 %v1357
  %v1422 = vunpack.c.l.b16 %v1358
  %v1423 = vunpack.c.l.b16 %v1359
  %v1424 = vunpack.c.l.b16 %v1360
  %v1425 = vunpack.c.l.b16 %v1361
  %v1426 = vunpack.c.l.b16 %v1362
  %v1427 = vunpack.c.l.b16 %v1363
  %v1428 = vunpack.c.l.b16 %v1364
  %v1429 = vunpack.c.l.b16 %v1365
  %v1430 = vunpack.c.l.b16 %v1366
  %v1431 = vunpack.c.l.b16 %v1367
  %v1432 = vunpack.c.l.b16 %v1368
  %v1433 = vunpack.c.l.b16 %v1369
  %v1434 = vunpack.c.l.b16 %v1370
  %v1435 = vunpack.c.l.b16 %v1371
  %v1436 = vpack.c.b16 %v1421, %v1420
  %v1437 = vpack.c.b16 %v1423, %v1422
  %v1438 = vpack.c.b16 %v1425, %v1424
  %v1439 = vpack.c.b16 %v1427, %v1426
  %v1440 = vpack.c.b16 %v1429, %v1428
  %v1441 = vpack.c.b16 %v1431, %v1430
  %v1442 = vpack.c.b16 %v1433, %v1432
  %v1443 = vpack.c.b16 %v1435, %v1434
  %1452 = vmatpush.bf16.msra.mxu0 %v1443
  %1453 = vmatpush.bf16.msra.mxu0 %v1442
  %1454 = vmatpush.bf16.msra.mxu0 %v1441
  %1455 = vmatpush.bf16.msra.mxu0 %v1440
  %1456 = vmatpush.bf16.msra.mxu0 %v1439
  %1457 = vmatpush.bf16.msra.mxu0 %v1438
  %1458 = vmatpush.bf16.msra.mxu0 %v1437
  %1459 = vmatpush.bf16.msra.mxu0 %v1436
  %1460 = vmatmul.bf16.gmra.mxu0 %v1388
  %v1461 = vpop.f32.mrf.mxu0
  %v1462 = vadd.f32 0.0, %v1461
  %v1463 = vpop.f32.mrf.mxu0
  %v1464 = vadd.f32 0.0, %v1463
  %1465 = vmatmul.bf16.gmra.mxu0 %v1389
  %v1466 = vpop.f32.mrf.mxu0
  %v1467 = vadd.f32 0.0, %v1466
  %v1468 = vpop.f32.mrf.mxu0
  %v1469 = vadd.f32 0.0, %v1468
  %1470 = vmatmul.bf16.gmra.mxu0 %v1390
  %v1471 = vpop.f32.mrf.mxu0
  %v1472 = vadd.f32 0.0, %v1471
  %v1473 = vpop.f32.mrf.mxu0
  %v1474 = vadd.f32 0.0, %v1473
  %1475 = vmatmul.bf16.gmra.mxu0 %v1391
  %v1476 = vpop.f32.mrf.mxu0
  %v1477 = vadd.f32 0.0, %v1476
  %v1478 = vpop.f32.mrf.mxu0
  %v1479 = vadd.f32 0.0, %v1478
  %1480 = vmatmul.bf16.gmra.mxu0 %v1392
  %v1481 = vpop.f32.mrf.mxu0
  %v1482 = vadd.f32 0.0, %v1481
  %v1483 = vpop.f32.mrf.mxu0
  %v1484 = vadd.f32 0.0, %v1483
  %1485 = vmatmul.bf16.gmra.mxu0 %v1393
  %v1486 = vpop.f32.mrf.mxu0
  %v1487 = vadd.f32 0.0, %v1486
  %v1488 = vpop.f32.mrf.mxu0
  %v1489 = vadd.f32 0.0, %v1488
  %1490 = vmatmul.bf16.gmra.mxu0 %v1394
  %v1491 = vpop.f32.mrf.mxu0
  %v1492 = vadd.f32 0.0, %v1491
  %v1493 = vpop.f32.mrf.mxu0
  %v1494 = vadd.f32 0.0, %v1493
  %1495 = vmatmul.bf16.gmra.mxu0 %v1395
  %v1496 = vpop.f32.mrf.mxu0
  %v1497 = vadd.f32 0.0, %v1496
  %v1498 = vpop.f32.mrf.mxu0
  %v1499 = vadd.f32 0.0, %v1498
  %1500 = vdwg.mxu0
  %v1501 = vadd.f32 %v1201, %v1462
  %v1502 = vadd.f32 %v1203, %v1464
  %v1503 = vadd.f32 %v1206, %v1467
  %v1504 = vadd.f32 %v1208, %v1469
  %v1505 = vadd.f32 %v1211, %v1472
  %v1506 = vadd.f32 %v1213, %v1474
  %v1507 = vadd.f32 %v1216, %v1477
  %v1508 = vadd.f32 %v1218, %v1479
  %v1509 = vadd.f32 %v1221, %v1482
  %v1510 = vadd.f32 %v1223, %v1484
  %v1511 = vadd.f32 %v1226, %v1487
  %v1512 = vadd.f32 %v1228, %v1489
  %v1513 = vadd.f32 %v1231, %v1492
  %v1514 = vadd.f32 %v1233, %v1494
  %v1515 = vadd.f32 %v1236, %v1497
  %v1516 = vadd.f32 %v1238, %v1499
  %v1517 = vld [vmem:[%s571] sm:$0xf]
  %v1518 = vld [vmem:[%s571 + $0x8] sm:$0xf]
  %v1519 = vld [vmem:[%s571 + $0x10] sm:$0xf]
  %v1520 = vld [vmem:[%s571 + $0x18] sm:$0xf]
  %v1521 = vld [vmem:[%s571 + $0x20] sm:$0xf]
  %v1522 = vld [vmem:[%s571 + $0x28] sm:$0xf]
  %v1523 = vld [vmem:[%s571 + $0x30] sm:$0xf]
  %v1524 = vld [vmem:[%s571 + $0x38] sm:$0xf]
  %v1525 = vld [vmem:[%s571 + $0x50] sm:$0xf]
  %v1526 = vld [vmem:[%s571 + $0x58] sm:$0xf]
  %v1527 = vld [vmem:[%s571 + $0x60] sm:$0xf]
  %v1528 = vld [vmem:[%s571 + $0x68] sm:$0xf]
  %v1529 = vld [vmem:[%s571 + $0x70] sm:$0xf]
  %v1530 = vld [vmem:[%s571 + $0x78] sm:$0xf]
  %v1531 = vld [vmem:[%s571 + $0x80] sm:$0xf]
  %v1532 = vld [vmem:[%s571 + $0x88] sm:$0xf]
  %s1533 = scalar_lea.vmem %s2, 192
  %v1534 = vld [vmem:[%s1533] sm:$0xf]
  %v1535 = vld [vmem:[%s1533 + $0x4] sm:$0xf]
  %v1536 = vld [vmem:[%s1533 + $0x8] sm:$0xf]
  %v1537 = vld [vmem:[%s1533 + $0xc] sm:$0xf]
  %v1538 = vld [vmem:[%s1533 + $0x10] sm:$0xf]
  %v1539 = vld [vmem:[%s1533 + $0x14] sm:$0xf]
  %v1540 = vld [vmem:[%s1533 + $0x18] sm:$0xf]
  %v1541 = vld [vmem:[%s1533 + $0x1c] sm:$0xf]
  %v1542 = vld [vmem:[%s1533 + $0x20] sm:$0xf]
  %v1543 = vld [vmem:[%s1533 + $0x24] sm:$0xf]
  %v1544 = vld [vmem:[%s1533 + $0x28] sm:$0xf]
  %v1545 = vld [vmem:[%s1533 + $0x2c] sm:$0xf]
  %v1546 = vld [vmem:[%s1533 + $0x30] sm:$0xf]
  %v1547 = vld [vmem:[%s1533 + $0x34] sm:$0xf]
  %v1548 = vld [vmem:[%s1533 + $0x38] sm:$0xf]
  %v1549 = vld [vmem:[%s1533 + $0x3c] sm:$0xf]
  %v1566 = vunpack.c.l.b16 %v1517
  %v1567 = vunpack.c.l.b16 %v1518
  %v1568 = vunpack.c.l.b16 %v1519
  %v1569 = vunpack.c.l.b16 %v1520
  %v1570 = vunpack.c.l.b16 %v1521
  %v1571 = vunpack.c.l.b16 %v1522
  %v1572 = vunpack.c.l.b16 %v1523
  %v1573 = vunpack.c.l.b16 %v1524
  %v1574 = vunpack.c.l.b16 %v1525
  %v1575 = vunpack.c.l.b16 %v1526
  %v1576 = vunpack.c.l.b16 %v1527
  %v1577 = vunpack.c.l.b16 %v1528
  %v1578 = vunpack.c.l.b16 %v1529
  %v1579 = vunpack.c.l.b16 %v1530
  %v1580 = vunpack.c.l.b16 %v1531
  %v1581 = vunpack.c.l.b16 %v1532
  %v1582 = vpack.c.b16 %v1567, %v1566
  %v1583 = vpack.c.b16 %v1569, %v1568
  %v1584 = vpack.c.b16 %v1571, %v1570
  %v1585 = vpack.c.b16 %v1573, %v1572
  %v1586 = vpack.c.b16 %v1575, %v1574
  %v1587 = vpack.c.b16 %v1577, %v1576
  %v1588 = vpack.c.b16 %v1579, %v1578
  %v1589 = vpack.c.b16 %v1581, %v1580
  %v1614 = vunpack.c.l.b16 %v1534
  %v1615 = vunpack.c.l.b16 %v1535
  %v1616 = vunpack.c.l.b16 %v1536
  %v1617 = vunpack.c.l.b16 %v1537
  %v1618 = vunpack.c.l.b16 %v1538
  %v1619 = vunpack.c.l.b16 %v1539
  %v1620 = vunpack.c.l.b16 %v1540
  %v1621 = vunpack.c.l.b16 %v1541
  %v1622 = vunpack.c.l.b16 %v1542
  %v1623 = vunpack.c.l.b16 %v1543
  %v1624 = vunpack.c.l.b16 %v1544
  %v1625 = vunpack.c.l.b16 %v1545
  %v1626 = vunpack.c.l.b16 %v1546
  %v1627 = vunpack.c.l.b16 %v1547
  %v1628 = vunpack.c.l.b16 %v1548
  %v1629 = vunpack.c.l.b16 %v1549
  %v1630 = vpack.c.b16 %v1615, %v1614
  %v1631 = vpack.c.b16 %v1617, %v1616
  %v1632 = vpack.c.b16 %v1619, %v1618
  %v1633 = vpack.c.b16 %v1621, %v1620
  %v1634 = vpack.c.b16 %v1623, %v1622
  %v1635 = vpack.c.b16 %v1625, %v1624
  %v1636 = vpack.c.b16 %v1627, %v1626
  %v1637 = vpack.c.b16 %v1629, %v1628
  %1646 = vmatpush.bf16.msra.mxu0 %v1637
  %1647 = vmatpush.bf16.msra.mxu0 %v1636
  %1648 = vmatpush.bf16.msra.mxu0 %v1635
  %1649 = vmatpush.bf16.msra.mxu0 %v1634
  %1650 = vmatpush.bf16.msra.mxu0 %v1633
  %1651 = vmatpush.bf16.msra.mxu0 %v1632
  %1652 = vmatpush.bf16.msra.mxu0 %v1631
  %1653 = vmatpush.bf16.msra.mxu0 %v1630
  %1654 = vmatmul.bf16.gmra.mxu0 %v1582
  %v1655 = vpop.f32.mrf.mxu0
  %v1656 = vadd.f32 0.0, %v1655
  %v1657 = vpop.f32.mrf.mxu0
  %v1658 = vadd.f32 0.0, %v1657
  %1659 = vmatmul.bf16.gmra.mxu0 %v1583
  %v1660 = vpop.f32.mrf.mxu0
  %v1661 = vadd.f32 0.0, %v1660
  %v1662 = vpop.f32.mrf.mxu0
  %v1663 = vadd.f32 0.0, %v1662
  %1664 = vmatmul.bf16.gmra.mxu0 %v1584
  %v1665 = vpop.f32.mrf.mxu0
  %v1666 = vadd.f32 0.0, %v1665
  %v1667 = vpop.f32.mrf.mxu0
  %v1668 = vadd.f32 0.0, %v1667
  %1669 = vmatmul.bf16.gmra.mxu0 %v1585
  %v1670 = vpop.f32.mrf.mxu0
  %v1671 = vadd.f32 0.0, %v1670
  %v1672 = vpop.f32.mrf.mxu0
  %v1673 = vadd.f32 0.0, %v1672
  %1674 = vmatmul.bf16.gmra.mxu0 %v1586
  %v1675 = vpop.f32.mrf.mxu0
  %v1676 = vadd.f32 0.0, %v1675
  %v1677 = vpop.f32.mrf.mxu0
  %v1678 = vadd.f32 0.0, %v1677
  %1679 = vmatmul.bf16.gmra.mxu0 %v1587
  %v1680 = vpop.f32.mrf.mxu0
  %v1681 = vadd.f32 0.0, %v1680
  %v1682 = vpop.f32.mrf.mxu0
  %v1683 = vadd.f32 0.0, %v1682
  %1684 = vmatmul.bf16.gmra.mxu0 %v1588
  %v1685 = vpop.f32.mrf.mxu0
  %v1686 = vadd.f32 0.0, %v1685
  %v1687 = vpop.f32.mrf.mxu0
  %v1688 = vadd.f32 0.0, %v1687
  %1689 = vmatmul.bf16.gmra.mxu0 %v1589
  %v1690 = vpop.f32.mrf.mxu0
  %v1691 = vadd.f32 0.0, %v1690
  %v1692 = vpop.f32.mrf.mxu0
  %v1693 = vadd.f32 0.0, %v1692
  %1694 = vdwg.mxu0
  %v1695 = vadd.f32 %v1501, %v1656
  %v1696 = vadd.f32 %v1502, %v1658
  %v1697 = vadd.f32 %v1503, %v1661
  %v1698 = vadd.f32 %v1504, %v1663
  %v1699 = vadd.f32 %v1505, %v1666
  %v1700 = vadd.f32 %v1506, %v1668
  %v1701 = vadd.f32 %v1507, %v1671
  %v1702 = vadd.f32 %v1508, %v1673
  %v1703 = vadd.f32 %v1509, %v1676
  %v1704 = vadd.f32 %v1510, %v1678
  %v1705 = vadd.f32 %v1511, %v1681
  %v1706 = vadd.f32 %v1512, %v1683
  %v1707 = vadd.f32 %v1513, %v1686
  %v1708 = vadd.f32 %v1514, %v1688
  %v1709 = vadd.f32 %v1515, %v1691
  %v1710 = vadd.f32 %v1516, %v1693
  %v1711 = vld [vmem:[%s571] sm:$0xf]
  %v1712 = vld [vmem:[%s571 + $0x4] sm:$0x1]
  %v1713 = vld [vmem:[%s571 + $0x8] sm:$0xf]
  %v1714 = vld [vmem:[%s571 + $0xc] sm:$0x1]
  %v1715 = vld [vmem:[%s571 + $0x10] sm:$0xf]
  %v1716 = vld [vmem:[%s571 + $0x14] sm:$0x1]
  %v1717 = vld [vmem:[%s571 + $0x18] sm:$0xf]
  %v1718 = vld [vmem:[%s571 + $0x1c] sm:$0x1]
  %v1719 = vld [vmem:[%s571 + $0x20] sm:$0xf]
  %v1720 = vld [vmem:[%s571 + $0x24] sm:$0x1]
  %v1721 = vld [vmem:[%s571 + $0x28] sm:$0xf]
  %v1722 = vld [vmem:[%s571 + $0x2c] sm:$0x1]
  %v1723 = vld [vmem:[%s571 + $0x30] sm:$0xf]
  %v1724 = vld [vmem:[%s571 + $0x34] sm:$0x1]
  %v1725 = vld [vmem:[%s571 + $0x38] sm:$0xf]
  %v1726 = vld [vmem:[%s571 + $0x3c] sm:$0x1]
  %v1727 = vld [vmem:[%s571 + $0x50] sm:$0xf]
  %v1728 = vld [vmem:[%s571 + $0x54] sm:$0x1]
  %v1729 = vld [vmem:[%s571 + $0x58] sm:$0xf]
  %v1730 = vld [vmem:[%s571 + $0x5c] sm:$0x1]
  %v1731 = vld [vmem:[%s571 + $0x60] sm:$0xf]
  %v1732 = vld [vmem:[%s571 + $0x64] sm:$0x1]
  %v1733 = vld [vmem:[%s571 + $0x68] sm:$0xf]
  %v1734 = vld [vmem:[%s571 + $0x6c] sm:$0x1]
  %v1735 = vld [vmem:[%s571 + $0x70] sm:$0xf]
  %v1736 = vld [vmem:[%s571 + $0x74] sm:$0x1]
  %v1737 = vld [vmem:[%s571 + $0x78] sm:$0xf]
  %v1738 = vld [vmem:[%s571 + $0x7c] sm:$0x1]
  %v1739 = vld [vmem:[%s571 + $0x80] sm:$0xf]
  %v1740 = vld [vmem:[%s571 + $0x84] sm:$0x1]
  %v1741 = vld [vmem:[%s571 + $0x88] sm:$0xf]
  %v1742 = vld [vmem:[%s571 + $0x8c] sm:$0x1]
  %v1744 = vshrl.u32 %v1711, 16
  %v1746 = vrot.slane %v1744, 4
  %v1747 = vshll.u32 %v1711, 16
  %v1749 = vrot.slane %v1747, 5
  %v1750 = vor.u32 %v1746, %v1749
  %v1751 = vrot.slane %v1750, 4
  %v1753 = vshll.u32 %v1712, 16
  %v1755 = vrot.slane %v1753, 5
  %v1756 = vsel %vm724, %v1751, %v1755
  %v1758 = vshrl.u32 %v1713, 16
  %v1760 = vrot.slane %v1758, 4
  %v1761 = vshll.u32 %v1713, 16
  %v1763 = vrot.slane %v1761, 5
  %v1764 = vor.u32 %v1760, %v1763
  %v1765 = vrot.slane %v1764, 4
  %v1767 = vshll.u32 %v1714, 16
  %v1769 = vrot.slane %v1767, 5
  %v1770 = vsel %vm724, %v1765, %v1769
  %v1772 = vshrl.u32 %v1715, 16
  %v1774 = vrot.slane %v1772, 4
  %v1775 = vshll.u32 %v1715, 16
  %v1777 = vrot.slane %v1775, 5
  %v1778 = vor.u32 %v1774, %v1777
  %v1779 = vrot.slane %v1778, 4
  %v1781 = vshll.u32 %v1716, 16
  %v1783 = vrot.slane %v1781, 5
  %v1784 = vsel %vm724, %v1779, %v1783
  %v1786 = vshrl.u32 %v1717, 16
  %v1788 = vrot.slane %v1786, 4
  %v1789 = vshll.u32 %v1717, 16
  %v1791 = vrot.slane %v1789, 5
  %v1792 = vor.u32 %v1788, %v1791
  %v1793 = vrot.slane %v1792, 4
  %v1795 = vshll.u32 %v1718, 16
  %v1797 = vrot.slane %v1795, 5
  %v1798 = vsel %vm724, %v1793, %v1797
  %v1800 = vshrl.u32 %v1719, 16
  %v1802 = vrot.slane %v1800, 4
  %v1803 = vshll.u32 %v1719, 16
  %v1805 = vrot.slane %v1803, 5
  %v1806 = vor.u32 %v1802, %v1805
  %v1807 = vrot.slane %v1806, 4
  %v1809 = vshll.u32 %v1720, 16
  %v1811 = vrot.slane %v1809, 5
  %v1812 = vsel %vm724, %v1807, %v1811
  %v1814 = vshrl.u32 %v1721, 16
  %v1816 = vrot.slane %v1814, 4
  %v1817 = vshll.u32 %v1721, 16
  %v1819 = vrot.slane %v1817, 5
  %v1820 = vor.u32 %v1816, %v1819
  %v1821 = vrot.slane %v1820, 4
  %v1823 = vshll.u32 %v1722, 16
  %v1825 = vrot.slane %v1823, 5
  %v1826 = vsel %vm724, %v1821, %v1825
  %v1828 = vshrl.u32 %v1723, 16
  %v1830 = vrot.slane %v1828, 4
  %v1831 = vshll.u32 %v1723, 16
  %v1833 = vrot.slane %v1831, 5
  %v1834 = vor.u32 %v1830, %v1833
  %v1835 = vrot.slane %v1834, 4
  %v1837 = vshll.u32 %v1724, 16
  %v1839 = vrot.slane %v1837, 5
  %v1840 = vsel %vm724, %v1835, %v1839
  %v1842 = vshrl.u32 %v1725, 16
  %v1844 = vrot.slane %v1842, 4
  %v1845 = vshll.u32 %v1725, 16
  %v1847 = vrot.slane %v1845, 5
  %v1848 = vor.u32 %v1844, %v1847
  %v1849 = vrot.slane %v1848, 4
  %v1851 = vshll.u32 %v1726, 16
  %v1853 = vrot.slane %v1851, 5
  %v1854 = vsel %vm724, %v1849, %v1853
  %v1856 = vshrl.u32 %v1727, 16
  %v1858 = vrot.slane %v1856, 4
  %v1859 = vshll.u32 %v1727, 16
  %v1861 = vrot.slane %v1859, 5
  %v1862 = vor.u32 %v1858, %v1861
  %v1863 = vrot.slane %v1862, 4
  %v1865 = vshll.u32 %v1728, 16
  %v1867 = vrot.slane %v1865, 5
  %v1868 = vsel %vm724, %v1863, %v1867
  %v1870 = vshrl.u32 %v1729, 16
  %v1872 = vrot.slane %v1870, 4
  %v1873 = vshll.u32 %v1729, 16
  %v1875 = vrot.slane %v1873, 5
  %v1876 = vor.u32 %v1872, %v1875
  %v1877 = vrot.slane %v1876, 4
  %v1879 = vshll.u32 %v1730, 16
  %v1881 = vrot.slane %v1879, 5
  %v1882 = vsel %vm724, %v1877, %v1881
  %v1884 = vshrl.u32 %v1731, 16
  %v1886 = vrot.slane %v1884, 4
  %v1887 = vshll.u32 %v1731, 16
  %v1889 = vrot.slane %v1887, 5
  %v1890 = vor.u32 %v1886, %v1889
  %v1891 = vrot.slane %v1890, 4
  %v1893 = vshll.u32 %v1732, 16
  %v1895 = vrot.slane %v1893, 5
  %v1896 = vsel %vm724, %v1891, %v1895
  %v1898 = vshrl.u32 %v1733, 16
  %v1900 = vrot.slane %v1898, 4
  %v1901 = vshll.u32 %v1733, 16
  %v1903 = vrot.slane %v1901, 5
  %v1904 = vor.u32 %v1900, %v1903
  %v1905 = vrot.slane %v1904, 4
  %v1907 = vshll.u32 %v1734, 16
  %v1909 = vrot.slane %v1907, 5
  %v1910 = vsel %vm724, %v1905, %v1909
  %v1912 = vshrl.u32 %v1735, 16
  %v1914 = vrot.slane %v1912, 4
  %v1915 = vshll.u32 %v1735, 16
  %v1917 = vrot.slane %v1915, 5
  %v1918 = vor.u32 %v1914, %v1917
  %v1919 = vrot.slane %v1918, 4
  %v1921 = vshll.u32 %v1736, 16
  %v1923 = vrot.slane %v1921, 5
  %v1924 = vsel %vm724, %v1919, %v1923
  %v1926 = vshrl.u32 %v1737, 16
  %v1928 = vrot.slane %v1926, 4
  %v1929 = vshll.u32 %v1737, 16
  %v1931 = vrot.slane %v1929, 5
  %v1932 = vor.u32 %v1928, %v1931
  %v1933 = vrot.slane %v1932, 4
  %v1935 = vshll.u32 %v1738, 16
  %v1937 = vrot.slane %v1935, 5
  %v1938 = vsel %vm724, %v1933, %v1937
  %v1940 = vshrl.u32 %v1739, 16
  %v1942 = vrot.slane %v1940, 4
  %v1943 = vshll.u32 %v1739, 16
  %v1945 = vrot.slane %v1943, 5
  %v1946 = vor.u32 %v1942, %v1945
  %v1947 = vrot.slane %v1946, 4
  %v1949 = vshll.u32 %v1740, 16
  %v1951 = vrot.slane %v1949, 5
  %v1952 = vsel %vm724, %v1947, %v1951
  %v1954 = vshrl.u32 %v1741, 16
  %v1956 = vrot.slane %v1954, 4
  %v1957 = vshll.u32 %v1741, 16
  %v1959 = vrot.slane %v1957, 5
  %v1960 = vor.u32 %v1956, %v1959
  %v1961 = vrot.slane %v1960, 4
  %v1963 = vshll.u32 %v1742, 16
  %v1965 = vrot.slane %v1963, 5
  %v1966 = vsel %vm724, %v1961, %v1965
  %s1967 = scalar_lea.vmem %s2, 256
  %v1968 = vld [vmem:[%s1967] sm:$0xf]
  %v1969 = vld [vmem:[%s1967 + $0x4] sm:$0xf]
  %v1970 = vld [vmem:[%s1967 + $0x8] sm:$0xf]
  %v1971 = vld [vmem:[%s1967 + $0xc] sm:$0xf]
  %v1972 = vld [vmem:[%s1967 + $0x10] sm:$0xf]
  %v1973 = vld [vmem:[%s1967 + $0x14] sm:$0xf]
  %v1974 = vld [vmem:[%s1967 + $0x18] sm:$0xf]
  %v1975 = vld [vmem:[%s1967 + $0x1c] sm:$0xf]
  %v1976 = vld [vmem:[%s1967 + $0x20] sm:$0xf]
  %v1977 = vld [vmem:[%s1967 + $0x24] sm:$0xf]
  %v1978 = vld [vmem:[%s1967 + $0x28] sm:$0xf]
  %v1979 = vld [vmem:[%s1967 + $0x2c] sm:$0xf]
  %v1980 = vld [vmem:[%s1967 + $0x30] sm:$0xf]
  %v1981 = vld [vmem:[%s1967 + $0x34] sm:$0xf]
  %v1982 = vld [vmem:[%s1967 + $0x38] sm:$0xf]
  %v1983 = vld [vmem:[%s1967 + $0x3c] sm:$0xf]
  %v1984 = vunpack.c.l.b16 %v1756
  %v1985 = vunpack.c.l.b16 %v1770
  %v1986 = vunpack.c.l.b16 %v1784
  %v1987 = vunpack.c.l.b16 %v1798
  %v1988 = vunpack.c.l.b16 %v1812
  %v1989 = vunpack.c.l.b16 %v1826
  %v1990 = vunpack.c.l.b16 %v1840
  %v1991 = vunpack.c.l.b16 %v1854
  %v1992 = vunpack.c.l.b16 %v1868
  %v1993 = vunpack.c.l.b16 %v1882
  %v1994 = vunpack.c.l.b16 %v1896
  %v1995 = vunpack.c.l.b16 %v1910
  %v1996 = vunpack.c.l.b16 %v1924
  %v1997 = vunpack.c.l.b16 %v1938
  %v1998 = vunpack.c.l.b16 %v1952
  %v1999 = vunpack.c.l.b16 %v1966
  %v2000 = vpack.c.b16 %v1985, %v1984
  %v2001 = vpack.c.b16 %v1987, %v1986
  %v2002 = vpack.c.b16 %v1989, %v1988
  %v2003 = vpack.c.b16 %v1991, %v1990
  %v2004 = vpack.c.b16 %v1993, %v1992
  %v2005 = vpack.c.b16 %v1995, %v1994
  %v2006 = vpack.c.b16 %v1997, %v1996
  %v2007 = vpack.c.b16 %v1999, %v1998
  %v2032 = vunpack.c.l.b16 %v1968
  %v2033 = vunpack.c.l.b16 %v1969
  %v2034 = vunpack.c.l.b16 %v1970
  %v2035 = vunpack.c.l.b16 %v1971
  %v2036 = vunpack.c.l.b16 %v1972
  %v2037 = vunpack.c.l.b16 %v1973
  %v2038 = vunpack.c.l.b16 %v1974
  %v2039 = vunpack.c.l.b16 %v1975
  %v2040 = vunpack.c.l.b16 %v1976
  %v2041 = vunpack.c.l.b16 %v1977
  %v2042 = vunpack.c.l.b16 %v1978
  %v2043 = vunpack.c.l.b16 %v1979
  %v2044 = vunpack.c.l.b16 %v1980
  %v2045 = vunpack.c.l.b16 %v1981
  %v2046 = vunpack.c.l.b16 %v1982
  %v2047 = vunpack.c.l.b16 %v1983
  %v2048 = vpack.c.b16 %v2033, %v2032
  %v2049 = vpack.c.b16 %v2035, %v2034
  %v2050 = vpack.c.b16 %v2037, %v2036
  %v2051 = vpack.c.b16 %v2039, %v2038
  %v2052 = vpack.c.b16 %v2041, %v2040
  %v2053 = vpack.c.b16 %v2043, %v2042
  %v2054 = vpack.c.b16 %v2045, %v2044
  %v2055 = vpack.c.b16 %v2047, %v2046
  %2064 = vmatpush.bf16.msra.mxu0 %v2055
  %2065 = vmatpush.bf16.msra.mxu0 %v2054
  %2066 = vmatpush.bf16.msra.mxu0 %v2053
  %2067 = vmatpush.bf16.msra.mxu0 %v2052
  %2068 = vmatpush.bf16.msra.mxu0 %v2051
  %2069 = vmatpush.bf16.msra.mxu0 %v2050
  %2070 = vmatpush.bf16.msra.mxu0 %v2049
  %2071 = vmatpush.bf16.msra.mxu0 %v2048
  %2072 = vmatmul.bf16.gmra.mxu0 %v2000
  %v2073 = vpop.f32.mrf.mxu0
  %v2074 = vadd.f32 0.0, %v2073
  %v2075 = vpop.f32.mrf.mxu0
  %v2076 = vadd.f32 0.0, %v2075
  %2077 = vmatmul.bf16.gmra.mxu0 %v2001
  %v2078 = vpop.f32.mrf.mxu0
  %v2079 = vadd.f32 0.0, %v2078
  %v2080 = vpop.f32.mrf.mxu0
  %v2081 = vadd.f32 0.0, %v2080
  %2082 = vmatmul.bf16.gmra.mxu0 %v2002
  %v2083 = vpop.f32.mrf.mxu0
  %v2084 = vadd.f32 0.0, %v2083
  %v2085 = vpop.f32.mrf.mxu0
  %v2086 = vadd.f32 0.0, %v2085
  %2087 = vmatmul.bf16.gmra.mxu0 %v2003
  %v2088 = vpop.f32.mrf.mxu0
  %v2089 = vadd.f32 0.0, %v2088
  %v2090 = vpop.f32.mrf.mxu0
  %v2091 = vadd.f32 0.0, %v2090
  %2092 = vmatmul.bf16.gmra.mxu0 %v2004
  %v2093 = vpop.f32.mrf.mxu0
  %v2094 = vadd.f32 0.0, %v2093
  %v2095 = vpop.f32.mrf.mxu0
  %v2096 = vadd.f32 0.0, %v2095
  %2097 = vmatmul.bf16.gmra.mxu0 %v2005
  %v2098 = vpop.f32.mrf.mxu0
  %v2099 = vadd.f32 0.0, %v2098
  %v2100 = vpop.f32.mrf.mxu0
  %v2101 = vadd.f32 0.0, %v2100
  %2102 = vmatmul.bf16.gmra.mxu0 %v2006
  %v2103 = vpop.f32.mrf.mxu0
  %v2104 = vadd.f32 0.0, %v2103
  %v2105 = vpop.f32.mrf.mxu0
  %v2106 = vadd.f32 0.0, %v2105
  %2107 = vmatmul.bf16.gmra.mxu0 %v2007
  %v2108 = vpop.f32.mrf.mxu0
  %v2109 = vadd.f32 0.0, %v2108
  %v2110 = vpop.f32.mrf.mxu0
  %v2111 = vadd.f32 0.0, %v2110
  %2112 = vdwg.mxu0
  %v2113 = vadd.f32 %v1695, %v2074
  %v2114 = vadd.f32 %v1696, %v2076
  %v2115 = vadd.f32 %v1697, %v2079
  %v2116 = vadd.f32 %v1698, %v2081
  %v2117 = vadd.f32 %v1699, %v2084
  %v2118 = vadd.f32 %v1700, %v2086
  %v2119 = vadd.f32 %v1701, %v2089
  %v2120 = vadd.f32 %v1702, %v2091
  %v2121 = vadd.f32 %v1703, %v2094
  %v2122 = vadd.f32 %v1704, %v2096
  %v2123 = vadd.f32 %v1705, %v2099
  %v2124 = vadd.f32 %v1706, %v2101
  %v2125 = vadd.f32 %v1707, %v2104
  %v2126 = vadd.f32 %v1708, %v2106
  %v2127 = vadd.f32 %v1709, %v2109
  %v2128 = vadd.f32 %v1710, %v2111
  %v2129 = vld [vmem:[%s571] sm:$0xe]
  %v2130 = vld [vmem:[%s571 + $0x8] sm:$0xe]
  %v2131 = vld [vmem:[%s571 + $0x10] sm:$0xe]
  %v2132 = vld [vmem:[%s571 + $0x18] sm:$0xe]
  %v2133 = vld [vmem:[%s571 + $0x20] sm:$0xe]
  %v2134 = vld [vmem:[%s571 + $0x28] sm:$0xe]
  %v2135 = vld [vmem:[%s571 + $0x30] sm:$0xe]
  %v2136 = vld [vmem:[%s571 + $0x38] sm:$0xe]
  %v2137 = vld [vmem:[%s571 + $0x50] sm:$0xe]
  %v2138 = vld [vmem:[%s571 + $0x58] sm:$0xe]
  %v2139 = vld [vmem:[%s571 + $0x60] sm:$0xe]
  %v2140 = vld [vmem:[%s571 + $0x68] sm:$0xe]
  %v2141 = vld [vmem:[%s571 + $0x70] sm:$0xe]
  %v2142 = vld [vmem:[%s571 + $0x78] sm:$0xe]
  %v2143 = vld [vmem:[%s571 + $0x80] sm:$0xe]
  %v2144 = vld [vmem:[%s571 + $0x88] sm:$0xe]
  %v2177 = vrot.slane %v2129, 5
  %v2178 = vrot.slane %v2177, 4
  %v2179 = vrot.slane %v1712, 5
  %v2180 = vsel %vm1290, %v2178, %v2179
  %v2181 = vrot.slane %v2130, 5
  %v2182 = vrot.slane %v2181, 4
  %v2183 = vrot.slane %v1714, 5
  %v2184 = vsel %vm1290, %v2182, %v2183
  %v2185 = vrot.slane %v2131, 5
  %v2186 = vrot.slane %v2185, 4
  %v2187 = vrot.slane %v1716, 5
  %v2188 = vsel %vm1290, %v2186, %v2187
  %v2189 = vrot.slane %v2132, 5
  %v2190 = vrot.slane %v2189, 4
  %v2191 = vrot.slane %v1718, 5
  %v2192 = vsel %vm1290, %v2190, %v2191
  %v2193 = vrot.slane %v2133, 5
  %v2194 = vrot.slane %v2193, 4
  %v2195 = vrot.slane %v1720, 5
  %v2196 = vsel %vm1290, %v2194, %v2195
  %v2197 = vrot.slane %v2134, 5
  %v2198 = vrot.slane %v2197, 4
  %v2199 = vrot.slane %v1722, 5
  %v2200 = vsel %vm1290, %v2198, %v2199
  %v2201 = vrot.slane %v2135, 5
  %v2202 = vrot.slane %v2201, 4
  %v2203 = vrot.slane %v1724, 5
  %v2204 = vsel %vm1290, %v2202, %v2203
  %v2205 = vrot.slane %v2136, 5
  %v2206 = vrot.slane %v2205, 4
  %v2207 = vrot.slane %v1726, 5
  %v2208 = vsel %vm1290, %v2206, %v2207
  %v2209 = vrot.slane %v2137, 5
  %v2210 = vrot.slane %v2209, 4
  %v2211 = vrot.slane %v1728, 5
  %v2212 = vsel %vm1290, %v2210, %v2211
  %v2213 = vrot.slane %v2138, 5
  %v2214 = vrot.slane %v2213, 4
  %v2215 = vrot.slane %v1730, 5
  %v2216 = vsel %vm1290, %v2214, %v2215
  %v2217 = vrot.slane %v2139, 5
  %v2218 = vrot.slane %v2217, 4
  %v2219 = vrot.slane %v1732, 5
  %v2220 = vsel %vm1290, %v2218, %v2219
  %v2221 = vrot.slane %v2140, 5
  %v2222 = vrot.slane %v2221, 4
  %v2223 = vrot.slane %v1734, 5
  %v2224 = vsel %vm1290, %v2222, %v2223
  %v2225 = vrot.slane %v2141, 5
  %v2226 = vrot.slane %v2225, 4
  %v2227 = vrot.slane %v1736, 5
  %v2228 = vsel %vm1290, %v2226, %v2227
  %v2229 = vrot.slane %v2142, 5
  %v2230 = vrot.slane %v2229, 4
  %v2231 = vrot.slane %v1738, 5
  %v2232 = vsel %vm1290, %v2230, %v2231
  %v2233 = vrot.slane %v2143, 5
  %v2234 = vrot.slane %v2233, 4
  %v2235 = vrot.slane %v1740, 5
  %v2236 = vsel %vm1290, %v2234, %v2235
  %v2237 = vrot.slane %v2144, 5
  %v2238 = vrot.slane %v2237, 4
  %v2239 = vrot.slane %v1742, 5
  %v2240 = vsel %vm1290, %v2238, %v2239
  %s2241 = scalar_lea.vmem %s2, 320
  %v2242 = vld [vmem:[%s2241] sm:$0xf]
  %v2243 = vld [vmem:[%s2241 + $0x4] sm:$0xf]
  %v2244 = vld [vmem:[%s2241 + $0x8] sm:$0xf]
  %v2245 = vld [vmem:[%s2241 + $0xc] sm:$0xf]
  %v2246 = vld [vmem:[%s2241 + $0x10] sm:$0xf]
  %v2247 = vld [vmem:[%s2241 + $0x14] sm:$0xf]
  %v2248 = vld [vmem:[%s2241 + $0x18] sm:$0xf]
  %v2249 = vld [vmem:[%s2241 + $0x1c] sm:$0xf]
  %v2250 = vld [vmem:[%s2241 + $0x20] sm:$0xf]
  %v2251 = vld [vmem:[%s2241 + $0x24] sm:$0xf]
  %v2252 = vld [vmem:[%s2241 + $0x28] sm:$0xf]
  %v2253 = vld [vmem:[%s2241 + $0x2c] sm:$0xf]
  %v2254 = vld [vmem:[%s2241 + $0x30] sm:$0xf]
  %v2255 = vld [vmem:[%s2241 + $0x34] sm:$0xf]
  %v2256 = vld [vmem:[%s2241 + $0x38] sm:$0xf]
  %v2257 = vld [vmem:[%s2241 + $0x3c] sm:$0xf]
  %v2258 = vunpack.c.l.b16 %v2180
  %v2259 = vunpack.c.l.b16 %v2184
  %v2260 = vunpack.c.l.b16 %v2188
  %v2261 = vunpack.c.l.b16 %v2192
  %v2262 = vunpack.c.l.b16 %v2196
  %v2263 = vunpack.c.l.b16 %v2200
  %v2264 = vunpack.c.l.b16 %v2204
  %v2265 = vunpack.c.l.b16 %v2208
  %v2266 = vunpack.c.l.b16 %v2212
  %v2267 = vunpack.c.l.b16 %v2216
  %v2268 = vunpack.c.l.b16 %v2220
  %v2269 = vunpack.c.l.b16 %v2224
  %v2270 = vunpack.c.l.b16 %v2228
  %v2271 = vunpack.c.l.b16 %v2232
  %v2272 = vunpack.c.l.b16 %v2236
  %v2273 = vunpack.c.l.b16 %v2240
  %v2274 = vpack.c.b16 %v2259, %v2258
  %v2275 = vpack.c.b16 %v2261, %v2260
  %v2276 = vpack.c.b16 %v2263, %v2262
  %v2277 = vpack.c.b16 %v2265, %v2264
  %v2278 = vpack.c.b16 %v2267, %v2266
  %v2279 = vpack.c.b16 %v2269, %v2268
  %v2280 = vpack.c.b16 %v2271, %v2270
  %v2281 = vpack.c.b16 %v2273, %v2272
  %v2306 = vunpack.c.l.b16 %v2242
  %v2307 = vunpack.c.l.b16 %v2243
  %v2308 = vunpack.c.l.b16 %v2244
  %v2309 = vunpack.c.l.b16 %v2245
  %v2310 = vunpack.c.l.b16 %v2246
  %v2311 = vunpack.c.l.b16 %v2247
  %v2312 = vunpack.c.l.b16 %v2248
  %v2313 = vunpack.c.l.b16 %v2249
  %v2314 = vunpack.c.l.b16 %v2250
  %v2315 = vunpack.c.l.b16 %v2251
  %v2316 = vunpack.c.l.b16 %v2252
  %v2317 = vunpack.c.l.b16 %v2253
  %v2318 = vunpack.c.l.b16 %v2254
  %v2319 = vunpack.c.l.b16 %v2255
  %v2320 = vunpack.c.l.b16 %v2256
  %v2321 = vunpack.c.l.b16 %v2257
  %v2322 = vpack.c.b16 %v2307, %v2306
  %v2323 = vpack.c.b16 %v2309, %v2308
  %v2324 = vpack.c.b16 %v2311, %v2310
  %v2325 = vpack.c.b16 %v2313, %v2312
  %v2326 = vpack.c.b16 %v2315, %v2314
  %v2327 = vpack.c.b16 %v2317, %v2316
  %v2328 = vpack.c.b16 %v2319, %v2318
  %v2329 = vpack.c.b16 %v2321, %v2320
  %2338 = vmatpush.bf16.msra.mxu0 %v2329
  %2339 = vmatpush.bf16.msra.mxu0 %v2328
  %2340 = vmatpush.bf16.msra.mxu0 %v2327
  %2341 = vmatpush.bf16.msra.mxu0 %v2326
  %2342 = vmatpush.bf16.msra.mxu0 %v2325
  %2343 = vmatpush.bf16.msra.mxu0 %v2324
  %2344 = vmatpush.bf16.msra.mxu0 %v2323
  %2345 = vmatpush.bf16.msra.mxu0 %v2322
  %2346 = vmatmul.bf16.gmra.mxu0 %v2274
  %v2347 = vpop.f32.mrf.mxu0
  %v2348 = vadd.f32 0.0, %v2347
  %v2349 = vpop.f32.mrf.mxu0
  %v2350 = vadd.f32 0.0, %v2349
  %2351 = vmatmul.bf16.gmra.mxu0 %v2275
  %v2352 = vpop.f32.mrf.mxu0
  %v2353 = vadd.f32 0.0, %v2352
  %v2354 = vpop.f32.mrf.mxu0
  %v2355 = vadd.f32 0.0, %v2354
  %2356 = vmatmul.bf16.gmra.mxu0 %v2276
  %v2357 = vpop.f32.mrf.mxu0
  %v2358 = vadd.f32 0.0, %v2357
  %v2359 = vpop.f32.mrf.mxu0
  %v2360 = vadd.f32 0.0, %v2359
  %2361 = vmatmul.bf16.gmra.mxu0 %v2277
  %v2362 = vpop.f32.mrf.mxu0
  %v2363 = vadd.f32 0.0, %v2362
  %v2364 = vpop.f32.mrf.mxu0
  %v2365 = vadd.f32 0.0, %v2364
  %2366 = vmatmul.bf16.gmra.mxu0 %v2278
  %v2367 = vpop.f32.mrf.mxu0
  %v2368 = vadd.f32 0.0, %v2367
  %v2369 = vpop.f32.mrf.mxu0
  %v2370 = vadd.f32 0.0, %v2369
  %2371 = vmatmul.bf16.gmra.mxu0 %v2279
  %v2372 = vpop.f32.mrf.mxu0
  %v2373 = vadd.f32 0.0, %v2372
  %v2374 = vpop.f32.mrf.mxu0
  %v2375 = vadd.f32 0.0, %v2374
  %2376 = vmatmul.bf16.gmra.mxu0 %v2280
  %v2377 = vpop.f32.mrf.mxu0
  %v2378 = vadd.f32 0.0, %v2377
  %v2379 = vpop.f32.mrf.mxu0
  %v2380 = vadd.f32 0.0, %v2379
  %2381 = vmatmul.bf16.gmra.mxu0 %v2281
  %v2382 = vpop.f32.mrf.mxu0
  %v2383 = vadd.f32 0.0, %v2382
  %v2384 = vpop.f32.mrf.mxu0
  %v2385 = vadd.f32 0.0, %v2384
  %2386 = vdwg.mxu0
  %v2387 = vadd.f32 %v2113, %v2348
  %v2388 = vadd.f32 %v2114, %v2350
  %v2389 = vadd.f32 %v2115, %v2353
  %v2390 = vadd.f32 %v2116, %v2355
  %v2391 = vadd.f32 %v2117, %v2358
  %v2392 = vadd.f32 %v2118, %v2360
  %v2393 = vadd.f32 %v2119, %v2363
  %v2394 = vadd.f32 %v2120, %v2365
  %v2395 = vadd.f32 %v2121, %v2368
  %v2396 = vadd.f32 %v2122, %v2370
  %v2397 = vadd.f32 %v2123, %v2373
  %v2398 = vadd.f32 %v2124, %v2375
  %v2399 = vadd.f32 %v2125, %v2378
  %v2400 = vadd.f32 %v2126, %v2380
  %v2401 = vadd.f32 %v2127, %v2383
  %v2402 = vadd.f32 %v2128, %v2385
  %s2403 = scalar_lea.vmem [#allocation2], 16
  %v2404 = vld [vmem:[%s2403] sm:$0xf]
  %v2405 = vld [vmem:[%s2403 + $0x8] sm:$0xf]
  %v2406 = vld [vmem:[%s2403 + $0x10] sm:$0xf]
  %v2407 = vld [vmem:[%s2403 + $0x18] sm:$0xf]
  %v2408 = vld [vmem:[%s2403 + $0x20] sm:$0xf]
  %v2409 = vld [vmem:[%s2403 + $0x28] sm:$0xf]
  %v2410 = vld [vmem:[%s2403 + $0x30] sm:$0xf]
  %v2411 = vld [vmem:[%s2403 + $0x38] sm:$0xf]
  %v2412 = vld [vmem:[%s2403 + $0x50] sm:$0xf]
  %v2413 = vld [vmem:[%s2403 + $0x58] sm:$0xf]
  %v2414 = vld [vmem:[%s2403 + $0x60] sm:$0xf]
  %v2415 = vld [vmem:[%s2403 + $0x68] sm:$0xf]
  %v2416 = vld [vmem:[%s2403 + $0x70] sm:$0xf]
  %v2417 = vld [vmem:[%s2403 + $0x78] sm:$0xf]
  %v2418 = vld [vmem:[%s2403 + $0x80] sm:$0xf]
  %v2419 = vld [vmem:[%s2403 + $0x88] sm:$0xf]
  %s2420 = scalar_lea.vmem %s2, 384
  %v2421 = vld [vmem:[%s2420] sm:$0xf]
  %v2422 = vld [vmem:[%s2420 + $0x4] sm:$0xf]
  %v2423 = vld [vmem:[%s2420 + $0x8] sm:$0xf]
  %v2424 = vld [vmem:[%s2420 + $0xc] sm:$0xf]
  %v2425 = vld [vmem:[%s2420 + $0x10] sm:$0xf]
  %v2426 = vld [vmem:[%s2420 + $0x14] sm:$0xf]
  %v2427 = vld [vmem:[%s2420 + $0x18] sm:$0xf]
  %v2428 = vld [vmem:[%s2420 + $0x1c] sm:$0xf]
  %v2429 = vld [vmem:[%s2420 + $0x20] sm:$0xf]
  %v2430 = vld [vmem:[%s2420 + $0x24] sm:$0xf]
  %v2431 = vld [vmem:[%s2420 + $0x28] sm:$0xf]
  %v2432 = vld [vmem:[%s2420 + $0x2c] sm:$0xf]
  %v2433 = vld [vmem:[%s2420 + $0x30] sm:$0xf]
  %v2434 = vld [vmem:[%s2420 + $0x34] sm:$0xf]
  %v2435 = vld [vmem:[%s2420 + $0x38] sm:$0xf]
  %v2436 = vld [vmem:[%s2420 + $0x3c] sm:$0xf]
  %v2453 = vunpack.c.l.b16 %v2404
  %v2454 = vunpack.c.l.b16 %v2405
  %v2455 = vunpack.c.l.b16 %v2406
  %v2456 = vunpack.c.l.b16 %v2407
  %v2457 = vunpack.c.l.b16 %v2408
  %v2458 = vunpack.c.l.b16 %v2409
  %v2459 = vunpack.c.l.b16 %v2410
  %v2460 = vunpack.c.l.b16 %v2411
  %v2461 = vunpack.c.l.b16 %v2412
  %v2462 = vunpack.c.l.b16 %v2413
  %v2463 = vunpack.c.l.b16 %v2414
  %v2464 = vunpack.c.l.b16 %v2415
  %v2465 = vunpack.c.l.b16 %v2416
  %v2466 = vunpack.c.l.b16 %v2417
  %v2467 = vunpack.c.l.b16 %v2418
  %v2468 = vunpack.c.l.b16 %v2419
  %v2469 = vpack.c.b16 %v2454, %v2453
  %v2470 = vpack.c.b16 %v2456, %v2455
  %v2471 = vpack.c.b16 %v2458, %v2457
  %v2472 = vpack.c.b16 %v2460, %v2459
  %v2473 = vpack.c.b16 %v2462, %v2461
  %v2474 = vpack.c.b16 %v2464, %v2463
  %v2475 = vpack.c.b16 %v2466, %v2465
  %v2476 = vpack.c.b16 %v2468, %v2467
  %v2501 = vunpack.c.l.b16 %v2421
  %v2502 = vunpack.c.l.b16 %v2422
  %v2503 = vunpack.c.l.b16 %v2423
  %v2504 = vunpack.c.l.b16 %v2424
  %v2505 = vunpack.c.l.b16 %v2425
  %v2506 = vunpack.c.l.b16 %v2426
  %v2507 = vunpack.c.l.b16 %v2427
  %v2508 = vunpack.c.l.b16 %v2428
  %v2509 = vunpack.c.l.b16 %v2429
  %v2510 = vunpack.c.l.b16 %v2430
  %v2511 = vunpack.c.l.b16 %v2431
  %v2512 = vunpack.c.l.b16 %v2432
  %v2513 = vunpack.c.l.b16 %v2433
  %v2514 = vunpack.c.l.b16 %v2434
  %v2515 = vunpack.c.l.b16 %v2435
  %v2516 = vunpack.c.l.b16 %v2436
  %v2517 = vpack.c.b16 %v2502, %v2501
  %v2518 = vpack.c.b16 %v2504, %v2503
  %v2519 = vpack.c.b16 %v2506, %v2505
  %v2520 = vpack.c.b16 %v2508, %v2507
  %v2521 = vpack.c.b16 %v2510, %v2509
  %v2522 = vpack.c.b16 %v2512, %v2511
  %v2523 = vpack.c.b16 %v2514, %v2513
  %v2524 = vpack.c.b16 %v2516, %v2515
  %2533 = vmatpush.bf16.msra.mxu0 %v2524
  %2534 = vmatpush.bf16.msra.mxu0 %v2523
  %2535 = vmatpush.bf16.msra.mxu0 %v2522
  %2536 = vmatpush.bf16.msra.mxu0 %v2521
  %2537 = vmatpush.bf16.msra.mxu0 %v2520
  %2538 = vmatpush.bf16.msra.mxu0 %v2519
  %2539 = vmatpush.bf16.msra.mxu0 %v2518
  %2540 = vmatpush.bf16.msra.mxu0 %v2517
  %2541 = vmatmul.bf16.gmra.mxu0 %v2469
  %v2542 = vpop.f32.mrf.mxu0
  %v2543 = vadd.f32 0.0, %v2542
  %v2544 = vpop.f32.mrf.mxu0
  %v2545 = vadd.f32 0.0, %v2544
  %2546 = vmatmul.bf16.gmra.mxu0 %v2470
  %v2547 = vpop.f32.mrf.mxu0
  %v2548 = vadd.f32 0.0, %v2547
  %v2549 = vpop.f32.mrf.mxu0
  %v2550 = vadd.f32 0.0, %v2549
  %2551 = vmatmul.bf16.gmra.mxu0 %v2471
  %v2552 = vpop.f32.mrf.mxu0
  %v2553 = vadd.f32 0.0, %v2552
  %v2554 = vpop.f32.mrf.mxu0
  %v2555 = vadd.f32 0.0, %v2554
  %2556 = vmatmul.bf16.gmra.mxu0 %v2472
  %v2557 = vpop.f32.mrf.mxu0
  %v2558 = vadd.f32 0.0, %v2557
  %v2559 = vpop.f32.mrf.mxu0
  %v2560 = vadd.f32 0.0, %v2559
  %2561 = vmatmul.bf16.gmra.mxu0 %v2473
  %v2562 = vpop.f32.mrf.mxu0
  %v2563 = vadd.f32 0.0, %v2562
  %v2564 = vpop.f32.mrf.mxu0
  %v2565 = vadd.f32 0.0, %v2564
  %2566 = vmatmul.bf16.gmra.mxu0 %v2474
  %v2567 = vpop.f32.mrf.mxu0
  %v2568 = vadd.f32 0.0, %v2567
  %v2569 = vpop.f32.mrf.mxu0
  %v2570 = vadd.f32 0.0, %v2569
  %2571 = vmatmul.bf16.gmra.mxu0 %v2475
  %v2572 = vpop.f32.mrf.mxu0
  %v2573 = vadd.f32 0.0, %v2572
  %v2574 = vpop.f32.mrf.mxu0
  %v2575 = vadd.f32 0.0, %v2574
  %2576 = vmatmul.bf16.gmra.mxu0 %v2476
  %v2577 = vpop.f32.mrf.mxu0
  %v2578 = vadd.f32 0.0, %v2577
  %v2579 = vpop.f32.mrf.mxu0
  %v2580 = vadd.f32 0.0, %v2579
  %2581 = vdwg.mxu0
  %v2582 = vadd.f32 %v2387, %v2543
  %v2583 = vadd.f32 %v2388, %v2545
  %v2584 = vadd.f32 %v2389, %v2548
  %v2585 = vadd.f32 %v2390, %v2550
  %v2586 = vadd.f32 %v2391, %v2553
  %v2587 = vadd.f32 %v2392, %v2555
  %v2588 = vadd.f32 %v2393, %v2558
  %v2589 = vadd.f32 %v2394, %v2560
  %v2590 = vadd.f32 %v2395, %v2563
  %v2591 = vadd.f32 %v2396, %v2565
  %v2592 = vadd.f32 %v2397, %v2568
  %v2593 = vadd.f32 %v2398, %v2570
  %v2594 = vadd.f32 %v2399, %v2573
  %v2595 = vadd.f32 %v2400, %v2575
  %v2596 = vadd.f32 %v2401, %v2578
  %v2597 = vadd.f32 %v2402, %v2580
  %v2598 = vld [vmem:[%s2403] sm:$0xf]
  %v2599 = vld [vmem:[%s2403 + $0x4] sm:$0x1]
  %v2600 = vld [vmem:[%s2403 + $0x8] sm:$0xf]
  %v2601 = vld [vmem:[%s2403 + $0xc] sm:$0x1]
  %v2602 = vld [vmem:[%s2403 + $0x10] sm:$0xf]
  %v2603 = vld [vmem:[%s2403 + $0x14] sm:$0x1]
  %v2604 = vld [vmem:[%s2403 + $0x18] sm:$0xf]
  %v2605 = vld [vmem:[%s2403 + $0x1c] sm:$0x1]
  %v2606 = vld [vmem:[%s2403 + $0x20] sm:$0xf]
  %v2607 = vld [vmem:[%s2403 + $0x24] sm:$0x1]
  %v2608 = vld [vmem:[%s2403 + $0x28] sm:$0xf]
  %v2609 = vld [vmem:[%s2403 + $0x2c] sm:$0x1]
  %v2610 = vld [vmem:[%s2403 + $0x30] sm:$0xf]
  %v2611 = vld [vmem:[%s2403 + $0x34] sm:$0x1]
  %v2612 = vld [vmem:[%s2403 + $0x38] sm:$0xf]
  %v2613 = vld [vmem:[%s2403 + $0x3c] sm:$0x1]
  %v2614 = vld [vmem:[%s2403 + $0x50] sm:$0xf]
  %v2615 = vld [vmem:[%s2403 + $0x54] sm:$0x1]
  %v2616 = vld [vmem:[%s2403 + $0x58] sm:$0xf]
  %v2617 = vld [vmem:[%s2403 + $0x5c] sm:$0x1]
  %v2618 = vld [vmem:[%s2403 + $0x60] sm:$0xf]
  %v2619 = vld [vmem:[%s2403 + $0x64] sm:$0x1]
  %v2620 = vld [vmem:[%s2403 + $0x68] sm:$0xf]
  %v2621 = vld [vmem:[%s2403 + $0x6c] sm:$0x1]
  %v2622 = vld [vmem:[%s2403 + $0x70] sm:$0xf]
  %v2623 = vld [vmem:[%s2403 + $0x74] sm:$0x1]
  %v2624 = vld [vmem:[%s2403 + $0x78] sm:$0xf]
  %v2625 = vld [vmem:[%s2403 + $0x7c] sm:$0x1]
  %v2626 = vld [vmem:[%s2403 + $0x80] sm:$0xf]
  %v2627 = vld [vmem:[%s2403 + $0x84] sm:$0x1]
  %v2628 = vld [vmem:[%s2403 + $0x88] sm:$0xf]
  %v2629 = vld [vmem:[%s2403 + $0x8c] sm:$0x1]
  %v2631 = vshrl.u32 %v2598, 16
  %v2633 = vrot.slane %v2631, 4
  %v2634 = vshll.u32 %v2598, 16
  %v2636 = vrot.slane %v2634, 5
  %v2637 = vor.u32 %v2633, %v2636
  %v2638 = vrot.slane %v2637, 4
  %v2640 = vshll.u32 %v2599, 16
  %v2642 = vrot.slane %v2640, 5
  %v2643 = vsel %vm724, %v2638, %v2642
  %v2645 = vshrl.u32 %v2600, 16
  %v2647 = vrot.slane %v2645, 4
  %v2648 = vshll.u32 %v2600, 16
  %v2650 = vrot.slane %v2648, 5
  %v2651 = vor.u32 %v2647, %v2650
  %v2652 = vrot.slane %v2651, 4
  %v2654 = vshll.u32 %v2601, 16
  %v2656 = vrot.slane %v2654, 5
  %v2657 = vsel %vm724, %v2652, %v2656
  %v2659 = vshrl.u32 %v2602, 16
  %v2661 = vrot.slane %v2659, 4
  %v2662 = vshll.u32 %v2602, 16
  %v2664 = vrot.slane %v2662, 5
  %v2665 = vor.u32 %v2661, %v2664
  %v2666 = vrot.slane %v2665, 4
  %v2668 = vshll.u32 %v2603, 16
  %v2670 = vrot.slane %v2668, 5
  %v2671 = vsel %vm724, %v2666, %v2670
  %v2673 = vshrl.u32 %v2604, 16
  %v2675 = vrot.slane %v2673, 4
  %v2676 = vshll.u32 %v2604, 16
  %v2678 = vrot.slane %v2676, 5
  %v2679 = vor.u32 %v2675, %v2678
  %v2680 = vrot.slane %v2679, 4
  %v2682 = vshll.u32 %v2605, 16
  %v2684 = vrot.slane %v2682, 5
  %v2685 = vsel %vm724, %v2680, %v2684
  %v2687 = vshrl.u32 %v2606, 16
  %v2689 = vrot.slane %v2687, 4
  %v2690 = vshll.u32 %v2606, 16
  %v2692 = vrot.slane %v2690, 5
  %v2693 = vor.u32 %v2689, %v2692
  %v2694 = vrot.slane %v2693, 4
  %v2696 = vshll.u32 %v2607, 16
  %v2698 = vrot.slane %v2696, 5
  %v2699 = vsel %vm724, %v2694, %v2698
  %v2701 = vshrl.u32 %v2608, 16
  %v2703 = vrot.slane %v2701, 4
  %v2704 = vshll.u32 %v2608, 16
  %v2706 = vrot.slane %v2704, 5
  %v2707 = vor.u32 %v2703, %v2706
  %v2708 = vrot.slane %v2707, 4
  %v2710 = vshll.u32 %v2609, 16
  %v2712 = vrot.slane %v2710, 5
  %v2713 = vsel %vm724, %v2708, %v2712
  %v2715 = vshrl.u32 %v2610, 16
  %v2717 = vrot.slane %v2715, 4
  %v2718 = vshll.u32 %v2610, 16
  %v2720 = vrot.slane %v2718, 5
  %v2721 = vor.u32 %v2717, %v2720
  %v2722 = vrot.slane %v2721, 4
  %v2724 = vshll.u32 %v2611, 16
  %v2726 = vrot.slane %v2724, 5
  %v2727 = vsel %vm724, %v2722, %v2726
  %v2729 = vshrl.u32 %v2612, 16
  %v2731 = vrot.slane %v2729, 4
  %v2732 = vshll.u32 %v2612, 16
  %v2734 = vrot.slane %v2732, 5
  %v2735 = vor.u32 %v2731, %v2734
  %v2736 = vrot.slane %v2735, 4
  %v2738 = vshll.u32 %v2613, 16
  %v2740 = vrot.slane %v2738, 5
  %v2741 = vsel %vm724, %v2736, %v2740
  %v2743 = vshrl.u32 %v2614, 16
  %v2745 = vrot.slane %v2743, 4
  %v2746 = vshll.u32 %v2614, 16
  %v2748 = vrot.slane %v2746, 5
  %v2749 = vor.u32 %v2745, %v2748
  %v2750 = vrot.slane %v2749, 4
  %v2752 = vshll.u32 %v2615, 16
  %v2754 = vrot.slane %v2752, 5
  %v2755 = vsel %vm724, %v2750, %v2754
  %v2757 = vshrl.u32 %v2616, 16
  %v2759 = vrot.slane %v2757, 4
  %v2760 = vshll.u32 %v2616, 16
  %v2762 = vrot.slane %v2760, 5
  %v2763 = vor.u32 %v2759, %v2762
  %v2764 = vrot.slane %v2763, 4
  %v2766 = vshll.u32 %v2617, 16
  %v2768 = vrot.slane %v2766, 5
  %v2769 = vsel %vm724, %v2764, %v2768
  %v2771 = vshrl.u32 %v2618, 16
  %v2773 = vrot.slane %v2771, 4
  %v2774 = vshll.u32 %v2618, 16
  %v2776 = vrot.slane %v2774, 5
  %v2777 = vor.u32 %v2773, %v2776
  %v2778 = vrot.slane %v2777, 4
  %v2780 = vshll.u32 %v2619, 16
  %v2782 = vrot.slane %v2780, 5
  %v2783 = vsel %vm724, %v2778, %v2782
  %v2785 = vshrl.u32 %v2620, 16
  %v2787 = vrot.slane %v2785, 4
  %v2788 = vshll.u32 %v2620, 16
  %v2790 = vrot.slane %v2788, 5
  %v2791 = vor.u32 %v2787, %v2790
  %v2792 = vrot.slane %v2791, 4
  %v2794 = vshll.u32 %v2621, 16
  %v2796 = vrot.slane %v2794, 5
  %v2797 = vsel %vm724, %v2792, %v2796
  %v2799 = vshrl.u32 %v2622, 16
  %v2801 = vrot.slane %v2799, 4
  %v2802 = vshll.u32 %v2622, 16
  %v2804 = vrot.slane %v2802, 5
  %v2805 = vor.u32 %v2801, %v2804
  %v2806 = vrot.slane %v2805, 4
  %v2808 = vshll.u32 %v2623, 16
  %v2810 = vrot.slane %v2808, 5
  %v2811 = vsel %vm724, %v2806, %v2810
  %v2813 = vshrl.u32 %v2624, 16
  %v2815 = vrot.slane %v2813, 4
  %v2816 = vshll.u32 %v2624, 16
  %v2818 = vrot.slane %v2816, 5
  %v2819 = vor.u32 %v2815, %v2818
  %v2820 = vrot.slane %v2819, 4
  %v2822 = vshll.u32 %v2625, 16
  %v2824 = vrot.slane %v2822, 5
  %v2825 = vsel %vm724, %v2820, %v2824
  %v2827 = vshrl.u32 %v2626, 16
  %v2829 = vrot.slane %v2827, 4
  %v2830 = vshll.u32 %v2626, 16
  %v2832 = vrot.slane %v2830, 5
  %v2833 = vor.u32 %v2829, %v2832
  %v2834 = vrot.slane %v2833, 4
  %v2836 = vshll.u32 %v2627, 16
  %v2838 = vrot.slane %v2836, 5
  %v2839 = vsel %vm724, %v2834, %v2838
  %v2841 = vshrl.u32 %v2628, 16
  %v2843 = vrot.slane %v2841, 4
  %v2844 = vshll.u32 %v2628, 16
  %v2846 = vrot.slane %v2844, 5
  %v2847 = vor.u32 %v2843, %v2846
  %v2848 = vrot.slane %v2847, 4
  %v2850 = vshll.u32 %v2629, 16
  %v2852 = vrot.slane %v2850, 5
  %v2853 = vsel %vm724, %v2848, %v2852
  %s2854 = scalar_lea.vmem %s2, 448
  %v2855 = vld [vmem:[%s2854] sm:$0xf]
  %v2856 = vld [vmem:[%s2854 + $0x4] sm:$0xf]
  %v2857 = vld [vmem:[%s2854 + $0x8] sm:$0xf]
  %v2858 = vld [vmem:[%s2854 + $0xc] sm:$0xf]
  %v2859 = vld [vmem:[%s2854 + $0x10] sm:$0xf]
  %v2860 = vld [vmem:[%s2854 + $0x14] sm:$0xf]
  %v2861 = vld [vmem:[%s2854 + $0x18] sm:$0xf]
  %v2862 = vld [vmem:[%s2854 + $0x1c] sm:$0xf]
  %v2863 = vld [vmem:[%s2854 + $0x20] sm:$0xf]
  %v2864 = vld [vmem:[%s2854 + $0x24] sm:$0xf]
  %v2865 = vld [vmem:[%s2854 + $0x28] sm:$0xf]
  %v2866 = vld [vmem:[%s2854 + $0x2c] sm:$0xf]
  %v2867 = vld [vmem:[%s2854 + $0x30] sm:$0xf]
  %v2868 = vld [vmem:[%s2854 + $0x34] sm:$0xf]
  %v2869 = vld [vmem:[%s2854 + $0x38] sm:$0xf]
  %v2870 = vld [vmem:[%s2854 + $0x3c] sm:$0xf]
  %v2871 = vunpack.c.l.b16 %v2643
  %v2872 = vunpack.c.l.b16 %v2657
  %v2873 = vunpack.c.l.b16 %v2671
  %v2874 = vunpack.c.l.b16 %v2685
  %v2875 = vunpack.c.l.b16 %v2699
  %v2876 = vunpack.c.l.b16 %v2713
  %v2877 = vunpack.c.l.b16 %v2727
  %v2878 = vunpack.c.l.b16 %v2741
  %v2879 = vunpack.c.l.b16 %v2755
  %v2880 = vunpack.c.l.b16 %v2769
  %v2881 = vunpack.c.l.b16 %v2783
  %v2882 = vunpack.c.l.b16 %v2797
  %v2883 = vunpack.c.l.b16 %v2811
  %v2884 = vunpack.c.l.b16 %v2825
  %v2885 = vunpack.c.l.b16 %v2839
  %v2886 = vunpack.c.l.b16 %v2853
  %v2887 = vpack.c.b16 %v2872, %v2871
  %v2888 = vpack.c.b16 %v2874, %v2873
  %v2889 = vpack.c.b16 %v2876, %v2875
  %v2890 = vpack.c.b16 %v2878, %v2877
  %v2891 = vpack.c.b16 %v2880, %v2879
  %v2892 = vpack.c.b16 %v2882, %v2881
  %v2893 = vpack.c.b16 %v2884, %v2883
  %v2894 = vpack.c.b16 %v2886, %v2885
  %v2919 = vunpack.c.l.b16 %v2855
  %v2920 = vunpack.c.l.b16 %v2856
  %v2921 = vunpack.c.l.b16 %v2857
  %v2922 = vunpack.c.l.b16 %v2858
  %v2923 = vunpack.c.l.b16 %v2859
  %v2924 = vunpack.c.l.b16 %v2860
  %v2925 = vunpack.c.l.b16 %v2861
  %v2926 = vunpack.c.l.b16 %v2862
  %v2927 = vunpack.c.l.b16 %v2863
  %v2928 = vunpack.c.l.b16 %v2864
  %v2929 = vunpack.c.l.b16 %v2865
  %v2930 = vunpack.c.l.b16 %v2866
  %v2931 = vunpack.c.l.b16 %v2867
  %v2932 = vunpack.c.l.b16 %v2868
  %v2933 = vunpack.c.l.b16 %v2869
  %v2934 = vunpack.c.l.b16 %v2870
  %v2935 = vpack.c.b16 %v2920, %v2919
  %v2936 = vpack.c.b16 %v2922, %v2921
  %v2937 = vpack.c.b16 %v2924, %v2923
  %v2938 = vpack.c.b16 %v2926, %v2925
  %v2939 = vpack.c.b16 %v2928, %v2927
  %v2940 = vpack.c.b16 %v2930, %v2929
  %v2941 = vpack.c.b16 %v2932, %v2931
  %v2942 = vpack.c.b16 %v2934, %v2933
  %2951 = vmatpush.bf16.msra.mxu0 %v2942
  %2952 = vmatpush.bf16.msra.mxu0 %v2941
  %2953 = vmatpush.bf16.msra.mxu0 %v2940
  %2954 = vmatpush.bf16.msra.mxu0 %v2939
  %2955 = vmatpush.bf16.msra.mxu0 %v2938
  %2956 = vmatpush.bf16.msra.mxu0 %v2937
  %2957 = vmatpush.bf16.msra.mxu0 %v2936
  %2958 = vmatpush.bf16.msra.mxu0 %v2935
  %2959 = vmatmul.bf16.gmra.mxu0 %v2887
  %v2960 = vpop.f32.mrf.mxu0
  %v2961 = vadd.f32 0.0, %v2960
  %v2962 = vpop.f32.mrf.mxu0
  %v2963 = vadd.f32 0.0, %v2962
  %2964 = vmatmul.bf16.gmra.mxu0 %v2888
  %v2965 = vpop.f32.mrf.mxu0
  %v2966 = vadd.f32 0.0, %v2965
  %v2967 = vpop.f32.mrf.mxu0
  %v2968 = vadd.f32 0.0, %v2967
  %2969 = vmatmul.bf16.gmra.mxu0 %v2889
  %v2970 = vpop.f32.mrf.mxu0
  %v2971 = vadd.f32 0.0, %v2970
  %v2972 = vpop.f32.mrf.mxu0
  %v2973 = vadd.f32 0.0, %v2972
  %2974 = vmatmul.bf16.gmra.mxu0 %v2890
  %v2975 = vpop.f32.mrf.mxu0
  %v2976 = vadd.f32 0.0, %v2975
  %v2977 = vpop.f32.mrf.mxu0
  %v2978 = vadd.f32 0.0, %v2977
  %2979 = vmatmul.bf16.gmra.mxu0 %v2891
  %v2980 = vpop.f32.mrf.mxu0
  %v2981 = vadd.f32 0.0, %v2980
  %v2982 = vpop.f32.mrf.mxu0
  %v2983 = vadd.f32 0.0, %v2982
  %2984 = vmatmul.bf16.gmra.mxu0 %v2892
  %v2985 = vpop.f32.mrf.mxu0
  %v2986 = vadd.f32 0.0, %v2985
  %v2987 = vpop.f32.mrf.mxu0
  %v2988 = vadd.f32 0.0, %v2987
  %2989 = vmatmul.bf16.gmra.mxu0 %v2893
  %v2990 = vpop.f32.mrf.mxu0
  %v2991 = vadd.f32 0.0, %v2990
  %v2992 = vpop.f32.mrf.mxu0
  %v2993 = vadd.f32 0.0, %v2992
  %2994 = vmatmul.bf16.gmra.mxu0 %v2894
  %v2995 = vpop.f32.mrf.mxu0
  %v2996 = vadd.f32 0.0, %v2995
  %v2997 = vpop.f32.mrf.mxu0
  %v2998 = vadd.f32 0.0, %v2997
  %2999 = vdwg.mxu0
  %v3000 = vadd.f32 %v2582, %v2961
  %v3001 = vadd.f32 %v2583, %v2963
  %v3002 = vadd.f32 %v2584, %v2966
  %v3003 = vadd.f32 %v2585, %v2968
  %v3004 = vadd.f32 %v2586, %v2971
  %v3005 = vadd.f32 %v2587, %v2973
  %v3006 = vadd.f32 %v2588, %v2976
  %v3007 = vadd.f32 %v2589, %v2978
  %v3008 = vadd.f32 %v2590, %v2981
  %v3009 = vadd.f32 %v2591, %v2983
  %v3010 = vadd.f32 %v2592, %v2986
  %v3011 = vadd.f32 %v2593, %v2988
  %v3012 = vadd.f32 %v2594, %v2991
  %v3013 = vadd.f32 %v2595, %v2993
  %v3014 = vadd.f32 %v2596, %v2996
  %v3015 = vadd.f32 %v2597, %v2998
  %v3016 = vld [vmem:[%s2403] sm:$0xe]
  %v3017 = vld [vmem:[%s2403 + $0x8] sm:$0xe]
  %v3018 = vld [vmem:[%s2403 + $0x10] sm:$0xe]
  %v3019 = vld [vmem:[%s2403 + $0x18] sm:$0xe]
  %v3020 = vld [vmem:[%s2403 + $0x20] sm:$0xe]
  %v3021 = vld [vmem:[%s2403 + $0x28] sm:$0xe]
  %v3022 = vld [vmem:[%s2403 + $0x30] sm:$0xe]
  %v3023 = vld [vmem:[%s2403 + $0x38] sm:$0xe]
  %v3024 = vld [vmem:[%s2403 + $0x50] sm:$0xe]
  %v3025 = vld [vmem:[%s2403 + $0x58] sm:$0xe]
  %v3026 = vld [vmem:[%s2403 + $0x60] sm:$0xe]
  %v3027 = vld [vmem:[%s2403 + $0x68] sm:$0xe]
  %v3028 = vld [vmem:[%s2403 + $0x70] sm:$0xe]
  %v3029 = vld [vmem:[%s2403 + $0x78] sm:$0xe]
  %v3030 = vld [vmem:[%s2403 + $0x80] sm:$0xe]
  %v3031 = vld [vmem:[%s2403 + $0x88] sm:$0xe]
  %v3064 = vrot.slane %v3016, 5
  %v3065 = vrot.slane %v3064, 4
  %v3066 = vrot.slane %v2599, 5
  %v3067 = vsel %vm1290, %v3065, %v3066
  %v3068 = vrot.slane %v3017, 5
  %v3069 = vrot.slane %v3068, 4
  %v3070 = vrot.slane %v2601, 5
  %v3071 = vsel %vm1290, %v3069, %v3070
  %v3072 = vrot.slane %v3018, 5
  %v3073 = vrot.slane %v3072, 4
  %v3074 = vrot.slane %v2603, 5
  %v3075 = vsel %vm1290, %v3073, %v3074
  %v3076 = vrot.slane %v3019, 5
  %v3077 = vrot.slane %v3076, 4
  %v3078 = vrot.slane %v2605, 5
  %v3079 = vsel %vm1290, %v3077, %v3078
  %v3080 = vrot.slane %v3020, 5
  %v3081 = vrot.slane %v3080, 4
  %v3082 = vrot.slane %v2607, 5
  %v3083 = vsel %vm1290, %v3081, %v3082
  %v3084 = vrot.slane %v3021, 5
  %v3085 = vrot.slane %v3084, 4
  %v3086 = vrot.slane %v2609, 5
  %v3087 = vsel %vm1290, %v3085, %v3086
  %v3088 = vrot.slane %v3022, 5
  %v3089 = vrot.slane %v3088, 4
  %v3090 = vrot.slane %v2611, 5
  %v3091 = vsel %vm1290, %v3089, %v3090
  %v3092 = vrot.slane %v3023, 5
  %v3093 = vrot.slane %v3092, 4
  %v3094 = vrot.slane %v2613, 5
  %v3095 = vsel %vm1290, %v3093, %v3094
  %v3096 = vrot.slane %v3024, 5
  %v3097 = vrot.slane %v3096, 4
  %v3098 = vrot.slane %v2615, 5
  %v3099 = vsel %vm1290, %v3097, %v3098
  %v3100 = vrot.slane %v3025, 5
  %v3101 = vrot.slane %v3100, 4
  %v3102 = vrot.slane %v2617, 5
  %v3103 = vsel %vm1290, %v3101, %v3102
  %v3104 = vrot.slane %v3026, 5
  %v3105 = vrot.slane %v3104, 4
  %v3106 = vrot.slane %v2619, 5
  %v3107 = vsel %vm1290, %v3105, %v3106
  %v3108 = vrot.slane %v3027, 5
  %v3109 = vrot.slane %v3108, 4
  %v3110 = vrot.slane %v2621, 5
  %v3111 = vsel %vm1290, %v3109, %v3110
  %v3112 = vrot.slane %v3028, 5
  %v3113 = vrot.slane %v3112, 4
  %v3114 = vrot.slane %v2623, 5
  %v3115 = vsel %vm1290, %v3113, %v3114
  %v3116 = vrot.slane %v3029, 5
  %v3117 = vrot.slane %v3116, 4
  %v3118 = vrot.slane %v2625, 5
  %v3119 = vsel %vm1290, %v3117, %v3118
  %v3120 = vrot.slane %v3030, 5
  %v3121 = vrot.slane %v3120, 4
  %v3122 = vrot.slane %v2627, 5
  %v3123 = vsel %vm1290, %v3121, %v3122
  %v3124 = vrot.slane %v3031, 5
  %v3125 = vrot.slane %v3124, 4
  %v3126 = vrot.slane %v2629, 5
  %v3127 = vsel %vm1290, %v3125, %v3126
  %s3128 = scalar_lea.vmem %s2, 512
  %v3129 = vld [vmem:[%s3128] sm:$0xf]
  %v3130 = vld [vmem:[%s3128 + $0x4] sm:$0xf]
  %v3131 = vld [vmem:[%s3128 + $0x8] sm:$0xf]
  %v3132 = vld [vmem:[%s3128 + $0xc] sm:$0xf]
  %v3133 = vld [vmem:[%s3128 + $0x10] sm:$0xf]
  %v3134 = vld [vmem:[%s3128 + $0x14] sm:$0xf]
  %v3135 = vld [vmem:[%s3128 + $0x18] sm:$0xf]
  %v3136 = vld [vmem:[%s3128 + $0x1c] sm:$0xf]
  %v3137 = vld [vmem:[%s3128 + $0x20] sm:$0xf]
  %v3138 = vld [vmem:[%s3128 + $0x24] sm:$0xf]
  %v3139 = vld [vmem:[%s3128 + $0x28] sm:$0xf]
  %v3140 = vld [vmem:[%s3128 + $0x2c] sm:$0xf]
  %v3141 = vld [vmem:[%s3128 + $0x30] sm:$0xf]
  %v3142 = vld [vmem:[%s3128 + $0x34] sm:$0xf]
  %v3143 = vld [vmem:[%s3128 + $0x38] sm:$0xf]
  %v3144 = vld [vmem:[%s3128 + $0x3c] sm:$0xf]
  %v3145 = vunpack.c.l.b16 %v3067
  %v3146 = vunpack.c.l.b16 %v3071
  %v3147 = vunpack.c.l.b16 %v3075
  %v3148 = vunpack.c.l.b16 %v3079
  %v3149 = vunpack.c.l.b16 %v3083
  %v3150 = vunpack.c.l.b16 %v3087
  %v3151 = vunpack.c.l.b16 %v3091
  %v3152 = vunpack.c.l.b16 %v3095
  %v3153 = vunpack.c.l.b16 %v3099
  %v3154 = vunpack.c.l.b16 %v3103
  %v3155 = vunpack.c.l.b16 %v3107
  %v3156 = vunpack.c.l.b16 %v3111
  %v3157 = vunpack.c.l.b16 %v3115
  %v3158 = vunpack.c.l.b16 %v3119
  %v3159 = vunpack.c.l.b16 %v3123
  %v3160 = vunpack.c.l.b16 %v3127
  %v3161 = vpack.c.b16 %v3146, %v3145
  %v3162 = vpack.c.b16 %v3148, %v3147
  %v3163 = vpack.c.b16 %v3150, %v3149
  %v3164 = vpack.c.b16 %v3152, %v3151
  %v3165 = vpack.c.b16 %v3154, %v3153
  %v3166 = vpack.c.b16 %v3156, %v3155
  %v3167 = vpack.c.b16 %v3158, %v3157
  %v3168 = vpack.c.b16 %v3160, %v3159
  %v3193 = vunpack.c.l.b16 %v3129
  %v3194 = vunpack.c.l.b16 %v3130
  %v3195 = vunpack.c.l.b16 %v3131
  %v3196 = vunpack.c.l.b16 %v3132
  %v3197 = vunpack.c.l.b16 %v3133
  %v3198 = vunpack.c.l.b16 %v3134
  %v3199 = vunpack.c.l.b16 %v3135
  %v3200 = vunpack.c.l.b16 %v3136
  %v3201 = vunpack.c.l.b16 %v3137
  %v3202 = vunpack.c.l.b16 %v3138
  %v3203 = vunpack.c.l.b16 %v3139
  %v3204 = vunpack.c.l.b16 %v3140
  %v3205 = vunpack.c.l.b16 %v3141
  %v3206 = vunpack.c.l.b16 %v3142
  %v3207 = vunpack.c.l.b16 %v3143
  %v3208 = vunpack.c.l.b16 %v3144
  %v3209 = vpack.c.b16 %v3194, %v3193
  %v3210 = vpack.c.b16 %v3196, %v3195
  %v3211 = vpack.c.b16 %v3198, %v3197
  %v3212 = vpack.c.b16 %v3200, %v3199
  %v3213 = vpack.c.b16 %v3202, %v3201
  %v3214 = vpack.c.b16 %v3204, %v3203
  %v3215 = vpack.c.b16 %v3206, %v3205
  %v3216 = vpack.c.b16 %v3208, %v3207
  %3225 = vmatpush.bf16.msra.mxu0 %v3216
  %3226 = vmatpush.bf16.msra.mxu0 %v3215
  %3227 = vmatpush.bf16.msra.mxu0 %v3214
  %3228 = vmatpush.bf16.msra.mxu0 %v3213
  %3229 = vmatpush.bf16.msra.mxu0 %v3212
  %3230 = vmatpush.bf16.msra.mxu0 %v3211
  %3231 = vmatpush.bf16.msra.mxu0 %v3210
  %3232 = vmatpush.bf16.msra.mxu0 %v3209
  %3233 = vmatmul.bf16.gmra.mxu0 %v3161
  %v3234 = vpop.f32.mrf.mxu0
  %v3235 = vadd.f32 0.0, %v3234
  %v3236 = vpop.f32.mrf.mxu0
  %v3237 = vadd.f32 0.0, %v3236
  %3238 = vmatmul.bf16.gmra.mxu0 %v3162
  %v3239 = vpop.f32.mrf.mxu0
  %v3240 = vadd.f32 0.0, %v3239
  %v3241 = vpop.f32.mrf.mxu0
  %v3242 = vadd.f32 0.0, %v3241
  %3243 = vmatmul.bf16.gmra.mxu0 %v3163
  %v3244 = vpop.f32.mrf.mxu0
  %v3245 = vadd.f32 0.0, %v3244
  %v3246 = vpop.f32.mrf.mxu0
  %v3247 = vadd.f32 0.0, %v3246
  %3248 = vmatmul.bf16.gmra.mxu0 %v3164
  %v3249 = vpop.f32.mrf.mxu0
  %v3250 = vadd.f32 0.0, %v3249
  %v3251 = vpop.f32.mrf.mxu0
  %v3252 = vadd.f32 0.0, %v3251
  %3253 = vmatmul.bf16.gmra.mxu0 %v3165
  %v3254 = vpop.f32.mrf.mxu0
  %v3255 = vadd.f32 0.0, %v3254
  %v3256 = vpop.f32.mrf.mxu0
  %v3257 = vadd.f32 0.0, %v3256
  %3258 = vmatmul.bf16.gmra.mxu0 %v3166
  %v3259 = vpop.f32.mrf.mxu0
  %v3260 = vadd.f32 0.0, %v3259
  %v3261 = vpop.f32.mrf.mxu0
  %v3262 = vadd.f32 0.0, %v3261
  %3263 = vmatmul.bf16.gmra.mxu0 %v3167
  %v3264 = vpop.f32.mrf.mxu0
  %v3265 = vadd.f32 0.0, %v3264
  %v3266 = vpop.f32.mrf.mxu0
  %v3267 = vadd.f32 0.0, %v3266
  %3268 = vmatmul.bf16.gmra.mxu0 %v3168
  %v3269 = vpop.f32.mrf.mxu0
  %v3270 = vadd.f32 0.0, %v3269
  %v3271 = vpop.f32.mrf.mxu0
  %v3272 = vadd.f32 0.0, %v3271
  %3273 = vdwg.mxu0
  %v3274 = vadd.f32 %v3000, %v3235
  %v3275 = vadd.f32 %v3001, %v3237
  %v3276 = vadd.f32 %v3002, %v3240
  %v3277 = vadd.f32 %v3003, %v3242
  %v3278 = vadd.f32 %v3004, %v3245
  %v3279 = vadd.f32 %v3005, %v3247
  %v3280 = vadd.f32 %v3006, %v3250
  %v3281 = vadd.f32 %v3007, %v3252
  %v3282 = vadd.f32 %v3008, %v3255
  %v3283 = vadd.f32 %v3009, %v3257
  %v3284 = vadd.f32 %v3010, %v3260
  %v3285 = vadd.f32 %v3011, %v3262
  %v3286 = vadd.f32 %v3012, %v3265
  %v3287 = vadd.f32 %v3013, %v3267
  %v3288 = vadd.f32 %v3014, %v3270
  %v3289 = vadd.f32 %v3015, %v3272
  %v3290 = vld [vmem:[%s3] sm:$0x1]
  %v3292 = vperm.slane %v3290, 0
  %v3294 = vadd.f32 %v3274, %v3292
  %v3295 = vadd.f32 %v3275, %v3292
  %v3296 = vadd.f32 %v3276, %v3292
  %v3297 = vadd.f32 %v3277, %v3292
  %v3298 = vadd.f32 %v3278, %v3292
  %v3299 = vadd.f32 %v3279, %v3292
  %v3300 = vadd.f32 %v3280, %v3292
  %v3301 = vadd.f32 %v3281, %v3292
  %v3302 = vadd.f32 %v3282, %v3292
  %v3303 = vadd.f32 %v3283, %v3292
  %v3304 = vadd.f32 %v3284, %v3292
  %v3305 = vadd.f32 %v3285, %v3292
  %v3306 = vadd.f32 %v3286, %v3292
  %v3307 = vadd.f32 %v3287, %v3292
  %v3308 = vadd.f32 %v3288, %v3292
  %v3309 = vadd.f32 %v3289, %v3292
  %v3310 = vmax.f32 %v3294, 0.0
  %v3311 = vmax.f32 %v3295, 0.0
  %v3312 = vmax.f32 %v3296, 0.0
  %v3313 = vmax.f32 %v3297, 0.0
  %v3314 = vmax.f32 %v3298, 0.0
  %v3315 = vmax.f32 %v3299, 0.0
  %v3316 = vmax.f32 %v3300, 0.0
  %v3317 = vmax.f32 %v3301, 0.0
  %v3318 = vmax.f32 %v3302, 0.0
  %v3319 = vmax.f32 %v3303, 0.0
  %v3320 = vmax.f32 %v3304, 0.0
  %v3321 = vmax.f32 %v3305, 0.0
  %v3322 = vmax.f32 %v3306, 0.0
  %v3323 = vmax.f32 %v3307, 0.0
  %v3324 = vmax.f32 %v3308, 0.0
  %v3325 = vmax.f32 %v3309, 0.0
  %v3326 = vpack.c.bf16 %v3310, %v3310
  %v3327 = vpack.c.bf16 %v3311, %v3311
  %v3328 = vpack.c.bf16 %v3312, %v3312
  %v3329 = vpack.c.bf16 %v3313, %v3313
  %v3330 = vpack.c.bf16 %v3314, %v3314
  %v3331 = vpack.c.bf16 %v3315, %v3315
  %v3332 = vpack.c.bf16 %v3316, %v3316
  %v3333 = vpack.c.bf16 %v3317, %v3317
  %v3334 = vpack.c.bf16 %v3318, %v3318
  %v3335 = vpack.c.bf16 %v3319, %v3319
  %v3336 = vpack.c.bf16 %v3320, %v3320
  %v3337 = vpack.c.bf16 %v3321, %v3321
  %v3338 = vpack.c.bf16 %v3322, %v3322
  %v3339 = vpack.c.bf16 %v3323, %v3323
  %v3340 = vpack.c.bf16 %v3324, %v3324
  %v3341 = vpack.c.bf16 %v3325, %v3325
  %v3343 = vshrl.u32 %v3326, 16
  %v3345 = vrot.slane %v3343, 7
  %v3346 = vshll.u32 %v3326, 16
  %v3348 = vor.u32 %v3345, %v3346
  %v3349 = vrot.slane %v3345, 4
  %v3351 = vshrl.u32 %v3327, 16
  %v3353 = vrot.slane %v3351, 7
  %v3354 = vshll.u32 %v3327, 16
  %v3356 = vor.u32 %v3353, %v3354
  %v3357 = vrot.slane %v3353, 4
  %v3359 = vshrl.u32 %v3328, 16
  %v3361 = vrot.slane %v3359, 7
  %v3362 = vshll.u32 %v3328, 16
  %v3364 = vor.u32 %v3361, %v3362
  %v3365 = vrot.slane %v3361, 4
  %v3367 = vshrl.u32 %v3329, 16
  %v3369 = vrot.slane %v3367, 7
  %v3370 = vshll.u32 %v3329, 16
  %v3372 = vor.u32 %v3369, %v3370
  %v3373 = vrot.slane %v3369, 4
  %v3375 = vshrl.u32 %v3330, 16
  %v3377 = vrot.slane %v3375, 7
  %v3378 = vshll.u32 %v3330, 16
  %v3380 = vor.u32 %v3377, %v3378
  %v3381 = vrot.slane %v3377, 4
  %v3383 = vshrl.u32 %v3331, 16
  %v3385 = vrot.slane %v3383, 7
  %v3386 = vshll.u32 %v3331, 16
  %v3388 = vor.u32 %v3385, %v3386
  %v3389 = vrot.slane %v3385, 4
  %v3391 = vshrl.u32 %v3332, 16
  %v3393 = vrot.slane %v3391, 7
  %v3394 = vshll.u32 %v3332, 16
  %v3396 = vor.u32 %v3393, %v3394
  %v3397 = vrot.slane %v3393, 4
  %v3399 = vshrl.u32 %v3333, 16
  %v3401 = vrot.slane %v3399, 7
  %v3402 = vshll.u32 %v3333, 16
  %v3404 = vor.u32 %v3401, %v3402
  %v3405 = vrot.slane %v3401, 4
  %v3407 = vshrl.u32 %v3334, 16
  %v3409 = vrot.slane %v3407, 7
  %v3410 = vshll.u32 %v3334, 16
  %v3412 = vor.u32 %v3409, %v3410
  %v3413 = vrot.slane %v3409, 4
  %v3415 = vshrl.u32 %v3335, 16
  %v3417 = vrot.slane %v3415, 7
  %v3418 = vshll.u32 %v3335, 16
  %v3420 = vor.u32 %v3417, %v3418
  %v3421 = vrot.slane %v3417, 4
  %v3423 = vshrl.u32 %v3336, 16
  %v3425 = vrot.slane %v3423, 7
  %v3426 = vshll.u32 %v3336, 16
  %v3428 = vor.u32 %v3425, %v3426
  %v3429 = vrot.slane %v3425, 4
  %v3431 = vshrl.u32 %v3337, 16
  %v3433 = vrot.slane %v3431, 7
  %v3434 = vshll.u32 %v3337, 16
  %v3436 = vor.u32 %v3433, %v3434
  %v3437 = vrot.slane %v3433, 4
  %v3439 = vshrl.u32 %v3338, 16
  %v3441 = vrot.slane %v3439, 7
  %v3442 = vshll.u32 %v3338, 16
  %v3444 = vor.u32 %v3441, %v3442
  %v3445 = vrot.slane %v3441, 4
  %v3447 = vshrl.u32 %v3339, 16
  %v3449 = vrot.slane %v3447, 7
  %v3450 = vshll.u32 %v3339, 16
  %v3452 = vor.u32 %v3449, %v3450
  %v3453 = vrot.slane %v3449, 4
  %v3455 = vshrl.u32 %v3340, 16
  %v3457 = vrot.slane %v3455, 7
  %v3458 = vshll.u32 %v3340, 16
  %v3460 = vor.u32 %v3457, %v3458
  %v3461 = vrot.slane %v3457, 4
  %v3463 = vshrl.u32 %v3341, 16
  %v3465 = vrot.slane %v3463, 7
  %v3466 = vshll.u32 %v3341, 16
  %v3468 = vor.u32 %v3465, %v3466
  %v3469 = vrot.slane %v3465, 4
  %s3502 = scalar_lea.vmem [#allocation3], 8
  %v3503 = vld [vmem:[%s3502] sm:$0xf]
  %v3504 = vsel %vm574, %v3348, %v3503
  %3505 = vst [vmem:[%s3502] sm:$0xf] %v3504
  %v3506 = vld [vmem:[%s3502 + $0x4] sm:$0x1]
  %v3507 = vsel %vm580, %v3349, %v3506
  %3508 = vst [vmem:[%s3502 + $0x4] sm:$0x1] %v3507
  %v3509 = vld [vmem:[%s3502 + $0x8] sm:$0xf]
  %v3510 = vsel %vm574, %v3356, %v3509
  %3511 = vst [vmem:[%s3502 + $0x8] sm:$0xf] %v3510
  %v3512 = vld [vmem:[%s3502 + $0xc] sm:$0x1]
  %v3513 = vsel %vm580, %v3357, %v3512
  %3514 = vst [vmem:[%s3502 + $0xc] sm:$0x1] %v3513
  %v3515 = vld [vmem:[%s3502 + $0x10] sm:$0xf]
  %v3516 = vsel %vm574, %v3364, %v3515
  %3517 = vst [vmem:[%s3502 + $0x10] sm:$0xf] %v3516
  %v3518 = vld [vmem:[%s3502 + $0x14] sm:$0x1]
  %v3519 = vsel %vm580, %v3365, %v3518
  %3520 = vst [vmem:[%s3502 + $0x14] sm:$0x1] %v3519
  %v3521 = vld [vmem:[%s3502 + $0x18] sm:$0xf]
  %v3522 = vsel %vm574, %v3372, %v3521
  %3523 = vst [vmem:[%s3502 + $0x18] sm:$0xf] %v3522
  %v3524 = vld [vmem:[%s3502 + $0x1c] sm:$0x1]
  %v3525 = vsel %vm580, %v3373, %v3524
  %3526 = vst [vmem:[%s3502 + $0x1c] sm:$0x1] %v3525
  %v3527 = vld [vmem:[%s3502 + $0x20] sm:$0xf]
  %v3528 = vsel %vm574, %v3380, %v3527
  %3529 = vst [vmem:[%s3502 + $0x20] sm:$0xf] %v3528
  %v3530 = vld [vmem:[%s3502 + $0x24] sm:$0x1]
  %v3531 = vsel %vm580, %v3381, %v3530
  %3532 = vst [vmem:[%s3502 + $0x24] sm:$0x1] %v3531
  %v3533 = vld [vmem:[%s3502 + $0x28] sm:$0xf]
  %v3534 = vsel %vm574, %v3388, %v3533
  %3535 = vst [vmem:[%s3502 + $0x28] sm:$0xf] %v3534
  %v3536 = vld [vmem:[%s3502 + $0x2c] sm:$0x1]
  %v3537 = vsel %vm580, %v3389, %v3536
  %3538 = vst [vmem:[%s3502 + $0x2c] sm:$0x1] %v3537
  %v3539 = vld [vmem:[%s3502 + $0x30] sm:$0xf]
  %v3540 = vsel %vm574, %v3396, %v3539
  %3541 = vst [vmem:[%s3502 + $0x30] sm:$0xf] %v3540
  %v3542 = vld [vmem:[%s3502 + $0x34] sm:$0x1]
  %v3543 = vsel %vm580, %v3397, %v3542
  %3544 = vst [vmem:[%s3502 + $0x34] sm:$0x1] %v3543
  %v3545 = vld [vmem:[%s3502 + $0x38] sm:$0xf]
  %v3546 = vsel %vm574, %v3404, %v3545
  %3547 = vst [vmem:[%s3502 + $0x38] sm:$0xf] %v3546
  %v3548 = vld [vmem:[%s3502 + $0x3c] sm:$0x1]
  %v3549 = vsel %vm580, %v3405, %v3548
  %3550 = vst [vmem:[%s3502 + $0x3c] sm:$0x1] %v3549
  %v3551 = vld [vmem:[%s3502 + $0x50] sm:$0xf]
  %v3552 = vsel %vm574, %v3412, %v3551
  %3553 = vst [vmem:[%s3502 + $0x50] sm:$0xf] %v3552
  %v3554 = vld [vmem:[%s3502 + $0x54] sm:$0x1]
  %v3555 = vsel %vm580, %v3413, %v3554
  %3556 = vst [vmem:[%s3502 + $0x54] sm:$0x1] %v3555
  %v3557 = vld [vmem:[%s3502 + $0x58] sm:$0xf]
  %v3558 = vsel %vm574, %v3420, %v3557
  %3559 = vst [vmem:[%s3502 + $0x58] sm:$0xf] %v3558
  %v3560 = vld [vmem:[%s3502 + $0x5c] sm:$0x1]
  %v3561 = vsel %vm580, %v3421, %v3560
  %3562 = vst [vmem:[%s3502 + $0x5c] sm:$0x1] %v3561
  %v3563 = vld [vmem:[%s3502 + $0x60] sm:$0xf]
  %v3564 = vsel %vm574, %v3428, %v3563
  %3565 = vst [vmem:[%s3502 + $0x60] sm:$0xf] %v3564
  %v3566 = vld [vmem:[%s3502 + $0x64] sm:$0x1]
  %v3567 = vsel %vm580, %v3429, %v3566
  %3568 = vst [vmem:[%s3502 + $0x64] sm:$0x1] %v3567
  %v3569 = vld [vmem:[%s3502 + $0x68] sm:$0xf]
  %v3570 = vsel %vm574, %v3436, %v3569
  %3571 = vst [vmem:[%s3502 + $0x68] sm:$0xf] %v3570
  %v3572 = vld [vmem:[%s3502 + $0x6c] sm:$0x1]
  %v3573 = vsel %vm580, %v3437, %v3572
  %3574 = vst [vmem:[%s3502 + $0x6c] sm:$0x1] %v3573
  %v3575 = vld [vmem:[%s3502 + $0x70] sm:$0xf]
  %v3576 = vsel %vm574, %v3444, %v3575
  %3577 = vst [vmem:[%s3502 + $0x70] sm:$0xf] %v3576
  %v3578 = vld [vmem:[%s3502 + $0x74] sm:$0x1]
  %v3579 = vsel %vm580, %v3445, %v3578
  %3580 = vst [vmem:[%s3502 + $0x74] sm:$0x1] %v3579
  %v3581 = vld [vmem:[%s3502 + $0x78] sm:$0xf]
  %v3582 = vsel %vm574, %v3452, %v3581
  %3583 = vst [vmem:[%s3502 + $0x78] sm:$0xf] %v3582
  %v3584 = vld [vmem:[%s3502 + $0x7c] sm:$0x1]
  %v3585 = vsel %vm580, %v3453, %v3584
  %3586 = vst [vmem:[%s3502 + $0x7c] sm:$0x1] %v3585
  %v3587 = vld [vmem:[%s3502 + $0x80] sm:$0xf]
  %v3588 = vsel %vm574, %v3460, %v3587
  %3589 = vst [vmem:[%s3502 + $0x80] sm:$0xf] %v3588
  %v3590 = vld [vmem:[%s3502 + $0x84] sm:$0x1]
  %v3591 = vsel %vm580, %v3461, %v3590
  %3592 = vst [vmem:[%s3502 + $0x84] sm:$0x1] %v3591
  %v3593 = vld [vmem:[%s3502 + $0x88] sm:$0xf]
  %v3594 = vsel %vm574, %v3468, %v3593
  %3595 = vst [vmem:[%s3502 + $0x88] sm:$0xf] %v3594
  %v3596 = vld [vmem:[%s3502 + $0x8c] sm:$0x1]
  %v3597 = vsel %vm580, %v3469, %v3596
  %3598 = vst [vmem:[%s3502 + $0x8c] sm:$0x1] %v3597
  %v3599 = vld [vmem:[#allocation3] sm:$0xf]
  %v3600 = vld [vmem:[#allocation3 + $0x8] sm:$0xf]
  %v3601 = vld [vmem:[#allocation3 + $0x10] sm:$0xf]
  %v3602 = vld [vmem:[#allocation3 + $0x18] sm:$0xf]
  %v3603 = vld [vmem:[#allocation3 + $0x20] sm:$0xf]
  %v3604 = vld [vmem:[#allocation3 + $0x28] sm:$0xf]
  %v3605 = vld [vmem:[#allocation3 + $0x30] sm:$0xf]
  %v3606 = vld [vmem:[#allocation3 + $0x38] sm:$0xf]
  %v3607 = vld [vmem:[#allocation3 + $0x50] sm:$0xf]
  %v3608 = vld [vmem:[#allocation3 + $0x58] sm:$0xf]
  %v3609 = vld [vmem:[#allocation3 + $0x60] sm:$0xf]
  %v3610 = vld [vmem:[#allocation3 + $0x68] sm:$0xf]
  %v3611 = vld [vmem:[#allocation3 + $0x70] sm:$0xf]
  %v3612 = vld [vmem:[#allocation3 + $0x78] sm:$0xf]
  %v3613 = vld [vmem:[#allocation3 + $0x80] sm:$0xf]
  %v3614 = vld [vmem:[#allocation3 + $0x88] sm:$0xf]
  %v3615 = vld [vmem:[%s4] sm:$0xff]
  %v3616 = vld [vmem:[%s4 + $0x8] sm:$0xff]
  %v3617 = vld [vmem:[%s4 + $0x10] sm:$0xff]
  %v3618 = vld [vmem:[%s4 + $0x18] sm:$0xff]
  %v3619 = vld [vmem:[%s4 + $0x20] sm:$0xff]
  %v3620 = vld [vmem:[%s4 + $0x28] sm:$0xff]
  %v3621 = vld [vmem:[%s4 + $0x30] sm:$0xff]
  %v3622 = vld [vmem:[%s4 + $0x38] sm:$0xff]
  %v3623 = vld [vmem:[%s4 + $0x40] sm:$0xff]
  %v3624 = vld [vmem:[%s4 + $0x48] sm:$0xff]
  %v3625 = vld [vmem:[%s4 + $0x50] sm:$0xff]
  %v3626 = vld [vmem:[%s4 + $0x58] sm:$0xff]
  %v3627 = vld [vmem:[%s4 + $0x60] sm:$0xff]
  %v3628 = vld [vmem:[%s4 + $0x68] sm:$0xff]
  %v3629 = vld [vmem:[%s4 + $0x70] sm:$0xff]
  %v3630 = vld [vmem:[%s4 + $0x78] sm:$0xff]
  %v3631 = vld [vmem:[%s4 + $0x80] sm:$0xff]
  %v3632 = vld [vmem:[%s4 + $0x88] sm:$0xff]
  %v3633 = vld [vmem:[%s4 + $0x90] sm:$0xff]
  %v3634 = vld [vmem:[%s4 + $0x98] sm:$0xff]
  %v3635 = vld [vmem:[%s4 + $0xa0] sm:$0xff]
  %v3636 = vld [vmem:[%s4 + $0xa8] sm:$0xff]
  %v3637 = vld [vmem:[%s4 + $0xb0] sm:$0xff]
  %v3638 = vld [vmem:[%s4 + $0xb8] sm:$0xff]
  %v3639 = vld [vmem:[%s4 + $0xc0] sm:$0xff]
  %v3640 = vld [vmem:[%s4 + $0xc8] sm:$0xff]
  %v3641 = vld [vmem:[%s4 + $0xd0] sm:$0xff]
  %v3642 = vld [vmem:[%s4 + $0xd8] sm:$0xff]
  %v3643 = vld [vmem:[%s4 + $0xe0] sm:$0xff]
  %v3644 = vld [vmem:[%s4 + $0xe8] sm:$0xff]
  %v3645 = vld [vmem:[%s4 + $0xf0] sm:$0xff]
  %v3646 = vld [vmem:[%s4 + $0xf8] sm:$0xff]
  %v3647 = vld [vmem:[#allocation3 + $0x4] sm:$0x1]
  %v3648 = vld [vmem:[#allocation3 + $0xc] sm:$0x1]
  %v3649 = vld [vmem:[#allocation3 + $0x14] sm:$0x1]
  %v3650 = vld [vmem:[#allocation3 + $0x1c] sm:$0x1]
  %v3651 = vld [vmem:[#allocation3 + $0x24] sm:$0x1]
  %v3652 = vld [vmem:[#allocation3 + $0x2c] sm:$0x1]
  %v3653 = vld [vmem:[#allocation3 + $0x34] sm:$0x1]
  %v3654 = vld [vmem:[#allocation3 + $0x3c] sm:$0x1]
  %v3655 = vld [vmem:[#allocation3 + $0x54] sm:$0x1]
  %v3656 = vld [vmem:[#allocation3 + $0x5c] sm:$0x1]
  %v3657 = vld [vmem:[#allocation3 + $0x64] sm:$0x1]
  %v3658 = vld [vmem:[#allocation3 + $0x6c] sm:$0x1]
  %v3659 = vld [vmem:[#allocation3 + $0x74] sm:$0x1]
  %v3660 = vld [vmem:[#allocation3 + $0x7c] sm:$0x1]
  %v3661 = vld [vmem:[#allocation3 + $0x84] sm:$0x1]
  %v3662 = vld [vmem:[#allocation3 + $0x8c] sm:$0x1]
  %v3664 = vshrl.u32 %v3599, 16
  %v3666 = vrot.slane %v3664, 4
  %v3667 = vshll.u32 %v3599, 16
  %v3669 = vrot.slane %v3667, 5
  %v3670 = vor.u32 %v3666, %v3669
  %v3671 = vrot.slane %v3670, 4
  %v3673 = vshll.u32 %v3647, 16
  %v3675 = vrot.slane %v3673, 5
  %v3676 = vsel %vm724, %v3671, %v3675
  %v3678 = vshrl.u32 %v3600, 16
  %v3680 = vrot.slane %v3678, 4
  %v3681 = vshll.u32 %v3600, 16
  %v3683 = vrot.slane %v3681, 5
  %v3684 = vor.u32 %v3680, %v3683
  %v3685 = vrot.slane %v3684, 4
  %v3687 = vshll.u32 %v3648, 16
  %v3689 = vrot.slane %v3687, 5
  %v3690 = vsel %vm724, %v3685, %v3689
  %v3692 = vshrl.u32 %v3601, 16
  %v3694 = vrot.slane %v3692, 4
  %v3695 = vshll.u32 %v3601, 16
  %v3697 = vrot.slane %v3695, 5
  %v3698 = vor.u32 %v3694, %v3697
  %v3699 = vrot.slane %v3698, 4
  %v3701 = vshll.u32 %v3649, 16
  %v3703 = vrot.slane %v3701, 5
  %v3704 = vsel %vm724, %v3699, %v3703
  %v3706 = vshrl.u32 %v3602, 16
  %v3708 = vrot.slane %v3706, 4
  %v3709 = vshll.u32 %v3602, 16
  %v3711 = vrot.slane %v3709, 5
  %v3712 = vor.u32 %v3708, %v3711
  %v3713 = vrot.slane %v3712, 4
  %v3715 = vshll.u32 %v3650, 16
  %v3717 = vrot.slane %v3715, 5
  %v3718 = vsel %vm724, %v3713, %v3717
  %v3720 = vshrl.u32 %v3603, 16
  %v3722 = vrot.slane %v3720, 4
  %v3723 = vshll.u32 %v3603, 16
  %v3725 = vrot.slane %v3723, 5
  %v3726 = vor.u32 %v3722, %v3725
  %v3727 = vrot.slane %v3726, 4
  %v3729 = vshll.u32 %v3651, 16
  %v3731 = vrot.slane %v3729, 5
  %v3732 = vsel %vm724, %v3727, %v3731
  %v3734 = vshrl.u32 %v3604, 16
  %v3736 = vrot.slane %v3734, 4
  %v3737 = vshll.u32 %v3604, 16
  %v3739 = vrot.slane %v3737, 5
  %v3740 = vor.u32 %v3736, %v3739
  %v3741 = vrot.slane %v3740, 4
  %v3743 = vshll.u32 %v3652, 16
  %v3745 = vrot.slane %v3743, 5
  %v3746 = vsel %vm724, %v3741, %v3745
  %v3748 = vshrl.u32 %v3605, 16
  %v3750 = vrot.slane %v3748, 4
  %v3751 = vshll.u32 %v3605, 16
  %v3753 = vrot.slane %v3751, 5
  %v3754 = vor.u32 %v3750, %v3753
  %v3755 = vrot.slane %v3754, 4
  %v3757 = vshll.u32 %v3653, 16
  %v3759 = vrot.slane %v3757, 5
  %v3760 = vsel %vm724, %v3755, %v3759
  %v3762 = vshrl.u32 %v3606, 16
  %v3764 = vrot.slane %v3762, 4
  %v3765 = vshll.u32 %v3606, 16
  %v3767 = vrot.slane %v3765, 5
  %v3768 = vor.u32 %v3764, %v3767
  %v3769 = vrot.slane %v3768, 4
  %v3771 = vshll.u32 %v3654, 16
  %v3773 = vrot.slane %v3771, 5
  %v3774 = vsel %vm724, %v3769, %v3773
  %v3776 = vshrl.u32 %v3607, 16
  %v3778 = vrot.slane %v3776, 4
  %v3779 = vshll.u32 %v3607, 16
  %v3781 = vrot.slane %v3779, 5
  %v3782 = vor.u32 %v3778, %v3781
  %v3783 = vrot.slane %v3782, 4
  %v3785 = vshll.u32 %v3655, 16
  %v3787 = vrot.slane %v3785, 5
  %v3788 = vsel %vm724, %v3783, %v3787
  %v3790 = vshrl.u32 %v3608, 16
  %v3792 = vrot.slane %v3790, 4
  %v3793 = vshll.u32 %v3608, 16
  %v3795 = vrot.slane %v3793, 5
  %v3796 = vor.u32 %v3792, %v3795
  %v3797 = vrot.slane %v3796, 4
  %v3799 = vshll.u32 %v3656, 16
  %v3801 = vrot.slane %v3799, 5
  %v3802 = vsel %vm724, %v3797, %v3801
  %v3804 = vshrl.u32 %v3609, 16
  %v3806 = vrot.slane %v3804, 4
  %v3807 = vshll.u32 %v3609, 16
  %v3809 = vrot.slane %v3807, 5
  %v3810 = vor.u32 %v3806, %v3809
  %v3811 = vrot.slane %v3810, 4
  %v3813 = vshll.u32 %v3657, 16
  %v3815 = vrot.slane %v3813, 5
  %v3816 = vsel %vm724, %v3811, %v3815
  %v3818 = vshrl.u32 %v3610, 16
  %v3820 = vrot.slane %v3818, 4
  %v3821 = vshll.u32 %v3610, 16
  %v3823 = vrot.slane %v3821, 5
  %v3824 = vor.u32 %v3820, %v3823
  %v3825 = vrot.slane %v3824, 4
  %v3827 = vshll.u32 %v3658, 16
  %v3829 = vrot.slane %v3827, 5
  %v3830 = vsel %vm724, %v3825, %v3829
  %v3832 = vshrl.u32 %v3611, 16
  %v3834 = vrot.slane %v3832, 4
  %v3835 = vshll.u32 %v3611, 16
  %v3837 = vrot.slane %v3835, 5
  %v3838 = vor.u32 %v3834, %v3837
  %v3839 = vrot.slane %v3838, 4
  %v3841 = vshll.u32 %v3659, 16
  %v3843 = vrot.slane %v3841, 5
  %v3844 = vsel %vm724, %v3839, %v3843
  %v3846 = vshrl.u32 %v3612, 16
  %v3848 = vrot.slane %v3846, 4
  %v3849 = vshll.u32 %v3612, 16
  %v3851 = vrot.slane %v3849, 5
  %v3852 = vor.u32 %v3848, %v3851
  %v3853 = vrot.slane %v3852, 4
  %v3855 = vshll.u32 %v3660, 16
  %v3857 = vrot.slane %v3855, 5
  %v3858 = vsel %vm724, %v3853, %v3857
  %v3860 = vshrl.u32 %v3613, 16
  %v3862 = vrot.slane %v3860, 4
  %v3863 = vshll.u32 %v3613, 16
  %v3865 = vrot.slane %v3863, 5
  %v3866 = vor.u32 %v3862, %v3865
  %v3867 = vrot.slane %v3866, 4
  %v3869 = vshll.u32 %v3661, 16
  %v3871 = vrot.slane %v3869, 5
  %v3872 = vsel %vm724, %v3867, %v3871
  %v3874 = vshrl.u32 %v3614, 16
  %v3876 = vrot.slane %v3874, 4
  %v3877 = vshll.u32 %v3614, 16
  %v3879 = vrot.slane %v3877, 5
  %v3880 = vor.u32 %v3876, %v3879
  %v3881 = vrot.slane %v3880, 4
  %v3883 = vshll.u32 %v3662, 16
  %v3885 = vrot.slane %v3883, 5
  %v3886 = vsel %vm724, %v3881, %v3885
  %s3887 = scalar_lea.vmem %s4, 256
  %v3888 = vld [vmem:[%s3887] sm:$0xff]
  %v3889 = vld [vmem:[%s3887 + $0x8] sm:$0xff]
  %v3890 = vld [vmem:[%s3887 + $0x10] sm:$0xff]
  %v3891 = vld [vmem:[%s3887 + $0x18] sm:$0xff]
  %v3892 = vld [vmem:[%s3887 + $0x20] sm:$0xff]
  %v3893 = vld [vmem:[%s3887 + $0x28] sm:$0xff]
  %v3894 = vld [vmem:[%s3887 + $0x30] sm:$0xff]
  %v3895 = vld [vmem:[%s3887 + $0x38] sm:$0xff]
  %v3896 = vld [vmem:[%s3887 + $0x40] sm:$0xff]
  %v3897 = vld [vmem:[%s3887 + $0x48] sm:$0xff]
  %v3898 = vld [vmem:[%s3887 + $0x50] sm:$0xff]
  %v3899 = vld [vmem:[%s3887 + $0x58] sm:$0xff]
  %v3900 = vld [vmem:[%s3887 + $0x60] sm:$0xff]
  %v3901 = vld [vmem:[%s3887 + $0x68] sm:$0xff]
  %v3902 = vld [vmem:[%s3887 + $0x70] sm:$0xff]
  %v3903 = vld [vmem:[%s3887 + $0x78] sm:$0xff]
  %v3904 = vld [vmem:[%s3887 + $0x80] sm:$0xff]
  %v3905 = vld [vmem:[%s3887 + $0x88] sm:$0xff]
  %v3906 = vld [vmem:[%s3887 + $0x90] sm:$0xff]
  %v3907 = vld [vmem:[%s3887 + $0x98] sm:$0xff]
  %v3908 = vld [vmem:[%s3887 + $0xa0] sm:$0xff]
  %v3909 = vld [vmem:[%s3887 + $0xa8] sm:$0xff]
  %v3910 = vld [vmem:[%s3887 + $0xb0] sm:$0xff]
  %v3911 = vld [vmem:[%s3887 + $0xb8] sm:$0xff]
  %v3912 = vld [vmem:[%s3887 + $0xc0] sm:$0xff]
  %v3913 = vld [vmem:[%s3887 + $0xc8] sm:$0xff]
  %v3914 = vld [vmem:[%s3887 + $0xd0] sm:$0xff]
  %v3915 = vld [vmem:[%s3887 + $0xd8] sm:$0xff]
  %v3916 = vld [vmem:[%s3887 + $0xe0] sm:$0xff]
  %v3917 = vld [vmem:[%s3887 + $0xe8] sm:$0xff]
  %v3918 = vld [vmem:[%s3887 + $0xf0] sm:$0xff]
  %v3919 = vld [vmem:[%s3887 + $0xf8] sm:$0xff]
  %v3920 = vunpack.c.l.b16 %v3676
  %v3921 = vunpack.c.l.b16 %v3690
  %v3922 = vunpack.c.l.b16 %v3704
  %v3923 = vunpack.c.l.b16 %v3718
  %v3924 = vunpack.c.l.b16 %v3732
  %v3925 = vunpack.c.l.b16 %v3746
  %v3926 = vunpack.c.l.b16 %v3760
  %v3927 = vunpack.c.l.b16 %v3774
  %v3928 = vunpack.c.l.b16 %v3788
  %v3929 = vunpack.c.l.b16 %v3802
  %v3930 = vunpack.c.l.b16 %v3816
  %v3931 = vunpack.c.l.b16 %v3830
  %v3932 = vunpack.c.l.b16 %v3844
  %v3933 = vunpack.c.l.b16 %v3858
  %v3934 = vunpack.c.l.b16 %v3872
  %v3935 = vunpack.c.l.b16 %v3886
  %v3936 = vpack.c.b16 %v3921, %v3920
  %v3937 = vpack.c.b16 %v3923, %v3922
  %v3938 = vpack.c.b16 %v3925, %v3924
  %v3939 = vpack.c.b16 %v3927, %v3926
  %v3940 = vpack.c.b16 %v3929, %v3928
  %v3941 = vpack.c.b16 %v3931, %v3930
  %v3942 = vpack.c.b16 %v3933, %v3932
  %v3943 = vpack.c.b16 %v3935, %v3934
  %v3984 = vunpack.c.l.b16 %v3888
  %v3985 = vunpack.c.h.b16 %v3888
  %v3986 = vunpack.c.l.b16 %v3889
  %v3987 = vunpack.c.h.b16 %v3889
  %v3988 = vunpack.c.l.b16 %v3890
  %v3989 = vunpack.c.h.b16 %v3890
  %v3990 = vunpack.c.l.b16 %v3891
  %v3991 = vunpack.c.h.b16 %v3891
  %v3992 = vunpack.c.l.b16 %v3892
  %v3993 = vunpack.c.h.b16 %v3892
  %v3994 = vunpack.c.l.b16 %v3893
  %v3995 = vunpack.c.h.b16 %v3893
  %v3996 = vunpack.c.l.b16 %v3894
  %v3997 = vunpack.c.h.b16 %v3894
  %v3998 = vunpack.c.l.b16 %v3895
  %v3999 = vunpack.c.h.b16 %v3895
  %v4000 = vunpack.c.l.b16 %v3896
  %v4001 = vunpack.c.h.b16 %v3896
  %v4002 = vunpack.c.l.b16 %v3897
  %v4003 = vunpack.c.h.b16 %v3897
  %v4004 = vunpack.c.l.b16 %v3898
  %v4005 = vunpack.c.h.b16 %v3898
  %v4006 = vunpack.c.l.b16 %v3899
  %v4007 = vunpack.c.h.b16 %v3899
  %v4008 = vunpack.c.l.b16 %v3900
  %v4009 = vunpack.c.h.b16 %v3900
  %v4010 = vunpack.c.l.b16 %v3901
  %v4011 = vunpack.c.h.b16 %v3901
  %v4012 = vunpack.c.l.b16 %v3902
  %v4013 = vunpack.c.h.b16 %v3902
  %v4014 = vunpack.c.l.b16 %v3903
  %v4015 = vunpack.c.h.b16 %v3903
  %v4016 = vunpack.c.l.b16 %v3904
  %v4017 = vunpack.c.h.b16 %v3904
  %v4018 = vunpack.c.l.b16 %v3905
  %v4019 = vunpack.c.h.b16 %v3905
  %v4020 = vunpack.c.l.b16 %v3906
  %v4021 = vunpack.c.h.b16 %v3906
  %v4022 = vunpack.c.l.b16 %v3907
  %v4023 = vunpack.c.h.b16 %v3907
  %v4024 = vunpack.c.l.b16 %v3908
  %v4025 = vunpack.c.h.b16 %v3908
  %v4026 = vunpack.c.l.b16 %v3909
  %v4027 = vunpack.c.h.b16 %v3909
  %v4028 = vunpack.c.l.b16 %v3910
  %v4029 = vunpack.c.h.b16 %v3910
  %v4030 = vunpack.c.l.b16 %v3911
  %v4031 = vunpack.c.h.b16 %v3911
  %v4032 = vunpack.c.l.b16 %v3912
  %v4033 = vunpack.c.h.b16 %v3912
  %v4034 = vunpack.c.l.b16 %v3913
  %v4035 = vunpack.c.h.b16 %v3913
  %v4036 = vunpack.c.l.b16 %v3914
  %v4037 = vunpack.c.h.b16 %v3914
  %v4038 = vunpack.c.l.b16 %v3915
  %v4039 = vunpack.c.h.b16 %v3915
  %v4040 = vunpack.c.l.b16 %v3916
  %v4041 = vunpack.c.h.b16 %v3916
  %v4042 = vunpack.c.l.b16 %v3917
  %v4043 = vunpack.c.h.b16 %v3917
  %v4044 = vunpack.c.l.b16 %v3918
  %v4045 = vunpack.c.h.b16 %v3918
  %v4046 = vunpack.c.l.b16 %v3919
  %v4047 = vunpack.c.h.b16 %v3919
  %v4048 = vpack.c.b16 %v3988, %v3984
  %v4049 = vpack.c.b16 %v3989, %v3985
  %v4050 = vpack.c.b16 %v3990, %v3986
  %v4051 = vpack.c.b16 %v3991, %v3987
  %v4052 = vpack.c.b16 %v3996, %v3992
  %v4053 = vpack.c.b16 %v3997, %v3993
  %v4054 = vpack.c.b16 %v3998, %v3994
  %v4055 = vpack.c.b16 %v3999, %v3995
  %v4056 = vpack.c.b16 %v4004, %v4000
  %v4057 = vpack.c.b16 %v4005, %v4001
  %v4058 = vpack.c.b16 %v4006, %v4002
  %v4059 = vpack.c.b16 %v4007, %v4003
  %v4060 = vpack.c.b16 %v4012, %v4008
  %v4061 = vpack.c.b16 %v4013, %v4009
  %v4062 = vpack.c.b16 %v4014, %v4010
  %v4063 = vpack.c.b16 %v4015, %v4011
  %v4064 = vpack.c.b16 %v4020, %v4016
  %v4065 = vpack.c.b16 %v4021, %v4017
  %v4066 = vpack.c.b16 %v4022, %v4018
  %v4067 = vpack.c.b16 %v4023, %v4019
  %v4068 = vpack.c.b16 %v4028, %v4024
  %v4069 = vpack.c.b16 %v4029, %v4025
  %v4070 = vpack.c.b16 %v4030, %v4026
  %v4071 = vpack.c.b16 %v4031, %v4027
  %v4072 = vpack.c.b16 %v4036, %v4032
  %v4073 = vpack.c.b16 %v4037, %v4033
  %v4074 = vpack.c.b16 %v4038, %v4034
  %v4075 = vpack.c.b16 %v4039, %v4035
  %v4076 = vpack.c.b16 %v4044, %v4040
  %v4077 = vpack.c.b16 %v4045, %v4041
  %v4078 = vpack.c.b16 %v4046, %v4042
  %v4079 = vpack.c.b16 %v4047, %v4043
  %4112 = vmatpush.bf16.msra.mxu0 %v4076
  %4113 = vmatpush.bf16.msra.mxu0 %v4072
  %4114 = vmatpush.bf16.msra.mxu0 %v4068
  %4115 = vmatpush.bf16.msra.mxu0 %v4064
  %4116 = vmatpush.bf16.msra.mxu0 %v4060
  %4117 = vmatpush.bf16.msra.mxu0 %v4056
  %4118 = vmatpush.bf16.msra.mxu0 %v4052
  %4119 = vmatpush.bf16.msra.mxu0 %v4048
  %4120 = vmatmul.bf16.gmra.mxu0 %v3936
  %v4121 = vpop.f32.mrf.mxu0
  %v4122 = vadd.f32 0.0, %v4121
  %v4123 = vpop.f32.mrf.mxu0
  %v4124 = vadd.f32 0.0, %v4123
  %4125 = vmatmul.bf16.gmra.mxu0 %v3937
  %v4126 = vpop.f32.mrf.mxu0
  %v4127 = vadd.f32 0.0, %v4126
  %v4128 = vpop.f32.mrf.mxu0
  %v4129 = vadd.f32 0.0, %v4128
  %4130 = vmatmul.bf16.gmra.mxu0 %v3938
  %v4131 = vpop.f32.mrf.mxu0
  %v4132 = vadd.f32 0.0, %v4131
  %v4133 = vpop.f32.mrf.mxu0
  %v4134 = vadd.f32 0.0, %v4133
  %4135 = vmatmul.bf16.gmra.mxu0 %v3939
  %v4136 = vpop.f32.mrf.mxu0
  %v4137 = vadd.f32 0.0, %v4136
  %v4138 = vpop.f32.mrf.mxu0
  %v4139 = vadd.f32 0.0, %v4138
  %4140 = vmatmul.bf16.gmra.mxu0 %v3940
  %v4141 = vpop.f32.mrf.mxu0
  %v4142 = vadd.f32 0.0, %v4141
  %v4143 = vpop.f32.mrf.mxu0
  %v4144 = vadd.f32 0.0, %v4143
  %4145 = vmatmul.bf16.gmra.mxu0 %v3941
  %v4146 = vpop.f32.mrf.mxu0
  %v4147 = vadd.f32 0.0, %v4146
  %v4148 = vpop.f32.mrf.mxu0
  %v4149 = vadd.f32 0.0, %v4148
  %4150 = vmatmul.bf16.gmra.mxu0 %v3942
  %v4151 = vpop.f32.mrf.mxu0
  %v4152 = vadd.f32 0.0, %v4151
  %v4153 = vpop.f32.mrf.mxu0
  %v4154 = vadd.f32 0.0, %v4153
  %4155 = vmatmul.bf16.gmra.mxu0 %v3943
  %v4156 = vpop.f32.mrf.mxu0
  %v4157 = vadd.f32 0.0, %v4156
  %v4158 = vpop.f32.mrf.mxu0
  %v4159 = vadd.f32 0.0, %v4158
  %4160 = vdwg.mxu0
  %4161 = vmatpush.bf16.msra.mxu0 %v4077
  %4162 = vmatpush.bf16.msra.mxu0 %v4073
  %4163 = vmatpush.bf16.msra.mxu0 %v4069
  %4164 = vmatpush.bf16.msra.mxu0 %v4065
  %4165 = vmatpush.bf16.msra.mxu0 %v4061
  %4166 = vmatpush.bf16.msra.mxu0 %v4057
  %4167 = vmatpush.bf16.msra.mxu0 %v4053
  %4168 = vmatpush.bf16.msra.mxu0 %v4049
  %4169 = vmatmul.bf16.gmra.mxu0 %v3936
  %v4170 = vpop.f32.mrf.mxu0
  %v4171 = vadd.f32 0.0, %v4170
  %v4172 = vpop.f32.mrf.mxu0
  %v4173 = vadd.f32 0.0, %v4172
  %4174 = vmatmul.bf16.gmra.mxu0 %v3937
  %v4175 = vpop.f32.mrf.mxu0
  %v4176 = vadd.f32 0.0, %v4175
  %v4177 = vpop.f32.mrf.mxu0
  %v4178 = vadd.f32 0.0, %v4177
  %4179 = vmatmul.bf16.gmra.mxu0 %v3938
  %v4180 = vpop.f32.mrf.mxu0
  %v4181 = vadd.f32 0.0, %v4180
  %v4182 = vpop.f32.mrf.mxu0
  %v4183 = vadd.f32 0.0, %v4182
  %4184 = vmatmul.bf16.gmra.mxu0 %v3939
  %v4185 = vpop.f32.mrf.mxu0
  %v4186 = vadd.f32 0.0, %v4185
  %v4187 = vpop.f32.mrf.mxu0
  %v4188 = vadd.f32 0.0, %v4187
  %4189 = vmatmul.bf16.gmra.mxu0 %v3940
  %v4190 = vpop.f32.mrf.mxu0
  %v4191 = vadd.f32 0.0, %v4190
  %v4192 = vpop.f32.mrf.mxu0
  %v4193 = vadd.f32 0.0, %v4192
  %4194 = vmatmul.bf16.gmra.mxu0 %v3941
  %v4195 = vpop.f32.mrf.mxu0
  %v4196 = vadd.f32 0.0, %v4195
  %v4197 = vpop.f32.mrf.mxu0
  %v4198 = vadd.f32 0.0, %v4197
  %4199 = vmatmul.bf16.gmra.mxu0 %v3942
  %v4200 = vpop.f32.mrf.mxu0
  %v4201 = vadd.f32 0.0, %v4200
  %v4202 = vpop.f32.mrf.mxu0
  %v4203 = vadd.f32 0.0, %v4202
  %4204 = vmatmul.bf16.gmra.mxu0 %v3943
  %v4205 = vpop.f32.mrf.mxu0
  %v4206 = vadd.f32 0.0, %v4205
  %v4207 = vpop.f32.mrf.mxu0
  %v4208 = vadd.f32 0.0, %v4207
  %4209 = vdwg.mxu0
  %4210 = vmatpush.bf16.msra.mxu0 %v4078
  %4211 = vmatpush.bf16.msra.mxu0 %v4074
  %4212 = vmatpush.bf16.msra.mxu0 %v4070
  %4213 = vmatpush.bf16.msra.mxu0 %v4066
  %4214 = vmatpush.bf16.msra.mxu0 %v4062
  %4215 = vmatpush.bf16.msra.mxu0 %v4058
  %4216 = vmatpush.bf16.msra.mxu0 %v4054
  %4217 = vmatpush.bf16.msra.mxu0 %v4050
  %4218 = vmatmul.bf16.gmra.mxu0 %v3936
  %v4219 = vpop.f32.mrf.mxu0
  %v4220 = vadd.f32 0.0, %v4219
  %v4221 = vpop.f32.mrf.mxu0
  %v4222 = vadd.f32 0.0, %v4221
  %4223 = vmatmul.bf16.gmra.mxu0 %v3937
  %v4224 = vpop.f32.mrf.mxu0
  %v4225 = vadd.f32 0.0, %v4224
  %v4226 = vpop.f32.mrf.mxu0
  %v4227 = vadd.f32 0.0, %v4226
  %4228 = vmatmul.bf16.gmra.mxu0 %v3938
  %v4229 = vpop.f32.mrf.mxu0
  %v4230 = vadd.f32 0.0, %v4229
  %v4231 = vpop.f32.mrf.mxu0
  %v4232 = vadd.f32 0.0, %v4231
  %4233 = vmatmul.bf16.gmra.mxu0 %v3939
  %v4234 = vpop.f32.mrf.mxu0
  %v4235 = vadd.f32 0.0, %v4234
  %v4236 = vpop.f32.mrf.mxu0
  %v4237 = vadd.f32 0.0, %v4236
  %4238 = vmatmul.bf16.gmra.mxu0 %v3940
  %v4239 = vpop.f32.mrf.mxu0
  %v4240 = vadd.f32 0.0, %v4239
  %v4241 = vpop.f32.mrf.mxu0
  %v4242 = vadd.f32 0.0, %v4241
  %4243 = vmatmul.bf16.gmra.mxu0 %v3941
  %v4244 = vpop.f32.mrf.mxu0
  %v4245 = vadd.f32 0.0, %v4244
  %v4246 = vpop.f32.mrf.mxu0
  %v4247 = vadd.f32 0.0, %v4246
  %4248 = vmatmul.bf16.gmra.mxu0 %v3942
  %v4249 = vpop.f32.mrf.mxu0
  %v4250 = vadd.f32 0.0, %v4249
  %v4251 = vpop.f32.mrf.mxu0
  %v4252 = vadd.f32 0.0, %v4251
  %4253 = vmatmul.bf16.gmra.mxu0 %v3943
  %v4254 = vpop.f32.mrf.mxu0
  %v4255 = vadd.f32 0.0, %v4254
  %v4256 = vpop.f32.mrf.mxu0
  %v4257 = vadd.f32 0.0, %v4256
  %4258 = vdwg.mxu0
  %4259 = vmatpush.bf16.msra.mxu0 %v4079
  %4260 = vmatpush.bf16.msra.mxu0 %v4075
  %4261 = vmatpush.bf16.msra.mxu0 %v4071
  %4262 = vmatpush.bf16.msra.mxu0 %v4067
  %4263 = vmatpush.bf16.msra.mxu0 %v4063
  %4264 = vmatpush.bf16.msra.mxu0 %v4059
  %4265 = vmatpush.bf16.msra.mxu0 %v4055
  %4266 = vmatpush.bf16.msra.mxu0 %v4051
  %4267 = vmatmul.bf16.gmra.mxu0 %v3936
  %v4268 = vpop.f32.mrf.mxu0
  %v4269 = vadd.f32 0.0, %v4268
  %v4270 = vpop.f32.mrf.mxu0
  %v4271 = vadd.f32 0.0, %v4270
  %4272 = vmatmul.bf16.gmra.mxu0 %v3937
  %v4273 = vpop.f32.mrf.mxu0
  %v4274 = vadd.f32 0.0, %v4273
  %v4275 = vpop.f32.mrf.mxu0
  %v4276 = vadd.f32 0.0, %v4275
  %4277 = vmatmul.bf16.gmra.mxu0 %v3938
  %v4278 = vpop.f32.mrf.mxu0
  %v4279 = vadd.f32 0.0, %v4278
  %v4280 = vpop.f32.mrf.mxu0
  %v4281 = vadd.f32 0.0, %v4280
  %4282 = vmatmul.bf16.gmra.mxu0 %v3939
  %v4283 = vpop.f32.mrf.mxu0
  %v4284 = vadd.f32 0.0, %v4283
  %v4285 = vpop.f32.mrf.mxu0
  %v4286 = vadd.f32 0.0, %v4285
  %4287 = vmatmul.bf16.gmra.mxu0 %v3940
  %v4288 = vpop.f32.mrf.mxu0
  %v4289 = vadd.f32 0.0, %v4288
  %v4290 = vpop.f32.mrf.mxu0
  %v4291 = vadd.f32 0.0, %v4290
  %4292 = vmatmul.bf16.gmra.mxu0 %v3941
  %v4293 = vpop.f32.mrf.mxu0
  %v4294 = vadd.f32 0.0, %v4293
  %v4295 = vpop.f32.mrf.mxu0
  %v4296 = vadd.f32 0.0, %v4295
  %4297 = vmatmul.bf16.gmra.mxu0 %v3942
  %v4298 = vpop.f32.mrf.mxu0
  %v4299 = vadd.f32 0.0, %v4298
  %v4300 = vpop.f32.mrf.mxu0
  %v4301 = vadd.f32 0.0, %v4300
  %4302 = vmatmul.bf16.gmra.mxu0 %v3943
  %v4303 = vpop.f32.mrf.mxu0
  %v4304 = vadd.f32 0.0, %v4303
  %v4305 = vpop.f32.mrf.mxu0
  %v4306 = vadd.f32 0.0, %v4305
  %4307 = vdwg.mxu0
  %v4324 = vunpack.c.l.b16 %v3599
  %v4325 = vunpack.c.l.b16 %v3600
  %v4326 = vunpack.c.l.b16 %v3601
  %v4327 = vunpack.c.l.b16 %v3602
  %v4328 = vunpack.c.l.b16 %v3603
  %v4329 = vunpack.c.l.b16 %v3604
  %v4330 = vunpack.c.l.b16 %v3605
  %v4331 = vunpack.c.l.b16 %v3606
  %v4332 = vunpack.c.l.b16 %v3607
  %v4333 = vunpack.c.l.b16 %v3608
  %v4334 = vunpack.c.l.b16 %v3609
  %v4335 = vunpack.c.l.b16 %v3610
  %v4336 = vunpack.c.l.b16 %v3611
  %v4337 = vunpack.c.l.b16 %v3612
  %v4338 = vunpack.c.l.b16 %v3613
  %v4339 = vunpack.c.l.b16 %v3614
  %v4340 = vpack.c.b16 %v4325, %v4324
  %v4341 = vpack.c.b16 %v4327, %v4326
  %v4342 = vpack.c.b16 %v4329, %v4328
  %v4343 = vpack.c.b16 %v4331, %v4330
  %v4344 = vpack.c.b16 %v4333, %v4332
  %v4345 = vpack.c.b16 %v4335, %v4334
  %v4346 = vpack.c.b16 %v4337, %v4336
  %v4347 = vpack.c.b16 %v4339, %v4338
  %v4388 = vunpack.c.l.b16 %v3615
  %v4389 = vunpack.c.h.b16 %v3615
  %v4390 = vunpack.c.l.b16 %v3616
  %v4391 = vunpack.c.h.b16 %v3616
  %v4392 = vunpack.c.l.b16 %v3617
  %v4393 = vunpack.c.h.b16 %v3617
  %v4394 = vunpack.c.l.b16 %v3618
  %v4395 = vunpack.c.h.b16 %v3618
  %v4396 = vunpack.c.l.b16 %v3619
  %v4397 = vunpack.c.h.b16 %v3619
  %v4398 = vunpack.c.l.b16 %v3620
  %v4399 = vunpack.c.h.b16 %v3620
  %v4400 = vunpack.c.l.b16 %v3621
  %v4401 = vunpack.c.h.b16 %v3621
  %v4402 = vunpack.c.l.b16 %v3622
  %v4403 = vunpack.c.h.b16 %v3622
  %v4404 = vunpack.c.l.b16 %v3623
  %v4405 = vunpack.c.h.b16 %v3623
  %v4406 = vunpack.c.l.b16 %v3624
  %v4407 = vunpack.c.h.b16 %v3624
  %v4408 = vunpack.c.l.b16 %v3625
  %v4409 = vunpack.c.h.b16 %v3625
  %v4410 = vunpack.c.l.b16 %v3626
  %v4411 = vunpack.c.h.b16 %v3626
  %v4412 = vunpack.c.l.b16 %v3627
  %v4413 = vunpack.c.h.b16 %v3627
  %v4414 = vunpack.c.l.b16 %v3628
  %v4415 = vunpack.c.h.b16 %v3628
  %v4416 = vunpack.c.l.b16 %v3629
  %v4417 = vunpack.c.h.b16 %v3629
  %v4418 = vunpack.c.l.b16 %v3630
  %v4419 = vunpack.c.h.b16 %v3630
  %v4420 = vunpack.c.l.b16 %v3631
  %v4421 = vunpack.c.h.b16 %v3631
  %v4422 = vunpack.c.l.b16 %v3632
  %v4423 = vunpack.c.h.b16 %v3632
  %v4424 = vunpack.c.l.b16 %v3633
  %v4425 = vunpack.c.h.b16 %v3633
  %v4426 = vunpack.c.l.b16 %v3634
  %v4427 = vunpack.c.h.b16 %v3634
  %v4428 = vunpack.c.l.b16 %v3635
  %v4429 = vunpack.c.h.b16 %v3635
  %v4430 = vunpack.c.l.b16 %v3636
  %v4431 = vunpack.c.h.b16 %v3636
  %v4432 = vunpack.c.l.b16 %v3637
  %v4433 = vunpack.c.h.b16 %v3637
  %v4434 = vunpack.c.l.b16 %v3638
  %v4435 = vunpack.c.h.b16 %v3638
  %v4436 = vunpack.c.l.b16 %v3639
  %v4437 = vunpack.c.h.b16 %v3639
  %v4438 = vunpack.c.l.b16 %v3640
  %v4439 = vunpack.c.h.b16 %v3640
  %v4440 = vunpack.c.l.b16 %v3641
  %v4441 = vunpack.c.h.b16 %v3641
  %v4442 = vunpack.c.l.b16 %v3642
  %v4443 = vunpack.c.h.b16 %v3642
  %v4444 = vunpack.c.l.b16 %v3643
  %v4445 = vunpack.c.h.b16 %v3643
  %v4446 = vunpack.c.l.b16 %v3644
  %v4447 = vunpack.c.h.b16 %v3644
  %v4448 = vunpack.c.l.b16 %v3645
  %v4449 = vunpack.c.h.b16 %v3645
  %v4450 = vunpack.c.l.b16 %v3646
  %v4451 = vunpack.c.h.b16 %v3646
  %v4452 = vpack.c.b16 %v4392, %v4388
  %v4453 = vpack.c.b16 %v4393, %v4389
  %v4454 = vpack.c.b16 %v4394, %v4390
  %v4455 = vpack.c.b16 %v4395, %v4391
  %v4456 = vpack.c.b16 %v4400, %v4396
  %v4457 = vpack.c.b16 %v4401, %v4397
  %v4458 = vpack.c.b16 %v4402, %v4398
  %v4459 = vpack.c.b16 %v4403, %v4399
  %v4460 = vpack.c.b16 %v4408, %v4404
  %v4461 = vpack.c.b16 %v4409, %v4405
  %v4462 = vpack.c.b16 %v4410, %v4406
  %v4463 = vpack.c.b16 %v4411, %v4407
  %v4464 = vpack.c.b16 %v4416, %v4412
  %v4465 = vpack.c.b16 %v4417, %v4413
  %v4466 = vpack.c.b16 %v4418, %v4414
  %v4467 = vpack.c.b16 %v4419, %v4415
  %v4468 = vpack.c.b16 %v4424, %v4420
  %v4469 = vpack.c.b16 %v4425, %v4421
  %v4470 = vpack.c.b16 %v4426, %v4422
  %v4471 = vpack.c.b16 %v4427, %v4423
  %v4472 = vpack.c.b16 %v4432, %v4428
  %v4473 = vpack.c.b16 %v4433, %v4429
  %v4474 = vpack.c.b16 %v4434, %v4430
  %v4475 = vpack.c.b16 %v4435, %v4431
  %v4476 = vpack.c.b16 %v4440, %v4436
  %v4477 = vpack.c.b16 %v4441, %v4437
  %v4478 = vpack.c.b16 %v4442, %v4438
  %v4479 = vpack.c.b16 %v4443, %v4439
  %v4480 = vpack.c.b16 %v4448, %v4444
  %v4481 = vpack.c.b16 %v4449, %v4445
  %v4482 = vpack.c.b16 %v4450, %v4446
  %v4483 = vpack.c.b16 %v4451, %v4447
  %4516 = vmatpush.bf16.msra.mxu0 %v4480
  %4517 = vmatpush.bf16.msra.mxu0 %v4476
  %4518 = vmatpush.bf16.msra.mxu0 %v4472
  %4519 = vmatpush.bf16.msra.mxu0 %v4468
  %4520 = vmatpush.bf16.msra.mxu0 %v4464
  %4521 = vmatpush.bf16.msra.mxu0 %v4460
  %4522 = vmatpush.bf16.msra.mxu0 %v4456
  %4523 = vmatpush.bf16.msra.mxu0 %v4452
  %4524 = vmatmul.bf16.gmra.mxu0 %v4340
  %v4525 = vpop.f32.mrf.mxu0
  %v4526 = vadd.f32 %v4122, %v4525
  %v4527 = vpop.f32.mrf.mxu0
  %v4528 = vadd.f32 %v4124, %v4527
  %4529 = vmatmul.bf16.gmra.mxu0 %v4341
  %v4530 = vpop.f32.mrf.mxu0
  %v4531 = vadd.f32 %v4127, %v4530
  %v4532 = vpop.f32.mrf.mxu0
  %v4533 = vadd.f32 %v4129, %v4532
  %4534 = vmatmul.bf16.gmra.mxu0 %v4342
  %v4535 = vpop.f32.mrf.mxu0
  %v4536 = vadd.f32 %v4132, %v4535
  %v4537 = vpop.f32.mrf.mxu0
  %v4538 = vadd.f32 %v4134, %v4537
  %4539 = vmatmul.bf16.gmra.mxu0 %v4343
  %v4540 = vpop.f32.mrf.mxu0
  %v4541 = vadd.f32 %v4137, %v4540
  %v4542 = vpop.f32.mrf.mxu0
  %v4543 = vadd.f32 %v4139, %v4542
  %4544 = vmatmul.bf16.gmra.mxu0 %v4344
  %v4545 = vpop.f32.mrf.mxu0
  %v4546 = vadd.f32 %v4142, %v4545
  %v4547 = vpop.f32.mrf.mxu0
  %v4548 = vadd.f32 %v4144, %v4547
  %4549 = vmatmul.bf16.gmra.mxu0 %v4345
  %v4550 = vpop.f32.mrf.mxu0
  %v4551 = vadd.f32 %v4147, %v4550
  %v4552 = vpop.f32.mrf.mxu0
  %v4553 = vadd.f32 %v4149, %v4552
  %4554 = vmatmul.bf16.gmra.mxu0 %v4346
  %v4555 = vpop.f32.mrf.mxu0
  %v4556 = vadd.f32 %v4152, %v4555
  %v4557 = vpop.f32.mrf.mxu0
  %v4558 = vadd.f32 %v4154, %v4557
  %4559 = vmatmul.bf16.gmra.mxu0 %v4347
  %v4560 = vpop.f32.mrf.mxu0
  %v4561 = vadd.f32 %v4157, %v4560
  %v4562 = vpop.f32.mrf.mxu0
  %v4563 = vadd.f32 %v4159, %v4562
  %4564 = vdwg.mxu0
  %4565 = vmatpush.bf16.msra.mxu0 %v4481
  %4566 = vmatpush.bf16.msra.mxu0 %v4477
  %4567 = vmatpush.bf16.msra.mxu0 %v4473
  %4568 = vmatpush.bf16.msra.mxu0 %v4469
  %4569 = vmatpush.bf16.msra.mxu0 %v4465
  %4570 = vmatpush.bf16.msra.mxu0 %v4461
  %4571 = vmatpush.bf16.msra.mxu0 %v4457
  %4572 = vmatpush.bf16.msra.mxu0 %v4453
  %4573 = vmatmul.bf16.gmra.mxu0 %v4340
  %v4574 = vpop.f32.mrf.mxu0
  %v4575 = vadd.f32 %v4171, %v4574
  %v4576 = vpop.f32.mrf.mxu0
  %v4577 = vadd.f32 %v4173, %v4576
  %4578 = vmatmul.bf16.gmra.mxu0 %v4341
  %v4579 = vpop.f32.mrf.mxu0
  %v4580 = vadd.f32 %v4176, %v4579
  %v4581 = vpop.f32.mrf.mxu0
  %v4582 = vadd.f32 %v4178, %v4581
  %4583 = vmatmul.bf16.gmra.mxu0 %v4342
  %v4584 = vpop.f32.mrf.mxu0
  %v4585 = vadd.f32 %v4181, %v4584
  %v4586 = vpop.f32.mrf.mxu0
  %v4587 = vadd.f32 %v4183, %v4586
  %4588 = vmatmul.bf16.gmra.mxu0 %v4343
  %v4589 = vpop.f32.mrf.mxu0
  %v4590 = vadd.f32 %v4186, %v4589
  %v4591 = vpop.f32.mrf.mxu0
  %v4592 = vadd.f32 %v4188, %v4591
  %4593 = vmatmul.bf16.gmra.mxu0 %v4344
  %v4594 = vpop.f32.mrf.mxu0
  %v4595 = vadd.f32 %v4191, %v4594
  %v4596 = vpop.f32.mrf.mxu0
  %v4597 = vadd.f32 %v4193, %v4596
  %4598 = vmatmul.bf16.gmra.mxu0 %v4345
  %v4599 = vpop.f32.mrf.mxu0
  %v4600 = vadd.f32 %v4196, %v4599
  %v4601 = vpop.f32.mrf.mxu0
  %v4602 = vadd.f32 %v4198, %v4601
  %4603 = vmatmul.bf16.gmra.mxu0 %v4346
  %v4604 = vpop.f32.mrf.mxu0
  %v4605 = vadd.f32 %v4201, %v4604
  %v4606 = vpop.f32.mrf.mxu0
  %v4607 = vadd.f32 %v4203, %v4606
  %4608 = vmatmul.bf16.gmra.mxu0 %v4347
  %v4609 = vpop.f32.mrf.mxu0
  %v4610 = vadd.f32 %v4206, %v4609
  %v4611 = vpop.f32.mrf.mxu0
  %v4612 = vadd.f32 %v4208, %v4611
  %4613 = vdwg.mxu0
  %4614 = vmatpush.bf16.msra.mxu0 %v4482
  %4615 = vmatpush.bf16.msra.mxu0 %v4478
  %4616 = vmatpush.bf16.msra.mxu0 %v4474
  %4617 = vmatpush.bf16.msra.mxu0 %v4470
  %4618 = vmatpush.bf16.msra.mxu0 %v4466
  %4619 = vmatpush.bf16.msra.mxu0 %v4462
  %4620 = vmatpush.bf16.msra.mxu0 %v4458
  %4621 = vmatpush.bf16.msra.mxu0 %v4454
  %4622 = vmatmul.bf16.gmra.mxu0 %v4340
  %v4623 = vpop.f32.mrf.mxu0
  %v4624 = vadd.f32 %v4220, %v4623
  %v4625 = vpop.f32.mrf.mxu0
  %v4626 = vadd.f32 %v4222, %v4625
  %4627 = vmatmul.bf16.gmra.mxu0 %v4341
  %v4628 = vpop.f32.mrf.mxu0
  %v4629 = vadd.f32 %v4225, %v4628
  %v4630 = vpop.f32.mrf.mxu0
  %v4631 = vadd.f32 %v4227, %v4630
  %4632 = vmatmul.bf16.gmra.mxu0 %v4342
  %v4633 = vpop.f32.mrf.mxu0
  %v4634 = vadd.f32 %v4230, %v4633
  %v4635 = vpop.f32.mrf.mxu0
  %v4636 = vadd.f32 %v4232, %v4635
  %4637 = vmatmul.bf16.gmra.mxu0 %v4343
  %v4638 = vpop.f32.mrf.mxu0
  %v4639 = vadd.f32 %v4235, %v4638
  %v4640 = vpop.f32.mrf.mxu0
  %v4641 = vadd.f32 %v4237, %v4640
  %4642 = vmatmul.bf16.gmra.mxu0 %v4344
  %v4643 = vpop.f32.mrf.mxu0
  %v4644 = vadd.f32 %v4240, %v4643
  %v4645 = vpop.f32.mrf.mxu0
  %v4646 = vadd.f32 %v4242, %v4645
  %4647 = vmatmul.bf16.gmra.mxu0 %v4345
  %v4648 = vpop.f32.mrf.mxu0
  %v4649 = vadd.f32 %v4245, %v4648
  %v4650 = vpop.f32.mrf.mxu0
  %v4651 = vadd.f32 %v4247, %v4650
  %4652 = vmatmul.bf16.gmra.mxu0 %v4346
  %v4653 = vpop.f32.mrf.mxu0
  %v4654 = vadd.f32 %v4250, %v4653
  %v4655 = vpop.f32.mrf.mxu0
  %v4656 = vadd.f32 %v4252, %v4655
  %4657 = vmatmul.bf16.gmra.mxu0 %v4347
  %v4658 = vpop.f32.mrf.mxu0
  %v4659 = vadd.f32 %v4255, %v4658
  %v4660 = vpop.f32.mrf.mxu0
  %v4661 = vadd.f32 %v4257, %v4660
  %4662 = vdwg.mxu0
  %4663 = vmatpush.bf16.msra.mxu0 %v4483
  %4664 = vmatpush.bf16.msra.mxu0 %v4479
  %4665 = vmatpush.bf16.msra.mxu0 %v4475
  %4666 = vmatpush.bf16.msra.mxu0 %v4471
  %4667 = vmatpush.bf16.msra.mxu0 %v4467
  %4668 = vmatpush.bf16.msra.mxu0 %v4463
  %4669 = vmatpush.bf16.msra.mxu0 %v4459
  %4670 = vmatpush.bf16.msra.mxu0 %v4455
  %4671 = vmatmul.bf16.gmra.mxu0 %v4340
  %v4672 = vpop.f32.mrf.mxu0
  %v4673 = vadd.f32 %v4269, %v4672
  %v4674 = vpop.f32.mrf.mxu0
  %v4675 = vadd.f32 %v4271, %v4674
  %4676 = vmatmul.bf16.gmra.mxu0 %v4341
  %v4677 = vpop.f32.mrf.mxu0
  %v4678 = vadd.f32 %v4274, %v4677
  %v4679 = vpop.f32.mrf.mxu0
  %v4680 = vadd.f32 %v4276, %v4679
  %4681 = vmatmul.bf16.gmra.mxu0 %v4342
  %v4682 = vpop.f32.mrf.mxu0
  %v4683 = vadd.f32 %v4279, %v4682
  %v4684 = vpop.f32.mrf.mxu0
  %v4685 = vadd.f32 %v4281, %v4684
  %4686 = vmatmul.bf16.gmra.mxu0 %v4343
  %v4687 = vpop.f32.mrf.mxu0
  %v4688 = vadd.f32 %v4284, %v4687
  %v4689 = vpop.f32.mrf.mxu0
  %v4690 = vadd.f32 %v4286, %v4689
  %4691 = vmatmul.bf16.gmra.mxu0 %v4344
  %v4692 = vpop.f32.mrf.mxu0
  %v4693 = vadd.f32 %v4289, %v4692
  %v4694 = vpop.f32.mrf.mxu0
  %v4695 = vadd.f32 %v4291, %v4694
  %4696 = vmatmul.bf16.gmra.mxu0 %v4345
  %v4697 = vpop.f32.mrf.mxu0
  %v4698 = vadd.f32 %v4294, %v4697
  %v4699 = vpop.f32.mrf.mxu0
  %v4700 = vadd.f32 %v4296, %v4699
  %4701 = vmatmul.bf16.gmra.mxu0 %v4346
  %v4702 = vpop.f32.mrf.mxu0
  %v4703 = vadd.f32 %v4299, %v4702
  %v4704 = vpop.f32.mrf.mxu0
  %v4705 = vadd.f32 %v4301, %v4704
  %4706 = vmatmul.bf16.gmra.mxu0 %v4347
  %v4707 = vpop.f32.mrf.mxu0
  %v4708 = vadd.f32 %v4304, %v4707
  %v4709 = vpop.f32.mrf.mxu0
  %v4710 = vadd.f32 %v4306, %v4709
  %4711 = vdwg.mxu0
  %v4712 = vld [vmem:[#allocation3] sm:$0xe]
  %v4713 = vld [vmem:[#allocation3 + $0x8] sm:$0xe]
  %v4714 = vld [vmem:[#allocation3 + $0x10] sm:$0xe]
  %v4715 = vld [vmem:[#allocation3 + $0x18] sm:$0xe]
  %v4716 = vld [vmem:[#allocation3 + $0x20] sm:$0xe]
  %v4717 = vld [vmem:[#allocation3 + $0x28] sm:$0xe]
  %v4718 = vld [vmem:[#allocation3 + $0x30] sm:$0xe]
  %v4719 = vld [vmem:[#allocation3 + $0x38] sm:$0xe]
  %v4720 = vld [vmem:[#allocation3 + $0x50] sm:$0xe]
  %v4721 = vld [vmem:[#allocation3 + $0x58] sm:$0xe]
  %v4722 = vld [vmem:[#allocation3 + $0x60] sm:$0xe]
  %v4723 = vld [vmem:[#allocation3 + $0x68] sm:$0xe]
  %v4724 = vld [vmem:[#allocation3 + $0x70] sm:$0xe]
  %v4725 = vld [vmem:[#allocation3 + $0x78] sm:$0xe]
  %v4726 = vld [vmem:[#allocation3 + $0x80] sm:$0xe]
  %v4727 = vld [vmem:[#allocation3 + $0x88] sm:$0xe]
  %v4760 = vrot.slane %v4712, 5
  %v4761 = vrot.slane %v4760, 4
  %v4762 = vrot.slane %v3647, 5
  %v4763 = vsel %vm1290, %v4761, %v4762
  %v4764 = vrot.slane %v4713, 5
  %v4765 = vrot.slane %v4764, 4
  %v4766 = vrot.slane %v3648, 5
  %v4767 = vsel %vm1290, %v4765, %v4766
  %v4768 = vrot.slane %v4714, 5
  %v4769 = vrot.slane %v4768, 4
  %v4770 = vrot.slane %v3649, 5
  %v4771 = vsel %vm1290, %v4769, %v4770
  %v4772 = vrot.slane %v4715, 5
  %v4773 = vrot.slane %v4772, 4
  %v4774 = vrot.slane %v3650, 5
  %v4775 = vsel %vm1290, %v4773, %v4774
  %v4776 = vrot.slane %v4716, 5
  %v4777 = vrot.slane %v4776, 4
  %v4778 = vrot.slane %v3651, 5
  %v4779 = vsel %vm1290, %v4777, %v4778
  %v4780 = vrot.slane %v4717, 5
  %v4781 = vrot.slane %v4780, 4
  %v4782 = vrot.slane %v3652, 5
  %v4783 = vsel %vm1290, %v4781, %v4782
  %v4784 = vrot.slane %v4718, 5
  %v4785 = vrot.slane %v4784, 4
  %v4786 = vrot.slane %v3653, 5
  %v4787 = vsel %vm1290, %v4785, %v4786
  %v4788 = vrot.slane %v4719, 5
  %v4789 = vrot.slane %v4788, 4
  %v4790 = vrot.slane %v3654, 5
  %v4791 = vsel %vm1290, %v4789, %v4790
  %v4792 = vrot.slane %v4720, 5
  %v4793 = vrot.slane %v4792, 4
  %v4794 = vrot.slane %v3655, 5
  %v4795 = vsel %vm1290, %v4793, %v4794
  %v4796 = vrot.slane %v4721, 5
  %v4797 = vrot.slane %v4796, 4
  %v4798 = vrot.slane %v3656, 5
  %v4799 = vsel %vm1290, %v4797, %v4798
  %v4800 = vrot.slane %v4722, 5
  %v4801 = vrot.slane %v4800, 4
  %v4802 = vrot.slane %v3657, 5
  %v4803 = vsel %vm1290, %v4801, %v4802
  %v4804 = vrot.slane %v4723, 5
  %v4805 = vrot.slane %v4804, 4
  %v4806 = vrot.slane %v3658, 5
  %v4807 = vsel %vm1290, %v4805, %v4806
  %v4808 = vrot.slane %v4724, 5
  %v4809 = vrot.slane %v4808, 4
  %v4810 = vrot.slane %v3659, 5
  %v4811 = vsel %vm1290, %v4809, %v4810
  %v4812 = vrot.slane %v4725, 5
  %v4813 = vrot.slane %v4812, 4
  %v4814 = vrot.slane %v3660, 5
  %v4815 = vsel %vm1290, %v4813, %v4814
  %v4816 = vrot.slane %v4726, 5
  %v4817 = vrot.slane %v4816, 4
  %v4818 = vrot.slane %v3661, 5
  %v4819 = vsel %vm1290, %v4817, %v4818
  %v4820 = vrot.slane %v4727, 5
  %v4821 = vrot.slane %v4820, 4
  %v4822 = vrot.slane %v3662, 5
  %v4823 = vsel %vm1290, %v4821, %v4822
  %s4824 = scalar_lea.vmem %s4, 512
  %v4825 = vld [vmem:[%s4824] sm:$0xff]
  %v4826 = vld [vmem:[%s4824 + $0x8] sm:$0xff]
  %v4827 = vld [vmem:[%s4824 + $0x10] sm:$0xff]
  %v4828 = vld [vmem:[%s4824 + $0x18] sm:$0xff]
  %v4829 = vld [vmem:[%s4824 + $0x20] sm:$0xff]
  %v4830 = vld [vmem:[%s4824 + $0x28] sm:$0xff]
  %v4831 = vld [vmem:[%s4824 + $0x30] sm:$0xff]
  %v4832 = vld [vmem:[%s4824 + $0x38] sm:$0xff]
  %v4833 = vld [vmem:[%s4824 + $0x40] sm:$0xff]
  %v4834 = vld [vmem:[%s4824 + $0x48] sm:$0xff]
  %v4835 = vld [vmem:[%s4824 + $0x50] sm:$0xff]
  %v4836 = vld [vmem:[%s4824 + $0x58] sm:$0xff]
  %v4837 = vld [vmem:[%s4824 + $0x60] sm:$0xff]
  %v4838 = vld [vmem:[%s4824 + $0x68] sm:$0xff]
  %v4839 = vld [vmem:[%s4824 + $0x70] sm:$0xff]
  %v4840 = vld [vmem:[%s4824 + $0x78] sm:$0xff]
  %v4841 = vld [vmem:[%s4824 + $0x80] sm:$0xff]
  %v4842 = vld [vmem:[%s4824 + $0x88] sm:$0xff]
  %v4843 = vld [vmem:[%s4824 + $0x90] sm:$0xff]
  %v4844 = vld [vmem:[%s4824 + $0x98] sm:$0xff]
  %v4845 = vld [vmem:[%s4824 + $0xa0] sm:$0xff]
  %v4846 = vld [vmem:[%s4824 + $0xa8] sm:$0xff]
  %v4847 = vld [vmem:[%s4824 + $0xb0] sm:$0xff]
  %v4848 = vld [vmem:[%s4824 + $0xb8] sm:$0xff]
  %v4849 = vld [vmem:[%s4824 + $0xc0] sm:$0xff]
  %v4850 = vld [vmem:[%s4824 + $0xc8] sm:$0xff]
  %v4851 = vld [vmem:[%s4824 + $0xd0] sm:$0xff]
  %v4852 = vld [vmem:[%s4824 + $0xd8] sm:$0xff]
  %v4853 = vld [vmem:[%s4824 + $0xe0] sm:$0xff]
  %v4854 = vld [vmem:[%s4824 + $0xe8] sm:$0xff]
  %v4855 = vld [vmem:[%s4824 + $0xf0] sm:$0xff]
  %v4856 = vld [vmem:[%s4824 + $0xf8] sm:$0xff]
  %v4857 = vunpack.c.l.b16 %v4763
  %v4858 = vunpack.c.l.b16 %v4767
  %v4859 = vunpack.c.l.b16 %v4771
  %v4860 = vunpack.c.l.b16 %v4775
  %v4861 = vunpack.c.l.b16 %v4779
  %v4862 = vunpack.c.l.b16 %v4783
  %v4863 = vunpack.c.l.b16 %v4787
  %v4864 = vunpack.c.l.b16 %v4791
  %v4865 = vunpack.c.l.b16 %v4795
  %v4866 = vunpack.c.l.b16 %v4799
  %v4867 = vunpack.c.l.b16 %v4803
  %v4868 = vunpack.c.l.b16 %v4807
  %v4869 = vunpack.c.l.b16 %v4811
  %v4870 = vunpack.c.l.b16 %v4815
  %v4871 = vunpack.c.l.b16 %v4819
  %v4872 = vunpack.c.l.b16 %v4823
  %v4873 = vpack.c.b16 %v4858, %v4857
  %v4874 = vpack.c.b16 %v4860, %v4859
  %v4875 = vpack.c.b16 %v4862, %v4861
  %v4876 = vpack.c.b16 %v4864, %v4863
  %v4877 = vpack.c.b16 %v4866, %v4865
  %v4878 = vpack.c.b16 %v4868, %v4867
  %v4879 = vpack.c.b16 %v4870, %v4869
  %v4880 = vpack.c.b16 %v4872, %v4871
  %v4921 = vunpack.c.l.b16 %v4825
  %v4922 = vunpack.c.h.b16 %v4825
  %v4923 = vunpack.c.l.b16 %v4826
  %v4924 = vunpack.c.h.b16 %v4826
  %v4925 = vunpack.c.l.b16 %v4827
  %v4926 = vunpack.c.h.b16 %v4827
  %v4927 = vunpack.c.l.b16 %v4828
  %v4928 = vunpack.c.h.b16 %v4828
  %v4929 = vunpack.c.l.b16 %v4829
  %v4930 = vunpack.c.h.b16 %v4829
  %v4931 = vunpack.c.l.b16 %v4830
  %v4932 = vunpack.c.h.b16 %v4830
  %v4933 = vunpack.c.l.b16 %v4831
  %v4934 = vunpack.c.h.b16 %v4831
  %v4935 = vunpack.c.l.b16 %v4832
  %v4936 = vunpack.c.h.b16 %v4832
  %v4937 = vunpack.c.l.b16 %v4833
  %v4938 = vunpack.c.h.b16 %v4833
  %v4939 = vunpack.c.l.b16 %v4834
  %v4940 = vunpack.c.h.b16 %v4834
  %v4941 = vunpack.c.l.b16 %v4835
  %v4942 = vunpack.c.h.b16 %v4835
  %v4943 = vunpack.c.l.b16 %v4836
  %v4944 = vunpack.c.h.b16 %v4836
  %v4945 = vunpack.c.l.b16 %v4837
  %v4946 = vunpack.c.h.b16 %v4837
  %v4947 = vunpack.c.l.b16 %v4838
  %v4948 = vunpack.c.h.b16 %v4838
  %v4949 = vunpack.c.l.b16 %v4839
  %v4950 = vunpack.c.h.b16 %v4839
  %v4951 = vunpack.c.l.b16 %v4840
  %v4952 = vunpack.c.h.b16 %v4840
  %v4953 = vunpack.c.l.b16 %v4841
  %v4954 = vunpack.c.h.b16 %v4841
  %v4955 = vunpack.c.l.b16 %v4842
  %v4956 = vunpack.c.h.b16 %v4842
  %v4957 = vunpack.c.l.b16 %v4843
  %v4958 = vunpack.c.h.b16 %v4843
  %v4959 = vunpack.c.l.b16 %v4844
  %v4960 = vunpack.c.h.b16 %v4844
  %v4961 = vunpack.c.l.b16 %v4845
  %v4962 = vunpack.c.h.b16 %v4845
  %v4963 = vunpack.c.l.b16 %v4846
  %v4964 = vunpack.c.h.b16 %v4846
  %v4965 = vunpack.c.l.b16 %v4847
  %v4966 = vunpack.c.h.b16 %v4847
  %v4967 = vunpack.c.l.b16 %v4848
  %v4968 = vunpack.c.h.b16 %v4848
  %v4969 = vunpack.c.l.b16 %v4849
  %v4970 = vunpack.c.h.b16 %v4849
  %v4971 = vunpack.c.l.b16 %v4850
  %v4972 = vunpack.c.h.b16 %v4850
  %v4973 = vunpack.c.l.b16 %v4851
  %v4974 = vunpack.c.h.b16 %v4851
  %v4975 = vunpack.c.l.b16 %v4852
  %v4976 = vunpack.c.h.b16 %v4852
  %v4977 = vunpack.c.l.b16 %v4853
  %v4978 = vunpack.c.h.b16 %v4853
  %v4979 = vunpack.c.l.b16 %v4854
  %v4980 = vunpack.c.h.b16 %v4854
  %v4981 = vunpack.c.l.b16 %v4855
  %v4982 = vunpack.c.h.b16 %v4855
  %v4983 = vunpack.c.l.b16 %v4856
  %v4984 = vunpack.c.h.b16 %v4856
  %v4985 = vpack.c.b16 %v4925, %v4921
  %v4986 = vpack.c.b16 %v4926, %v4922
  %v4987 = vpack.c.b16 %v4927, %v4923
  %v4988 = vpack.c.b16 %v4928, %v4924
  %v4989 = vpack.c.b16 %v4933, %v4929
  %v4990 = vpack.c.b16 %v4934, %v4930
  %v4991 = vpack.c.b16 %v4935, %v4931
  %v4992 = vpack.c.b16 %v4936, %v4932
  %v4993 = vpack.c.b16 %v4941, %v4937
  %v4994 = vpack.c.b16 %v4942, %v4938
  %v4995 = vpack.c.b16 %v4943, %v4939
  %v4996 = vpack.c.b16 %v4944, %v4940
  %v4997 = vpack.c.b16 %v4949, %v4945
  %v4998 = vpack.c.b16 %v4950, %v4946
  %v4999 = vpack.c.b16 %v4951, %v4947
  %v5000 = vpack.c.b16 %v4952, %v4948
  %v5001 = vpack.c.b16 %v4957, %v4953
  %v5002 = vpack.c.b16 %v4958, %v4954
  %v5003 = vpack.c.b16 %v4959, %v4955
  %v5004 = vpack.c.b16 %v4960, %v4956
  %v5005 = vpack.c.b16 %v4965, %v4961
  %v5006 = vpack.c.b16 %v4966, %v4962
  %v5007 = vpack.c.b16 %v4967, %v4963
  %v5008 = vpack.c.b16 %v4968, %v4964
  %v5009 = vpack.c.b16 %v4973, %v4969
  %v5010 = vpack.c.b16 %v4974, %v4970
  %v5011 = vpack.c.b16 %v4975, %v4971
  %v5012 = vpack.c.b16 %v4976, %v4972
  %v5013 = vpack.c.b16 %v4981, %v4977
  %v5014 = vpack.c.b16 %v4982, %v4978
  %v5015 = vpack.c.b16 %v4983, %v4979
  %v5016 = vpack.c.b16 %v4984, %v4980
  %5049 = vmatpush.bf16.msra.mxu0 %v5013
  %5050 = vmatpush.bf16.msra.mxu0 %v5009
  %5051 = vmatpush.bf16.msra.mxu0 %v5005
  %5052 = vmatpush.bf16.msra.mxu0 %v5001
  %5053 = vmatpush.bf16.msra.mxu0 %v4997
  %5054 = vmatpush.bf16.msra.mxu0 %v4993
  %5055 = vmatpush.bf16.msra.mxu0 %v4989
  %5056 = vmatpush.bf16.msra.mxu0 %v4985
  %5057 = vmatmul.bf16.gmra.mxu0 %v4873
  %v5058 = vpop.f32.mrf.mxu0
  %v5059 = vadd.f32 0.0, %v5058
  %v5060 = vpop.f32.mrf.mxu0
  %v5061 = vadd.f32 0.0, %v5060
  %5062 = vmatmul.bf16.gmra.mxu0 %v4874
  %v5063 = vpop.f32.mrf.mxu0
  %v5064 = vadd.f32 0.0, %v5063
  %v5065 = vpop.f32.mrf.mxu0
  %v5066 = vadd.f32 0.0, %v5065
  %5067 = vmatmul.bf16.gmra.mxu0 %v4875
  %v5068 = vpop.f32.mrf.mxu0
  %v5069 = vadd.f32 0.0, %v5068
  %v5070 = vpop.f32.mrf.mxu0
  %v5071 = vadd.f32 0.0, %v5070
  %5072 = vmatmul.bf16.gmra.mxu0 %v4876
  %v5073 = vpop.f32.mrf.mxu0
  %v5074 = vadd.f32 0.0, %v5073
  %v5075 = vpop.f32.mrf.mxu0
  %v5076 = vadd.f32 0.0, %v5075
  %5077 = vmatmul.bf16.gmra.mxu0 %v4877
  %v5078 = vpop.f32.mrf.mxu0
  %v5079 = vadd.f32 0.0, %v5078
  %v5080 = vpop.f32.mrf.mxu0
  %v5081 = vadd.f32 0.0, %v5080
  %5082 = vmatmul.bf16.gmra.mxu0 %v4878
  %v5083 = vpop.f32.mrf.mxu0
  %v5084 = vadd.f32 0.0, %v5083
  %v5085 = vpop.f32.mrf.mxu0
  %v5086 = vadd.f32 0.0, %v5085
  %5087 = vmatmul.bf16.gmra.mxu0 %v4879
  %v5088 = vpop.f32.mrf.mxu0
  %v5089 = vadd.f32 0.0, %v5088
  %v5090 = vpop.f32.mrf.mxu0
  %v5091 = vadd.f32 0.0, %v5090
  %5092 = vmatmul.bf16.gmra.mxu0 %v4880
  %v5093 = vpop.f32.mrf.mxu0
  %v5094 = vadd.f32 0.0, %v5093
  %v5095 = vpop.f32.mrf.mxu0
  %v5096 = vadd.f32 0.0, %v5095
  %5097 = vdwg.mxu0
  %5098 = vmatpush.bf16.msra.mxu0 %v5014
  %5099 = vmatpush.bf16.msra.mxu0 %v5010
  %5100 = vmatpush.bf16.msra.mxu0 %v5006
  %5101 = vmatpush.bf16.msra.mxu0 %v5002
  %5102 = vmatpush.bf16.msra.mxu0 %v4998
  %5103 = vmatpush.bf16.msra.mxu0 %v4994
  %5104 = vmatpush.bf16.msra.mxu0 %v4990
  %5105 = vmatpush.bf16.msra.mxu0 %v4986
  %5106 = vmatmul.bf16.gmra.mxu0 %v4873
  %v5107 = vpop.f32.mrf.mxu0
  %v5108 = vadd.f32 0.0, %v5107
  %v5109 = vpop.f32.mrf.mxu0
  %v5110 = vadd.f32 0.0, %v5109
  %5111 = vmatmul.bf16.gmra.mxu0 %v4874
  %v5112 = vpop.f32.mrf.mxu0
  %v5113 = vadd.f32 0.0, %v5112
  %v5114 = vpop.f32.mrf.mxu0
  %v5115 = vadd.f32 0.0, %v5114
  %5116 = vmatmul.bf16.gmra.mxu0 %v4875
  %v5117 = vpop.f32.mrf.mxu0
  %v5118 = vadd.f32 0.0, %v5117
  %v5119 = vpop.f32.mrf.mxu0
  %v5120 = vadd.f32 0.0, %v5119
  %5121 = vmatmul.bf16.gmra.mxu0 %v4876
  %v5122 = vpop.f32.mrf.mxu0
  %v5123 = vadd.f32 0.0, %v5122
  %v5124 = vpop.f32.mrf.mxu0
  %v5125 = vadd.f32 0.0, %v5124
  %5126 = vmatmul.bf16.gmra.mxu0 %v4877
  %v5127 = vpop.f32.mrf.mxu0
  %v5128 = vadd.f32 0.0, %v5127
  %v5129 = vpop.f32.mrf.mxu0
  %v5130 = vadd.f32 0.0, %v5129
  %5131 = vmatmul.bf16.gmra.mxu0 %v4878
  %v5132 = vpop.f32.mrf.mxu0
  %v5133 = vadd.f32 0.0, %v5132
  %v5134 = vpop.f32.mrf.mxu0
  %v5135 = vadd.f32 0.0, %v5134
  %5136 = vmatmul.bf16.gmra.mxu0 %v4879
  %v5137 = vpop.f32.mrf.mxu0
  %v5138 = vadd.f32 0.0, %v5137
  %v5139 = vpop.f32.mrf.mxu0
  %v5140 = vadd.f32 0.0, %v5139
  %5141 = vmatmul.bf16.gmra.mxu0 %v4880
  %v5142 = vpop.f32.mrf.mxu0
  %v5143 = vadd.f32 0.0, %v5142
  %v5144 = vpop.f32.mrf.mxu0
  %v5145 = vadd.f32 0.0, %v5144
  %5146 = vdwg.mxu0
  %5147 = vmatpush.bf16.msra.mxu0 %v5015
  %5148 = vmatpush.bf16.msra.mxu0 %v5011
  %5149 = vmatpush.bf16.msra.mxu0 %v5007
  %5150 = vmatpush.bf16.msra.mxu0 %v5003
  %5151 = vmatpush.bf16.msra.mxu0 %v4999
  %5152 = vmatpush.bf16.msra.mxu0 %v4995
  %5153 = vmatpush.bf16.msra.mxu0 %v4991
  %5154 = vmatpush.bf16.msra.mxu0 %v4987
  %5155 = vmatmul.bf16.gmra.mxu0 %v4873
  %v5156 = vpop.f32.mrf.mxu0
  %v5157 = vadd.f32 0.0, %v5156
  %v5158 = vpop.f32.mrf.mxu0
  %v5159 = vadd.f32 0.0, %v5158
  %5160 = vmatmul.bf16.gmra.mxu0 %v4874
  %v5161 = vpop.f32.mrf.mxu0
  %v5162 = vadd.f32 0.0, %v5161
  %v5163 = vpop.f32.mrf.mxu0
  %v5164 = vadd.f32 0.0, %v5163
  %5165 = vmatmul.bf16.gmra.mxu0 %v4875
  %v5166 = vpop.f32.mrf.mxu0
  %v5167 = vadd.f32 0.0, %v5166
  %v5168 = vpop.f32.mrf.mxu0
  %v5169 = vadd.f32 0.0, %v5168
  %5170 = vmatmul.bf16.gmra.mxu0 %v4876
  %v5171 = vpop.f32.mrf.mxu0
  %v5172 = vadd.f32 0.0, %v5171
  %v5173 = vpop.f32.mrf.mxu0
  %v5174 = vadd.f32 0.0, %v5173
  %5175 = vmatmul.bf16.gmra.mxu0 %v4877
  %v5176 = vpop.f32.mrf.mxu0
  %v5177 = vadd.f32 0.0, %v5176
  %v5178 = vpop.f32.mrf.mxu0
  %v5179 = vadd.f32 0.0, %v5178
  %5180 = vmatmul.bf16.gmra.mxu0 %v4878
  %v5181 = vpop.f32.mrf.mxu0
  %v5182 = vadd.f32 0.0, %v5181
  %v5183 = vpop.f32.mrf.mxu0
  %v5184 = vadd.f32 0.0, %v5183
  %5185 = vmatmul.bf16.gmra.mxu0 %v4879
  %v5186 = vpop.f32.mrf.mxu0
  %v5187 = vadd.f32 0.0, %v5186
  %v5188 = vpop.f32.mrf.mxu0
  %v5189 = vadd.f32 0.0, %v5188
  %5190 = vmatmul.bf16.gmra.mxu0 %v4880
  %v5191 = vpop.f32.mrf.mxu0
  %v5192 = vadd.f32 0.0, %v5191
  %v5193 = vpop.f32.mrf.mxu0
  %v5194 = vadd.f32 0.0, %v5193
  %5195 = vdwg.mxu0
  %5196 = vmatpush.bf16.msra.mxu0 %v5016
  %5197 = vmatpush.bf16.msra.mxu0 %v5012
  %5198 = vmatpush.bf16.msra.mxu0 %v5008
  %5199 = vmatpush.bf16.msra.mxu0 %v5004
  %5200 = vmatpush.bf16.msra.mxu0 %v5000
  %5201 = vmatpush.bf16.msra.mxu0 %v4996
  %5202 = vmatpush.bf16.msra.mxu0 %v4992
  %5203 = vmatpush.bf16.msra.mxu0 %v4988
  %5204 = vmatmul.bf16.gmra.mxu0 %v4873
  %v5205 = vpop.f32.mrf.mxu0
  %v5206 = vadd.f32 0.0, %v5205
  %v5207 = vpop.f32.mrf.mxu0
  %v5208 = vadd.f32 0.0, %v5207
  %5209 = vmatmul.bf16.gmra.mxu0 %v4874
  %v5210 = vpop.f32.mrf.mxu0
  %v5211 = vadd.f32 0.0, %v5210
  %v5212 = vpop.f32.mrf.mxu0
  %v5213 = vadd.f32 0.0, %v5212
  %5214 = vmatmul.bf16.gmra.mxu0 %v4875
  %v5215 = vpop.f32.mrf.mxu0
  %v5216 = vadd.f32 0.0, %v5215
  %v5217 = vpop.f32.mrf.mxu0
  %v5218 = vadd.f32 0.0, %v5217
  %5219 = vmatmul.bf16.gmra.mxu0 %v4876
  %v5220 = vpop.f32.mrf.mxu0
  %v5221 = vadd.f32 0.0, %v5220
  %v5222 = vpop.f32.mrf.mxu0
  %v5223 = vadd.f32 0.0, %v5222
  %5224 = vmatmul.bf16.gmra.mxu0 %v4877
  %v5225 = vpop.f32.mrf.mxu0
  %v5226 = vadd.f32 0.0, %v5225
  %v5227 = vpop.f32.mrf.mxu0
  %v5228 = vadd.f32 0.0, %v5227
  %5229 = vmatmul.bf16.gmra.mxu0 %v4878
  %v5230 = vpop.f32.mrf.mxu0
  %v5231 = vadd.f32 0.0, %v5230
  %v5232 = vpop.f32.mrf.mxu0
  %v5233 = vadd.f32 0.0, %v5232
  %5234 = vmatmul.bf16.gmra.mxu0 %v4879
  %v5235 = vpop.f32.mrf.mxu0
  %v5236 = vadd.f32 0.0, %v5235
  %v5237 = vpop.f32.mrf.mxu0
  %v5238 = vadd.f32 0.0, %v5237
  %5239 = vmatmul.bf16.gmra.mxu0 %v4880
  %v5240 = vpop.f32.mrf.mxu0
  %v5241 = vadd.f32 0.0, %v5240
  %v5242 = vpop.f32.mrf.mxu0
  %v5243 = vadd.f32 0.0, %v5242
  %5244 = vdwg.mxu0
  %v5245 = vadd.f32 %v4526, %v5059
  %v5246 = vadd.f32 %v4575, %v5108
  %v5247 = vadd.f32 %v4624, %v5157
  %v5248 = vadd.f32 %v4673, %v5206
  %v5249 = vadd.f32 %v4528, %v5061
  %v5250 = vadd.f32 %v4577, %v5110
  %v5251 = vadd.f32 %v4626, %v5159
  %v5252 = vadd.f32 %v4675, %v5208
  %v5253 = vadd.f32 %v4531, %v5064
  %v5254 = vadd.f32 %v4580, %v5113
  %v5255 = vadd.f32 %v4629, %v5162
  %v5256 = vadd.f32 %v4678, %v5211
  %v5257 = vadd.f32 %v4533, %v5066
  %v5258 = vadd.f32 %v4582, %v5115
  %v5259 = vadd.f32 %v4631, %v5164
  %v5260 = vadd.f32 %v4680, %v5213
  %v5261 = vadd.f32 %v4536, %v5069
  %v5262 = vadd.f32 %v4585, %v5118
  %v5263 = vadd.f32 %v4634, %v5167
  %v5264 = vadd.f32 %v4683, %v5216
  %v5265 = vadd.f32 %v4538, %v5071
  %v5266 = vadd.f32 %v4587, %v5120
  %v5267 = vadd.f32 %v4636, %v5169
  %v5268 = vadd.f32 %v4685, %v5218
  %v5269 = vadd.f32 %v4541, %v5074
  %v5270 = vadd.f32 %v4590, %v5123
  %v5271 = vadd.f32 %v4639, %v5172
  %v5272 = vadd.f32 %v4688, %v5221
  %v5273 = vadd.f32 %v4543, %v5076
  %v5274 = vadd.f32 %v4592, %v5125
  %v5275 = vadd.f32 %v4641, %v5174
  %v5276 = vadd.f32 %v4690, %v5223
  %v5277 = vadd.f32 %v4546, %v5079
  %v5278 = vadd.f32 %v4595, %v5128
  %v5279 = vadd.f32 %v4644, %v5177
  %v5280 = vadd.f32 %v4693, %v5226
  %v5281 = vadd.f32 %v4548, %v5081
  %v5282 = vadd.f32 %v4597, %v5130
  %v5283 = vadd.f32 %v4646, %v5179
  %v5284 = vadd.f32 %v4695, %v5228
  %v5285 = vadd.f32 %v4551, %v5084
  %v5286 = vadd.f32 %v4600, %v5133
  %v5287 = vadd.f32 %v4649, %v5182
  %v5288 = vadd.f32 %v4698, %v5231
  %v5289 = vadd.f32 %v4553, %v5086
  %v5290 = vadd.f32 %v4602, %v5135
  %v5291 = vadd.f32 %v4651, %v5184
  %v5292 = vadd.f32 %v4700, %v5233
  %v5293 = vadd.f32 %v4556, %v5089
  %v5294 = vadd.f32 %v4605, %v5138
  %v5295 = vadd.f32 %v4654, %v5187
  %v5296 = vadd.f32 %v4703, %v5236
  %v5297 = vadd.f32 %v4558, %v5091
  %v5298 = vadd.f32 %v4607, %v5140
  %v5299 = vadd.f32 %v4656, %v5189
  %v5300 = vadd.f32 %v4705, %v5238
  %v5301 = vadd.f32 %v4561, %v5094
  %v5302 = vadd.f32 %v4610, %v5143
  %v5303 = vadd.f32 %v4659, %v5192
  %v5304 = vadd.f32 %v4708, %v5241
  %v5305 = vadd.f32 %v4563, %v5096
  %v5306 = vadd.f32 %v4612, %v5145
  %v5307 = vadd.f32 %v4661, %v5194
  %v5308 = vadd.f32 %v4710, %v5243
  %v5309 = vld [vmem:[%s3502] sm:$0xf]
  %v5310 = vld [vmem:[%s3502 + $0x8] sm:$0xf]
  %v5311 = vld [vmem:[%s3502 + $0x10] sm:$0xf]
  %v5312 = vld [vmem:[%s3502 + $0x18] sm:$0xf]
  %v5313 = vld [vmem:[%s3502 + $0x20] sm:$0xf]
  %v5314 = vld [vmem:[%s3502 + $0x28] sm:$0xf]
  %v5315 = vld [vmem:[%s3502 + $0x30] sm:$0xf]
  %v5316 = vld [vmem:[%s3502 + $0x38] sm:$0xf]
  %v5317 = vld [vmem:[%s3502 + $0x50] sm:$0xf]
  %v5318 = vld [vmem:[%s3502 + $0x58] sm:$0xf]
  %v5319 = vld [vmem:[%s3502 + $0x60] sm:$0xf]
  %v5320 = vld [vmem:[%s3502 + $0x68] sm:$0xf]
  %v5321 = vld [vmem:[%s3502 + $0x70] sm:$0xf]
  %v5322 = vld [vmem:[%s3502 + $0x78] sm:$0xf]
  %v5323 = vld [vmem:[%s3502 + $0x80] sm:$0xf]
  %v5324 = vld [vmem:[%s3502 + $0x88] sm:$0xf]
  %s5325 = scalar_lea.vmem %s4, 768
  %v5326 = vld [vmem:[%s5325] sm:$0xff]
  %v5327 = vld [vmem:[%s5325 + $0x8] sm:$0xff]
  %v5328 = vld [vmem:[%s5325 + $0x10] sm:$0xff]
  %v5329 = vld [vmem:[%s5325 + $0x18] sm:$0xff]
  %v5330 = vld [vmem:[%s5325 + $0x20] sm:$0xff]
  %v5331 = vld [vmem:[%s5325 + $0x28] sm:$0xff]
  %v5332 = vld [vmem:[%s5325 + $0x30] sm:$0xff]
  %v5333 = vld [vmem:[%s5325 + $0x38] sm:$0xff]
  %v5334 = vld [vmem:[%s5325 + $0x40] sm:$0xff]
  %v5335 = vld [vmem:[%s5325 + $0x48] sm:$0xff]
  %v5336 = vld [vmem:[%s5325 + $0x50] sm:$0xff]
  %v5337 = vld [vmem:[%s5325 + $0x58] sm:$0xff]
  %v5338 = vld [vmem:[%s5325 + $0x60] sm:$0xff]
  %v5339 = vld [vmem:[%s5325 + $0x68] sm:$0xff]
  %v5340 = vld [vmem:[%s5325 + $0x70] sm:$0xff]
  %v5341 = vld [vmem:[%s5325 + $0x78] sm:$0xff]
  %v5342 = vld [vmem:[%s5325 + $0x80] sm:$0xff]
  %v5343 = vld [vmem:[%s5325 + $0x88] sm:$0xff]
  %v5344 = vld [vmem:[%s5325 + $0x90] sm:$0xff]
  %v5345 = vld [vmem:[%s5325 + $0x98] sm:$0xff]
  %v5346 = vld [vmem:[%s5325 + $0xa0] sm:$0xff]
  %v5347 = vld [vmem:[%s5325 + $0xa8] sm:$0xff]
  %v5348 = vld [vmem:[%s5325 + $0xb0] sm:$0xff]
  %v5349 = vld [vmem:[%s5325 + $0xb8] sm:$0xff]
  %v5350 = vld [vmem:[%s5325 + $0xc0] sm:$0xff]
  %v5351 = vld [vmem:[%s5325 + $0xc8] sm:$0xff]
  %v5352 = vld [vmem:[%s5325 + $0xd0] sm:$0xff]
  %v5353 = vld [vmem:[%s5325 + $0xd8] sm:$0xff]
  %v5354 = vld [vmem:[%s5325 + $0xe0] sm:$0xff]
  %v5355 = vld [vmem:[%s5325 + $0xe8] sm:$0xff]
  %v5356 = vld [vmem:[%s5325 + $0xf0] sm:$0xff]
  %v5357 = vld [vmem:[%s5325 + $0xf8] sm:$0xff]
  %v5374 = vunpack.c.l.b16 %v5309
  %v5375 = vunpack.c.l.b16 %v5310
  %v5376 = vunpack.c.l.b16 %v5311
  %v5377 = vunpack.c.l.b16 %v5312
  %v5378 = vunpack.c.l.b16 %v5313
  %v5379 = vunpack.c.l.b16 %v5314
  %v5380 = vunpack.c.l.b16 %v5315
  %v5381 = vunpack.c.l.b16 %v5316
  %v5382 = vunpack.c.l.b16 %v5317
  %v5383 = vunpack.c.l.b16 %v5318
  %v5384 = vunpack.c.l.b16 %v5319
  %v5385 = vunpack.c.l.b16 %v5320
  %v5386 = vunpack.c.l.b16 %v5321
  %v5387 = vunpack.c.l.b16 %v5322
  %v5388 = vunpack.c.l.b16 %v5323
  %v5389 = vunpack.c.l.b16 %v5324
  %v5390 = vpack.c.b16 %v5375, %v5374
  %v5391 = vpack.c.b16 %v5377, %v5376
  %v5392 = vpack.c.b16 %v5379, %v5378
  %v5393 = vpack.c.b16 %v5381, %v5380
  %v5394 = vpack.c.b16 %v5383, %v5382
  %v5395 = vpack.c.b16 %v5385, %v5384
  %v5396 = vpack.c.b16 %v5387, %v5386
  %v5397 = vpack.c.b16 %v5389, %v5388
  %v5438 = vunpack.c.l.b16 %v5326
  %v5439 = vunpack.c.h.b16 %v5326
  %v5440 = vunpack.c.l.b16 %v5327
  %v5441 = vunpack.c.h.b16 %v5327
  %v5442 = vunpack.c.l.b16 %v5328
  %v5443 = vunpack.c.h.b16 %v5328
  %v5444 = vunpack.c.l.b16 %v5329
  %v5445 = vunpack.c.h.b16 %v5329
  %v5446 = vunpack.c.l.b16 %v5330
  %v5447 = vunpack.c.h.b16 %v5330
  %v5448 = vunpack.c.l.b16 %v5331
  %v5449 = vunpack.c.h.b16 %v5331
  %v5450 = vunpack.c.l.b16 %v5332
  %v5451 = vunpack.c.h.b16 %v5332
  %v5452 = vunpack.c.l.b16 %v5333
  %v5453 = vunpack.c.h.b16 %v5333
  %v5454 = vunpack.c.l.b16 %v5334
  %v5455 = vunpack.c.h.b16 %v5334
  %v5456 = vunpack.c.l.b16 %v5335
  %v5457 = vunpack.c.h.b16 %v5335
  %v5458 = vunpack.c.l.b16 %v5336
  %v5459 = vunpack.c.h.b16 %v5336
  %v5460 = vunpack.c.l.b16 %v5337
  %v5461 = vunpack.c.h.b16 %v5337
  %v5462 = vunpack.c.l.b16 %v5338
  %v5463 = vunpack.c.h.b16 %v5338
  %v5464 = vunpack.c.l.b16 %v5339
  %v5465 = vunpack.c.h.b16 %v5339
  %v5466 = vunpack.c.l.b16 %v5340
  %v5467 = vunpack.c.h.b16 %v5340
  %v5468 = vunpack.c.l.b16 %v5341
  %v5469 = vunpack.c.h.b16 %v5341
  %v5470 = vunpack.c.l.b16 %v5342
  %v5471 = vunpack.c.h.b16 %v5342
  %v5472 = vunpack.c.l.b16 %v5343
  %v5473 = vunpack.c.h.b16 %v5343
  %v5474 = vunpack.c.l.b16 %v5344
  %v5475 = vunpack.c.h.b16 %v5344
  %v5476 = vunpack.c.l.b16 %v5345
  %v5477 = vunpack.c.h.b16 %v5345
  %v5478 = vunpack.c.l.b16 %v5346
  %v5479 = vunpack.c.h.b16 %v5346
  %v5480 = vunpack.c.l.b16 %v5347
  %v5481 = vunpack.c.h.b16 %v5347
  %v5482 = vunpack.c.l.b16 %v5348
  %v5483 = vunpack.c.h.b16 %v5348
  %v5484 = vunpack.c.l.b16 %v5349
  %v5485 = vunpack.c.h.b16 %v5349
  %v5486 = vunpack.c.l.b16 %v5350
  %v5487 = vunpack.c.h.b16 %v5350
  %v5488 = vunpack.c.l.b16 %v5351
  %v5489 = vunpack.c.h.b16 %v5351
  %v5490 = vunpack.c.l.b16 %v5352
  %v5491 = vunpack.c.h.b16 %v5352
  %v5492 = vunpack.c.l.b16 %v5353
  %v5493 = vunpack.c.h.b16 %v5353
  %v5494 = vunpack.c.l.b16 %v5354
  %v5495 = vunpack.c.h.b16 %v5354
  %v5496 = vunpack.c.l.b16 %v5355
  %v5497 = vunpack.c.h.b16 %v5355
  %v5498 = vunpack.c.l.b16 %v5356
  %v5499 = vunpack.c.h.b16 %v5356
  %v5500 = vunpack.c.l.b16 %v5357
  %v5501 = vunpack.c.h.b16 %v5357
  %v5502 = vpack.c.b16 %v5442, %v5438
  %v5503 = vpack.c.b16 %v5443, %v5439
  %v5504 = vpack.c.b16 %v5444, %v5440
  %v5505 = vpack.c.b16 %v5445, %v5441
  %v5506 = vpack.c.b16 %v5450, %v5446
  %v5507 = vpack.c.b16 %v5451, %v5447
  %v5508 = vpack.c.b16 %v5452, %v5448
  %v5509 = vpack.c.b16 %v5453, %v5449
  %v5510 = vpack.c.b16 %v5458, %v5454
  %v5511 = vpack.c.b16 %v5459, %v5455
  %v5512 = vpack.c.b16 %v5460, %v5456
  %v5513 = vpack.c.b16 %v5461, %v5457
  %v5514 = vpack.c.b16 %v5466, %v5462
  %v5515 = vpack.c.b16 %v5467, %v5463
  %v5516 = vpack.c.b16 %v5468, %v5464
  %v5517 = vpack.c.b16 %v5469, %v5465
  %v5518 = vpack.c.b16 %v5474, %v5470
  %v5519 = vpack.c.b16 %v5475, %v5471
  %v5520 = vpack.c.b16 %v5476, %v5472
  %v5521 = vpack.c.b16 %v5477, %v5473
  %v5522 = vpack.c.b16 %v5482, %v5478
  %v5523 = vpack.c.b16 %v5483, %v5479
  %v5524 = vpack.c.b16 %v5484, %v5480
  %v5525 = vpack.c.b16 %v5485, %v5481
  %v5526 = vpack.c.b16 %v5490, %v5486
  %v5527 = vpack.c.b16 %v5491, %v5487
  %v5528 = vpack.c.b16 %v5492, %v5488
  %v5529 = vpack.c.b16 %v5493, %v5489
  %v5530 = vpack.c.b16 %v5498, %v5494
  %v5531 = vpack.c.b16 %v5499, %v5495
  %v5532 = vpack.c.b16 %v5500, %v5496
  %v5533 = vpack.c.b16 %v5501, %v5497
  %5566 = vmatpush.bf16.msra.mxu0 %v5530
  %5567 = vmatpush.bf16.msra.mxu0 %v5526
  %5568 = vmatpush.bf16.msra.mxu0 %v5522
  %5569 = vmatpush.bf16.msra.mxu0 %v5518
  %5570 = vmatpush.bf16.msra.mxu0 %v5514
  %5571 = vmatpush.bf16.msra.mxu0 %v5510
  %5572 = vmatpush.bf16.msra.mxu0 %v5506
  %5573 = vmatpush.bf16.msra.mxu0 %v5502
  %5574 = vmatmul.bf16.gmra.mxu0 %v5390
  %v5575 = vpop.f32.mrf.mxu0
  %v5576 = vadd.f32 0.0, %v5575
  %v5577 = vpop.f32.mrf.mxu0
  %v5578 = vadd.f32 0.0, %v5577
  %5579 = vmatmul.bf16.gmra.mxu0 %v5391
  %v5580 = vpop.f32.mrf.mxu0
  %v5581 = vadd.f32 0.0, %v5580
  %v5582 = vpop.f32.mrf.mxu0
  %v5583 = vadd.f32 0.0, %v5582
  %5584 = vmatmul.bf16.gmra.mxu0 %v5392
  %v5585 = vpop.f32.mrf.mxu0
  %v5586 = vadd.f32 0.0, %v5585
  %v5587 = vpop.f32.mrf.mxu0
  %v5588 = vadd.f32 0.0, %v5587
  %5589 = vmatmul.bf16.gmra.mxu0 %v5393
  %v5590 = vpop.f32.mrf.mxu0
  %v5591 = vadd.f32 0.0, %v5590
  %v5592 = vpop.f32.mrf.mxu0
  %v5593 = vadd.f32 0.0, %v5592
  %5594 = vmatmul.bf16.gmra.mxu0 %v5394
  %v5595 = vpop.f32.mrf.mxu0
  %v5596 = vadd.f32 0.0, %v5595
  %v5597 = vpop.f32.mrf.mxu0
  %v5598 = vadd.f32 0.0, %v5597
  %5599 = vmatmul.bf16.gmra.mxu0 %v5395
  %v5600 = vpop.f32.mrf.mxu0
  %v5601 = vadd.f32 0.0, %v5600
  %v5602 = vpop.f32.mrf.mxu0
  %v5603 = vadd.f32 0.0, %v5602
  %5604 = vmatmul.bf16.gmra.mxu0 %v5396
  %v5605 = vpop.f32.mrf.mxu0
  %v5606 = vadd.f32 0.0, %v5605
  %v5607 = vpop.f32.mrf.mxu0
  %v5608 = vadd.f32 0.0, %v5607
  %5609 = vmatmul.bf16.gmra.mxu0 %v5397
  %v5610 = vpop.f32.mrf.mxu0
  %v5611 = vadd.f32 0.0, %v5610
  %v5612 = vpop.f32.mrf.mxu0
  %v5613 = vadd.f32 0.0, %v5612
  %5614 = vdwg.mxu0
  %5615 = vmatpush.bf16.msra.mxu0 %v5531
  %5616 = vmatpush.bf16.msra.mxu0 %v5527
  %5617 = vmatpush.bf16.msra.mxu0 %v5523
  %5618 = vmatpush.bf16.msra.mxu0 %v5519
  %5619 = vmatpush.bf16.msra.mxu0 %v5515
  %5620 = vmatpush.bf16.msra.mxu0 %v5511
  %5621 = vmatpush.bf16.msra.mxu0 %v5507
  %5622 = vmatpush.bf16.msra.mxu0 %v5503
  %5623 = vmatmul.bf16.gmra.mxu0 %v5390
  %v5624 = vpop.f32.mrf.mxu0
  %v5625 = vadd.f32 0.0, %v5624
  %v5626 = vpop.f32.mrf.mxu0
  %v5627 = vadd.f32 0.0, %v5626
  %5628 = vmatmul.bf16.gmra.mxu0 %v5391
  %v5629 = vpop.f32.mrf.mxu0
  %v5630 = vadd.f32 0.0, %v5629
  %v5631 = vpop.f32.mrf.mxu0
  %v5632 = vadd.f32 0.0, %v5631
  %5633 = vmatmul.bf16.gmra.mxu0 %v5392
  %v5634 = vpop.f32.mrf.mxu0
  %v5635 = vadd.f32 0.0, %v5634
  %v5636 = vpop.f32.mrf.mxu0
  %v5637 = vadd.f32 0.0, %v5636
  %5638 = vmatmul.bf16.gmra.mxu0 %v5393
  %v5639 = vpop.f32.mrf.mxu0
  %v5640 = vadd.f32 0.0, %v5639
  %v5641 = vpop.f32.mrf.mxu0
  %v5642 = vadd.f32 0.0, %v5641
  %5643 = vmatmul.bf16.gmra.mxu0 %v5394
  %v5644 = vpop.f32.mrf.mxu0
  %v5645 = vadd.f32 0.0, %v5644
  %v5646 = vpop.f32.mrf.mxu0
  %v5647 = vadd.f32 0.0, %v5646
  %5648 = vmatmul.bf16.gmra.mxu0 %v5395
  %v5649 = vpop.f32.mrf.mxu0
  %v5650 = vadd.f32 0.0, %v5649
  %v5651 = vpop.f32.mrf.mxu0
  %v5652 = vadd.f32 0.0, %v5651
  %5653 = vmatmul.bf16.gmra.mxu0 %v5396
  %v5654 = vpop.f32.mrf.mxu0
  %v5655 = vadd.f32 0.0, %v5654
  %v5656 = vpop.f32.mrf.mxu0
  %v5657 = vadd.f32 0.0, %v5656
  %5658 = vmatmul.bf16.gmra.mxu0 %v5397
  %v5659 = vpop.f32.mrf.mxu0
  %v5660 = vadd.f32 0.0, %v5659
  %v5661 = vpop.f32.mrf.mxu0
  %v5662 = vadd.f32 0.0, %v5661
  %5663 = vdwg.mxu0
  %5664 = vmatpush.bf16.msra.mxu0 %v5532
  %5665 = vmatpush.bf16.msra.mxu0 %v5528
  %5666 = vmatpush.bf16.msra.mxu0 %v5524
  %5667 = vmatpush.bf16.msra.mxu0 %v5520
  %5668 = vmatpush.bf16.msra.mxu0 %v5516
  %5669 = vmatpush.bf16.msra.mxu0 %v5512
  %5670 = vmatpush.bf16.msra.mxu0 %v5508
  %5671 = vmatpush.bf16.msra.mxu0 %v5504
  %5672 = vmatmul.bf16.gmra.mxu0 %v5390
  %v5673 = vpop.f32.mrf.mxu0
  %v5674 = vadd.f32 0.0, %v5673
  %v5675 = vpop.f32.mrf.mxu0
  %v5676 = vadd.f32 0.0, %v5675
  %5677 = vmatmul.bf16.gmra.mxu0 %v5391
  %v5678 = vpop.f32.mrf.mxu0
  %v5679 = vadd.f32 0.0, %v5678
  %v5680 = vpop.f32.mrf.mxu0
  %v5681 = vadd.f32 0.0, %v5680
  %5682 = vmatmul.bf16.gmra.mxu0 %v5392
  %v5683 = vpop.f32.mrf.mxu0
  %v5684 = vadd.f32 0.0, %v5683
  %v5685 = vpop.f32.mrf.mxu0
  %v5686 = vadd.f32 0.0, %v5685
  %5687 = vmatmul.bf16.gmra.mxu0 %v5393
  %v5688 = vpop.f32.mrf.mxu0
  %v5689 = vadd.f32 0.0, %v5688
  %v5690 = vpop.f32.mrf.mxu0
  %v5691 = vadd.f32 0.0, %v5690
  %5692 = vmatmul.bf16.gmra.mxu0 %v5394
  %v5693 = vpop.f32.mrf.mxu0
  %v5694 = vadd.f32 0.0, %v5693
  %v5695 = vpop.f32.mrf.mxu0
  %v5696 = vadd.f32 0.0, %v5695
  %5697 = vmatmul.bf16.gmra.mxu0 %v5395
  %v5698 = vpop.f32.mrf.mxu0
  %v5699 = vadd.f32 0.0, %v5698
  %v5700 = vpop.f32.mrf.mxu0
  %v5701 = vadd.f32 0.0, %v5700
  %5702 = vmatmul.bf16.gmra.mxu0 %v5396
  %v5703 = vpop.f32.mrf.mxu0
  %v5704 = vadd.f32 0.0, %v5703
  %v5705 = vpop.f32.mrf.mxu0
  %v5706 = vadd.f32 0.0, %v5705
  %5707 = vmatmul.bf16.gmra.mxu0 %v5397
  %v5708 = vpop.f32.mrf.mxu0
  %v5709 = vadd.f32 0.0, %v5708
  %v5710 = vpop.f32.mrf.mxu0
  %v5711 = vadd.f32 0.0, %v5710
  %5712 = vdwg.mxu0
  %5713 = vmatpush.bf16.msra.mxu0 %v5533
  %5714 = vmatpush.bf16.msra.mxu0 %v5529
  %5715 = vmatpush.bf16.msra.mxu0 %v5525
  %5716 = vmatpush.bf16.msra.mxu0 %v5521
  %5717 = vmatpush.bf16.msra.mxu0 %v5517
  %5718 = vmatpush.bf16.msra.mxu0 %v5513
  %5719 = vmatpush.bf16.msra.mxu0 %v5509
  %5720 = vmatpush.bf16.msra.mxu0 %v5505
  %5721 = vmatmul.bf16.gmra.mxu0 %v5390
  %v5722 = vpop.f32.mrf.mxu0
  %v5723 = vadd.f32 0.0, %v5722
  %v5724 = vpop.f32.mrf.mxu0
  %v5725 = vadd.f32 0.0, %v5724
  %5726 = vmatmul.bf16.gmra.mxu0 %v5391
  %v5727 = vpop.f32.mrf.mxu0
  %v5728 = vadd.f32 0.0, %v5727
  %v5729 = vpop.f32.mrf.mxu0
  %v5730 = vadd.f32 0.0, %v5729
  %5731 = vmatmul.bf16.gmra.mxu0 %v5392
  %v5732 = vpop.f32.mrf.mxu0
  %v5733 = vadd.f32 0.0, %v5732
  %v5734 = vpop.f32.mrf.mxu0
  %v5735 = vadd.f32 0.0, %v5734
  %5736 = vmatmul.bf16.gmra.mxu0 %v5393
  %v5737 = vpop.f32.mrf.mxu0
  %v5738 = vadd.f32 0.0, %v5737
  %v5739 = vpop.f32.mrf.mxu0
  %v5740 = vadd.f32 0.0, %v5739
  %5741 = vmatmul.bf16.gmra.mxu0 %v5394
  %v5742 = vpop.f32.mrf.mxu0
  %v5743 = vadd.f32 0.0, %v5742
  %v5744 = vpop.f32.mrf.mxu0
  %v5745 = vadd.f32 0.0, %v5744
  %5746 = vmatmul.bf16.gmra.mxu0 %v5395
  %v5747 = vpop.f32.mrf.mxu0
  %v5748 = vadd.f32 0.0, %v5747
  %v5749 = vpop.f32.mrf.mxu0
  %v5750 = vadd.f32 0.0, %v5749
  %5751 = vmatmul.bf16.gmra.mxu0 %v5396
  %v5752 = vpop.f32.mrf.mxu0
  %v5753 = vadd.f32 0.0, %v5752
  %v5754 = vpop.f32.mrf.mxu0
  %v5755 = vadd.f32 0.0, %v5754
  %5756 = vmatmul.bf16.gmra.mxu0 %v5397
  %v5757 = vpop.f32.mrf.mxu0
  %v5758 = vadd.f32 0.0, %v5757
  %v5759 = vpop.f32.mrf.mxu0
  %v5760 = vadd.f32 0.0, %v5759
  %5761 = vdwg.mxu0
  %v5762 = vadd.f32 %v5245, %v5576
  %v5763 = vadd.f32 %v5246, %v5625
  %v5764 = vadd.f32 %v5247, %v5674
  %v5765 = vadd.f32 %v5248, %v5723
  %v5766 = vadd.f32 %v5249, %v5578
  %v5767 = vadd.f32 %v5250, %v5627
  %v5768 = vadd.f32 %v5251, %v5676
  %v5769 = vadd.f32 %v5252, %v5725
  %v5770 = vadd.f32 %v5253, %v5581
  %v5771 = vadd.f32 %v5254, %v5630
  %v5772 = vadd.f32 %v5255, %v5679
  %v5773 = vadd.f32 %v5256, %v5728
  %v5774 = vadd.f32 %v5257, %v5583
  %v5775 = vadd.f32 %v5258, %v5632
  %v5776 = vadd.f32 %v5259, %v5681
  %v5777 = vadd.f32 %v5260, %v5730
  %v5778 = vadd.f32 %v5261, %v5586
  %v5779 = vadd.f32 %v5262, %v5635
  %v5780 = vadd.f32 %v5263, %v5684
  %v5781 = vadd.f32 %v5264, %v5733
  %v5782 = vadd.f32 %v5265, %v5588
  %v5783 = vadd.f32 %v5266, %v5637
  %v5784 = vadd.f32 %v5267, %v5686
  %v5785 = vadd.f32 %v5268, %v5735
  %v5786 = vadd.f32 %v5269, %v5591
  %v5787 = vadd.f32 %v5270, %v5640
  %v5788 = vadd.f32 %v5271, %v5689
  %v5789 = vadd.f32 %v5272, %v5738
  %v5790 = vadd.f32 %v5273, %v5593
  %v5791 = vadd.f32 %v5274, %v5642
  %v5792 = vadd.f32 %v5275, %v5691
  %v5793 = vadd.f32 %v5276, %v5740
  %v5794 = vadd.f32 %v5277, %v5596
  %v5795 = vadd.f32 %v5278, %v5645
  %v5796 = vadd.f32 %v5279, %v5694
  %v5797 = vadd.f32 %v5280, %v5743
  %v5798 = vadd.f32 %v5281, %v5598
  %v5799 = vadd.f32 %v5282, %v5647
  %v5800 = vadd.f32 %v5283, %v5696
  %v5801 = vadd.f32 %v5284, %v5745
  %v5802 = vadd.f32 %v5285, %v5601
  %v5803 = vadd.f32 %v5286, %v5650
  %v5804 = vadd.f32 %v5287, %v5699
  %v5805 = vadd.f32 %v5288, %v5748
  %v5806 = vadd.f32 %v5289, %v5603
  %v5807 = vadd.f32 %v5290, %v5652
  %v5808 = vadd.f32 %v5291, %v5701
  %v5809 = vadd.f32 %v5292, %v5750
  %v5810 = vadd.f32 %v5293, %v5606
  %v5811 = vadd.f32 %v5294, %v5655
  %v5812 = vadd.f32 %v5295, %v5704
  %v5813 = vadd.f32 %v5296, %v5753
  %v5814 = vadd.f32 %v5297, %v5608
  %v5815 = vadd.f32 %v5298, %v5657
  %v5816 = vadd.f32 %v5299, %v5706
  %v5817 = vadd.f32 %v5300, %v5755
  %v5818 = vadd.f32 %v5301, %v5611
  %v5819 = vadd.f32 %v5302, %v5660
  %v5820 = vadd.f32 %v5303, %v5709
  %v5821 = vadd.f32 %v5304, %v5758
  %v5822 = vadd.f32 %v5305, %v5613
  %v5823 = vadd.f32 %v5306, %v5662
  %v5824 = vadd.f32 %v5307, %v5711
  %v5825 = vadd.f32 %v5308, %v5760
  %v5826 = vld [vmem:[%s3502] sm:$0xf]
  %v5827 = vld [vmem:[%s3502 + $0x4] sm:$0x1]
  %v5828 = vld [vmem:[%s3502 + $0x8] sm:$0xf]
  %v5829 = vld [vmem:[%s3502 + $0xc] sm:$0x1]
  %v5830 = vld [vmem:[%s3502 + $0x10] sm:$0xf]
  %v5831 = vld [vmem:[%s3502 + $0x14] sm:$0x1]
  %v5832 = vld [vmem:[%s3502 + $0x18] sm:$0xf]
  %v5833 = vld [vmem:[%s3502 + $0x1c] sm:$0x1]
  %v5834 = vld [vmem:[%s3502 + $0x20] sm:$0xf]
  %v5835 = vld [vmem:[%s3502 + $0x24] sm:$0x1]
  %v5836 = vld [vmem:[%s3502 + $0x28] sm:$0xf]
  %v5837 = vld [vmem:[%s3502 + $0x2c] sm:$0x1]
  %v5838 = vld [vmem:[%s3502 + $0x30] sm:$0xf]
  %v5839 = vld [vmem:[%s3502 + $0x34] sm:$0x1]
  %v5840 = vld [vmem:[%s3502 + $0x38] sm:$0xf]
  %v5841 = vld [vmem:[%s3502 + $0x3c] sm:$0x1]
  %v5842 = vld [vmem:[%s3502 + $0x50] sm:$0xf]
  %v5843 = vld [vmem:[%s3502 + $0x54] sm:$0x1]
  %v5844 = vld [vmem:[%s3502 + $0x58] sm:$0xf]
  %v5845 = vld [vmem:[%s3502 + $0x5c] sm:$0x1]
  %v5846 = vld [vmem:[%s3502 + $0x60] sm:$0xf]
  %v5847 = vld [vmem:[%s3502 + $0x64] sm:$0x1]
  %v5848 = vld [vmem:[%s3502 + $0x68] sm:$0xf]
  %v5849 = vld [vmem:[%s3502 + $0x6c] sm:$0x1]
  %v5850 = vld [vmem:[%s3502 + $0x70] sm:$0xf]
  %v5851 = vld [vmem:[%s3502 + $0x74] sm:$0x1]
  %v5852 = vld [vmem:[%s3502 + $0x78] sm:$0xf]
  %v5853 = vld [vmem:[%s3502 + $0x7c] sm:$0x1]
  %v5854 = vld [vmem:[%s3502 + $0x80] sm:$0xf]
  %v5855 = vld [vmem:[%s3502 + $0x84] sm:$0x1]
  %v5856 = vld [vmem:[%s3502 + $0x88] sm:$0xf]
  %v5857 = vld [vmem:[%s3502 + $0x8c] sm:$0x1]
  %v5859 = vshrl.u32 %v5826, 16
  %v5861 = vrot.slane %v5859, 4
  %v5862 = vshll.u32 %v5826, 16
  %v5864 = vrot.slane %v5862, 5
  %v5865 = vor.u32 %v5861, %v5864
  %v5866 = vrot.slane %v5865, 4
  %v5868 = vshll.u32 %v5827, 16
  %v5870 = vrot.slane %v5868, 5
  %v5871 = vsel %vm724, %v5866, %v5870
  %v5873 = vshrl.u32 %v5828, 16
  %v5875 = vrot.slane %v5873, 4
  %v5876 = vshll.u32 %v5828, 16
  %v5878 = vrot.slane %v5876, 5
  %v5879 = vor.u32 %v5875, %v5878
  %v5880 = vrot.slane %v5879, 4
  %v5882 = vshll.u32 %v5829, 16
  %v5884 = vrot.slane %v5882, 5
  %v5885 = vsel %vm724, %v5880, %v5884
  %v5887 = vshrl.u32 %v5830, 16
  %v5889 = vrot.slane %v5887, 4
  %v5890 = vshll.u32 %v5830, 16
  %v5892 = vrot.slane %v5890, 5
  %v5893 = vor.u32 %v5889, %v5892
  %v5894 = vrot.slane %v5893, 4
  %v5896 = vshll.u32 %v5831, 16
  %v5898 = vrot.slane %v5896, 5
  %v5899 = vsel %vm724, %v5894, %v5898
  %v5901 = vshrl.u32 %v5832, 16
  %v5903 = vrot.slane %v5901, 4
  %v5904 = vshll.u32 %v5832, 16
  %v5906 = vrot.slane %v5904, 5
  %v5907 = vor.u32 %v5903, %v5906
  %v5908 = vrot.slane %v5907, 4
  %v5910 = vshll.u32 %v5833, 16
  %v5912 = vrot.slane %v5910, 5
  %v5913 = vsel %vm724, %v5908, %v5912
  %v5915 = vshrl.u32 %v5834, 16
  %v5917 = vrot.slane %v5915, 4
  %v5918 = vshll.u32 %v5834, 16
  %v5920 = vrot.slane %v5918, 5
  %v5921 = vor.u32 %v5917, %v5920
  %v5922 = vrot.slane %v5921, 4
  %v5924 = vshll.u32 %v5835, 16
  %v5926 = vrot.slane %v5924, 5
  %v5927 = vsel %vm724, %v5922, %v5926
  %v5929 = vshrl.u32 %v5836, 16
  %v5931 = vrot.slane %v5929, 4
  %v5932 = vshll.u32 %v5836, 16
  %v5934 = vrot.slane %v5932, 5
  %v5935 = vor.u32 %v5931, %v5934
  %v5936 = vrot.slane %v5935, 4
  %v5938 = vshll.u32 %v5837, 16
  %v5940 = vrot.slane %v5938, 5
  %v5941 = vsel %vm724, %v5936, %v5940
  %v5943 = vshrl.u32 %v5838, 16
  %v5945 = vrot.slane %v5943, 4
  %v5946 = vshll.u32 %v5838, 16
  %v5948 = vrot.slane %v5946, 5
  %v5949 = vor.u32 %v5945, %v5948
  %v5950 = vrot.slane %v5949, 4
  %v5952 = vshll.u32 %v5839, 16
  %v5954 = vrot.slane %v5952, 5
  %v5955 = vsel %vm724, %v5950, %v5954
  %v5957 = vshrl.u32 %v5840, 16
  %v5959 = vrot.slane %v5957, 4
  %v5960 = vshll.u32 %v5840, 16
  %v5962 = vrot.slane %v5960, 5
  %v5963 = vor.u32 %v5959, %v5962
  %v5964 = vrot.slane %v5963, 4
  %v5966 = vshll.u32 %v5841, 16
  %v5968 = vrot.slane %v5966, 5
  %v5969 = vsel %vm724, %v5964, %v5968
  %v5971 = vshrl.u32 %v5842, 16
  %v5973 = vrot.slane %v5971, 4
  %v5974 = vshll.u32 %v5842, 16
  %v5976 = vrot.slane %v5974, 5
  %v5977 = vor.u32 %v5973, %v5976
  %v5978 = vrot.slane %v5977, 4
  %v5980 = vshll.u32 %v5843, 16
  %v5982 = vrot.slane %v5980, 5
  %v5983 = vsel %vm724, %v5978, %v5982
  %v5985 = vshrl.u32 %v5844, 16
  %v5987 = vrot.slane %v5985, 4
  %v5988 = vshll.u32 %v5844, 16
  %v5990 = vrot.slane %v5988, 5
  %v5991 = vor.u32 %v5987, %v5990
  %v5992 = vrot.slane %v5991, 4
  %v5994 = vshll.u32 %v5845, 16
  %v5996 = vrot.slane %v5994, 5
  %v5997 = vsel %vm724, %v5992, %v5996
  %v5999 = vshrl.u32 %v5846, 16
  %v6001 = vrot.slane %v5999, 4
  %v6002 = vshll.u32 %v5846, 16
  %v6004 = vrot.slane %v6002, 5
  %v6005 = vor.u32 %v6001, %v6004
  %v6006 = vrot.slane %v6005, 4
  %v6008 = vshll.u32 %v5847, 16
  %v6010 = vrot.slane %v6008, 5
  %v6011 = vsel %vm724, %v6006, %v6010
  %v6013 = vshrl.u32 %v5848, 16
  %v6015 = vrot.slane %v6013, 4
  %v6016 = vshll.u32 %v5848, 16
  %v6018 = vrot.slane %v6016, 5
  %v6019 = vor.u32 %v6015, %v6018
  %v6020 = vrot.slane %v6019, 4
  %v6022 = vshll.u32 %v5849, 16
  %v6024 = vrot.slane %v6022, 5
  %v6025 = vsel %vm724, %v6020, %v6024
  %v6027 = vshrl.u32 %v5850, 16
  %v6029 = vrot.slane %v6027, 4
  %v6030 = vshll.u32 %v5850, 16
  %v6032 = vrot.slane %v6030, 5
  %v6033 = vor.u32 %v6029, %v6032
  %v6034 = vrot.slane %v6033, 4
  %v6036 = vshll.u32 %v5851, 16
  %v6038 = vrot.slane %v6036, 5
  %v6039 = vsel %vm724, %v6034, %v6038
  %v6041 = vshrl.u32 %v5852, 16
  %v6043 = vrot.slane %v6041, 4
  %v6044 = vshll.u32 %v5852, 16
  %v6046 = vrot.slane %v6044, 5
  %v6047 = vor.u32 %v6043, %v6046
  %v6048 = vrot.slane %v6047, 4
  %v6050 = vshll.u32 %v5853, 16
  %v6052 = vrot.slane %v6050, 5
  %v6053 = vsel %vm724, %v6048, %v6052
  %v6055 = vshrl.u32 %v5854, 16
  %v6057 = vrot.slane %v6055, 4
  %v6058 = vshll.u32 %v5854, 16
  %v6060 = vrot.slane %v6058, 5
  %v6061 = vor.u32 %v6057, %v6060
  %v6062 = vrot.slane %v6061, 4
  %v6064 = vshll.u32 %v5855, 16
  %v6066 = vrot.slane %v6064, 5
  %v6067 = vsel %vm724, %v6062, %v6066
  %v6069 = vshrl.u32 %v5856, 16
  %v6071 = vrot.slane %v6069, 4
  %v6072 = vshll.u32 %v5856, 16
  %v6074 = vrot.slane %v6072, 5
  %v6075 = vor.u32 %v6071, %v6074
  %v6076 = vrot.slane %v6075, 4
  %v6078 = vshll.u32 %v5857, 16
  %v6080 = vrot.slane %v6078, 5
  %v6081 = vsel %vm724, %v6076, %v6080
  %s6082 = scalar_lea.vmem %s4, 1024
  %v6083 = vld [vmem:[%s6082] sm:$0xff]
  %v6084 = vld [vmem:[%s6082 + $0x8] sm:$0xff]
  %v6085 = vld [vmem:[%s6082 + $0x10] sm:$0xff]
  %v6086 = vld [vmem:[%s6082 + $0x18] sm:$0xff]
  %v6087 = vld [vmem:[%s6082 + $0x20] sm:$0xff]
  %v6088 = vld [vmem:[%s6082 + $0x28] sm:$0xff]
  %v6089 = vld [vmem:[%s6082 + $0x30] sm:$0xff]
  %v6090 = vld [vmem:[%s6082 + $0x38] sm:$0xff]
  %v6091 = vld [vmem:[%s6082 + $0x40] sm:$0xff]
  %v6092 = vld [vmem:[%s6082 + $0x48] sm:$0xff]
  %v6093 = vld [vmem:[%s6082 + $0x50] sm:$0xff]
  %v6094 = vld [vmem:[%s6082 + $0x58] sm:$0xff]
  %v6095 = vld [vmem:[%s6082 + $0x60] sm:$0xff]
  %v6096 = vld [vmem:[%s6082 + $0x68] sm:$0xff]
  %v6097 = vld [vmem:[%s6082 + $0x70] sm:$0xff]
  %v6098 = vld [vmem:[%s6082 + $0x78] sm:$0xff]
  %v6099 = vld [vmem:[%s6082 + $0x80] sm:$0xff]
  %v6100 = vld [vmem:[%s6082 + $0x88] sm:$0xff]
  %v6101 = vld [vmem:[%s6082 + $0x90] sm:$0xff]
  %v6102 = vld [vmem:[%s6082 + $0x98] sm:$0xff]
  %v6103 = vld [vmem:[%s6082 + $0xa0] sm:$0xff]
  %v6104 = vld [vmem:[%s6082 + $0xa8] sm:$0xff]
  %v6105 = vld [vmem:[%s6082 + $0xb0] sm:$0xff]
  %v6106 = vld [vmem:[%s6082 + $0xb8] sm:$0xff]
  %v6107 = vld [vmem:[%s6082 + $0xc0] sm:$0xff]
  %v6108 = vld [vmem:[%s6082 + $0xc8] sm:$0xff]
  %v6109 = vld [vmem:[%s6082 + $0xd0] sm:$0xff]
  %v6110 = vld [vmem:[%s6082 + $0xd8] sm:$0xff]
  %v6111 = vld [vmem:[%s6082 + $0xe0] sm:$0xff]
  %v6112 = vld [vmem:[%s6082 + $0xe8] sm:$0xff]
  %v6113 = vld [vmem:[%s6082 + $0xf0] sm:$0xff]
  %v6114 = vld [vmem:[%s6082 + $0xf8] sm:$0xff]
  %v6115 = vunpack.c.l.b16 %v5871
  %v6116 = vunpack.c.l.b16 %v5885
  %v6117 = vunpack.c.l.b16 %v5899
  %v6118 = vunpack.c.l.b16 %v5913
  %v6119 = vunpack.c.l.b16 %v5927
  %v6120 = vunpack.c.l.b16 %v5941
  %v6121 = vunpack.c.l.b16 %v5955
  %v6122 = vunpack.c.l.b16 %v5969
  %v6123 = vunpack.c.l.b16 %v5983
  %v6124 = vunpack.c.l.b16 %v5997
  %v6125 = vunpack.c.l.b16 %v6011
  %v6126 = vunpack.c.l.b16 %v6025
  %v6127 = vunpack.c.l.b16 %v6039
  %v6128 = vunpack.c.l.b16 %v6053
  %v6129 = vunpack.c.l.b16 %v6067
  %v6130 = vunpack.c.l.b16 %v6081
  %v6131 = vpack.c.b16 %v6116, %v6115
  %v6132 = vpack.c.b16 %v6118, %v6117
  %v6133 = vpack.c.b16 %v6120, %v6119
  %v6134 = vpack.c.b16 %v6122, %v6121
  %v6135 = vpack.c.b16 %v6124, %v6123
  %v6136 = vpack.c.b16 %v6126, %v6125
  %v6137 = vpack.c.b16 %v6128, %v6127
  %v6138 = vpack.c.b16 %v6130, %v6129
  %v6179 = vunpack.c.l.b16 %v6083
  %v6180 = vunpack.c.h.b16 %v6083
  %v6181 = vunpack.c.l.b16 %v6084
  %v6182 = vunpack.c.h.b16 %v6084
  %v6183 = vunpack.c.l.b16 %v6085
  %v6184 = vunpack.c.h.b16 %v6085
  %v6185 = vunpack.c.l.b16 %v6086
  %v6186 = vunpack.c.h.b16 %v6086
  %v6187 = vunpack.c.l.b16 %v6087
  %v6188 = vunpack.c.h.b16 %v6087
  %v6189 = vunpack.c.l.b16 %v6088
  %v6190 = vunpack.c.h.b16 %v6088
  %v6191 = vunpack.c.l.b16 %v6089
  %v6192 = vunpack.c.h.b16 %v6089
  %v6193 = vunpack.c.l.b16 %v6090
  %v6194 = vunpack.c.h.b16 %v6090
  %v6195 = vunpack.c.l.b16 %v6091
  %v6196 = vunpack.c.h.b16 %v6091
  %v6197 = vunpack.c.l.b16 %v6092
  %v6198 = vunpack.c.h.b16 %v6092
  %v6199 = vunpack.c.l.b16 %v6093
  %v6200 = vunpack.c.h.b16 %v6093
  %v6201 = vunpack.c.l.b16 %v6094
  %v6202 = vunpack.c.h.b16 %v6094
  %v6203 = vunpack.c.l.b16 %v6095
  %v6204 = vunpack.c.h.b16 %v6095
  %v6205 = vunpack.c.l.b16 %v6096
  %v6206 = vunpack.c.h.b16 %v6096
  %v6207 = vunpack.c.l.b16 %v6097
  %v6208 = vunpack.c.h.b16 %v6097
  %v6209 = vunpack.c.l.b16 %v6098
  %v6210 = vunpack.c.h.b16 %v6098
  %v6211 = vunpack.c.l.b16 %v6099
  %v6212 = vunpack.c.h.b16 %v6099
  %v6213 = vunpack.c.l.b16 %v6100
  %v6214 = vunpack.c.h.b16 %v6100
  %v6215 = vunpack.c.l.b16 %v6101
  %v6216 = vunpack.c.h.b16 %v6101
  %v6217 = vunpack.c.l.b16 %v6102
  %v6218 = vunpack.c.h.b16 %v6102
  %v6219 = vunpack.c.l.b16 %v6103
  %v6220 = vunpack.c.h.b16 %v6103
  %v6221 = vunpack.c.l.b16 %v6104
  %v6222 = vunpack.c.h.b16 %v6104
  %v6223 = vunpack.c.l.b16 %v6105
  %v6224 = vunpack.c.h.b16 %v6105
  %v6225 = vunpack.c.l.b16 %v6106
  %v6226 = vunpack.c.h.b16 %v6106
  %v6227 = vunpack.c.l.b16 %v6107
  %v6228 = vunpack.c.h.b16 %v6107
  %v6229 = vunpack.c.l.b16 %v6108
  %v6230 = vunpack.c.h.b16 %v6108
  %v6231 = vunpack.c.l.b16 %v6109
  %v6232 = vunpack.c.h.b16 %v6109
  %v6233 = vunpack.c.l.b16 %v6110
  %v6234 = vunpack.c.h.b16 %v6110
  %v6235 = vunpack.c.l.b16 %v6111
  %v6236 = vunpack.c.h.b16 %v6111
  %v6237 = vunpack.c.l.b16 %v6112
  %v6238 = vunpack.c.h.b16 %v6112
  %v6239 = vunpack.c.l.b16 %v6113
  %v6240 = vunpack.c.h.b16 %v6113
  %v6241 = vunpack.c.l.b16 %v6114
  %v6242 = vunpack.c.h.b16 %v6114
  %v6243 = vpack.c.b16 %v6183, %v6179
  %v6244 = vpack.c.b16 %v6184, %v6180
  %v6245 = vpack.c.b16 %v6185, %v6181
  %v6246 = vpack.c.b16 %v6186, %v6182
  %v6247 = vpack.c.b16 %v6191, %v6187
  %v6248 = vpack.c.b16 %v6192, %v6188
  %v6249 = vpack.c.b16 %v6193, %v6189
  %v6250 = vpack.c.b16 %v6194, %v6190
  %v6251 = vpack.c.b16 %v6199, %v6195
  %v6252 = vpack.c.b16 %v6200, %v6196
  %v6253 = vpack.c.b16 %v6201, %v6197
  %v6254 = vpack.c.b16 %v6202, %v6198
  %v6255 = vpack.c.b16 %v6207, %v6203
  %v6256 = vpack.c.b16 %v6208, %v6204
  %v6257 = vpack.c.b16 %v6209, %v6205
  %v6258 = vpack.c.b16 %v6210, %v6206
  %v6259 = vpack.c.b16 %v6215, %v6211
  %v6260 = vpack.c.b16 %v6216, %v6212
  %v6261 = vpack.c.b16 %v6217, %v6213
  %v6262 = vpack.c.b16 %v6218, %v6214
  %v6263 = vpack.c.b16 %v6223, %v6219
  %v6264 = vpack.c.b16 %v6224, %v6220
  %v6265 = vpack.c.b16 %v6225, %v6221
  %v6266 = vpack.c.b16 %v6226, %v6222
  %v6267 = vpack.c.b16 %v6231, %v6227
  %v6268 = vpack.c.b16 %v6232, %v6228
  %v6269 = vpack.c.b16 %v6233, %v6229
  %v6270 = vpack.c.b16 %v6234, %v6230
  %v6271 = vpack.c.b16 %v6239, %v6235
  %v6272 = vpack.c.b16 %v6240, %v6236
  %v6273 = vpack.c.b16 %v6241, %v6237
  %v6274 = vpack.c.b16 %v6242, %v6238
  %6307 = vmatpush.bf16.msra.mxu0 %v6271
  %6308 = vmatpush.bf16.msra.mxu0 %v6267
  %6309 = vmatpush.bf16.msra.mxu0 %v6263
  %6310 = vmatpush.bf16.msra.mxu0 %v6259
  %6311 = vmatpush.bf16.msra.mxu0 %v6255
  %6312 = vmatpush.bf16.msra.mxu0 %v6251
  %6313 = vmatpush.bf16.msra.mxu0 %v6247
  %6314 = vmatpush.bf16.msra.mxu0 %v6243
  %6315 = vmatmul.bf16.gmra.mxu0 %v6131
  %v6316 = vpop.f32.mrf.mxu0
  %v6317 = vadd.f32 0.0, %v6316
  %v6318 = vpop.f32.mrf.mxu0
  %v6319 = vadd.f32 0.0, %v6318
  %6320 = vmatmul.bf16.gmra.mxu0 %v6132
  %v6321 = vpop.f32.mrf.mxu0
  %v6322 = vadd.f32 0.0, %v6321
  %v6323 = vpop.f32.mrf.mxu0
  %v6324 = vadd.f32 0.0, %v6323
  %6325 = vmatmul.bf16.gmra.mxu0 %v6133
  %v6326 = vpop.f32.mrf.mxu0
  %v6327 = vadd.f32 0.0, %v6326
  %v6328 = vpop.f32.mrf.mxu0
  %v6329 = vadd.f32 0.0, %v6328
  %6330 = vmatmul.bf16.gmra.mxu0 %v6134
  %v6331 = vpop.f32.mrf.mxu0
  %v6332 = vadd.f32 0.0, %v6331
  %v6333 = vpop.f32.mrf.mxu0
  %v6334 = vadd.f32 0.0, %v6333
  %6335 = vmatmul.bf16.gmra.mxu0 %v6135
  %v6336 = vpop.f32.mrf.mxu0
  %v6337 = vadd.f32 0.0, %v6336
  %v6338 = vpop.f32.mrf.mxu0
  %v6339 = vadd.f32 0.0, %v6338
  %6340 = vmatmul.bf16.gmra.mxu0 %v6136
  %v6341 = vpop.f32.mrf.mxu0
  %v6342 = vadd.f32 0.0, %v6341
  %v6343 = vpop.f32.mrf.mxu0
  %v6344 = vadd.f32 0.0, %v6343
  %6345 = vmatmul.bf16.gmra.mxu0 %v6137
  %v6346 = vpop.f32.mrf.mxu0
  %v6347 = vadd.f32 0.0, %v6346
  %v6348 = vpop.f32.mrf.mxu0
  %v6349 = vadd.f32 0.0, %v6348
  %6350 = vmatmul.bf16.gmra.mxu0 %v6138
  %v6351 = vpop.f32.mrf.mxu0
  %v6352 = vadd.f32 0.0, %v6351
  %v6353 = vpop.f32.mrf.mxu0
  %v6354 = vadd.f32 0.0, %v6353
  %6355 = vdwg.mxu0
  %6356 = vmatpush.bf16.msra.mxu0 %v6272
  %6357 = vmatpush.bf16.msra.mxu0 %v6268
  %6358 = vmatpush.bf16.msra.mxu0 %v6264
  %6359 = vmatpush.bf16.msra.mxu0 %v6260
  %6360 = vmatpush.bf16.msra.mxu0 %v6256
  %6361 = vmatpush.bf16.msra.mxu0 %v6252
  %6362 = vmatpush.bf16.msra.mxu0 %v6248
  %6363 = vmatpush.bf16.msra.mxu0 %v6244
  %6364 = vmatmul.bf16.gmra.mxu0 %v6131
  %v6365 = vpop.f32.mrf.mxu0
  %v6366 = vadd.f32 0.0, %v6365
  %v6367 = vpop.f32.mrf.mxu0
  %v6368 = vadd.f32 0.0, %v6367
  %6369 = vmatmul.bf16.gmra.mxu0 %v6132
  %v6370 = vpop.f32.mrf.mxu0
  %v6371 = vadd.f32 0.0, %v6370
  %v6372 = vpop.f32.mrf.mxu0
  %v6373 = vadd.f32 0.0, %v6372
  %6374 = vmatmul.bf16.gmra.mxu0 %v6133
  %v6375 = vpop.f32.mrf.mxu0
  %v6376 = vadd.f32 0.0, %v6375
  %v6377 = vpop.f32.mrf.mxu0
  %v6378 = vadd.f32 0.0, %v6377
  %6379 = vmatmul.bf16.gmra.mxu0 %v6134
  %v6380 = vpop.f32.mrf.mxu0
  %v6381 = vadd.f32 0.0, %v6380
  %v6382 = vpop.f32.mrf.mxu0
  %v6383 = vadd.f32 0.0, %v6382
  %6384 = vmatmul.bf16.gmra.mxu0 %v6135
  %v6385 = vpop.f32.mrf.mxu0
  %v6386 = vadd.f32 0.0, %v6385
  %v6387 = vpop.f32.mrf.mxu0
  %v6388 = vadd.f32 0.0, %v6387
  %6389 = vmatmul.bf16.gmra.mxu0 %v6136
  %v6390 = vpop.f32.mrf.mxu0
  %v6391 = vadd.f32 0.0, %v6390
  %v6392 = vpop.f32.mrf.mxu0
  %v6393 = vadd.f32 0.0, %v6392
  %6394 = vmatmul.bf16.gmra.mxu0 %v6137
  %v6395 = vpop.f32.mrf.mxu0
  %v6396 = vadd.f32 0.0, %v6395
  %v6397 = vpop.f32.mrf.mxu0
  %v6398 = vadd.f32 0.0, %v6397
  %6399 = vmatmul.bf16.gmra.mxu0 %v6138
  %v6400 = vpop.f32.mrf.mxu0
  %v6401 = vadd.f32 0.0, %v6400
  %v6402 = vpop.f32.mrf.mxu0
  %v6403 = vadd.f32 0.0, %v6402
  %6404 = vdwg.mxu0
  %6405 = vmatpush.bf16.msra.mxu0 %v6273
  %6406 = vmatpush.bf16.msra.mxu0 %v6269
  %6407 = vmatpush.bf16.msra.mxu0 %v6265
  %6408 = vmatpush.bf16.msra.mxu0 %v6261
  %6409 = vmatpush.bf16.msra.mxu0 %v6257
  %6410 = vmatpush.bf16.msra.mxu0 %v6253
  %6411 = vmatpush.bf16.msra.mxu0 %v6249
  %6412 = vmatpush.bf16.msra.mxu0 %v6245
  %6413 = vmatmul.bf16.gmra.mxu0 %v6131
  %v6414 = vpop.f32.mrf.mxu0
  %v6415 = vadd.f32 0.0, %v6414
  %v6416 = vpop.f32.mrf.mxu0
  %v6417 = vadd.f32 0.0, %v6416
  %6418 = vmatmul.bf16.gmra.mxu0 %v6132
  %v6419 = vpop.f32.mrf.mxu0
  %v6420 = vadd.f32 0.0, %v6419
  %v6421 = vpop.f32.mrf.mxu0
  %v6422 = vadd.f32 0.0, %v6421
  %6423 = vmatmul.bf16.gmra.mxu0 %v6133
  %v6424 = vpop.f32.mrf.mxu0
  %v6425 = vadd.f32 0.0, %v6424
  %v6426 = vpop.f32.mrf.mxu0
  %v6427 = vadd.f32 0.0, %v6426
  %6428 = vmatmul.bf16.gmra.mxu0 %v6134
  %v6429 = vpop.f32.mrf.mxu0
  %v6430 = vadd.f32 0.0, %v6429
  %v6431 = vpop.f32.mrf.mxu0
  %v6432 = vadd.f32 0.0, %v6431
  %6433 = vmatmul.bf16.gmra.mxu0 %v6135
  %v6434 = vpop.f32.mrf.mxu0
  %v6435 = vadd.f32 0.0, %v6434
  %v6436 = vpop.f32.mrf.mxu0
  %v6437 = vadd.f32 0.0, %v6436
  %6438 = vmatmul.bf16.gmra.mxu0 %v6136
  %v6439 = vpop.f32.mrf.mxu0
  %v6440 = vadd.f32 0.0, %v6439
  %v6441 = vpop.f32.mrf.mxu0
  %v6442 = vadd.f32 0.0, %v6441
  %6443 = vmatmul.bf16.gmra.mxu0 %v6137
  %v6444 = vpop.f32.mrf.mxu0
  %v6445 = vadd.f32 0.0, %v6444
  %v6446 = vpop.f32.mrf.mxu0
  %v6447 = vadd.f32 0.0, %v6446
  %6448 = vmatmul.bf16.gmra.mxu0 %v6138
  %v6449 = vpop.f32.mrf.mxu0
  %v6450 = vadd.f32 0.0, %v6449
  %v6451 = vpop.f32.mrf.mxu0
  %v6452 = vadd.f32 0.0, %v6451
  %6453 = vdwg.mxu0
  %6454 = vmatpush.bf16.msra.mxu0 %v6274
  %6455 = vmatpush.bf16.msra.mxu0 %v6270
  %6456 = vmatpush.bf16.msra.mxu0 %v6266
  %6457 = vmatpush.bf16.msra.mxu0 %v6262
  %6458 = vmatpush.bf16.msra.mxu0 %v6258
  %6459 = vmatpush.bf16.msra.mxu0 %v6254
  %6460 = vmatpush.bf16.msra.mxu0 %v6250
  %6461 = vmatpush.bf16.msra.mxu0 %v6246
  %6462 = vmatmul.bf16.gmra.mxu0 %v6131
  %v6463 = vpop.f32.mrf.mxu0
  %v6464 = vadd.f32 0.0, %v6463
  %v6465 = vpop.f32.mrf.mxu0
  %v6466 = vadd.f32 0.0, %v6465
  %6467 = vmatmul.bf16.gmra.mxu0 %v6132
  %v6468 = vpop.f32.mrf.mxu0
  %v6469 = vadd.f32 0.0, %v6468
  %v6470 = vpop.f32.mrf.mxu0
  %v6471 = vadd.f32 0.0, %v6470
  %6472 = vmatmul.bf16.gmra.mxu0 %v6133
  %v6473 = vpop.f32.mrf.mxu0
  %v6474 = vadd.f32 0.0, %v6473
  %v6475 = vpop.f32.mrf.mxu0
  %v6476 = vadd.f32 0.0, %v6475
  %6477 = vmatmul.bf16.gmra.mxu0 %v6134
  %v6478 = vpop.f32.mrf.mxu0
  %v6479 = vadd.f32 0.0, %v6478
  %v6480 = vpop.f32.mrf.mxu0
  %v6481 = vadd.f32 0.0, %v6480
  %6482 = vmatmul.bf16.gmra.mxu0 %v6135
  %v6483 = vpop.f32.mrf.mxu0
  %v6484 = vadd.f32 0.0, %v6483
  %v6485 = vpop.f32.mrf.mxu0
  %v6486 = vadd.f32 0.0, %v6485
  %6487 = vmatmul.bf16.gmra.mxu0 %v6136
  %v6488 = vpop.f32.mrf.mxu0
  %v6489 = vadd.f32 0.0, %v6488
  %v6490 = vpop.f32.mrf.mxu0
  %v6491 = vadd.f32 0.0, %v6490
  %6492 = vmatmul.bf16.gmra.mxu0 %v6137
  %v6493 = vpop.f32.mrf.mxu0
  %v6494 = vadd.f32 0.0, %v6493
  %v6495 = vpop.f32.mrf.mxu0
  %v6496 = vadd.f32 0.0, %v6495
  %6497 = vmatmul.bf16.gmra.mxu0 %v6138
  %v6498 = vpop.f32.mrf.mxu0
  %v6499 = vadd.f32 0.0, %v6498
  %v6500 = vpop.f32.mrf.mxu0
  %v6501 = vadd.f32 0.0, %v6500
  %6502 = vdwg.mxu0
  %v6503 = vadd.f32 %v5762, %v6317
  %v6504 = vadd.f32 %v5763, %v6366
  %v6505 = vadd.f32 %v5764, %v6415
  %v6506 = vadd.f32 %v5765, %v6464
  %v6507 = vadd.f32 %v5766, %v6319
  %v6508 = vadd.f32 %v5767, %v6368
  %v6509 = vadd.f32 %v5768, %v6417
  %v6510 = vadd.f32 %v5769, %v6466
  %v6511 = vadd.f32 %v5770, %v6322
  %v6512 = vadd.f32 %v5771, %v6371
  %v6513 = vadd.f32 %v5772, %v6420
  %v6514 = vadd.f32 %v5773, %v6469
  %v6515 = vadd.f32 %v5774, %v6324
  %v6516 = vadd.f32 %v5775, %v6373
  %v6517 = vadd.f32 %v5776, %v6422
  %v6518 = vadd.f32 %v5777, %v6471
  %v6519 = vadd.f32 %v5778, %v6327
  %v6520 = vadd.f32 %v5779, %v6376
  %v6521 = vadd.f32 %v5780, %v6425
  %v6522 = vadd.f32 %v5781, %v6474
  %v6523 = vadd.f32 %v5782, %v6329
  %v6524 = vadd.f32 %v5783, %v6378
  %v6525 = vadd.f32 %v5784, %v6427
  %v6526 = vadd.f32 %v5785, %v6476
  %v6527 = vadd.f32 %v5786, %v6332
  %v6528 = vadd.f32 %v5787, %v6381
  %v6529 = vadd.f32 %v5788, %v6430
  %v6530 = vadd.f32 %v5789, %v6479
  %v6531 = vadd.f32 %v5790, %v6334
  %v6532 = vadd.f32 %v5791, %v6383
  %v6533 = vadd.f32 %v5792, %v6432
  %v6534 = vadd.f32 %v5793, %v6481
  %v6535 = vadd.f32 %v5794, %v6337
  %v6536 = vadd.f32 %v5795, %v6386
  %v6537 = vadd.f32 %v5796, %v6435
  %v6538 = vadd.f32 %v5797, %v6484
  %v6539 = vadd.f32 %v5798, %v6339
  %v6540 = vadd.f32 %v5799, %v6388
  %v6541 = vadd.f32 %v5800, %v6437
  %v6542 = vadd.f32 %v5801, %v6486
  %v6543 = vadd.f32 %v5802, %v6342
  %v6544 = vadd.f32 %v5803, %v6391
  %v6545 = vadd.f32 %v5804, %v6440
  %v6546 = vadd.f32 %v5805, %v6489
  %v6547 = vadd.f32 %v5806, %v6344
  %v6548 = vadd.f32 %v5807, %v6393
  %v6549 = vadd.f32 %v5808, %v6442
  %v6550 = vadd.f32 %v5809, %v6491
  %v6551 = vadd.f32 %v5810, %v6347
  %v6552 = vadd.f32 %v5811, %v6396
  %v6553 = vadd.f32 %v5812, %v6445
  %v6554 = vadd.f32 %v5813, %v6494
  %v6555 = vadd.f32 %v5814, %v6349
  %v6556 = vadd.f32 %v5815, %v6398
  %v6557 = vadd.f32 %v5816, %v6447
  %v6558 = vadd.f32 %v5817, %v6496
  %v6559 = vadd.f32 %v5818, %v6352
  %v6560 = vadd.f32 %v5819, %v6401
  %v6561 = vadd.f32 %v5820, %v6450
  %v6562 = vadd.f32 %v5821, %v6499
  %v6563 = vadd.f32 %v5822, %v6354
  %v6564 = vadd.f32 %v5823, %v6403
  %v6565 = vadd.f32 %v5824, %v6452
  %v6566 = vadd.f32 %v5825, %v6501
  %v6567 = vld [vmem:[%s3502] sm:$0xe]
  %v6568 = vld [vmem:[%s3502 + $0x8] sm:$0xe]
  %v6569 = vld [vmem:[%s3502 + $0x10] sm:$0xe]
  %v6570 = vld [vmem:[%s3502 + $0x18] sm:$0xe]
  %v6571 = vld [vmem:[%s3502 + $0x20] sm:$0xe]
  %v6572 = vld [vmem:[%s3502 + $0x28] sm:$0xe]
  %v6573 = vld [vmem:[%s3502 + $0x30] sm:$0xe]
  %v6574 = vld [vmem:[%s3502 + $0x38] sm:$0xe]
  %v6575 = vld [vmem:[%s3502 + $0x50] sm:$0xe]
  %v6576 = vld [vmem:[%s3502 + $0x58] sm:$0xe]
  %v6577 = vld [vmem:[%s3502 + $0x60] sm:$0xe]
  %v6578 = vld [vmem:[%s3502 + $0x68] sm:$0xe]
  %v6579 = vld [vmem:[%s3502 + $0x70] sm:$0xe]
  %v6580 = vld [vmem:[%s3502 + $0x78] sm:$0xe]
  %v6581 = vld [vmem:[%s3502 + $0x80] sm:$0xe]
  %v6582 = vld [vmem:[%s3502 + $0x88] sm:$0xe]
  %v6615 = vrot.slane %v6567, 5
  %v6616 = vrot.slane %v6615, 4
  %v6617 = vrot.slane %v5827, 5
  %v6618 = vsel %vm1290, %v6616, %v6617
  %v6619 = vrot.slane %v6568, 5
  %v6620 = vrot.slane %v6619, 4
  %v6621 = vrot.slane %v5829, 5
  %v6622 = vsel %vm1290, %v6620, %v6621
  %v6623 = vrot.slane %v6569, 5
  %v6624 = vrot.slane %v6623, 4
  %v6625 = vrot.slane %v5831, 5
  %v6626 = vsel %vm1290, %v6624, %v6625
  %v6627 = vrot.slane %v6570, 5
  %v6628 = vrot.slane %v6627, 4
  %v6629 = vrot.slane %v5833, 5
  %v6630 = vsel %vm1290, %v6628, %v6629
  %v6631 = vrot.slane %v6571, 5
  %v6632 = vrot.slane %v6631, 4
  %v6633 = vrot.slane %v5835, 5
  %v6634 = vsel %vm1290, %v6632, %v6633
  %v6635 = vrot.slane %v6572, 5
  %v6636 = vrot.slane %v6635, 4
  %v6637 = vrot.slane %v5837, 5
  %v6638 = vsel %vm1290, %v6636, %v6637
  %v6639 = vrot.slane %v6573, 5
  %v6640 = vrot.slane %v6639, 4
  %v6641 = vrot.slane %v5839, 5
  %v6642 = vsel %vm1290, %v6640, %v6641
  %v6643 = vrot.slane %v6574, 5
  %v6644 = vrot.slane %v6643, 4
  %v6645 = vrot.slane %v5841, 5
  %v6646 = vsel %vm1290, %v6644, %v6645
  %v6647 = vrot.slane %v6575, 5
  %v6648 = vrot.slane %v6647, 4
  %v6649 = vrot.slane %v5843, 5
  %v6650 = vsel %vm1290, %v6648, %v6649
  %v6651 = vrot.slane %v6576, 5
  %v6652 = vrot.slane %v6651, 4
  %v6653 = vrot.slane %v5845, 5
  %v6654 = vsel %vm1290, %v6652, %v6653
  %v6655 = vrot.slane %v6577, 5
  %v6656 = vrot.slane %v6655, 4
  %v6657 = vrot.slane %v5847, 5
  %v6658 = vsel %vm1290, %v6656, %v6657
  %v6659 = vrot.slane %v6578, 5
  %v6660 = vrot.slane %v6659, 4
  %v6661 = vrot.slane %v5849, 5
  %v6662 = vsel %vm1290, %v6660, %v6661
  %v6663 = vrot.slane %v6579, 5
  %v6664 = vrot.slane %v6663, 4
  %v6665 = vrot.slane %v5851, 5
  %v6666 = vsel %vm1290, %v6664, %v6665
  %v6667 = vrot.slane %v6580, 5
  %v6668 = vrot.slane %v6667, 4
  %v6669 = vrot.slane %v5853, 5
  %v6670 = vsel %vm1290, %v6668, %v6669
  %v6671 = vrot.slane %v6581, 5
  %v6672 = vrot.slane %v6671, 4
  %v6673 = vrot.slane %v5855, 5
  %v6674 = vsel %vm1290, %v6672, %v6673
  %v6675 = vrot.slane %v6582, 5
  %v6676 = vrot.slane %v6675, 4
  %v6677 = vrot.slane %v5857, 5
  %v6678 = vsel %vm1290, %v6676, %v6677
  %s6679 = scalar_lea.vmem %s4, 1280
  %v6680 = vld [vmem:[%s6679] sm:$0xff]
  %v6681 = vld [vmem:[%s6679 + $0x8] sm:$0xff]
  %v6682 = vld [vmem:[%s6679 + $0x10] sm:$0xff]
  %v6683 = vld [vmem:[%s6679 + $0x18] sm:$0xff]
  %v6684 = vld [vmem:[%s6679 + $0x20] sm:$0xff]
  %v6685 = vld [vmem:[%s6679 + $0x28] sm:$0xff]
  %v6686 = vld [vmem:[%s6679 + $0x30] sm:$0xff]
  %v6687 = vld [vmem:[%s6679 + $0x38] sm:$0xff]
  %v6688 = vld [vmem:[%s6679 + $0x40] sm:$0xff]
  %v6689 = vld [vmem:[%s6679 + $0x48] sm:$0xff]
  %v6690 = vld [vmem:[%s6679 + $0x50] sm:$0xff]
  %v6691 = vld [vmem:[%s6679 + $0x58] sm:$0xff]
  %v6692 = vld [vmem:[%s6679 + $0x60] sm:$0xff]
  %v6693 = vld [vmem:[%s6679 + $0x68] sm:$0xff]
  %v6694 = vld [vmem:[%s6679 + $0x70] sm:$0xff]
  %v6695 = vld [vmem:[%s6679 + $0x78] sm:$0xff]
  %v6696 = vld [vmem:[%s6679 + $0x80] sm:$0xff]
  %v6697 = vld [vmem:[%s6679 + $0x88] sm:$0xff]
  %v6698 = vld [vmem:[%s6679 + $0x90] sm:$0xff]
  %v6699 = vld [vmem:[%s6679 + $0x98] sm:$0xff]
  %v6700 = vld [vmem:[%s6679 + $0xa0] sm:$0xff]
  %v6701 = vld [vmem:[%s6679 + $0xa8] sm:$0xff]
  %v6702 = vld [vmem:[%s6679 + $0xb0] sm:$0xff]
  %v6703 = vld [vmem:[%s6679 + $0xb8] sm:$0xff]
  %v6704 = vld [vmem:[%s6679 + $0xc0] sm:$0xff]
  %v6705 = vld [vmem:[%s6679 + $0xc8] sm:$0xff]
  %v6706 = vld [vmem:[%s6679 + $0xd0] sm:$0xff]
  %v6707 = vld [vmem:[%s6679 + $0xd8] sm:$0xff]
  %v6708 = vld [vmem:[%s6679 + $0xe0] sm:$0xff]
  %v6709 = vld [vmem:[%s6679 + $0xe8] sm:$0xff]
  %v6710 = vld [vmem:[%s6679 + $0xf0] sm:$0xff]
  %v6711 = vld [vmem:[%s6679 + $0xf8] sm:$0xff]
  %v6712 = vunpack.c.l.b16 %v6618
  %v6713 = vunpack.c.l.b16 %v6622
  %v6714 = vunpack.c.l.b16 %v6626
  %v6715 = vunpack.c.l.b16 %v6630
  %v6716 = vunpack.c.l.b16 %v6634
  %v6717 = vunpack.c.l.b16 %v6638
  %v6718 = vunpack.c.l.b16 %v6642
  %v6719 = vunpack.c.l.b16 %v6646
  %v6720 = vunpack.c.l.b16 %v6650
  %v6721 = vunpack.c.l.b16 %v6654
  %v6722 = vunpack.c.l.b16 %v6658
  %v6723 = vunpack.c.l.b16 %v6662
  %v6724 = vunpack.c.l.b16 %v6666
  %v6725 = vunpack.c.l.b16 %v6670
  %v6726 = vunpack.c.l.b16 %v6674
  %v6727 = vunpack.c.l.b16 %v6678
  %v6728 = vpack.c.b16 %v6713, %v6712
  %v6729 = vpack.c.b16 %v6715, %v6714
  %v6730 = vpack.c.b16 %v6717, %v6716
  %v6731 = vpack.c.b16 %v6719, %v6718
  %v6732 = vpack.c.b16 %v6721, %v6720
  %v6733 = vpack.c.b16 %v6723, %v6722
  %v6734 = vpack.c.b16 %v6725, %v6724
  %v6735 = vpack.c.b16 %v6727, %v6726
  %v6776 = vunpack.c.l.b16 %v6680
  %v6777 = vunpack.c.h.b16 %v6680
  %v6778 = vunpack.c.l.b16 %v6681
  %v6779 = vunpack.c.h.b16 %v6681
  %v6780 = vunpack.c.l.b16 %v6682
  %v6781 = vunpack.c.h.b16 %v6682
  %v6782 = vunpack.c.l.b16 %v6683
  %v6783 = vunpack.c.h.b16 %v6683
  %v6784 = vunpack.c.l.b16 %v6684
  %v6785 = vunpack.c.h.b16 %v6684
  %v6786 = vunpack.c.l.b16 %v6685
  %v6787 = vunpack.c.h.b16 %v6685
  %v6788 = vunpack.c.l.b16 %v6686
  %v6789 = vunpack.c.h.b16 %v6686
  %v6790 = vunpack.c.l.b16 %v6687
  %v6791 = vunpack.c.h.b16 %v6687
  %v6792 = vunpack.c.l.b16 %v6688
  %v6793 = vunpack.c.h.b16 %v6688
  %v6794 = vunpack.c.l.b16 %v6689
  %v6795 = vunpack.c.h.b16 %v6689
  %v6796 = vunpack.c.l.b16 %v6690
  %v6797 = vunpack.c.h.b16 %v6690
  %v6798 = vunpack.c.l.b16 %v6691
  %v6799 = vunpack.c.h.b16 %v6691
  %v6800 = vunpack.c.l.b16 %v6692
  %v6801 = vunpack.c.h.b16 %v6692
  %v6802 = vunpack.c.l.b16 %v6693
  %v6803 = vunpack.c.h.b16 %v6693
  %v6804 = vunpack.c.l.b16 %v6694
  %v6805 = vunpack.c.h.b16 %v6694
  %v6806 = vunpack.c.l.b16 %v6695
  %v6807 = vunpack.c.h.b16 %v6695
  %v6808 = vunpack.c.l.b16 %v6696
  %v6809 = vunpack.c.h.b16 %v6696
  %v6810 = vunpack.c.l.b16 %v6697
  %v6811 = vunpack.c.h.b16 %v6697
  %v6812 = vunpack.c.l.b16 %v6698
  %v6813 = vunpack.c.h.b16 %v6698
  %v6814 = vunpack.c.l.b16 %v6699
  %v6815 = vunpack.c.h.b16 %v6699
  %v6816 = vunpack.c.l.b16 %v6700
  %v6817 = vunpack.c.h.b16 %v6700
  %v6818 = vunpack.c.l.b16 %v6701
  %v6819 = vunpack.c.h.b16 %v6701
  %v6820 = vunpack.c.l.b16 %v6702
  %v6821 = vunpack.c.h.b16 %v6702
  %v6822 = vunpack.c.l.b16 %v6703
  %v6823 = vunpack.c.h.b16 %v6703
  %v6824 = vunpack.c.l.b16 %v6704
  %v6825 = vunpack.c.h.b16 %v6704
  %v6826 = vunpack.c.l.b16 %v6705
  %v6827 = vunpack.c.h.b16 %v6705
  %v6828 = vunpack.c.l.b16 %v6706
  %v6829 = vunpack.c.h.b16 %v6706
  %v6830 = vunpack.c.l.b16 %v6707
  %v6831 = vunpack.c.h.b16 %v6707
  %v6832 = vunpack.c.l.b16 %v6708
  %v6833 = vunpack.c.h.b16 %v6708
  %v6834 = vunpack.c.l.b16 %v6709
  %v6835 = vunpack.c.h.b16 %v6709
  %v6836 = vunpack.c.l.b16 %v6710
  %v6837 = vunpack.c.h.b16 %v6710
  %v6838 = vunpack.c.l.b16 %v6711
  %v6839 = vunpack.c.h.b16 %v6711
  %v6840 = vpack.c.b16 %v6780, %v6776
  %v6841 = vpack.c.b16 %v6781, %v6777
  %v6842 = vpack.c.b16 %v6782, %v6778
  %v6843 = vpack.c.b16 %v6783, %v6779
  %v6844 = vpack.c.b16 %v6788, %v6784
  %v6845 = vpack.c.b16 %v6789, %v6785
  %v6846 = vpack.c.b16 %v6790, %v6786
  %v6847 = vpack.c.b16 %v6791, %v6787
  %v6848 = vpack.c.b16 %v6796, %v6792
  %v6849 = vpack.c.b16 %v6797, %v6793
  %v6850 = vpack.c.b16 %v6798, %v6794
  %v6851 = vpack.c.b16 %v6799, %v6795
  %v6852 = vpack.c.b16 %v6804, %v6800
  %v6853 = vpack.c.b16 %v6805, %v6801
  %v6854 = vpack.c.b16 %v6806, %v6802
  %v6855 = vpack.c.b16 %v6807, %v6803
  %v6856 = vpack.c.b16 %v6812, %v6808
  %v6857 = vpack.c.b16 %v6813, %v6809
  %v6858 = vpack.c.b16 %v6814, %v6810
  %v6859 = vpack.c.b16 %v6815, %v6811
  %v6860 = vpack.c.b16 %v6820, %v6816
  %v6861 = vpack.c.b16 %v6821, %v6817
  %v6862 = vpack.c.b16 %v6822, %v6818
  %v6863 = vpack.c.b16 %v6823, %v6819
  %v6864 = vpack.c.b16 %v6828, %v6824
  %v6865 = vpack.c.b16 %v6829, %v6825
  %v6866 = vpack.c.b16 %v6830, %v6826
  %v6867 = vpack.c.b16 %v6831, %v6827
  %v6868 = vpack.c.b16 %v6836, %v6832
  %v6869 = vpack.c.b16 %v6837, %v6833
  %v6870 = vpack.c.b16 %v6838, %v6834
  %v6871 = vpack.c.b16 %v6839, %v6835
  %6904 = vmatpush.bf16.msra.mxu0 %v6868
  %6905 = vmatpush.bf16.msra.mxu0 %v6864
  %6906 = vmatpush.bf16.msra.mxu0 %v6860
  %6907 = vmatpush.bf16.msra.mxu0 %v6856
  %6908 = vmatpush.bf16.msra.mxu0 %v6852
  %6909 = vmatpush.bf16.msra.mxu0 %v6848
  %6910 = vmatpush.bf16.msra.mxu0 %v6844
  %6911 = vmatpush.bf16.msra.mxu0 %v6840
  %6912 = vmatmul.bf16.gmra.mxu0 %v6728
  %v6913 = vpop.f32.mrf.mxu0
  %v6914 = vadd.f32 0.0, %v6913
  %v6915 = vpop.f32.mrf.mxu0
  %v6916 = vadd.f32 0.0, %v6915
  %6917 = vmatmul.bf16.gmra.mxu0 %v6729
  %v6918 = vpop.f32.mrf.mxu0
  %v6919 = vadd.f32 0.0, %v6918
  %v6920 = vpop.f32.mrf.mxu0
  %v6921 = vadd.f32 0.0, %v6920
  %6922 = vmatmul.bf16.gmra.mxu0 %v6730
  %v6923 = vpop.f32.mrf.mxu0
  %v6924 = vadd.f32 0.0, %v6923
  %v6925 = vpop.f32.mrf.mxu0
  %v6926 = vadd.f32 0.0, %v6925
  %6927 = vmatmul.bf16.gmra.mxu0 %v6731
  %v6928 = vpop.f32.mrf.mxu0
  %v6929 = vadd.f32 0.0, %v6928
  %v6930 = vpop.f32.mrf.mxu0
  %v6931 = vadd.f32 0.0, %v6930
  %6932 = vmatmul.bf16.gmra.mxu0 %v6732
  %v6933 = vpop.f32.mrf.mxu0
  %v6934 = vadd.f32 0.0, %v6933
  %v6935 = vpop.f32.mrf.mxu0
  %v6936 = vadd.f32 0.0, %v6935
  %6937 = vmatmul.bf16.gmra.mxu0 %v6733
  %v6938 = vpop.f32.mrf.mxu0
  %v6939 = vadd.f32 0.0, %v6938
  %v6940 = vpop.f32.mrf.mxu0
  %v6941 = vadd.f32 0.0, %v6940
  %6942 = vmatmul.bf16.gmra.mxu0 %v6734
  %v6943 = vpop.f32.mrf.mxu0
  %v6944 = vadd.f32 0.0, %v6943
  %v6945 = vpop.f32.mrf.mxu0
  %v6946 = vadd.f32 0.0, %v6945
  %6947 = vmatmul.bf16.gmra.mxu0 %v6735
  %v6948 = vpop.f32.mrf.mxu0
  %v6949 = vadd.f32 0.0, %v6948
  %v6950 = vpop.f32.mrf.mxu0
  %v6951 = vadd.f32 0.0, %v6950
  %6952 = vdwg.mxu0
  %6953 = vmatpush.bf16.msra.mxu0 %v6869
  %6954 = vmatpush.bf16.msra.mxu0 %v6865
  %6955 = vmatpush.bf16.msra.mxu0 %v6861
  %6956 = vmatpush.bf16.msra.mxu0 %v6857
  %6957 = vmatpush.bf16.msra.mxu0 %v6853
  %6958 = vmatpush.bf16.msra.mxu0 %v6849
  %6959 = vmatpush.bf16.msra.mxu0 %v6845
  %6960 = vmatpush.bf16.msra.mxu0 %v6841
  %6961 = vmatmul.bf16.gmra.mxu0 %v6728
  %v6962 = vpop.f32.mrf.mxu0
  %v6963 = vadd.f32 0.0, %v6962
  %v6964 = vpop.f32.mrf.mxu0
  %v6965 = vadd.f32 0.0, %v6964
  %6966 = vmatmul.bf16.gmra.mxu0 %v6729
  %v6967 = vpop.f32.mrf.mxu0
  %v6968 = vadd.f32 0.0, %v6967
  %v6969 = vpop.f32.mrf.mxu0
  %v6970 = vadd.f32 0.0, %v6969
  %6971 = vmatmul.bf16.gmra.mxu0 %v6730
  %v6972 = vpop.f32.mrf.mxu0
  %v6973 = vadd.f32 0.0, %v6972
  %v6974 = vpop.f32.mrf.mxu0
  %v6975 = vadd.f32 0.0, %v6974
  %6976 = vmatmul.bf16.gmra.mxu0 %v6731
  %v6977 = vpop.f32.mrf.mxu0
  %v6978 = vadd.f32 0.0, %v6977
  %v6979 = vpop.f32.mrf.mxu0
  %v6980 = vadd.f32 0.0, %v6979
  %6981 = vmatmul.bf16.gmra.mxu0 %v6732
  %v6982 = vpop.f32.mrf.mxu0
  %v6983 = vadd.f32 0.0, %v6982
  %v6984 = vpop.f32.mrf.mxu0
  %v6985 = vadd.f32 0.0, %v6984
  %6986 = vmatmul.bf16.gmra.mxu0 %v6733
  %v6987 = vpop.f32.mrf.mxu0
  %v6988 = vadd.f32 0.0, %v6987
  %v6989 = vpop.f32.mrf.mxu0
  %v6990 = vadd.f32 0.0, %v6989
  %6991 = vmatmul.bf16.gmra.mxu0 %v6734
  %v6992 = vpop.f32.mrf.mxu0
  %v6993 = vadd.f32 0.0, %v6992
  %v6994 = vpop.f32.mrf.mxu0
  %v6995 = vadd.f32 0.0, %v6994
  %6996 = vmatmul.bf16.gmra.mxu0 %v6735
  %v6997 = vpop.f32.mrf.mxu0
  %v6998 = vadd.f32 0.0, %v6997
  %v6999 = vpop.f32.mrf.mxu0
  %v7000 = vadd.f32 0.0, %v6999
  %7001 = vdwg.mxu0
  %7002 = vmatpush.bf16.msra.mxu0 %v6870
  %7003 = vmatpush.bf16.msra.mxu0 %v6866
  %7004 = vmatpush.bf16.msra.mxu0 %v6862
  %7005 = vmatpush.bf16.msra.mxu0 %v6858
  %7006 = vmatpush.bf16.msra.mxu0 %v6854
  %7007 = vmatpush.bf16.msra.mxu0 %v6850
  %7008 = vmatpush.bf16.msra.mxu0 %v6846
  %7009 = vmatpush.bf16.msra.mxu0 %v6842
  %7010 = vmatmul.bf16.gmra.mxu0 %v6728
  %v7011 = vpop.f32.mrf.mxu0
  %v7012 = vadd.f32 0.0, %v7011
  %v7013 = vpop.f32.mrf.mxu0
  %v7014 = vadd.f32 0.0, %v7013
  %7015 = vmatmul.bf16.gmra.mxu0 %v6729
  %v7016 = vpop.f32.mrf.mxu0
  %v7017 = vadd.f32 0.0, %v7016
  %v7018 = vpop.f32.mrf.mxu0
  %v7019 = vadd.f32 0.0, %v7018
  %7020 = vmatmul.bf16.gmra.mxu0 %v6730
  %v7021 = vpop.f32.mrf.mxu0
  %v7022 = vadd.f32 0.0, %v7021
  %v7023 = vpop.f32.mrf.mxu0
  %v7024 = vadd.f32 0.0, %v7023
  %7025 = vmatmul.bf16.gmra.mxu0 %v6731
  %v7026 = vpop.f32.mrf.mxu0
  %v7027 = vadd.f32 0.0, %v7026
  %v7028 = vpop.f32.mrf.mxu0
  %v7029 = vadd.f32 0.0, %v7028
  %7030 = vmatmul.bf16.gmra.mxu0 %v6732
  %v7031 = vpop.f32.mrf.mxu0
  %v7032 = vadd.f32 0.0, %v7031
  %v7033 = vpop.f32.mrf.mxu0
  %v7034 = vadd.f32 0.0, %v7033
  %7035 = vmatmul.bf16.gmra.mxu0 %v6733
  %v7036 = vpop.f32.mrf.mxu0
  %v7037 = vadd.f32 0.0, %v7036
  %v7038 = vpop.f32.mrf.mxu0
  %v7039 = vadd.f32 0.0, %v7038
  %7040 = vmatmul.bf16.gmra.mxu0 %v6734
  %v7041 = vpop.f32.mrf.mxu0
  %v7042 = vadd.f32 0.0, %v7041
  %v7043 = vpop.f32.mrf.mxu0
  %v7044 = vadd.f32 0.0, %v7043
  %7045 = vmatmul.bf16.gmra.mxu0 %v6735
  %v7046 = vpop.f32.mrf.mxu0
  %v7047 = vadd.f32 0.0, %v7046
  %v7048 = vpop.f32.mrf.mxu0
  %v7049 = vadd.f32 0.0, %v7048
  %7050 = vdwg.mxu0
  %7051 = vmatpush.bf16.msra.mxu0 %v6871
  %7052 = vmatpush.bf16.msra.mxu0 %v6867
  %7053 = vmatpush.bf16.msra.mxu0 %v6863
  %7054 = vmatpush.bf16.msra.mxu0 %v6859
  %7055 = vmatpush.bf16.msra.mxu0 %v6855
  %7056 = vmatpush.bf16.msra.mxu0 %v6851
  %7057 = vmatpush.bf16.msra.mxu0 %v6847
  %7058 = vmatpush.bf16.msra.mxu0 %v6843
  %7059 = vmatmul.bf16.gmra.mxu0 %v6728
  %v7060 = vpop.f32.mrf.mxu0
  %v7061 = vadd.f32 0.0, %v7060
  %v7062 = vpop.f32.mrf.mxu0
  %v7063 = vadd.f32 0.0, %v7062
  %7064 = vmatmul.bf16.gmra.mxu0 %v6729
  %v7065 = vpop.f32.mrf.mxu0
  %v7066 = vadd.f32 0.0, %v7065
  %v7067 = vpop.f32.mrf.mxu0
  %v7068 = vadd.f32 0.0, %v7067
  %7069 = vmatmul.bf16.gmra.mxu0 %v6730
  %v7070 = vpop.f32.mrf.mxu0
  %v7071 = vadd.f32 0.0, %v7070
  %v7072 = vpop.f32.mrf.mxu0
  %v7073 = vadd.f32 0.0, %v7072
  %7074 = vmatmul.bf16.gmra.mxu0 %v6731
  %v7075 = vpop.f32.mrf.mxu0
  %v7076 = vadd.f32 0.0, %v7075
  %v7077 = vpop.f32.mrf.mxu0
  %v7078 = vadd.f32 0.0, %v7077
  %7079 = vmatmul.bf16.gmra.mxu0 %v6732
  %v7080 = vpop.f32.mrf.mxu0
  %v7081 = vadd.f32 0.0, %v7080
  %v7082 = vpop.f32.mrf.mxu0
  %v7083 = vadd.f32 0.0, %v7082
  %7084 = vmatmul.bf16.gmra.mxu0 %v6733
  %v7085 = vpop.f32.mrf.mxu0
  %v7086 = vadd.f32 0.0, %v7085
  %v7087 = vpop.f32.mrf.mxu0
  %v7088 = vadd.f32 0.0, %v7087
  %7089 = vmatmul.bf16.gmra.mxu0 %v6734
  %v7090 = vpop.f32.mrf.mxu0
  %v7091 = vadd.f32 0.0, %v7090
  %v7092 = vpop.f32.mrf.mxu0
  %v7093 = vadd.f32 0.0, %v7092
  %7094 = vmatmul.bf16.gmra.mxu0 %v6735
  %v7095 = vpop.f32.mrf.mxu0
  %v7096 = vadd.f32 0.0, %v7095
  %v7097 = vpop.f32.mrf.mxu0
  %v7098 = vadd.f32 0.0, %v7097
  %7099 = vdwg.mxu0
  %v7100 = vadd.f32 %v6503, %v6914
  %v7101 = vadd.f32 %v6504, %v6963
  %v7102 = vadd.f32 %v6505, %v7012
  %v7103 = vadd.f32 %v6506, %v7061
  %v7104 = vadd.f32 %v6507, %v6916
  %v7105 = vadd.f32 %v6508, %v6965
  %v7106 = vadd.f32 %v6509, %v7014
  %v7107 = vadd.f32 %v6510, %v7063
  %v7108 = vadd.f32 %v6511, %v6919
  %v7109 = vadd.f32 %v6512, %v6968
  %v7110 = vadd.f32 %v6513, %v7017
  %v7111 = vadd.f32 %v6514, %v7066
  %v7112 = vadd.f32 %v6515, %v6921
  %v7113 = vadd.f32 %v6516, %v6970
  %v7114 = vadd.f32 %v6517, %v7019
  %v7115 = vadd.f32 %v6518, %v7068
  %v7116 = vadd.f32 %v6519, %v6924
  %v7117 = vadd.f32 %v6520, %v6973
  %v7118 = vadd.f32 %v6521, %v7022
  %v7119 = vadd.f32 %v6522, %v7071
  %v7120 = vadd.f32 %v6523, %v6926
  %v7121 = vadd.f32 %v6524, %v6975
  %v7122 = vadd.f32 %v6525, %v7024
  %v7123 = vadd.f32 %v6526, %v7073
  %v7124 = vadd.f32 %v6527, %v6929
  %v7125 = vadd.f32 %v6528, %v6978
  %v7126 = vadd.f32 %v6529, %v7027
  %v7127 = vadd.f32 %v6530, %v7076
  %v7128 = vadd.f32 %v6531, %v6931
  %v7129 = vadd.f32 %v6532, %v6980
  %v7130 = vadd.f32 %v6533, %v7029
  %v7131 = vadd.f32 %v6534, %v7078
  %v7132 = vadd.f32 %v6535, %v6934
  %v7133 = vadd.f32 %v6536, %v6983
  %v7134 = vadd.f32 %v6537, %v7032
  %v7135 = vadd.f32 %v6538, %v7081
  %v7136 = vadd.f32 %v6539, %v6936
  %v7137 = vadd.f32 %v6540, %v6985
  %v7138 = vadd.f32 %v6541, %v7034
  %v7139 = vadd.f32 %v6542, %v7083
  %v7140 = vadd.f32 %v6543, %v6939
  %v7141 = vadd.f32 %v6544, %v6988
  %v7142 = vadd.f32 %v6545, %v7037
  %v7143 = vadd.f32 %v6546, %v7086
  %v7144 = vadd.f32 %v6547, %v6941
  %v7145 = vadd.f32 %v6548, %v6990
  %v7146 = vadd.f32 %v6549, %v7039
  %v7147 = vadd.f32 %v6550, %v7088
  %v7148 = vadd.f32 %v6551, %v6944
  %v7149 = vadd.f32 %v6552, %v6993
  %v7150 = vadd.f32 %v6553, %v7042
  %v7151 = vadd.f32 %v6554, %v7091
  %v7152 = vadd.f32 %v6555, %v6946
  %v7153 = vadd.f32 %v6556, %v6995
  %v7154 = vadd.f32 %v6557, %v7044
  %v7155 = vadd.f32 %v6558, %v7093
  %v7156 = vadd.f32 %v6559, %v6949
  %v7157 = vadd.f32 %v6560, %v6998
  %v7158 = vadd.f32 %v6561, %v7047
  %v7159 = vadd.f32 %v6562, %v7096
  %v7160 = vadd.f32 %v6563, %v6951
  %v7161 = vadd.f32 %v6564, %v7000
  %v7162 = vadd.f32 %v6565, %v7049
  %v7163 = vadd.f32 %v6566, %v7098
  %s7164 = scalar_lea.vmem [#allocation3], 16
  %v7165 = vld [vmem:[%s7164] sm:$0xf]
  %v7166 = vld [vmem:[%s7164 + $0x8] sm:$0xf]
  %v7167 = vld [vmem:[%s7164 + $0x10] sm:$0xf]
  %v7168 = vld [vmem:[%s7164 + $0x18] sm:$0xf]
  %v7169 = vld [vmem:[%s7164 + $0x20] sm:$0xf]
  %v7170 = vld [vmem:[%s7164 + $0x28] sm:$0xf]
  %v7171 = vld [vmem:[%s7164 + $0x30] sm:$0xf]
  %v7172 = vld [vmem:[%s7164 + $0x38] sm:$0xf]
  %v7173 = vld [vmem:[%s7164 + $0x50] sm:$0xf]
  %v7174 = vld [vmem:[%s7164 + $0x58] sm:$0xf]
  %v7175 = vld [vmem:[%s7164 + $0x60] sm:$0xf]
  %v7176 = vld [vmem:[%s7164 + $0x68] sm:$0xf]
  %v7177 = vld [vmem:[%s7164 + $0x70] sm:$0xf]
  %v7178 = vld [vmem:[%s7164 + $0x78] sm:$0xf]
  %v7179 = vld [vmem:[%s7164 + $0x80] sm:$0xf]
  %v7180 = vld [vmem:[%s7164 + $0x88] sm:$0xf]
  %s7181 = scalar_lea.vmem %s4, 1536
  %v7182 = vld [vmem:[%s7181] sm:$0xff]
  %v7183 = vld [vmem:[%s7181 + $0x8] sm:$0xff]
  %v7184 = vld [vmem:[%s7181 + $0x10] sm:$0xff]
  %v7185 = vld [vmem:[%s7181 + $0x18] sm:$0xff]
  %v7186 = vld [vmem:[%s7181 + $0x20] sm:$0xff]
  %v7187 = vld [vmem:[%s7181 + $0x28] sm:$0xff]
  %v7188 = vld [vmem:[%s7181 + $0x30] sm:$0xff]
  %v7189 = vld [vmem:[%s7181 + $0x38] sm:$0xff]
  %v7190 = vld [vmem:[%s7181 + $0x40] sm:$0xff]
  %v7191 = vld [vmem:[%s7181 + $0x48] sm:$0xff]
  %v7192 = vld [vmem:[%s7181 + $0x50] sm:$0xff]
  %v7193 = vld [vmem:[%s7181 + $0x58] sm:$0xff]
  %v7194 = vld [vmem:[%s7181 + $0x60] sm:$0xff]
  %v7195 = vld [vmem:[%s7181 + $0x68] sm:$0xff]
  %v7196 = vld [vmem:[%s7181 + $0x70] sm:$0xff]
  %v7197 = vld [vmem:[%s7181 + $0x78] sm:$0xff]
  %v7198 = vld [vmem:[%s7181 + $0x80] sm:$0xff]
  %v7199 = vld [vmem:[%s7181 + $0x88] sm:$0xff]
  %v7200 = vld [vmem:[%s7181 + $0x90] sm:$0xff]
  %v7201 = vld [vmem:[%s7181 + $0x98] sm:$0xff]
  %v7202 = vld [vmem:[%s7181 + $0xa0] sm:$0xff]
  %v7203 = vld [vmem:[%s7181 + $0xa8] sm:$0xff]
  %v7204 = vld [vmem:[%s7181 + $0xb0] sm:$0xff]
  %v7205 = vld [vmem:[%s7181 + $0xb8] sm:$0xff]
  %v7206 = vld [vmem:[%s7181 + $0xc0] sm:$0xff]
  %v7207 = vld [vmem:[%s7181 + $0xc8] sm:$0xff]
  %v7208 = vld [vmem:[%s7181 + $0xd0] sm:$0xff]
  %v7209 = vld [vmem:[%s7181 + $0xd8] sm:$0xff]
  %v7210 = vld [vmem:[%s7181 + $0xe0] sm:$0xff]
  %v7211 = vld [vmem:[%s7181 + $0xe8] sm:$0xff]
  %v7212 = vld [vmem:[%s7181 + $0xf0] sm:$0xff]
  %v7213 = vld [vmem:[%s7181 + $0xf8] sm:$0xff]
  %v7230 = vunpack.c.l.b16 %v7165
  %v7231 = vunpack.c.l.b16 %v7166
  %v7232 = vunpack.c.l.b16 %v7167
  %v7233 = vunpack.c.l.b16 %v7168
  %v7234 = vunpack.c.l.b16 %v7169
  %v7235 = vunpack.c.l.b16 %v7170
  %v7236 = vunpack.c.l.b16 %v7171
  %v7237 = vunpack.c.l.b16 %v7172
  %v7238 = vunpack.c.l.b16 %v7173
  %v7239 = vunpack.c.l.b16 %v7174
  %v7240 = vunpack.c.l.b16 %v7175
  %v7241 = vunpack.c.l.b16 %v7176
  %v7242 = vunpack.c.l.b16 %v7177
  %v7243 = vunpack.c.l.b16 %v7178
  %v7244 = vunpack.c.l.b16 %v7179
  %v7245 = vunpack.c.l.b16 %v7180
  %v7246 = vpack.c.b16 %v7231, %v7230
  %v7247 = vpack.c.b16 %v7233, %v7232
  %v7248 = vpack.c.b16 %v7235, %v7234
  %v7249 = vpack.c.b16 %v7237, %v7236
  %v7250 = vpack.c.b16 %v7239, %v7238
  %v7251 = vpack.c.b16 %v7241, %v7240
  %v7252 = vpack.c.b16 %v7243, %v7242
  %v7253 = vpack.c.b16 %v7245, %v7244
  %v7294 = vunpack.c.l.b16 %v7182
  %v7295 = vunpack.c.h.b16 %v7182
  %v7296 = vunpack.c.l.b16 %v7183
  %v7297 = vunpack.c.h.b16 %v7183
  %v7298 = vunpack.c.l.b16 %v7184
  %v7299 = vunpack.c.h.b16 %v7184
  %v7300 = vunpack.c.l.b16 %v7185
  %v7301 = vunpack.c.h.b16 %v7185
  %v7302 = vunpack.c.l.b16 %v7186
  %v7303 = vunpack.c.h.b16 %v7186
  %v7304 = vunpack.c.l.b16 %v7187
  %v7305 = vunpack.c.h.b16 %v7187
  %v7306 = vunpack.c.l.b16 %v7188
  %v7307 = vunpack.c.h.b16 %v7188
  %v7308 = vunpack.c.l.b16 %v7189
  %v7309 = vunpack.c.h.b16 %v7189
  %v7310 = vunpack.c.l.b16 %v7190
  %v7311 = vunpack.c.h.b16 %v7190
  %v7312 = vunpack.c.l.b16 %v7191
  %v7313 = vunpack.c.h.b16 %v7191
  %v7314 = vunpack.c.l.b16 %v7192
  %v7315 = vunpack.c.h.b16 %v7192
  %v7316 = vunpack.c.l.b16 %v7193
  %v7317 = vunpack.c.h.b16 %v7193
  %v7318 = vunpack.c.l.b16 %v7194
  %v7319 = vunpack.c.h.b16 %v7194
  %v7320 = vunpack.c.l.b16 %v7195
  %v7321 = vunpack.c.h.b16 %v7195
  %v7322 = vunpack.c.l.b16 %v7196
  %v7323 = vunpack.c.h.b16 %v7196
  %v7324 = vunpack.c.l.b16 %v7197
  %v7325 = vunpack.c.h.b16 %v7197
  %v7326 = vunpack.c.l.b16 %v7198
  %v7327 = vunpack.c.h.b16 %v7198
  %v7328 = vunpack.c.l.b16 %v7199
  %v7329 = vunpack.c.h.b16 %v7199
  %v7330 = vunpack.c.l.b16 %v7200
  %v7331 = vunpack.c.h.b16 %v7200
  %v7332 = vunpack.c.l.b16 %v7201
  %v7333 = vunpack.c.h.b16 %v7201
  %v7334 = vunpack.c.l.b16 %v7202
  %v7335 = vunpack.c.h.b16 %v7202
  %v7336 = vunpack.c.l.b16 %v7203
  %v7337 = vunpack.c.h.b16 %v7203
  %v7338 = vunpack.c.l.b16 %v7204
  %v7339 = vunpack.c.h.b16 %v7204
  %v7340 = vunpack.c.l.b16 %v7205
  %v7341 = vunpack.c.h.b16 %v7205
  %v7342 = vunpack.c.l.b16 %v7206
  %v7343 = vunpack.c.h.b16 %v7206
  %v7344 = vunpack.c.l.b16 %v7207
  %v7345 = vunpack.c.h.b16 %v7207
  %v7346 = vunpack.c.l.b16 %v7208
  %v7347 = vunpack.c.h.b16 %v7208
  %v7348 = vunpack.c.l.b16 %v7209
  %v7349 = vunpack.c.h.b16 %v7209
  %v7350 = vunpack.c.l.b16 %v7210
  %v7351 = vunpack.c.h.b16 %v7210
  %v7352 = vunpack.c.l.b16 %v7211
  %v7353 = vunpack.c.h.b16 %v7211
  %v7354 = vunpack.c.l.b16 %v7212
  %v7355 = vunpack.c.h.b16 %v7212
  %v7356 = vunpack.c.l.b16 %v7213
  %v7357 = vunpack.c.h.b16 %v7213
  %v7358 = vpack.c.b16 %v7298, %v7294
  %v7359 = vpack.c.b16 %v7299, %v7295
  %v7360 = vpack.c.b16 %v7300, %v7296
  %v7361 = vpack.c.b16 %v7301, %v7297
  %v7362 = vpack.c.b16 %v7306, %v7302
  %v7363 = vpack.c.b16 %v7307, %v7303
  %v7364 = vpack.c.b16 %v7308, %v7304
  %v7365 = vpack.c.b16 %v7309, %v7305
  %v7366 = vpack.c.b16 %v7314, %v7310
  %v7367 = vpack.c.b16 %v7315, %v7311
  %v7368 = vpack.c.b16 %v7316, %v7312
  %v7369 = vpack.c.b16 %v7317, %v7313
  %v7370 = vpack.c.b16 %v7322, %v7318
  %v7371 = vpack.c.b16 %v7323, %v7319
  %v7372 = vpack.c.b16 %v7324, %v7320
  %v7373 = vpack.c.b16 %v7325, %v7321
  %v7374 = vpack.c.b16 %v7330, %v7326
  %v7375 = vpack.c.b16 %v7331, %v7327
  %v7376 = vpack.c.b16 %v7332, %v7328
  %v7377 = vpack.c.b16 %v7333, %v7329
  %v7378 = vpack.c.b16 %v7338, %v7334
  %v7379 = vpack.c.b16 %v7339, %v7335
  %v7380 = vpack.c.b16 %v7340, %v7336
  %v7381 = vpack.c.b16 %v7341, %v7337
  %v7382 = vpack.c.b16 %v7346, %v7342
  %v7383 = vpack.c.b16 %v7347, %v7343
  %v7384 = vpack.c.b16 %v7348, %v7344
  %v7385 = vpack.c.b16 %v7349, %v7345
  %v7386 = vpack.c.b16 %v7354, %v7350
  %v7387 = vpack.c.b16 %v7355, %v7351
  %v7388 = vpack.c.b16 %v7356, %v7352
  %v7389 = vpack.c.b16 %v7357, %v7353
  %7422 = vmatpush.bf16.msra.mxu0 %v7386
  %7423 = vmatpush.bf16.msra.mxu0 %v7382
  %7424 = vmatpush.bf16.msra.mxu0 %v7378
  %7425 = vmatpush.bf16.msra.mxu0 %v7374
  %7426 = vmatpush.bf16.msra.mxu0 %v7370
  %7427 = vmatpush.bf16.msra.mxu0 %v7366
  %7428 = vmatpush.bf16.msra.mxu0 %v7362
  %7429 = vmatpush.bf16.msra.mxu0 %v7358
  %7430 = vmatmul.bf16.gmra.mxu0 %v7246
  %v7431 = vpop.f32.mrf.mxu0
  %v7432 = vadd.f32 0.0, %v7431
  %v7433 = vpop.f32.mrf.mxu0
  %v7434 = vadd.f32 0.0, %v7433
  %7435 = vmatmul.bf16.gmra.mxu0 %v7247
  %v7436 = vpop.f32.mrf.mxu0
  %v7437 = vadd.f32 0.0, %v7436
  %v7438 = vpop.f32.mrf.mxu0
  %v7439 = vadd.f32 0.0, %v7438
  %7440 = vmatmul.bf16.gmra.mxu0 %v7248
  %v7441 = vpop.f32.mrf.mxu0
  %v7442 = vadd.f32 0.0, %v7441
  %v7443 = vpop.f32.mrf.mxu0
  %v7444 = vadd.f32 0.0, %v7443
  %7445 = vmatmul.bf16.gmra.mxu0 %v7249
  %v7446 = vpop.f32.mrf.mxu0
  %v7447 = vadd.f32 0.0, %v7446
  %v7448 = vpop.f32.mrf.mxu0
  %v7449 = vadd.f32 0.0, %v7448
  %7450 = vmatmul.bf16.gmra.mxu0 %v7250
  %v7451 = vpop.f32.mrf.mxu0
  %v7452 = vadd.f32 0.0, %v7451
  %v7453 = vpop.f32.mrf.mxu0
  %v7454 = vadd.f32 0.0, %v7453
  %7455 = vmatmul.bf16.gmra.mxu0 %v7251
  %v7456 = vpop.f32.mrf.mxu0
  %v7457 = vadd.f32 0.0, %v7456
  %v7458 = vpop.f32.mrf.mxu0
  %v7459 = vadd.f32 0.0, %v7458
  %7460 = vmatmul.bf16.gmra.mxu0 %v7252
  %v7461 = vpop.f32.mrf.mxu0
  %v7462 = vadd.f32 0.0, %v7461
  %v7463 = vpop.f32.mrf.mxu0
  %v7464 = vadd.f32 0.0, %v7463
  %7465 = vmatmul.bf16.gmra.mxu0 %v7253
  %v7466 = vpop.f32.mrf.mxu0
  %v7467 = vadd.f32 0.0, %v7466
  %v7468 = vpop.f32.mrf.mxu0
  %v7469 = vadd.f32 0.0, %v7468
  %7470 = vdwg.mxu0
  %7471 = vmatpush.bf16.msra.mxu0 %v7387
  %7472 = vmatpush.bf16.msra.mxu0 %v7383
  %7473 = vmatpush.bf16.msra.mxu0 %v7379
  %7474 = vmatpush.bf16.msra.mxu0 %v7375
  %7475 = vmatpush.bf16.msra.mxu0 %v7371
  %7476 = vmatpush.bf16.msra.mxu0 %v7367
  %7477 = vmatpush.bf16.msra.mxu0 %v7363
  %7478 = vmatpush.bf16.msra.mxu0 %v7359
  %7479 = vmatmul.bf16.gmra.mxu0 %v7246
  %v7480 = vpop.f32.mrf.mxu0
  %v7481 = vadd.f32 0.0, %v7480
  %v7482 = vpop.f32.mrf.mxu0
  %v7483 = vadd.f32 0.0, %v7482
  %7484 = vmatmul.bf16.gmra.mxu0 %v7247
  %v7485 = vpop.f32.mrf.mxu0
  %v7486 = vadd.f32 0.0, %v7485
  %v7487 = vpop.f32.mrf.mxu0
  %v7488 = vadd.f32 0.0, %v7487
  %7489 = vmatmul.bf16.gmra.mxu0 %v7248
  %v7490 = vpop.f32.mrf.mxu0
  %v7491 = vadd.f32 0.0, %v7490
  %v7492 = vpop.f32.mrf.mxu0
  %v7493 = vadd.f32 0.0, %v7492
  %7494 = vmatmul.bf16.gmra.mxu0 %v7249
  %v7495 = vpop.f32.mrf.mxu0
  %v7496 = vadd.f32 0.0, %v7495
  %v7497 = vpop.f32.mrf.mxu0
  %v7498 = vadd.f32 0.0, %v7497
  %7499 = vmatmul.bf16.gmra.mxu0 %v7250
  %v7500 = vpop.f32.mrf.mxu0
  %v7501 = vadd.f32 0.0, %v7500
  %v7502 = vpop.f32.mrf.mxu0
  %v7503 = vadd.f32 0.0, %v7502
  %7504 = vmatmul.bf16.gmra.mxu0 %v7251
  %v7505 = vpop.f32.mrf.mxu0
  %v7506 = vadd.f32 0.0, %v7505
  %v7507 = vpop.f32.mrf.mxu0
  %v7508 = vadd.f32 0.0, %v7507
  %7509 = vmatmul.bf16.gmra.mxu0 %v7252
  %v7510 = vpop.f32.mrf.mxu0
  %v7511 = vadd.f32 0.0, %v7510
  %v7512 = vpop.f32.mrf.mxu0
  %v7513 = vadd.f32 0.0, %v7512
  %7514 = vmatmul.bf16.gmra.mxu0 %v7253
  %v7515 = vpop.f32.mrf.mxu0
  %v7516 = vadd.f32 0.0, %v7515
  %v7517 = vpop.f32.mrf.mxu0
  %v7518 = vadd.f32 0.0, %v7517
  %7519 = vdwg.mxu0
  %7520 = vmatpush.bf16.msra.mxu0 %v7388
  %7521 = vmatpush.bf16.msra.mxu0 %v7384
  %7522 = vmatpush.bf16.msra.mxu0 %v7380
  %7523 = vmatpush.bf16.msra.mxu0 %v7376
  %7524 = vmatpush.bf16.msra.mxu0 %v7372
  %7525 = vmatpush.bf16.msra.mxu0 %v7368
  %7526 = vmatpush.bf16.msra.mxu0 %v7364
  %7527 = vmatpush.bf16.msra.mxu0 %v7360
  %7528 = vmatmul.bf16.gmra.mxu0 %v7246
  %v7529 = vpop.f32.mrf.mxu0
  %v7530 = vadd.f32 0.0, %v7529
  %v7531 = vpop.f32.mrf.mxu0
  %v7532 = vadd.f32 0.0, %v7531
  %7533 = vmatmul.bf16.gmra.mxu0 %v7247
  %v7534 = vpop.f32.mrf.mxu0
  %v7535 = vadd.f32 0.0, %v7534
  %v7536 = vpop.f32.mrf.mxu0
  %v7537 = vadd.f32 0.0, %v7536
  %7538 = vmatmul.bf16.gmra.mxu0 %v7248
  %v7539 = vpop.f32.mrf.mxu0
  %v7540 = vadd.f32 0.0, %v7539
  %v7541 = vpop.f32.mrf.mxu0
  %v7542 = vadd.f32 0.0, %v7541
  %7543 = vmatmul.bf16.gmra.mxu0 %v7249
  %v7544 = vpop.f32.mrf.mxu0
  %v7545 = vadd.f32 0.0, %v7544
  %v7546 = vpop.f32.mrf.mxu0
  %v7547 = vadd.f32 0.0, %v7546
  %7548 = vmatmul.bf16.gmra.mxu0 %v7250
  %v7549 = vpop.f32.mrf.mxu0
  %v7550 = vadd.f32 0.0, %v7549
  %v7551 = vpop.f32.mrf.mxu0
  %v7552 = vadd.f32 0.0, %v7551
  %7553 = vmatmul.bf16.gmra.mxu0 %v7251
  %v7554 = vpop.f32.mrf.mxu0
  %v7555 = vadd.f32 0.0, %v7554
  %v7556 = vpop.f32.mrf.mxu0
  %v7557 = vadd.f32 0.0, %v7556
  %7558 = vmatmul.bf16.gmra.mxu0 %v7252
  %v7559 = vpop.f32.mrf.mxu0
  %v7560 = vadd.f32 0.0, %v7559
  %v7561 = vpop.f32.mrf.mxu0
  %v7562 = vadd.f32 0.0, %v7561
  %7563 = vmatmul.bf16.gmra.mxu0 %v7253
  %v7564 = vpop.f32.mrf.mxu0
  %v7565 = vadd.f32 0.0, %v7564
  %v7566 = vpop.f32.mrf.mxu0
  %v7567 = vadd.f32 0.0, %v7566
  %7568 = vdwg.mxu0
  %7569 = vmatpush.bf16.msra.mxu0 %v7389
  %7570 = vmatpush.bf16.msra.mxu0 %v7385
  %7571 = vmatpush.bf16.msra.mxu0 %v7381
  %7572 = vmatpush.bf16.msra.mxu0 %v7377
  %7573 = vmatpush.bf16.msra.mxu0 %v7373
  %7574 = vmatpush.bf16.msra.mxu0 %v7369
  %7575 = vmatpush.bf16.msra.mxu0 %v7365
  %7576 = vmatpush.bf16.msra.mxu0 %v7361
  %7577 = vmatmul.bf16.gmra.mxu0 %v7246
  %v7578 = vpop.f32.mrf.mxu0
  %v7579 = vadd.f32 0.0, %v7578
  %v7580 = vpop.f32.mrf.mxu0
  %v7581 = vadd.f32 0.0, %v7580
  %7582 = vmatmul.bf16.gmra.mxu0 %v7247
  %v7583 = vpop.f32.mrf.mxu0
  %v7584 = vadd.f32 0.0, %v7583
  %v7585 = vpop.f32.mrf.mxu0
  %v7586 = vadd.f32 0.0, %v7585
  %7587 = vmatmul.bf16.gmra.mxu0 %v7248
  %v7588 = vpop.f32.mrf.mxu0
  %v7589 = vadd.f32 0.0, %v7588
  %v7590 = vpop.f32.mrf.mxu0
  %v7591 = vadd.f32 0.0, %v7590
  %7592 = vmatmul.bf16.gmra.mxu0 %v7249
  %v7593 = vpop.f32.mrf.mxu0
  %v7594 = vadd.f32 0.0, %v7593
  %v7595 = vpop.f32.mrf.mxu0
  %v7596 = vadd.f32 0.0, %v7595
  %7597 = vmatmul.bf16.gmra.mxu0 %v7250
  %v7598 = vpop.f32.mrf.mxu0
  %v7599 = vadd.f32 0.0, %v7598
  %v7600 = vpop.f32.mrf.mxu0
  %v7601 = vadd.f32 0.0, %v7600
  %7602 = vmatmul.bf16.gmra.mxu0 %v7251
  %v7603 = vpop.f32.mrf.mxu0
  %v7604 = vadd.f32 0.0, %v7603
  %v7605 = vpop.f32.mrf.mxu0
  %v7606 = vadd.f32 0.0, %v7605
  %7607 = vmatmul.bf16.gmra.mxu0 %v7252
  %v7608 = vpop.f32.mrf.mxu0
  %v7609 = vadd.f32 0.0, %v7608
  %v7610 = vpop.f32.mrf.mxu0
  %v7611 = vadd.f32 0.0, %v7610
  %7612 = vmatmul.bf16.gmra.mxu0 %v7253
  %v7613 = vpop.f32.mrf.mxu0
  %v7614 = vadd.f32 0.0, %v7613
  %v7615 = vpop.f32.mrf.mxu0
  %v7616 = vadd.f32 0.0, %v7615
  %7617 = vdwg.mxu0
  %v7618 = vadd.f32 %v7100, %v7432
  %v7619 = vadd.f32 %v7101, %v7481
  %v7620 = vadd.f32 %v7102, %v7530
  %v7621 = vadd.f32 %v7103, %v7579
  %v7622 = vadd.f32 %v7104, %v7434
  %v7623 = vadd.f32 %v7105, %v7483
  %v7624 = vadd.f32 %v7106, %v7532
  %v7625 = vadd.f32 %v7107, %v7581
  %v7626 = vadd.f32 %v7108, %v7437
  %v7627 = vadd.f32 %v7109, %v7486
  %v7628 = vadd.f32 %v7110, %v7535
  %v7629 = vadd.f32 %v7111, %v7584
  %v7630 = vadd.f32 %v7112, %v7439
  %v7631 = vadd.f32 %v7113, %v7488
  %v7632 = vadd.f32 %v7114, %v7537
  %v7633 = vadd.f32 %v7115, %v7586
  %v7634 = vadd.f32 %v7116, %v7442
  %v7635 = vadd.f32 %v7117, %v7491
  %v7636 = vadd.f32 %v7118, %v7540
  %v7637 = vadd.f32 %v7119, %v7589
  %v7638 = vadd.f32 %v7120, %v7444
  %v7639 = vadd.f32 %v7121, %v7493
  %v7640 = vadd.f32 %v7122, %v7542
  %v7641 = vadd.f32 %v7123, %v7591
  %v7642 = vadd.f32 %v7124, %v7447
  %v7643 = vadd.f32 %v7125, %v7496
  %v7644 = vadd.f32 %v7126, %v7545
  %v7645 = vadd.f32 %v7127, %v7594
  %v7646 = vadd.f32 %v7128, %v7449
  %v7647 = vadd.f32 %v7129, %v7498
  %v7648 = vadd.f32 %v7130, %v7547
  %v7649 = vadd.f32 %v7131, %v7596
  %v7650 = vadd.f32 %v7132, %v7452
  %v7651 = vadd.f32 %v7133, %v7501
  %v7652 = vadd.f32 %v7134, %v7550
  %v7653 = vadd.f32 %v7135, %v7599
  %v7654 = vadd.f32 %v7136, %v7454
  %v7655 = vadd.f32 %v7137, %v7503
  %v7656 = vadd.f32 %v7138, %v7552
  %v7657 = vadd.f32 %v7139, %v7601
  %v7658 = vadd.f32 %v7140, %v7457
  %v7659 = vadd.f32 %v7141, %v7506
  %v7660 = vadd.f32 %v7142, %v7555
  %v7661 = vadd.f32 %v7143, %v7604
  %v7662 = vadd.f32 %v7144, %v7459
  %v7663 = vadd.f32 %v7145, %v7508
  %v7664 = vadd.f32 %v7146, %v7557
  %v7665 = vadd.f32 %v7147, %v7606
  %v7666 = vadd.f32 %v7148, %v7462
  %v7667 = vadd.f32 %v7149, %v7511
  %v7668 = vadd.f32 %v7150, %v7560
  %v7669 = vadd.f32 %v7151, %v7609
  %v7670 = vadd.f32 %v7152, %v7464
  %v7671 = vadd.f32 %v7153, %v7513
  %v7672 = vadd.f32 %v7154, %v7562
  %v7673 = vadd.f32 %v7155, %v7611
  %v7674 = vadd.f32 %v7156, %v7467
  %v7675 = vadd.f32 %v7157, %v7516
  %v7676 = vadd.f32 %v7158, %v7565
  %v7677 = vadd.f32 %v7159, %v7614
  %v7678 = vadd.f32 %v7160, %v7469
  %v7679 = vadd.f32 %v7161, %v7518
  %v7680 = vadd.f32 %v7162, %v7567
  %v7681 = vadd.f32 %v7163, %v7616
  %v7682 = vld [vmem:[%s7164] sm:$0xf]
  %v7683 = vld [vmem:[%s7164 + $0x4] sm:$0x1]
  %v7684 = vld [vmem:[%s7164 + $0x8] sm:$0xf]
  %v7685 = vld [vmem:[%s7164 + $0xc] sm:$0x1]
  %v7686 = vld [vmem:[%s7164 + $0x10] sm:$0xf]
  %v7687 = vld [vmem:[%s7164 + $0x14] sm:$0x1]
  %v7688 = vld [vmem:[%s7164 + $0x18] sm:$0xf]
  %v7689 = vld [vmem:[%s7164 + $0x1c] sm:$0x1]
  %v7690 = vld [vmem:[%s7164 + $0x20] sm:$0xf]
  %v7691 = vld [vmem:[%s7164 + $0x24] sm:$0x1]
  %v7692 = vld [vmem:[%s7164 + $0x28] sm:$0xf]
  %v7693 = vld [vmem:[%s7164 + $0x2c] sm:$0x1]
  %v7694 = vld [vmem:[%s7164 + $0x30] sm:$0xf]
  %v7695 = vld [vmem:[%s7164 + $0x34] sm:$0x1]
  %v7696 = vld [vmem:[%s7164 + $0x38] sm:$0xf]
  %v7697 = vld [vmem:[%s7164 + $0x3c] sm:$0x1]
  %v7698 = vld [vmem:[%s7164 + $0x50] sm:$0xf]
  %v7699 = vld [vmem:[%s7164 + $0x54] sm:$0x1]
  %v7700 = vld [vmem:[%s7164 + $0x58] sm:$0xf]
  %v7701 = vld [vmem:[%s7164 + $0x5c] sm:$0x1]
  %v7702 = vld [vmem:[%s7164 + $0x60] sm:$0xf]
  %v7703 = vld [vmem:[%s7164 + $0x64] sm:$0x1]
  %v7704 = vld [vmem:[%s7164 + $0x68] sm:$0xf]
  %v7705 = vld [vmem:[%s7164 + $0x6c] sm:$0x1]
  %v7706 = vld [vmem:[%s7164 + $0x70] sm:$0xf]
  %v7707 = vld [vmem:[%s7164 + $0x74] sm:$0x1]
  %v7708 = vld [vmem:[%s7164 + $0x78] sm:$0xf]
  %v7709 = vld [vmem:[%s7164 + $0x7c] sm:$0x1]
  %v7710 = vld [vmem:[%s7164 + $0x80] sm:$0xf]
  %v7711 = vld [vmem:[%s7164 + $0x84] sm:$0x1]
  %v7712 = vld [vmem:[%s7164 + $0x88] sm:$0xf]
  %v7713 = vld [vmem:[%s7164 + $0x8c] sm:$0x1]
  %v7715 = vshrl.u32 %v7682, 16
  %v7717 = vrot.slane %v7715, 4
  %v7718 = vshll.u32 %v7682, 16
  %v7720 = vrot.slane %v7718, 5
  %v7721 = vor.u32 %v7717, %v7720
  %v7722 = vrot.slane %v7721, 4
  %v7724 = vshll.u32 %v7683, 16
  %v7726 = vrot.slane %v7724, 5
  %v7727 = vsel %vm724, %v7722, %v7726
  %v7729 = vshrl.u32 %v7684, 16
  %v7731 = vrot.slane %v7729, 4
  %v7732 = vshll.u32 %v7684, 16
  %v7734 = vrot.slane %v7732, 5
  %v7735 = vor.u32 %v7731, %v7734
  %v7736 = vrot.slane %v7735, 4
  %v7738 = vshll.u32 %v7685, 16
  %v7740 = vrot.slane %v7738, 5
  %v7741 = vsel %vm724, %v7736, %v7740
  %v7743 = vshrl.u32 %v7686, 16
  %v7745 = vrot.slane %v7743, 4
  %v7746 = vshll.u32 %v7686, 16
  %v7748 = vrot.slane %v7746, 5
  %v7749 = vor.u32 %v7745, %v7748
  %v7750 = vrot.slane %v7749, 4
  %v7752 = vshll.u32 %v7687, 16
  %v7754 = vrot.slane %v7752, 5
  %v7755 = vsel %vm724, %v7750, %v7754
  %v7757 = vshrl.u32 %v7688, 16
  %v7759 = vrot.slane %v7757, 4
  %v7760 = vshll.u32 %v7688, 16
  %v7762 = vrot.slane %v7760, 5
  %v7763 = vor.u32 %v7759, %v7762
  %v7764 = vrot.slane %v7763, 4
  %v7766 = vshll.u32 %v7689, 16
  %v7768 = vrot.slane %v7766, 5
  %v7769 = vsel %vm724, %v7764, %v7768
  %v7771 = vshrl.u32 %v7690, 16
  %v7773 = vrot.slane %v7771, 4
  %v7774 = vshll.u32 %v7690, 16
  %v7776 = vrot.slane %v7774, 5
  %v7777 = vor.u32 %v7773, %v7776
  %v7778 = vrot.slane %v7777, 4
  %v7780 = vshll.u32 %v7691, 16
  %v7782 = vrot.slane %v7780, 5
  %v7783 = vsel %vm724, %v7778, %v7782
  %v7785 = vshrl.u32 %v7692, 16
  %v7787 = vrot.slane %v7785, 4
  %v7788 = vshll.u32 %v7692, 16
  %v7790 = vrot.slane %v7788, 5
  %v7791 = vor.u32 %v7787, %v7790
  %v7792 = vrot.slane %v7791, 4
  %v7794 = vshll.u32 %v7693, 16
  %v7796 = vrot.slane %v7794, 5
  %v7797 = vsel %vm724, %v7792, %v7796
  %v7799 = vshrl.u32 %v7694, 16
  %v7801 = vrot.slane %v7799, 4
  %v7802 = vshll.u32 %v7694, 16
  %v7804 = vrot.slane %v7802, 5
  %v7805 = vor.u32 %v7801, %v7804
  %v7806 = vrot.slane %v7805, 4
  %v7808 = vshll.u32 %v7695, 16
  %v7810 = vrot.slane %v7808, 5
  %v7811 = vsel %vm724, %v7806, %v7810
  %v7813 = vshrl.u32 %v7696, 16
  %v7815 = vrot.slane %v7813, 4
  %v7816 = vshll.u32 %v7696, 16
  %v7818 = vrot.slane %v7816, 5
  %v7819 = vor.u32 %v7815, %v7818
  %v7820 = vrot.slane %v7819, 4
  %v7822 = vshll.u32 %v7697, 16
  %v7824 = vrot.slane %v7822, 5
  %v7825 = vsel %vm724, %v7820, %v7824
  %v7827 = vshrl.u32 %v7698, 16
  %v7829 = vrot.slane %v7827, 4
  %v7830 = vshll.u32 %v7698, 16
  %v7832 = vrot.slane %v7830, 5
  %v7833 = vor.u32 %v7829, %v7832
  %v7834 = vrot.slane %v7833, 4
  %v7836 = vshll.u32 %v7699, 16
  %v7838 = vrot.slane %v7836, 5
  %v7839 = vsel %vm724, %v7834, %v7838
  %v7841 = vshrl.u32 %v7700, 16
  %v7843 = vrot.slane %v7841, 4
  %v7844 = vshll.u32 %v7700, 16
  %v7846 = vrot.slane %v7844, 5
  %v7847 = vor.u32 %v7843, %v7846
  %v7848 = vrot.slane %v7847, 4
  %v7850 = vshll.u32 %v7701, 16
  %v7852 = vrot.slane %v7850, 5
  %v7853 = vsel %vm724, %v7848, %v7852
  %v7855 = vshrl.u32 %v7702, 16
  %v7857 = vrot.slane %v7855, 4
  %v7858 = vshll.u32 %v7702, 16
  %v7860 = vrot.slane %v7858, 5
  %v7861 = vor.u32 %v7857, %v7860
  %v7862 = vrot.slane %v7861, 4
  %v7864 = vshll.u32 %v7703, 16
  %v7866 = vrot.slane %v7864, 5
  %v7867 = vsel %vm724, %v7862, %v7866
  %v7869 = vshrl.u32 %v7704, 16
  %v7871 = vrot.slane %v7869, 4
  %v7872 = vshll.u32 %v7704, 16
  %v7874 = vrot.slane %v7872, 5
  %v7875 = vor.u32 %v7871, %v7874
  %v7876 = vrot.slane %v7875, 4
  %v7878 = vshll.u32 %v7705, 16
  %v7880 = vrot.slane %v7878, 5
  %v7881 = vsel %vm724, %v7876, %v7880
  %v7883 = vshrl.u32 %v7706, 16
  %v7885 = vrot.slane %v7883, 4
  %v7886 = vshll.u32 %v7706, 16
  %v7888 = vrot.slane %v7886, 5
  %v7889 = vor.u32 %v7885, %v7888
  %v7890 = vrot.slane %v7889, 4
  %v7892 = vshll.u32 %v7707, 16
  %v7894 = vrot.slane %v7892, 5
  %v7895 = vsel %vm724, %v7890, %v7894
  %v7897 = vshrl.u32 %v7708, 16
  %v7899 = vrot.slane %v7897, 4
  %v7900 = vshll.u32 %v7708, 16
  %v7902 = vrot.slane %v7900, 5
  %v7903 = vor.u32 %v7899, %v7902
  %v7904 = vrot.slane %v7903, 4
  %v7906 = vshll.u32 %v7709, 16
  %v7908 = vrot.slane %v7906, 5
  %v7909 = vsel %vm724, %v7904, %v7908
  %v7911 = vshrl.u32 %v7710, 16
  %v7913 = vrot.slane %v7911, 4
  %v7914 = vshll.u32 %v7710, 16
  %v7916 = vrot.slane %v7914, 5
  %v7917 = vor.u32 %v7913, %v7916
  %v7918 = vrot.slane %v7917, 4
  %v7920 = vshll.u32 %v7711, 16
  %v7922 = vrot.slane %v7920, 5
  %v7923 = vsel %vm724, %v7918, %v7922
  %v7925 = vshrl.u32 %v7712, 16
  %v7927 = vrot.slane %v7925, 4
  %v7928 = vshll.u32 %v7712, 16
  %v7930 = vrot.slane %v7928, 5
  %v7931 = vor.u32 %v7927, %v7930
  %v7932 = vrot.slane %v7931, 4
  %v7934 = vshll.u32 %v7713, 16
  %v7936 = vrot.slane %v7934, 5
  %v7937 = vsel %vm724, %v7932, %v7936
  %s7938 = scalar_lea.vmem %s4, 1792
  %v7939 = vld [vmem:[%s7938] sm:$0xff]
  %v7940 = vld [vmem:[%s7938 + $0x8] sm:$0xff]
  %v7941 = vld [vmem:[%s7938 + $0x10] sm:$0xff]
  %v7942 = vld [vmem:[%s7938 + $0x18] sm:$0xff]
  %v7943 = vld [vmem:[%s7938 + $0x20] sm:$0xff]
  %v7944 = vld [vmem:[%s7938 + $0x28] sm:$0xff]
  %v7945 = vld [vmem:[%s7938 + $0x30] sm:$0xff]
  %v7946 = vld [vmem:[%s7938 + $0x38] sm:$0xff]
  %v7947 = vld [vmem:[%s7938 + $0x40] sm:$0xff]
  %v7948 = vld [vmem:[%s7938 + $0x48] sm:$0xff]
  %v7949 = vld [vmem:[%s7938 + $0x50] sm:$0xff]
  %v7950 = vld [vmem:[%s7938 + $0x58] sm:$0xff]
  %v7951 = vld [vmem:[%s7938 + $0x60] sm:$0xff]
  %v7952 = vld [vmem:[%s7938 + $0x68] sm:$0xff]
  %v7953 = vld [vmem:[%s7938 + $0x70] sm:$0xff]
  %v7954 = vld [vmem:[%s7938 + $0x78] sm:$0xff]
  %v7955 = vld [vmem:[%s7938 + $0x80] sm:$0xff]
  %v7956 = vld [vmem:[%s7938 + $0x88] sm:$0xff]
  %v7957 = vld [vmem:[%s7938 + $0x90] sm:$0xff]
  %v7958 = vld [vmem:[%s7938 + $0x98] sm:$0xff]
  %v7959 = vld [vmem:[%s7938 + $0xa0] sm:$0xff]
  %v7960 = vld [vmem:[%s7938 + $0xa8] sm:$0xff]
  %v7961 = vld [vmem:[%s7938 + $0xb0] sm:$0xff]
  %v7962 = vld [vmem:[%s7938 + $0xb8] sm:$0xff]
  %v7963 = vld [vmem:[%s7938 + $0xc0] sm:$0xff]
  %v7964 = vld [vmem:[%s7938 + $0xc8] sm:$0xff]
  %v7965 = vld [vmem:[%s7938 + $0xd0] sm:$0xff]
  %v7966 = vld [vmem:[%s7938 + $0xd8] sm:$0xff]
  %v7967 = vld [vmem:[%s7938 + $0xe0] sm:$0xff]
  %v7968 = vld [vmem:[%s7938 + $0xe8] sm:$0xff]
  %v7969 = vld [vmem:[%s7938 + $0xf0] sm:$0xff]
  %v7970 = vld [vmem:[%s7938 + $0xf8] sm:$0xff]
  %v7971 = vunpack.c.l.b16 %v7727
  %v7972 = vunpack.c.l.b16 %v7741
  %v7973 = vunpack.c.l.b16 %v7755
  %v7974 = vunpack.c.l.b16 %v7769
  %v7975 = vunpack.c.l.b16 %v7783
  %v7976 = vunpack.c.l.b16 %v7797
  %v7977 = vunpack.c.l.b16 %v7811
  %v7978 = vunpack.c.l.b16 %v7825
  %v7979 = vunpack.c.l.b16 %v7839
  %v7980 = vunpack.c.l.b16 %v7853
  %v7981 = vunpack.c.l.b16 %v7867
  %v7982 = vunpack.c.l.b16 %v7881
  %v7983 = vunpack.c.l.b16 %v7895
  %v7984 = vunpack.c.l.b16 %v7909
  %v7985 = vunpack.c.l.b16 %v7923
  %v7986 = vunpack.c.l.b16 %v7937
  %v7987 = vpack.c.b16 %v7972, %v7971
  %v7988 = vpack.c.b16 %v7974, %v7973
  %v7989 = vpack.c.b16 %v7976, %v7975
  %v7990 = vpack.c.b16 %v7978, %v7977
  %v7991 = vpack.c.b16 %v7980, %v7979
  %v7992 = vpack.c.b16 %v7982, %v7981
  %v7993 = vpack.c.b16 %v7984, %v7983
  %v7994 = vpack.c.b16 %v7986, %v7985
  %v8035 = vunpack.c.l.b16 %v7939
  %v8036 = vunpack.c.h.b16 %v7939
  %v8037 = vunpack.c.l.b16 %v7940
  %v8038 = vunpack.c.h.b16 %v7940
  %v8039 = vunpack.c.l.b16 %v7941
  %v8040 = vunpack.c.h.b16 %v7941
  %v8041 = vunpack.c.l.b16 %v7942
  %v8042 = vunpack.c.h.b16 %v7942
  %v8043 = vunpack.c.l.b16 %v7943
  %v8044 = vunpack.c.h.b16 %v7943
  %v8045 = vunpack.c.l.b16 %v7944
  %v8046 = vunpack.c.h.b16 %v7944
  %v8047 = vunpack.c.l.b16 %v7945
  %v8048 = vunpack.c.h.b16 %v7945
  %v8049 = vunpack.c.l.b16 %v7946
  %v8050 = vunpack.c.h.b16 %v7946
  %v8051 = vunpack.c.l.b16 %v7947
  %v8052 = vunpack.c.h.b16 %v7947
  %v8053 = vunpack.c.l.b16 %v7948
  %v8054 = vunpack.c.h.b16 %v7948
  %v8055 = vunpack.c.l.b16 %v7949
  %v8056 = vunpack.c.h.b16 %v7949
  %v8057 = vunpack.c.l.b16 %v7950
  %v8058 = vunpack.c.h.b16 %v7950
  %v8059 = vunpack.c.l.b16 %v7951
  %v8060 = vunpack.c.h.b16 %v7951
  %v8061 = vunpack.c.l.b16 %v7952
  %v8062 = vunpack.c.h.b16 %v7952
  %v8063 = vunpack.c.l.b16 %v7953
  %v8064 = vunpack.c.h.b16 %v7953
  %v8065 = vunpack.c.l.b16 %v7954
  %v8066 = vunpack.c.h.b16 %v7954
  %v8067 = vunpack.c.l.b16 %v7955
  %v8068 = vunpack.c.h.b16 %v7955
  %v8069 = vunpack.c.l.b16 %v7956
  %v8070 = vunpack.c.h.b16 %v7956
  %v8071 = vunpack.c.l.b16 %v7957
  %v8072 = vunpack.c.h.b16 %v7957
  %v8073 = vunpack.c.l.b16 %v7958
  %v8074 = vunpack.c.h.b16 %v7958
  %v8075 = vunpack.c.l.b16 %v7959
  %v8076 = vunpack.c.h.b16 %v7959
  %v8077 = vunpack.c.l.b16 %v7960
  %v8078 = vunpack.c.h.b16 %v7960
  %v8079 = vunpack.c.l.b16 %v7961
  %v8080 = vunpack.c.h.b16 %v7961
  %v8081 = vunpack.c.l.b16 %v7962
  %v8082 = vunpack.c.h.b16 %v7962
  %v8083 = vunpack.c.l.b16 %v7963
  %v8084 = vunpack.c.h.b16 %v7963
  %v8085 = vunpack.c.l.b16 %v7964
  %v8086 = vunpack.c.h.b16 %v7964
  %v8087 = vunpack.c.l.b16 %v7965
  %v8088 = vunpack.c.h.b16 %v7965
  %v8089 = vunpack.c.l.b16 %v7966
  %v8090 = vunpack.c.h.b16 %v7966
  %v8091 = vunpack.c.l.b16 %v7967
  %v8092 = vunpack.c.h.b16 %v7967
  %v8093 = vunpack.c.l.b16 %v7968
  %v8094 = vunpack.c.h.b16 %v7968
  %v8095 = vunpack.c.l.b16 %v7969
  %v8096 = vunpack.c.h.b16 %v7969
  %v8097 = vunpack.c.l.b16 %v7970
  %v8098 = vunpack.c.h.b16 %v7970
  %v8099 = vpack.c.b16 %v8039, %v8035
  %v8100 = vpack.c.b16 %v8040, %v8036
  %v8101 = vpack.c.b16 %v8041, %v8037
  %v8102 = vpack.c.b16 %v8042, %v8038
  %v8103 = vpack.c.b16 %v8047, %v8043
  %v8104 = vpack.c.b16 %v8048, %v8044
  %v8105 = vpack.c.b16 %v8049, %v8045
  %v8106 = vpack.c.b16 %v8050, %v8046
  %v8107 = vpack.c.b16 %v8055, %v8051
  %v8108 = vpack.c.b16 %v8056, %v8052
  %v8109 = vpack.c.b16 %v8057, %v8053
  %v8110 = vpack.c.b16 %v8058, %v8054
  %v8111 = vpack.c.b16 %v8063, %v8059
  %v8112 = vpack.c.b16 %v8064, %v8060
  %v8113 = vpack.c.b16 %v8065, %v8061
  %v8114 = vpack.c.b16 %v8066, %v8062
  %v8115 = vpack.c.b16 %v8071, %v8067
  %v8116 = vpack.c.b16 %v8072, %v8068
  %v8117 = vpack.c.b16 %v8073, %v8069
  %v8118 = vpack.c.b16 %v8074, %v8070
  %v8119 = vpack.c.b16 %v8079, %v8075
  %v8120 = vpack.c.b16 %v8080, %v8076
  %v8121 = vpack.c.b16 %v8081, %v8077
  %v8122 = vpack.c.b16 %v8082, %v8078
  %v8123 = vpack.c.b16 %v8087, %v8083
  %v8124 = vpack.c.b16 %v8088, %v8084
  %v8125 = vpack.c.b16 %v8089, %v8085
  %v8126 = vpack.c.b16 %v8090, %v8086
  %v8127 = vpack.c.b16 %v8095, %v8091
  %v8128 = vpack.c.b16 %v8096, %v8092
  %v8129 = vpack.c.b16 %v8097, %v8093
  %v8130 = vpack.c.b16 %v8098, %v8094
  %8163 = vmatpush.bf16.msra.mxu0 %v8127
  %8164 = vmatpush.bf16.msra.mxu0 %v8123
  %8165 = vmatpush.bf16.msra.mxu0 %v8119
  %8166 = vmatpush.bf16.msra.mxu0 %v8115
  %8167 = vmatpush.bf16.msra.mxu0 %v8111
  %8168 = vmatpush.bf16.msra.mxu0 %v8107
  %8169 = vmatpush.bf16.msra.mxu0 %v8103
  %8170 = vmatpush.bf16.msra.mxu0 %v8099
  %8171 = vmatmul.bf16.gmra.mxu0 %v7987
  %v8172 = vpop.f32.mrf.mxu0
  %v8173 = vadd.f32 0.0, %v8172
  %v8174 = vpop.f32.mrf.mxu0
  %v8175 = vadd.f32 0.0, %v8174
  %8176 = vmatmul.bf16.gmra.mxu0 %v7988
  %v8177 = vpop.f32.mrf.mxu0
  %v8178 = vadd.f32 0.0, %v8177
  %v8179 = vpop.f32.mrf.mxu0
  %v8180 = vadd.f32 0.0, %v8179
  %8181 = vmatmul.bf16.gmra.mxu0 %v7989
  %v8182 = vpop.f32.mrf.mxu0
  %v8183 = vadd.f32 0.0, %v8182
  %v8184 = vpop.f32.mrf.mxu0
  %v8185 = vadd.f32 0.0, %v8184
  %8186 = vmatmul.bf16.gmra.mxu0 %v7990
  %v8187 = vpop.f32.mrf.mxu0
  %v8188 = vadd.f32 0.0, %v8187
  %v8189 = vpop.f32.mrf.mxu0
  %v8190 = vadd.f32 0.0, %v8189
  %8191 = vmatmul.bf16.gmra.mxu0 %v7991
  %v8192 = vpop.f32.mrf.mxu0
  %v8193 = vadd.f32 0.0, %v8192
  %v8194 = vpop.f32.mrf.mxu0
  %v8195 = vadd.f32 0.0, %v8194
  %8196 = vmatmul.bf16.gmra.mxu0 %v7992
  %v8197 = vpop.f32.mrf.mxu0
  %v8198 = vadd.f32 0.0, %v8197
  %v8199 = vpop.f32.mrf.mxu0
  %v8200 = vadd.f32 0.0, %v8199
  %8201 = vmatmul.bf16.gmra.mxu0 %v7993
  %v8202 = vpop.f32.mrf.mxu0
  %v8203 = vadd.f32 0.0, %v8202
  %v8204 = vpop.f32.mrf.mxu0
  %v8205 = vadd.f32 0.0, %v8204
  %8206 = vmatmul.bf16.gmra.mxu0 %v7994
  %v8207 = vpop.f32.mrf.mxu0
  %v8208 = vadd.f32 0.0, %v8207
  %v8209 = vpop.f32.mrf.mxu0
  %v8210 = vadd.f32 0.0, %v8209
  %8211 = vdwg.mxu0
  %8212 = vmatpush.bf16.msra.mxu0 %v8128
  %8213 = vmatpush.bf16.msra.mxu0 %v8124
  %8214 = vmatpush.bf16.msra.mxu0 %v8120
  %8215 = vmatpush.bf16.msra.mxu0 %v8116
  %8216 = vmatpush.bf16.msra.mxu0 %v8112
  %8217 = vmatpush.bf16.msra.mxu0 %v8108
  %8218 = vmatpush.bf16.msra.mxu0 %v8104
  %8219 = vmatpush.bf16.msra.mxu0 %v8100
  %8220 = vmatmul.bf16.gmra.mxu0 %v7987
  %v8221 = vpop.f32.mrf.mxu0
  %v8222 = vadd.f32 0.0, %v8221
  %v8223 = vpop.f32.mrf.mxu0
  %v8224 = vadd.f32 0.0, %v8223
  %8225 = vmatmul.bf16.gmra.mxu0 %v7988
  %v8226 = vpop.f32.mrf.mxu0
  %v8227 = vadd.f32 0.0, %v8226
  %v8228 = vpop.f32.mrf.mxu0
  %v8229 = vadd.f32 0.0, %v8228
  %8230 = vmatmul.bf16.gmra.mxu0 %v7989
  %v8231 = vpop.f32.mrf.mxu0
  %v8232 = vadd.f32 0.0, %v8231
  %v8233 = vpop.f32.mrf.mxu0
  %v8234 = vadd.f32 0.0, %v8233
  %8235 = vmatmul.bf16.gmra.mxu0 %v7990
  %v8236 = vpop.f32.mrf.mxu0
  %v8237 = vadd.f32 0.0, %v8236
  %v8238 = vpop.f32.mrf.mxu0
  %v8239 = vadd.f32 0.0, %v8238
  %8240 = vmatmul.bf16.gmra.mxu0 %v7991
  %v8241 = vpop.f32.mrf.mxu0
  %v8242 = vadd.f32 0.0, %v8241
  %v8243 = vpop.f32.mrf.mxu0
  %v8244 = vadd.f32 0.0, %v8243
  %8245 = vmatmul.bf16.gmra.mxu0 %v7992
  %v8246 = vpop.f32.mrf.mxu0
  %v8247 = vadd.f32 0.0, %v8246
  %v8248 = vpop.f32.mrf.mxu0
  %v8249 = vadd.f32 0.0, %v8248
  %8250 = vmatmul.bf16.gmra.mxu0 %v7993
  %v8251 = vpop.f32.mrf.mxu0
  %v8252 = vadd.f32 0.0, %v8251
  %v8253 = vpop.f32.mrf.mxu0
  %v8254 = vadd.f32 0.0, %v8253
  %8255 = vmatmul.bf16.gmra.mxu0 %v7994
  %v8256 = vpop.f32.mrf.mxu0
  %v8257 = vadd.f32 0.0, %v8256
  %v8258 = vpop.f32.mrf.mxu0
  %v8259 = vadd.f32 0.0, %v8258
  %8260 = vdwg.mxu0
  %8261 = vmatpush.bf16.msra.mxu0 %v8129
  %8262 = vmatpush.bf16.msra.mxu0 %v8125
  %8263 = vmatpush.bf16.msra.mxu0 %v8121
  %8264 = vmatpush.bf16.msra.mxu0 %v8117
  %8265 = vmatpush.bf16.msra.mxu0 %v8113
  %8266 = vmatpush.bf16.msra.mxu0 %v8109
  %8267 = vmatpush.bf16.msra.mxu0 %v8105
  %8268 = vmatpush.bf16.msra.mxu0 %v8101
  %8269 = vmatmul.bf16.gmra.mxu0 %v7987
  %v8270 = vpop.f32.mrf.mxu0
  %v8271 = vadd.f32 0.0, %v8270
  %v8272 = vpop.f32.mrf.mxu0
  %v8273 = vadd.f32 0.0, %v8272
  %8274 = vmatmul.bf16.gmra.mxu0 %v7988
  %v8275 = vpop.f32.mrf.mxu0
  %v8276 = vadd.f32 0.0, %v8275
  %v8277 = vpop.f32.mrf.mxu0
  %v8278 = vadd.f32 0.0, %v8277
  %8279 = vmatmul.bf16.gmra.mxu0 %v7989
  %v8280 = vpop.f32.mrf.mxu0
  %v8281 = vadd.f32 0.0, %v8280
  %v8282 = vpop.f32.mrf.mxu0
  %v8283 = vadd.f32 0.0, %v8282
  %8284 = vmatmul.bf16.gmra.mxu0 %v7990
  %v8285 = vpop.f32.mrf.mxu0
  %v8286 = vadd.f32 0.0, %v8285
  %v8287 = vpop.f32.mrf.mxu0
  %v8288 = vadd.f32 0.0, %v8287
  %8289 = vmatmul.bf16.gmra.mxu0 %v7991
  %v8290 = vpop.f32.mrf.mxu0
  %v8291 = vadd.f32 0.0, %v8290
  %v8292 = vpop.f32.mrf.mxu0
  %v8293 = vadd.f32 0.0, %v8292
  %8294 = vmatmul.bf16.gmra.mxu0 %v7992
  %v8295 = vpop.f32.mrf.mxu0
  %v8296 = vadd.f32 0.0, %v8295
  %v8297 = vpop.f32.mrf.mxu0
  %v8298 = vadd.f32 0.0, %v8297
  %8299 = vmatmul.bf16.gmra.mxu0 %v7993
  %v8300 = vpop.f32.mrf.mxu0
  %v8301 = vadd.f32 0.0, %v8300
  %v8302 = vpop.f32.mrf.mxu0
  %v8303 = vadd.f32 0.0, %v8302
  %8304 = vmatmul.bf16.gmra.mxu0 %v7994
  %v8305 = vpop.f32.mrf.mxu0
  %v8306 = vadd.f32 0.0, %v8305
  %v8307 = vpop.f32.mrf.mxu0
  %v8308 = vadd.f32 0.0, %v8307
  %8309 = vdwg.mxu0
  %8310 = vmatpush.bf16.msra.mxu0 %v8130
  %8311 = vmatpush.bf16.msra.mxu0 %v8126
  %8312 = vmatpush.bf16.msra.mxu0 %v8122
  %8313 = vmatpush.bf16.msra.mxu0 %v8118
  %8314 = vmatpush.bf16.msra.mxu0 %v8114
  %8315 = vmatpush.bf16.msra.mxu0 %v8110
  %8316 = vmatpush.bf16.msra.mxu0 %v8106
  %8317 = vmatpush.bf16.msra.mxu0 %v8102
  %8318 = vmatmul.bf16.gmra.mxu0 %v7987
  %v8319 = vpop.f32.mrf.mxu0
  %v8320 = vadd.f32 0.0, %v8319
  %v8321 = vpop.f32.mrf.mxu0
  %v8322 = vadd.f32 0.0, %v8321
  %8323 = vmatmul.bf16.gmra.mxu0 %v7988
  %v8324 = vpop.f32.mrf.mxu0
  %v8325 = vadd.f32 0.0, %v8324
  %v8326 = vpop.f32.mrf.mxu0
  %v8327 = vadd.f32 0.0, %v8326
  %8328 = vmatmul.bf16.gmra.mxu0 %v7989
  %v8329 = vpop.f32.mrf.mxu0
  %v8330 = vadd.f32 0.0, %v8329
  %v8331 = vpop.f32.mrf.mxu0
  %v8332 = vadd.f32 0.0, %v8331
  %8333 = vmatmul.bf16.gmra.mxu0 %v7990
  %v8334 = vpop.f32.mrf.mxu0
  %v8335 = vadd.f32 0.0, %v8334
  %v8336 = vpop.f32.mrf.mxu0
  %v8337 = vadd.f32 0.0, %v8336
  %8338 = vmatmul.bf16.gmra.mxu0 %v7991
  %v8339 = vpop.f32.mrf.mxu0
  %v8340 = vadd.f32 0.0, %v8339
  %v8341 = vpop.f32.mrf.mxu0
  %v8342 = vadd.f32 0.0, %v8341
  %8343 = vmatmul.bf16.gmra.mxu0 %v7992
  %v8344 = vpop.f32.mrf.mxu0
  %v8345 = vadd.f32 0.0, %v8344
  %v8346 = vpop.f32.mrf.mxu0
  %v8347 = vadd.f32 0.0, %v8346
  %8348 = vmatmul.bf16.gmra.mxu0 %v7993
  %v8349 = vpop.f32.mrf.mxu0
  %v8350 = vadd.f32 0.0, %v8349
  %v8351 = vpop.f32.mrf.mxu0
  %v8352 = vadd.f32 0.0, %v8351
  %8353 = vmatmul.bf16.gmra.mxu0 %v7994
  %v8354 = vpop.f32.mrf.mxu0
  %v8355 = vadd.f32 0.0, %v8354
  %v8356 = vpop.f32.mrf.mxu0
  %v8357 = vadd.f32 0.0, %v8356
  %8358 = vdwg.mxu0
  %v8359 = vadd.f32 %v7618, %v8173
  %v8360 = vadd.f32 %v7619, %v8222
  %v8361 = vadd.f32 %v7620, %v8271
  %v8362 = vadd.f32 %v7621, %v8320
  %v8363 = vadd.f32 %v7622, %v8175
  %v8364 = vadd.f32 %v7623, %v8224
  %v8365 = vadd.f32 %v7624, %v8273
  %v8366 = vadd.f32 %v7625, %v8322
  %v8367 = vadd.f32 %v7626, %v8178
  %v8368 = vadd.f32 %v7627, %v8227
  %v8369 = vadd.f32 %v7628, %v8276
  %v8370 = vadd.f32 %v7629, %v8325
  %v8371 = vadd.f32 %v7630, %v8180
  %v8372 = vadd.f32 %v7631, %v8229
  %v8373 = vadd.f32 %v7632, %v8278
  %v8374 = vadd.f32 %v7633, %v8327
  %v8375 = vadd.f32 %v7634, %v8183
  %v8376 = vadd.f32 %v7635, %v8232
  %v8377 = vadd.f32 %v7636, %v8281
  %v8378 = vadd.f32 %v7637, %v8330
  %v8379 = vadd.f32 %v7638, %v8185
  %v8380 = vadd.f32 %v7639, %v8234
  %v8381 = vadd.f32 %v7640, %v8283
  %v8382 = vadd.f32 %v7641, %v8332
  %v8383 = vadd.f32 %v7642, %v8188
  %v8384 = vadd.f32 %v7643, %v8237
  %v8385 = vadd.f32 %v7644, %v8286
  %v8386 = vadd.f32 %v7645, %v8335
  %v8387 = vadd.f32 %v7646, %v8190
  %v8388 = vadd.f32 %v7647, %v8239
  %v8389 = vadd.f32 %v7648, %v8288
  %v8390 = vadd.f32 %v7649, %v8337
  %v8391 = vadd.f32 %v7650, %v8193
  %v8392 = vadd.f32 %v7651, %v8242
  %v8393 = vadd.f32 %v7652, %v8291
  %v8394 = vadd.f32 %v7653, %v8340
  %v8395 = vadd.f32 %v7654, %v8195
  %v8396 = vadd.f32 %v7655, %v8244
  %v8397 = vadd.f32 %v7656, %v8293
  %v8398 = vadd.f32 %v7657, %v8342
  %v8399 = vadd.f32 %v7658, %v8198
  %v8400 = vadd.f32 %v7659, %v8247
  %v8401 = vadd.f32 %v7660, %v8296
  %v8402 = vadd.f32 %v7661, %v8345
  %v8403 = vadd.f32 %v7662, %v8200
  %v8404 = vadd.f32 %v7663, %v8249
  %v8405 = vadd.f32 %v7664, %v8298
  %v8406 = vadd.f32 %v7665, %v8347
  %v8407 = vadd.f32 %v7666, %v8203
  %v8408 = vadd.f32 %v7667, %v8252
  %v8409 = vadd.f32 %v7668, %v8301
  %v8410 = vadd.f32 %v7669, %v8350
  %v8411 = vadd.f32 %v7670, %v8205
  %v8412 = vadd.f32 %v7671, %v8254
  %v8413 = vadd.f32 %v7672, %v8303
  %v8414 = vadd.f32 %v7673, %v8352
  %v8415 = vadd.f32 %v7674, %v8208
  %v8416 = vadd.f32 %v7675, %v8257
  %v8417 = vadd.f32 %v7676, %v8306
  %v8418 = vadd.f32 %v7677, %v8355
  %v8419 = vadd.f32 %v7678, %v8210
  %v8420 = vadd.f32 %v7679, %v8259
  %v8421 = vadd.f32 %v7680, %v8308
  %v8422 = vadd.f32 %v7681, %v8357
  %v8423 = vld [vmem:[%s7164] sm:$0xe]
  %v8424 = vld [vmem:[%s7164 + $0x8] sm:$0xe]
  %v8425 = vld [vmem:[%s7164 + $0x10] sm:$0xe]
  %v8426 = vld [vmem:[%s7164 + $0x18] sm:$0xe]
  %v8427 = vld [vmem:[%s7164 + $0x20] sm:$0xe]
  %v8428 = vld [vmem:[%s7164 + $0x28] sm:$0xe]
  %v8429 = vld [vmem:[%s7164 + $0x30] sm:$0xe]
  %v8430 = vld [vmem:[%s7164 + $0x38] sm:$0xe]
  %v8431 = vld [vmem:[%s7164 + $0x50] sm:$0xe]
  %v8432 = vld [vmem:[%s7164 + $0x58] sm:$0xe]
  %v8433 = vld [vmem:[%s7164 + $0x60] sm:$0xe]
  %v8434 = vld [vmem:[%s7164 + $0x68] sm:$0xe]
  %v8435 = vld [vmem:[%s7164 + $0x70] sm:$0xe]
  %v8436 = vld [vmem:[%s7164 + $0x78] sm:$0xe]
  %v8437 = vld [vmem:[%s7164 + $0x80] sm:$0xe]
  %v8438 = vld [vmem:[%s7164 + $0x88] sm:$0xe]
  %v8471 = vrot.slane %v8423, 5
  %v8472 = vrot.slane %v8471, 4
  %v8473 = vrot.slane %v7683, 5
  %v8474 = vsel %vm1290, %v8472, %v8473
  %v8475 = vrot.slane %v8424, 5
  %v8476 = vrot.slane %v8475, 4
  %v8477 = vrot.slane %v7685, 5
  %v8478 = vsel %vm1290, %v8476, %v8477
  %v8479 = vrot.slane %v8425, 5
  %v8480 = vrot.slane %v8479, 4
  %v8481 = vrot.slane %v7687, 5
  %v8482 = vsel %vm1290, %v8480, %v8481
  %v8483 = vrot.slane %v8426, 5
  %v8484 = vrot.slane %v8483, 4
  %v8485 = vrot.slane %v7689, 5
  %v8486 = vsel %vm1290, %v8484, %v8485
  %v8487 = vrot.slane %v8427, 5
  %v8488 = vrot.slane %v8487, 4
  %v8489 = vrot.slane %v7691, 5
  %v8490 = vsel %vm1290, %v8488, %v8489
  %v8491 = vrot.slane %v8428, 5
  %v8492 = vrot.slane %v8491, 4
  %v8493 = vrot.slane %v7693, 5
  %v8494 = vsel %vm1290, %v8492, %v8493
  %v8495 = vrot.slane %v8429, 5
  %v8496 = vrot.slane %v8495, 4
  %v8497 = vrot.slane %v7695, 5
  %v8498 = vsel %vm1290, %v8496, %v8497
  %v8499 = vrot.slane %v8430, 5
  %v8500 = vrot.slane %v8499, 4
  %v8501 = vrot.slane %v7697, 5
  %v8502 = vsel %vm1290, %v8500, %v8501
  %v8503 = vrot.slane %v8431, 5
  %v8504 = vrot.slane %v8503, 4
  %v8505 = vrot.slane %v7699, 5
  %v8506 = vsel %vm1290, %v8504, %v8505
  %v8507 = vrot.slane %v8432, 5
  %v8508 = vrot.slane %v8507, 4
  %v8509 = vrot.slane %v7701, 5
  %v8510 = vsel %vm1290, %v8508, %v8509
  %v8511 = vrot.slane %v8433, 5
  %v8512 = vrot.slane %v8511, 4
  %v8513 = vrot.slane %v7703, 5
  %v8514 = vsel %vm1290, %v8512, %v8513
  %v8515 = vrot.slane %v8434, 5
  %v8516 = vrot.slane %v8515, 4
  %v8517 = vrot.slane %v7705, 5
  %v8518 = vsel %vm1290, %v8516, %v8517
  %v8519 = vrot.slane %v8435, 5
  %v8520 = vrot.slane %v8519, 4
  %v8521 = vrot.slane %v7707, 5
  %v8522 = vsel %vm1290, %v8520, %v8521
  %v8523 = vrot.slane %v8436, 5
  %v8524 = vrot.slane %v8523, 4
  %v8525 = vrot.slane %v7709, 5
  %v8526 = vsel %vm1290, %v8524, %v8525
  %v8527 = vrot.slane %v8437, 5
  %v8528 = vrot.slane %v8527, 4
  %v8529 = vrot.slane %v7711, 5
  %v8530 = vsel %vm1290, %v8528, %v8529
  %v8531 = vrot.slane %v8438, 5
  %v8532 = vrot.slane %v8531, 4
  %v8533 = vrot.slane %v7713, 5
  %v8534 = vsel %vm1290, %v8532, %v8533
  %s8535 = scalar_lea.vmem %s4, 2048
  %v8536 = vld [vmem:[%s8535] sm:$0xff]
  %v8537 = vld [vmem:[%s8535 + $0x8] sm:$0xff]
  %v8538 = vld [vmem:[%s8535 + $0x10] sm:$0xff]
  %v8539 = vld [vmem:[%s8535 + $0x18] sm:$0xff]
  %v8540 = vld [vmem:[%s8535 + $0x20] sm:$0xff]
  %v8541 = vld [vmem:[%s8535 + $0x28] sm:$0xff]
  %v8542 = vld [vmem:[%s8535 + $0x30] sm:$0xff]
  %v8543 = vld [vmem:[%s8535 + $0x38] sm:$0xff]
  %v8544 = vld [vmem:[%s8535 + $0x40] sm:$0xff]
  %v8545 = vld [vmem:[%s8535 + $0x48] sm:$0xff]
  %v8546 = vld [vmem:[%s8535 + $0x50] sm:$0xff]
  %v8547 = vld [vmem:[%s8535 + $0x58] sm:$0xff]
  %v8548 = vld [vmem:[%s8535 + $0x60] sm:$0xff]
  %v8549 = vld [vmem:[%s8535 + $0x68] sm:$0xff]
  %v8550 = vld [vmem:[%s8535 + $0x70] sm:$0xff]
  %v8551 = vld [vmem:[%s8535 + $0x78] sm:$0xff]
  %v8552 = vld [vmem:[%s8535 + $0x80] sm:$0xff]
  %v8553 = vld [vmem:[%s8535 + $0x88] sm:$0xff]
  %v8554 = vld [vmem:[%s8535 + $0x90] sm:$0xff]
  %v8555 = vld [vmem:[%s8535 + $0x98] sm:$0xff]
  %v8556 = vld [vmem:[%s8535 + $0xa0] sm:$0xff]
  %v8557 = vld [vmem:[%s8535 + $0xa8] sm:$0xff]
  %v8558 = vld [vmem:[%s8535 + $0xb0] sm:$0xff]
  %v8559 = vld [vmem:[%s8535 + $0xb8] sm:$0xff]
  %v8560 = vld [vmem:[%s8535 + $0xc0] sm:$0xff]
  %v8561 = vld [vmem:[%s8535 + $0xc8] sm:$0xff]
  %v8562 = vld [vmem:[%s8535 + $0xd0] sm:$0xff]
  %v8563 = vld [vmem:[%s8535 + $0xd8] sm:$0xff]
  %v8564 = vld [vmem:[%s8535 + $0xe0] sm:$0xff]
  %v8565 = vld [vmem:[%s8535 + $0xe8] sm:$0xff]
  %v8566 = vld [vmem:[%s8535 + $0xf0] sm:$0xff]
  %v8567 = vld [vmem:[%s8535 + $0xf8] sm:$0xff]
  %v8568 = vunpack.c.l.b16 %v8474
  %v8569 = vunpack.c.l.b16 %v8478
  %v8570 = vunpack.c.l.b16 %v8482
  %v8571 = vunpack.c.l.b16 %v8486
  %v8572 = vunpack.c.l.b16 %v8490
  %v8573 = vunpack.c.l.b16 %v8494
  %v8574 = vunpack.c.l.b16 %v8498
  %v8575 = vunpack.c.l.b16 %v8502
  %v8576 = vunpack.c.l.b16 %v8506
  %v8577 = vunpack.c.l.b16 %v8510
  %v8578 = vunpack.c.l.b16 %v8514
  %v8579 = vunpack.c.l.b16 %v8518
  %v8580 = vunpack.c.l.b16 %v8522
  %v8581 = vunpack.c.l.b16 %v8526
  %v8582 = vunpack.c.l.b16 %v8530
  %v8583 = vunpack.c.l.b16 %v8534
  %v8584 = vpack.c.b16 %v8569, %v8568
  %v8585 = vpack.c.b16 %v8571, %v8570
  %v8586 = vpack.c.b16 %v8573, %v8572
  %v8587 = vpack.c.b16 %v8575, %v8574
  %v8588 = vpack.c.b16 %v8577, %v8576
  %v8589 = vpack.c.b16 %v8579, %v8578
  %v8590 = vpack.c.b16 %v8581, %v8580
  %v8591 = vpack.c.b16 %v8583, %v8582
  %v8632 = vunpack.c.l.b16 %v8536
  %v8633 = vunpack.c.h.b16 %v8536
  %v8634 = vunpack.c.l.b16 %v8537
  %v8635 = vunpack.c.h.b16 %v8537
  %v8636 = vunpack.c.l.b16 %v8538
  %v8637 = vunpack.c.h.b16 %v8538
  %v8638 = vunpack.c.l.b16 %v8539
  %v8639 = vunpack.c.h.b16 %v8539
  %v8640 = vunpack.c.l.b16 %v8540
  %v8641 = vunpack.c.h.b16 %v8540
  %v8642 = vunpack.c.l.b16 %v8541
  %v8643 = vunpack.c.h.b16 %v8541
  %v8644 = vunpack.c.l.b16 %v8542
  %v8645 = vunpack.c.h.b16 %v8542
  %v8646 = vunpack.c.l.b16 %v8543
  %v8647 = vunpack.c.h.b16 %v8543
  %v8648 = vunpack.c.l.b16 %v8544
  %v8649 = vunpack.c.h.b16 %v8544
  %v8650 = vunpack.c.l.b16 %v8545
  %v8651 = vunpack.c.h.b16 %v8545
  %v8652 = vunpack.c.l.b16 %v8546
  %v8653 = vunpack.c.h.b16 %v8546
  %v8654 = vunpack.c.l.b16 %v8547
  %v8655 = vunpack.c.h.b16 %v8547
  %v8656 = vunpack.c.l.b16 %v8548
  %v8657 = vunpack.c.h.b16 %v8548
  %v8658 = vunpack.c.l.b16 %v8549
  %v8659 = vunpack.c.h.b16 %v8549
  %v8660 = vunpack.c.l.b16 %v8550
  %v8661 = vunpack.c.h.b16 %v8550
  %v8662 = vunpack.c.l.b16 %v8551
  %v8663 = vunpack.c.h.b16 %v8551
  %v8664 = vunpack.c.l.b16 %v8552
  %v8665 = vunpack.c.h.b16 %v8552
  %v8666 = vunpack.c.l.b16 %v8553
  %v8667 = vunpack.c.h.b16 %v8553
  %v8668 = vunpack.c.l.b16 %v8554
  %v8669 = vunpack.c.h.b16 %v8554
  %v8670 = vunpack.c.l.b16 %v8555
  %v8671 = vunpack.c.h.b16 %v8555
  %v8672 = vunpack.c.l.b16 %v8556
  %v8673 = vunpack.c.h.b16 %v8556
  %v8674 = vunpack.c.l.b16 %v8557
  %v8675 = vunpack.c.h.b16 %v8557
  %v8676 = vunpack.c.l.b16 %v8558
  %v8677 = vunpack.c.h.b16 %v8558
  %v8678 = vunpack.c.l.b16 %v8559
  %v8679 = vunpack.c.h.b16 %v8559
  %v8680 = vunpack.c.l.b16 %v8560
  %v8681 = vunpack.c.h.b16 %v8560
  %v8682 = vunpack.c.l.b16 %v8561
  %v8683 = vunpack.c.h.b16 %v8561
  %v8684 = vunpack.c.l.b16 %v8562
  %v8685 = vunpack.c.h.b16 %v8562
  %v8686 = vunpack.c.l.b16 %v8563
  %v8687 = vunpack.c.h.b16 %v8563
  %v8688 = vunpack.c.l.b16 %v8564
  %v8689 = vunpack.c.h.b16 %v8564
  %v8690 = vunpack.c.l.b16 %v8565
  %v8691 = vunpack.c.h.b16 %v8565
  %v8692 = vunpack.c.l.b16 %v8566
  %v8693 = vunpack.c.h.b16 %v8566
  %v8694 = vunpack.c.l.b16 %v8567
  %v8695 = vunpack.c.h.b16 %v8567
  %v8696 = vpack.c.b16 %v8636, %v8632
  %v8697 = vpack.c.b16 %v8637, %v8633
  %v8698 = vpack.c.b16 %v8638, %v8634
  %v8699 = vpack.c.b16 %v8639, %v8635
  %v8700 = vpack.c.b16 %v8644, %v8640
  %v8701 = vpack.c.b16 %v8645, %v8641
  %v8702 = vpack.c.b16 %v8646, %v8642
  %v8703 = vpack.c.b16 %v8647, %v8643
  %v8704 = vpack.c.b16 %v8652, %v8648
  %v8705 = vpack.c.b16 %v8653, %v8649
  %v8706 = vpack.c.b16 %v8654, %v8650
  %v8707 = vpack.c.b16 %v8655, %v8651
  %v8708 = vpack.c.b16 %v8660, %v8656
  %v8709 = vpack.c.b16 %v8661, %v8657
  %v8710 = vpack.c.b16 %v8662, %v8658
  %v8711 = vpack.c.b16 %v8663, %v8659
  %v8712 = vpack.c.b16 %v8668, %v8664
  %v8713 = vpack.c.b16 %v8669, %v8665
  %v8714 = vpack.c.b16 %v8670, %v8666
  %v8715 = vpack.c.b16 %v8671, %v8667
  %v8716 = vpack.c.b16 %v8676, %v8672
  %v8717 = vpack.c.b16 %v8677, %v8673
  %v8718 = vpack.c.b16 %v8678, %v8674
  %v8719 = vpack.c.b16 %v8679, %v8675
  %v8720 = vpack.c.b16 %v8684, %v8680
  %v8721 = vpack.c.b16 %v8685, %v8681
  %v8722 = vpack.c.b16 %v8686, %v8682
  %v8723 = vpack.c.b16 %v8687, %v8683
  %v8724 = vpack.c.b16 %v8692, %v8688
  %v8725 = vpack.c.b16 %v8693, %v8689
  %v8726 = vpack.c.b16 %v8694, %v8690
  %v8727 = vpack.c.b16 %v8695, %v8691
  %8760 = vmatpush.bf16.msra.mxu0 %v8724
  %8761 = vmatpush.bf16.msra.mxu0 %v8720
  %8762 = vmatpush.bf16.msra.mxu0 %v8716
  %8763 = vmatpush.bf16.msra.mxu0 %v8712
  %8764 = vmatpush.bf16.msra.mxu0 %v8708
  %8765 = vmatpush.bf16.msra.mxu0 %v8704
  %8766 = vmatpush.bf16.msra.mxu0 %v8700
  %8767 = vmatpush.bf16.msra.mxu0 %v8696
  %8768 = vmatmul.bf16.gmra.mxu0 %v8584
  %v8769 = vpop.f32.mrf.mxu0
  %v8770 = vadd.f32 0.0, %v8769
  %v8771 = vpop.f32.mrf.mxu0
  %v8772 = vadd.f32 0.0, %v8771
  %8773 = vmatmul.bf16.gmra.mxu0 %v8585
  %v8774 = vpop.f32.mrf.mxu0
  %v8775 = vadd.f32 0.0, %v8774
  %v8776 = vpop.f32.mrf.mxu0
  %v8777 = vadd.f32 0.0, %v8776
  %8778 = vmatmul.bf16.gmra.mxu0 %v8586
  %v8779 = vpop.f32.mrf.mxu0
  %v8780 = vadd.f32 0.0, %v8779
  %v8781 = vpop.f32.mrf.mxu0
  %v8782 = vadd.f32 0.0, %v8781
  %8783 = vmatmul.bf16.gmra.mxu0 %v8587
  %v8784 = vpop.f32.mrf.mxu0
  %v8785 = vadd.f32 0.0, %v8784
  %v8786 = vpop.f32.mrf.mxu0
  %v8787 = vadd.f32 0.0, %v8786
  %8788 = vmatmul.bf16.gmra.mxu0 %v8588
  %v8789 = vpop.f32.mrf.mxu0
  %v8790 = vadd.f32 0.0, %v8789
  %v8791 = vpop.f32.mrf.mxu0
  %v8792 = vadd.f32 0.0, %v8791
  %8793 = vmatmul.bf16.gmra.mxu0 %v8589
  %v8794 = vpop.f32.mrf.mxu0
  %v8795 = vadd.f32 0.0, %v8794
  %v8796 = vpop.f32.mrf.mxu0
  %v8797 = vadd.f32 0.0, %v8796
  %8798 = vmatmul.bf16.gmra.mxu0 %v8590
  %v8799 = vpop.f32.mrf.mxu0
  %v8800 = vadd.f32 0.0, %v8799
  %v8801 = vpop.f32.mrf.mxu0
  %v8802 = vadd.f32 0.0, %v8801
  %8803 = vmatmul.bf16.gmra.mxu0 %v8591
  %v8804 = vpop.f32.mrf.mxu0
  %v8805 = vadd.f32 0.0, %v8804
  %v8806 = vpop.f32.mrf.mxu0
  %v8807 = vadd.f32 0.0, %v8806
  %8808 = vdwg.mxu0
  %8809 = vmatpush.bf16.msra.mxu0 %v8725
  %8810 = vmatpush.bf16.msra.mxu0 %v8721
  %8811 = vmatpush.bf16.msra.mxu0 %v8717
  %8812 = vmatpush.bf16.msra.mxu0 %v8713
  %8813 = vmatpush.bf16.msra.mxu0 %v8709
  %8814 = vmatpush.bf16.msra.mxu0 %v8705
  %8815 = vmatpush.bf16.msra.mxu0 %v8701
  %8816 = vmatpush.bf16.msra.mxu0 %v8697
  %8817 = vmatmul.bf16.gmra.mxu0 %v8584
  %v8818 = vpop.f32.mrf.mxu0
  %v8819 = vadd.f32 0.0, %v8818
  %v8820 = vpop.f32.mrf.mxu0
  %v8821 = vadd.f32 0.0, %v8820
  %8822 = vmatmul.bf16.gmra.mxu0 %v8585
  %v8823 = vpop.f32.mrf.mxu0
  %v8824 = vadd.f32 0.0, %v8823
  %v8825 = vpop.f32.mrf.mxu0
  %v8826 = vadd.f32 0.0, %v8825
  %8827 = vmatmul.bf16.gmra.mxu0 %v8586
  %v8828 = vpop.f32.mrf.mxu0
  %v8829 = vadd.f32 0.0, %v8828
  %v8830 = vpop.f32.mrf.mxu0
  %v8831 = vadd.f32 0.0, %v8830
  %8832 = vmatmul.bf16.gmra.mxu0 %v8587
  %v8833 = vpop.f32.mrf.mxu0
  %v8834 = vadd.f32 0.0, %v8833
  %v8835 = vpop.f32.mrf.mxu0
  %v8836 = vadd.f32 0.0, %v8835
  %8837 = vmatmul.bf16.gmra.mxu0 %v8588
  %v8838 = vpop.f32.mrf.mxu0
  %v8839 = vadd.f32 0.0, %v8838
  %v8840 = vpop.f32.mrf.mxu0
  %v8841 = vadd.f32 0.0, %v8840
  %8842 = vmatmul.bf16.gmra.mxu0 %v8589
  %v8843 = vpop.f32.mrf.mxu0
  %v8844 = vadd.f32 0.0, %v8843
  %v8845 = vpop.f32.mrf.mxu0
  %v8846 = vadd.f32 0.0, %v8845
  %8847 = vmatmul.bf16.gmra.mxu0 %v8590
  %v8848 = vpop.f32.mrf.mxu0
  %v8849 = vadd.f32 0.0, %v8848
  %v8850 = vpop.f32.mrf.mxu0
  %v8851 = vadd.f32 0.0, %v8850
  %8852 = vmatmul.bf16.gmra.mxu0 %v8591
  %v8853 = vpop.f32.mrf.mxu0
  %v8854 = vadd.f32 0.0, %v8853
  %v8855 = vpop.f32.mrf.mxu0
  %v8856 = vadd.f32 0.0, %v8855
  %8857 = vdwg.mxu0
  %8858 = vmatpush.bf16.msra.mxu0 %v8726
  %8859 = vmatpush.bf16.msra.mxu0 %v8722
  %8860 = vmatpush.bf16.msra.mxu0 %v8718
  %8861 = vmatpush.bf16.msra.mxu0 %v8714
  %8862 = vmatpush.bf16.msra.mxu0 %v8710
  %8863 = vmatpush.bf16.msra.mxu0 %v8706
  %8864 = vmatpush.bf16.msra.mxu0 %v8702
  %8865 = vmatpush.bf16.msra.mxu0 %v8698
  %8866 = vmatmul.bf16.gmra.mxu0 %v8584
  %v8867 = vpop.f32.mrf.mxu0
  %v8868 = vadd.f32 0.0, %v8867
  %v8869 = vpop.f32.mrf.mxu0
  %v8870 = vadd.f32 0.0, %v8869
  %8871 = vmatmul.bf16.gmra.mxu0 %v8585
  %v8872 = vpop.f32.mrf.mxu0
  %v8873 = vadd.f32 0.0, %v8872
  %v8874 = vpop.f32.mrf.mxu0
  %v8875 = vadd.f32 0.0, %v8874
  %8876 = vmatmul.bf16.gmra.mxu0 %v8586
  %v8877 = vpop.f32.mrf.mxu0
  %v8878 = vadd.f32 0.0, %v8877
  %v8879 = vpop.f32.mrf.mxu0
  %v8880 = vadd.f32 0.0, %v8879
  %8881 = vmatmul.bf16.gmra.mxu0 %v8587
  %v8882 = vpop.f32.mrf.mxu0
  %v8883 = vadd.f32 0.0, %v8882
  %v8884 = vpop.f32.mrf.mxu0
  %v8885 = vadd.f32 0.0, %v8884
  %8886 = vmatmul.bf16.gmra.mxu0 %v8588
  %v8887 = vpop.f32.mrf.mxu0
  %v8888 = vadd.f32 0.0, %v8887
  %v8889 = vpop.f32.mrf.mxu0
  %v8890 = vadd.f32 0.0, %v8889
  %8891 = vmatmul.bf16.gmra.mxu0 %v8589
  %v8892 = vpop.f32.mrf.mxu0
  %v8893 = vadd.f32 0.0, %v8892
  %v8894 = vpop.f32.mrf.mxu0
  %v8895 = vadd.f32 0.0, %v8894
  %8896 = vmatmul.bf16.gmra.mxu0 %v8590
  %v8897 = vpop.f32.mrf.mxu0
  %v8898 = vadd.f32 0.0, %v8897
  %v8899 = vpop.f32.mrf.mxu0
  %v8900 = vadd.f32 0.0, %v8899
  %8901 = vmatmul.bf16.gmra.mxu0 %v8591
  %v8902 = vpop.f32.mrf.mxu0
  %v8903 = vadd.f32 0.0, %v8902
  %v8904 = vpop.f32.mrf.mxu0
  %v8905 = vadd.f32 0.0, %v8904
  %8906 = vdwg.mxu0
  %8907 = vmatpush.bf16.msra.mxu0 %v8727
  %8908 = vmatpush.bf16.msra.mxu0 %v8723
  %8909 = vmatpush.bf16.msra.mxu0 %v8719
  %8910 = vmatpush.bf16.msra.mxu0 %v8715
  %8911 = vmatpush.bf16.msra.mxu0 %v8711
  %8912 = vmatpush.bf16.msra.mxu0 %v8707
  %8913 = vmatpush.bf16.msra.mxu0 %v8703
  %8914 = vmatpush.bf16.msra.mxu0 %v8699
  %8915 = vmatmul.bf16.gmra.mxu0 %v8584
  %v8916 = vpop.f32.mrf.mxu0
  %v8917 = vadd.f32 0.0, %v8916
  %v8918 = vpop.f32.mrf.mxu0
  %v8919 = vadd.f32 0.0, %v8918
  %8920 = vmatmul.bf16.gmra.mxu0 %v8585
  %v8921 = vpop.f32.mrf.mxu0
  %v8922 = vadd.f32 0.0, %v8921
  %v8923 = vpop.f32.mrf.mxu0
  %v8924 = vadd.f32 0.0, %v8923
  %8925 = vmatmul.bf16.gmra.mxu0 %v8586
  %v8926 = vpop.f32.mrf.mxu0
  %v8927 = vadd.f32 0.0, %v8926
  %v8928 = vpop.f32.mrf.mxu0
  %v8929 = vadd.f32 0.0, %v8928
  %8930 = vmatmul.bf16.gmra.mxu0 %v8587
  %v8931 = vpop.f32.mrf.mxu0
  %v8932 = vadd.f32 0.0, %v8931
  %v8933 = vpop.f32.mrf.mxu0
  %v8934 = vadd.f32 0.0, %v8933
  %8935 = vmatmul.bf16.gmra.mxu0 %v8588
  %v8936 = vpop.f32.mrf.mxu0
  %v8937 = vadd.f32 0.0, %v8936
  %v8938 = vpop.f32.mrf.mxu0
  %v8939 = vadd.f32 0.0, %v8938
  %8940 = vmatmul.bf16.gmra.mxu0 %v8589
  %v8941 = vpop.f32.mrf.mxu0
  %v8942 = vadd.f32 0.0, %v8941
  %v8943 = vpop.f32.mrf.mxu0
  %v8944 = vadd.f32 0.0, %v8943
  %8945 = vmatmul.bf16.gmra.mxu0 %v8590
  %v8946 = vpop.f32.mrf.mxu0
  %v8947 = vadd.f32 0.0, %v8946
  %v8948 = vpop.f32.mrf.mxu0
  %v8949 = vadd.f32 0.0, %v8948
  %8950 = vmatmul.bf16.gmra.mxu0 %v8591
  %v8951 = vpop.f32.mrf.mxu0
  %v8952 = vadd.f32 0.0, %v8951
  %v8953 = vpop.f32.mrf.mxu0
  %v8954 = vadd.f32 0.0, %v8953
  %8955 = vdwg.mxu0
  %v8956 = vadd.f32 %v8359, %v8770
  %v8957 = vadd.f32 %v8360, %v8819
  %v8958 = vadd.f32 %v8361, %v8868
  %v8959 = vadd.f32 %v8362, %v8917
  %v8960 = vadd.f32 %v8363, %v8772
  %v8961 = vadd.f32 %v8364, %v8821
  %v8962 = vadd.f32 %v8365, %v8870
  %v8963 = vadd.f32 %v8366, %v8919
  %v8964 = vadd.f32 %v8367, %v8775
  %v8965 = vadd.f32 %v8368, %v8824
  %v8966 = vadd.f32 %v8369, %v8873
  %v8967 = vadd.f32 %v8370, %v8922
  %v8968 = vadd.f32 %v8371, %v8777
  %v8969 = vadd.f32 %v8372, %v8826
  %v8970 = vadd.f32 %v8373, %v8875
  %v8971 = vadd.f32 %v8374, %v8924
  %v8972 = vadd.f32 %v8375, %v8780
  %v8973 = vadd.f32 %v8376, %v8829
  %v8974 = vadd.f32 %v8377, %v8878
  %v8975 = vadd.f32 %v8378, %v8927
  %v8976 = vadd.f32 %v8379, %v8782
  %v8977 = vadd.f32 %v8380, %v8831
  %v8978 = vadd.f32 %v8381, %v8880
  %v8979 = vadd.f32 %v8382, %v8929
  %v8980 = vadd.f32 %v8383, %v8785
  %v8981 = vadd.f32 %v8384, %v8834
  %v8982 = vadd.f32 %v8385, %v8883
  %v8983 = vadd.f32 %v8386, %v8932
  %v8984 = vadd.f32 %v8387, %v8787
  %v8985 = vadd.f32 %v8388, %v8836
  %v8986 = vadd.f32 %v8389, %v8885
  %v8987 = vadd.f32 %v8390, %v8934
  %v8988 = vadd.f32 %v8391, %v8790
  %v8989 = vadd.f32 %v8392, %v8839
  %v8990 = vadd.f32 %v8393, %v8888
  %v8991 = vadd.f32 %v8394, %v8937
  %v8992 = vadd.f32 %v8395, %v8792
  %v8993 = vadd.f32 %v8396, %v8841
  %v8994 = vadd.f32 %v8397, %v8890
  %v8995 = vadd.f32 %v8398, %v8939
  %v8996 = vadd.f32 %v8399, %v8795
  %v8997 = vadd.f32 %v8400, %v8844
  %v8998 = vadd.f32 %v8401, %v8893
  %v8999 = vadd.f32 %v8402, %v8942
  %v9000 = vadd.f32 %v8403, %v8797
  %v9001 = vadd.f32 %v8404, %v8846
  %v9002 = vadd.f32 %v8405, %v8895
  %v9003 = vadd.f32 %v8406, %v8944
  %v9004 = vadd.f32 %v8407, %v8800
  %v9005 = vadd.f32 %v8408, %v8849
  %v9006 = vadd.f32 %v8409, %v8898
  %v9007 = vadd.f32 %v8410, %v8947
  %v9008 = vadd.f32 %v8411, %v8802
  %v9009 = vadd.f32 %v8412, %v8851
  %v9010 = vadd.f32 %v8413, %v8900
  %v9011 = vadd.f32 %v8414, %v8949
  %v9012 = vadd.f32 %v8415, %v8805
  %v9013 = vadd.f32 %v8416, %v8854
  %v9014 = vadd.f32 %v8417, %v8903
  %v9015 = vadd.f32 %v8418, %v8952
  %v9016 = vadd.f32 %v8419, %v8807
  %v9017 = vadd.f32 %v8420, %v8856
  %v9018 = vadd.f32 %v8421, %v8905
  %v9019 = vadd.f32 %v8422, %v8954
  %v9020 = vld [vmem:[%s5] sm:$0xf]
  %v9022 = vperm.slane %v9020, 0
  %v9023 = vperm.slane %v9020, 1
  %v9024 = vperm.slane %v9020, 2
  %v9025 = vperm.slane %v9020, 3
  %v9030 = vadd.f32 %v8956, %v9022
  %v9031 = vadd.f32 %v8957, %v9023
  %v9032 = vadd.f32 %v8958, %v9024
  %v9033 = vadd.f32 %v8959, %v9025
  %v9034 = vadd.f32 %v8960, %v9022
  %v9035 = vadd.f32 %v8961, %v9023
  %v9036 = vadd.f32 %v8962, %v9024
  %v9037 = vadd.f32 %v8963, %v9025
  %v9038 = vadd.f32 %v8964, %v9022
  %v9039 = vadd.f32 %v8965, %v9023
  %v9040 = vadd.f32 %v8966, %v9024
  %v9041 = vadd.f32 %v8967, %v9025
  %v9042 = vadd.f32 %v8968, %v9022
  %v9043 = vadd.f32 %v8969, %v9023
  %v9044 = vadd.f32 %v8970, %v9024
  %v9045 = vadd.f32 %v8971, %v9025
  %v9046 = vadd.f32 %v8972, %v9022
  %v9047 = vadd.f32 %v8973, %v9023
  %v9048 = vadd.f32 %v8974, %v9024
  %v9049 = vadd.f32 %v8975, %v9025
  %v9050 = vadd.f32 %v8976, %v9022
  %v9051 = vadd.f32 %v8977, %v9023
  %v9052 = vadd.f32 %v8978, %v9024
  %v9053 = vadd.f32 %v8979, %v9025
  %v9054 = vadd.f32 %v8980, %v9022
  %v9055 = vadd.f32 %v8981, %v9023
  %v9056 = vadd.f32 %v8982, %v9024
  %v9057 = vadd.f32 %v8983, %v9025
  %v9058 = vadd.f32 %v8984, %v9022
  %v9059 = vadd.f32 %v8985, %v9023
  %v9060 = vadd.f32 %v8986, %v9024
  %v9061 = vadd.f32 %v8987, %v9025
  %v9062 = vadd.f32 %v8988, %v9022
  %v9063 = vadd.f32 %v8989, %v9023
  %v9064 = vadd.f32 %v8990, %v9024
  %v9065 = vadd.f32 %v8991, %v9025
  %v9066 = vadd.f32 %v8992, %v9022
  %v9067 = vadd.f32 %v8993, %v9023
  %v9068 = vadd.f32 %v8994, %v9024
  %v9069 = vadd.f32 %v8995, %v9025
  %v9070 = vadd.f32 %v8996, %v9022
  %v9071 = vadd.f32 %v8997, %v9023
  %v9072 = vadd.f32 %v8998, %v9024
  %v9073 = vadd.f32 %v8999, %v9025
  %v9074 = vadd.f32 %v9000, %v9022
  %v9075 = vadd.f32 %v9001, %v9023
  %v9076 = vadd.f32 %v9002, %v9024
  %v9077 = vadd.f32 %v9003, %v9025
  %v9078 = vadd.f32 %v9004, %v9022
  %v9079 = vadd.f32 %v9005, %v9023
  %v9080 = vadd.f32 %v9006, %v9024
  %v9081 = vadd.f32 %v9007, %v9025
  %v9082 = vadd.f32 %v9008, %v9022
  %v9083 = vadd.f32 %v9009, %v9023
  %v9084 = vadd.f32 %v9010, %v9024
  %v9085 = vadd.f32 %v9011, %v9025
  %v9086 = vadd.f32 %v9012, %v9022
  %v9087 = vadd.f32 %v9013, %v9023
  %v9088 = vadd.f32 %v9014, %v9024
  %v9089 = vadd.f32 %v9015, %v9025
  %v9090 = vadd.f32 %v9016, %v9022
  %v9091 = vadd.f32 %v9017, %v9023
  %v9092 = vadd.f32 %v9018, %v9024
  %v9093 = vadd.f32 %v9019, %v9025
  %v9094 = vpack.c.bf16 %v9034, %v9030
  %v9095 = vpack.c.bf16 %v9035, %v9031
  %v9096 = vpack.c.bf16 %v9036, %v9032
  %v9097 = vpack.c.bf16 %v9037, %v9033
  %v9098 = vpack.c.bf16 %v9042, %v9038
  %v9099 = vpack.c.bf16 %v9043, %v9039
  %v9100 = vpack.c.bf16 %v9044, %v9040
  %v9101 = vpack.c.bf16 %v9045, %v9041
  %v9102 = vpack.c.bf16 %v9050, %v9046
  %v9103 = vpack.c.bf16 %v9051, %v9047
  %v9104 = vpack.c.bf16 %v9052, %v9048
  %v9105 = vpack.c.bf16 %v9053, %v9049
  %v9106 = vpack.c.bf16 %v9058, %v9054
  %v9107 = vpack.c.bf16 %v9059, %v9055
  %v9108 = vpack.c.bf16 %v9060, %v9056
  %v9109 = vpack.c.bf16 %v9061, %v9057
  %v9110 = vpack.c.bf16 %v9066, %v9062
  %v9111 = vpack.c.bf16 %v9067, %v9063
  %v9112 = vpack.c.bf16 %v9068, %v9064
  %v9113 = vpack.c.bf16 %v9069, %v9065
  %v9114 = vpack.c.bf16 %v9074, %v9070
  %v9115 = vpack.c.bf16 %v9075, %v9071
  %v9116 = vpack.c.bf16 %v9076, %v9072
  %v9117 = vpack.c.bf16 %v9077, %v9073
  %v9118 = vpack.c.bf16 %v9082, %v9078
  %v9119 = vpack.c.bf16 %v9083, %v9079
  %v9120 = vpack.c.bf16 %v9084, %v9080
  %v9121 = vpack.c.bf16 %v9085, %v9081
  %v9122 = vpack.c.bf16 %v9090, %v9086
  %v9123 = vpack.c.bf16 %v9091, %v9087
  %v9124 = vpack.c.bf16 %v9092, %v9088
  %v9125 = vpack.c.bf16 %v9093, %v9089
  %v9126 = vld [vmem:[%s6] sm:$0xf]
  %v9127 = vld [vmem:[%s6 + $0x4] sm:$0xf]
  %v9128 = vld [vmem:[%s6 + $0x8] sm:$0xf]
  %v9129 = vld [vmem:[%s6 + $0xc] sm:$0xf]
  %v9130 = vld [vmem:[%s6 + $0x10] sm:$0xf]
  %v9131 = vld [vmem:[%s6 + $0x14] sm:$0xf]
  %v9132 = vld [vmem:[%s6 + $0x18] sm:$0xf]
  %v9133 = vld [vmem:[%s6 + $0x1c] sm:$0xf]
  %v9134 = vld [vmem:[%s6 + $0x20] sm:$0xf]
  %v9135 = vld [vmem:[%s6 + $0x24] sm:$0xf]
  %v9136 = vld [vmem:[%s6 + $0x28] sm:$0xf]
  %v9137 = vld [vmem:[%s6 + $0x2c] sm:$0xf]
  %v9138 = vld [vmem:[%s6 + $0x30] sm:$0xf]
  %v9139 = vld [vmem:[%s6 + $0x34] sm:$0xf]
  %v9140 = vld [vmem:[%s6 + $0x38] sm:$0xf]
  %v9141 = vld [vmem:[%s6 + $0x3c] sm:$0xf]
  %v9142 = vld [vmem:[%s6 + $0x40] sm:$0xf]
  %v9143 = vld [vmem:[%s6 + $0x44] sm:$0xf]
  %v9144 = vld [vmem:[%s6 + $0x48] sm:$0xf]
  %v9145 = vld [vmem:[%s6 + $0x4c] sm:$0xf]
  %v9146 = vld [vmem:[%s6 + $0x50] sm:$0xf]
  %v9147 = vld [vmem:[%s6 + $0x54] sm:$0xf]
  %v9148 = vld [vmem:[%s6 + $0x58] sm:$0xf]
  %v9149 = vld [vmem:[%s6 + $0x5c] sm:$0xf]
  %v9150 = vld [vmem:[%s6 + $0x60] sm:$0xf]
  %v9151 = vld [vmem:[%s6 + $0x64] sm:$0xf]
  %v9152 = vld [vmem:[%s6 + $0x68] sm:$0xf]
  %v9153 = vld [vmem:[%s6 + $0x6c] sm:$0xf]
  %v9154 = vld [vmem:[%s6 + $0x70] sm:$0xf]
  %v9155 = vld [vmem:[%s6 + $0x74] sm:$0xf]
  %v9156 = vld [vmem:[%s6 + $0x78] sm:$0xf]
  %v9157 = vld [vmem:[%s6 + $0x7c] sm:$0xf]
  %v9158 = vld [vmem:[%s6 + $0x80] sm:$0xf]
  %v9159 = vld [vmem:[%s6 + $0x84] sm:$0xf]
  %v9160 = vld [vmem:[%s6 + $0x88] sm:$0xf]
  %v9161 = vld [vmem:[%s6 + $0x8c] sm:$0xf]
  %v9162 = vld [vmem:[%s6 + $0x90] sm:$0xf]
  %v9163 = vld [vmem:[%s6 + $0x94] sm:$0xf]
  %v9164 = vld [vmem:[%s6 + $0x98] sm:$0xf]
  %v9165 = vld [vmem:[%s6 + $0x9c] sm:$0xf]
  %v9166 = vld [vmem:[%s6 + $0xa0] sm:$0xf]
  %v9167 = vld [vmem:[%s6 + $0xa4] sm:$0xf]
  %v9168 = vld [vmem:[%s6 + $0xa8] sm:$0xf]
  %v9169 = vld [vmem:[%s6 + $0xac] sm:$0xf]
  %v9170 = vld [vmem:[%s6 + $0xb0] sm:$0xf]
  %v9171 = vld [vmem:[%s6 + $0xb4] sm:$0xf]
  %v9172 = vld [vmem:[%s6 + $0xb8] sm:$0xf]
  %v9173 = vld [vmem:[%s6 + $0xbc] sm:$0xf]
  %v9174 = vld [vmem:[%s6 + $0xc0] sm:$0xf]
  %v9175 = vld [vmem:[%s6 + $0xc4] sm:$0xf]
  %v9176 = vld [vmem:[%s6 + $0xc8] sm:$0xf]
  %v9177 = vld [vmem:[%s6 + $0xcc] sm:$0xf]
  %v9178 = vld [vmem:[%s6 + $0xd0] sm:$0xf]
  %v9179 = vld [vmem:[%s6 + $0xd4] sm:$0xf]
  %v9180 = vld [vmem:[%s6 + $0xd8] sm:$0xf]
  %v9181 = vld [vmem:[%s6 + $0xdc] sm:$0xf]
  %v9182 = vld [vmem:[%s6 + $0xe0] sm:$0xf]
  %v9183 = vld [vmem:[%s6 + $0xe4] sm:$0xf]
  %v9184 = vld [vmem:[%s6 + $0xe8] sm:$0xf]
  %v9185 = vld [vmem:[%s6 + $0xec] sm:$0xf]
  %v9186 = vld [vmem:[%s6 + $0xf0] sm:$0xf]
  %v9187 = vld [vmem:[%s6 + $0xf4] sm:$0xf]
  %v9188 = vld [vmem:[%s6 + $0xf8] sm:$0xf]
  %v9189 = vld [vmem:[%s6 + $0xfc] sm:$0xf]
  %v9190 = vld [vmem:[%s7] sm:$0x1]
  %v9192 = vperm.slane %v9190, 0
  %v9258 = vunpack.c.l.b16 %v9126
  %v9259 = vunpack.c.l.b16 %v9127
  %v9260 = vunpack.c.l.b16 %v9128
  %v9261 = vunpack.c.l.b16 %v9129
  %v9262 = vunpack.c.l.b16 %v9130
  %v9263 = vunpack.c.l.b16 %v9131
  %v9264 = vunpack.c.l.b16 %v9132
  %v9265 = vunpack.c.l.b16 %v9133
  %v9266 = vunpack.c.l.b16 %v9134
  %v9267 = vunpack.c.l.b16 %v9135
  %v9268 = vunpack.c.l.b16 %v9136
  %v9269 = vunpack.c.l.b16 %v9137
  %v9270 = vunpack.c.l.b16 %v9138
  %v9271 = vunpack.c.l.b16 %v9139
  %v9272 = vunpack.c.l.b16 %v9140
  %v9273 = vunpack.c.l.b16 %v9141
  %v9274 = vunpack.c.l.b16 %v9142
  %v9275 = vunpack.c.l.b16 %v9143
  %v9276 = vunpack.c.l.b16 %v9144
  %v9277 = vunpack.c.l.b16 %v9145
  %v9278 = vunpack.c.l.b16 %v9146
  %v9279 = vunpack.c.l.b16 %v9147
  %v9280 = vunpack.c.l.b16 %v9148
  %v9281 = vunpack.c.l.b16 %v9149
  %v9282 = vunpack.c.l.b16 %v9150
  %v9283 = vunpack.c.l.b16 %v9151
  %v9284 = vunpack.c.l.b16 %v9152
  %v9285 = vunpack.c.l.b16 %v9153
  %v9286 = vunpack.c.l.b16 %v9154
  %v9287 = vunpack.c.l.b16 %v9155
  %v9288 = vunpack.c.l.b16 %v9156
  %v9289 = vunpack.c.l.b16 %v9157
  %v9290 = vunpack.c.l.b16 %v9158
  %v9291 = vunpack.c.l.b16 %v9159
  %v9292 = vunpack.c.l.b16 %v9160
  %v9293 = vunpack.c.l.b16 %v9161
  %v9294 = vunpack.c.l.b16 %v9162
  %v9295 = vunpack.c.l.b16 %v9163
  %v9296 = vunpack.c.l.b16 %v9164
  %v9297 = vunpack.c.l.b16 %v9165
  %v9298 = vunpack.c.l.b16 %v9166
  %v9299 = vunpack.c.l.b16 %v9167
  %v9300 = vunpack.c.l.b16 %v9168
  %v9301 = vunpack.c.l.b16 %v9169
  %v9302 = vunpack.c.l.b16 %v9170
  %v9303 = vunpack.c.l.b16 %v9171
  %v9304 = vunpack.c.l.b16 %v9172
  %v9305 = vunpack.c.l.b16 %v9173
  %v9306 = vunpack.c.l.b16 %v9174
  %v9307 = vunpack.c.l.b16 %v9175
  %v9308 = vunpack.c.l.b16 %v9176
  %v9309 = vunpack.c.l.b16 %v9177
  %v9310 = vunpack.c.l.b16 %v9178
  %v9311 = vunpack.c.l.b16 %v9179
  %v9312 = vunpack.c.l.b16 %v9180
  %v9313 = vunpack.c.l.b16 %v9181
  %v9314 = vunpack.c.l.b16 %v9182
  %v9315 = vunpack.c.l.b16 %v9183
  %v9316 = vunpack.c.l.b16 %v9184
  %v9317 = vunpack.c.l.b16 %v9185
  %v9318 = vunpack.c.l.b16 %v9186
  %v9319 = vunpack.c.l.b16 %v9187
  %v9320 = vunpack.c.l.b16 %v9188
  %v9321 = vunpack.c.l.b16 %v9189
  %v9322 = vpack.c.b16 %v9259, %v9258
  %v9323 = vpack.c.b16 %v9261, %v9260
  %v9324 = vpack.c.b16 %v9263, %v9262
  %v9325 = vpack.c.b16 %v9265, %v9264
  %v9326 = vpack.c.b16 %v9267, %v9266
  %v9327 = vpack.c.b16 %v9269, %v9268
  %v9328 = vpack.c.b16 %v9271, %v9270
  %v9329 = vpack.c.b16 %v9273, %v9272
  %v9330 = vpack.c.b16 %v9275, %v9274
  %v9331 = vpack.c.b16 %v9277, %v9276
  %v9332 = vpack.c.b16 %v9279, %v9278
  %v9333 = vpack.c.b16 %v9281, %v9280
  %v9334 = vpack.c.b16 %v9283, %v9282
  %v9335 = vpack.c.b16 %v9285, %v9284
  %v9336 = vpack.c.b16 %v9287, %v9286
  %v9337 = vpack.c.b16 %v9289, %v9288
  %v9338 = vpack.c.b16 %v9291, %v9290
  %v9339 = vpack.c.b16 %v9293, %v9292
  %v9340 = vpack.c.b16 %v9295, %v9294
  %v9341 = vpack.c.b16 %v9297, %v9296
  %v9342 = vpack.c.b16 %v9299, %v9298
  %v9343 = vpack.c.b16 %v9301, %v9300
  %v9344 = vpack.c.b16 %v9303, %v9302
  %v9345 = vpack.c.b16 %v9305, %v9304
  %v9346 = vpack.c.b16 %v9307, %v9306
  %v9347 = vpack.c.b16 %v9309, %v9308
  %v9348 = vpack.c.b16 %v9311, %v9310
  %v9349 = vpack.c.b16 %v9313, %v9312
  %v9350 = vpack.c.b16 %v9315, %v9314
  %v9351 = vpack.c.b16 %v9317, %v9316
  %v9352 = vpack.c.b16 %v9319, %v9318
  %v9353 = vpack.c.b16 %v9321, %v9320
  %9386 = vmatpush.bf16.msra.mxu0 %v9329
  %9387 = vmatpush.bf16.msra.mxu0 %v9328
  %9388 = vmatpush.bf16.msra.mxu0 %v9327
  %9389 = vmatpush.bf16.msra.mxu0 %v9326
  %9390 = vmatpush.bf16.msra.mxu0 %v9325
  %9391 = vmatpush.bf16.msra.mxu0 %v9324
  %9392 = vmatpush.bf16.msra.mxu0 %v9323
  %9393 = vmatpush.bf16.msra.mxu0 %v9322
  %9394 = vmatmul.bf16.gmra.mxu0 %v9094
  %v9395 = vpop.f32.mrf.mxu0
  %v9396 = vadd.f32 %v9192, %v9395
  %v9397 = vpop.f32.mrf.mxu0
  %v9398 = vadd.f32 %v9192, %v9397
  %9399 = vmatmul.bf16.gmra.mxu0 %v9098
  %v9400 = vpop.f32.mrf.mxu0
  %v9401 = vadd.f32 %v9192, %v9400
  %v9402 = vpop.f32.mrf.mxu0
  %v9403 = vadd.f32 %v9192, %v9402
  %9404 = vmatmul.bf16.gmra.mxu0 %v9102
  %v9405 = vpop.f32.mrf.mxu0
  %v9406 = vadd.f32 %v9192, %v9405
  %v9407 = vpop.f32.mrf.mxu0
  %v9408 = vadd.f32 %v9192, %v9407
  %9409 = vmatmul.bf16.gmra.mxu0 %v9106
  %v9410 = vpop.f32.mrf.mxu0
  %v9411 = vadd.f32 %v9192, %v9410
  %v9412 = vpop.f32.mrf.mxu0
  %v9413 = vadd.f32 %v9192, %v9412
  %9414 = vmatmul.bf16.gmra.mxu0 %v9110
  %v9415 = vpop.f32.mrf.mxu0
  %v9416 = vadd.f32 %v9192, %v9415
  %v9417 = vpop.f32.mrf.mxu0
  %v9418 = vadd.f32 %v9192, %v9417
  %9419 = vmatmul.bf16.gmra.mxu0 %v9114
  %v9420 = vpop.f32.mrf.mxu0
  %v9421 = vadd.f32 %v9192, %v9420
  %v9422 = vpop.f32.mrf.mxu0
  %v9423 = vadd.f32 %v9192, %v9422
  %9424 = vmatmul.bf16.gmra.mxu0 %v9118
  %v9425 = vpop.f32.mrf.mxu0
  %v9426 = vadd.f32 %v9192, %v9425
  %v9427 = vpop.f32.mrf.mxu0
  %v9428 = vadd.f32 %v9192, %v9427
  %9429 = vmatmul.bf16.gmra.mxu0 %v9122
  %v9430 = vpop.f32.mrf.mxu0
  %v9431 = vadd.f32 %v9192, %v9430
  %v9432 = vpop.f32.mrf.mxu0
  %v9433 = vadd.f32 %v9192, %v9432
  %9434 = vdwg.mxu0
  %9435 = vmatpush.bf16.msra.mxu0 %v9337
  %9436 = vmatpush.bf16.msra.mxu0 %v9336
  %9437 = vmatpush.bf16.msra.mxu0 %v9335
  %9438 = vmatpush.bf16.msra.mxu0 %v9334
  %9439 = vmatpush.bf16.msra.mxu0 %v9333
  %9440 = vmatpush.bf16.msra.mxu0 %v9332
  %9441 = vmatpush.bf16.msra.mxu0 %v9331
  %9442 = vmatpush.bf16.msra.mxu0 %v9330
  %9443 = vmatmul.bf16.gmra.mxu0 %v9095
  %v9444 = vpop.f32.mrf.mxu0
  %v9445 = vadd.f32 %v9396, %v9444
  %v9446 = vpop.f32.mrf.mxu0
  %v9447 = vadd.f32 %v9398, %v9446
  %9448 = vmatmul.bf16.gmra.mxu0 %v9099
  %v9449 = vpop.f32.mrf.mxu0
  %v9450 = vadd.f32 %v9401, %v9449
  %v9451 = vpop.f32.mrf.mxu0
  %v9452 = vadd.f32 %v9403, %v9451
  %9453 = vmatmul.bf16.gmra.mxu0 %v9103
  %v9454 = vpop.f32.mrf.mxu0
  %v9455 = vadd.f32 %v9406, %v9454
  %v9456 = vpop.f32.mrf.mxu0
  %v9457 = vadd.f32 %v9408, %v9456
  %9458 = vmatmul.bf16.gmra.mxu0 %v9107
  %v9459 = vpop.f32.mrf.mxu0
  %v9460 = vadd.f32 %v9411, %v9459
  %v9461 = vpop.f32.mrf.mxu0
  %v9462 = vadd.f32 %v9413, %v9461
  %9463 = vmatmul.bf16.gmra.mxu0 %v9111
  %v9464 = vpop.f32.mrf.mxu0
  %v9465 = vadd.f32 %v9416, %v9464
  %v9466 = vpop.f32.mrf.mxu0
  %v9467 = vadd.f32 %v9418, %v9466
  %9468 = vmatmul.bf16.gmra.mxu0 %v9115
  %v9469 = vpop.f32.mrf.mxu0
  %v9470 = vadd.f32 %v9421, %v9469
  %v9471 = vpop.f32.mrf.mxu0
  %v9472 = vadd.f32 %v9423, %v9471
  %9473 = vmatmul.bf16.gmra.mxu0 %v9119
  %v9474 = vpop.f32.mrf.mxu0
  %v9475 = vadd.f32 %v9426, %v9474
  %v9476 = vpop.f32.mrf.mxu0
  %v9477 = vadd.f32 %v9428, %v9476
  %9478 = vmatmul.bf16.gmra.mxu0 %v9123
  %v9479 = vpop.f32.mrf.mxu0
  %v9480 = vadd.f32 %v9431, %v9479
  %v9481 = vpop.f32.mrf.mxu0
  %v9482 = vadd.f32 %v9433, %v9481
  %9483 = vdwg.mxu0
  %9484 = vmatpush.bf16.msra.mxu0 %v9345
  %9485 = vmatpush.bf16.msra.mxu0 %v9344
  %9486 = vmatpush.bf16.msra.mxu0 %v9343
  %9487 = vmatpush.bf16.msra.mxu0 %v9342
  %9488 = vmatpush.bf16.msra.mxu0 %v9341
  %9489 = vmatpush.bf16.msra.mxu0 %v9340
  %9490 = vmatpush.bf16.msra.mxu0 %v9339
  %9491 = vmatpush.bf16.msra.mxu0 %v9338
  %9492 = vmatmul.bf16.gmra.mxu0 %v9096
  %v9493 = vpop.f32.mrf.mxu0
  %v9494 = vadd.f32 %v9445, %v9493
  %v9495 = vpop.f32.mrf.mxu0
  %v9496 = vadd.f32 %v9447, %v9495
  %9497 = vmatmul.bf16.gmra.mxu0 %v9100
  %v9498 = vpop.f32.mrf.mxu0
  %v9499 = vadd.f32 %v9450, %v9498
  %v9500 = vpop.f32.mrf.mxu0
  %v9501 = vadd.f32 %v9452, %v9500
  %9502 = vmatmul.bf16.gmra.mxu0 %v9104
  %v9503 = vpop.f32.mrf.mxu0
  %v9504 = vadd.f32 %v9455, %v9503
  %v9505 = vpop.f32.mrf.mxu0
  %v9506 = vadd.f32 %v9457, %v9505
  %9507 = vmatmul.bf16.gmra.mxu0 %v9108
  %v9508 = vpop.f32.mrf.mxu0
  %v9509 = vadd.f32 %v9460, %v9508
  %v9510 = vpop.f32.mrf.mxu0
  %v9511 = vadd.f32 %v9462, %v9510
  %9512 = vmatmul.bf16.gmra.mxu0 %v9112
  %v9513 = vpop.f32.mrf.mxu0
  %v9514 = vadd.f32 %v9465, %v9513
  %v9515 = vpop.f32.mrf.mxu0
  %v9516 = vadd.f32 %v9467, %v9515
  %9517 = vmatmul.bf16.gmra.mxu0 %v9116
  %v9518 = vpop.f32.mrf.mxu0
  %v9519 = vadd.f32 %v9470, %v9518
  %v9520 = vpop.f32.mrf.mxu0
  %v9521 = vadd.f32 %v9472, %v9520
  %9522 = vmatmul.bf16.gmra.mxu0 %v9120
  %v9523 = vpop.f32.mrf.mxu0
  %v9524 = vadd.f32 %v9475, %v9523
  %v9525 = vpop.f32.mrf.mxu0
  %v9526 = vadd.f32 %v9477, %v9525
  %9527 = vmatmul.bf16.gmra.mxu0 %v9124
  %v9528 = vpop.f32.mrf.mxu0
  %v9529 = vadd.f32 %v9480, %v9528
  %v9530 = vpop.f32.mrf.mxu0
  %v9531 = vadd.f32 %v9482, %v9530
  %9532 = vdwg.mxu0
  %9533 = vmatpush.bf16.msra.mxu0 %v9353
  %9534 = vmatpush.bf16.msra.mxu0 %v9352
  %9535 = vmatpush.bf16.msra.mxu0 %v9351
  %9536 = vmatpush.bf16.msra.mxu0 %v9350
  %9537 = vmatpush.bf16.msra.mxu0 %v9349
  %9538 = vmatpush.bf16.msra.mxu0 %v9348
  %9539 = vmatpush.bf16.msra.mxu0 %v9347
  %9540 = vmatpush.bf16.msra.mxu0 %v9346
  %9541 = vmatmul.bf16.gmra.mxu0 %v9097
  %v9542 = vpop.f32.mrf.mxu0
  %v9543 = vadd.f32 %v9494, %v9542
  %v9544 = vpop.f32.mrf.mxu0
  %v9545 = vadd.f32 %v9496, %v9544
  %9546 = vmatmul.bf16.gmra.mxu0 %v9101
  %v9547 = vpop.f32.mrf.mxu0
  %v9548 = vadd.f32 %v9499, %v9547
  %v9549 = vpop.f32.mrf.mxu0
  %v9550 = vadd.f32 %v9501, %v9549
  %9551 = vmatmul.bf16.gmra.mxu0 %v9105
  %v9552 = vpop.f32.mrf.mxu0
  %v9553 = vadd.f32 %v9504, %v9552
  %v9554 = vpop.f32.mrf.mxu0
  %v9555 = vadd.f32 %v9506, %v9554
  %9556 = vmatmul.bf16.gmra.mxu0 %v9109
  %v9557 = vpop.f32.mrf.mxu0
  %v9558 = vadd.f32 %v9509, %v9557
  %v9559 = vpop.f32.mrf.mxu0
  %v9560 = vadd.f32 %v9511, %v9559
  %9561 = vmatmul.bf16.gmra.mxu0 %v9113
  %v9562 = vpop.f32.mrf.mxu0
  %v9563 = vadd.f32 %v9514, %v9562
  %v9564 = vpop.f32.mrf.mxu0
  %v9565 = vadd.f32 %v9516, %v9564
  %9566 = vmatmul.bf16.gmra.mxu0 %v9117
  %v9567 = vpop.f32.mrf.mxu0
  %v9568 = vadd.f32 %v9519, %v9567
  %v9569 = vpop.f32.mrf.mxu0
  %v9570 = vadd.f32 %v9521, %v9569
  %9571 = vmatmul.bf16.gmra.mxu0 %v9121
  %v9572 = vpop.f32.mrf.mxu0
  %v9573 = vadd.f32 %v9524, %v9572
  %v9574 = vpop.f32.mrf.mxu0
  %v9575 = vadd.f32 %v9526, %v9574
  %9576 = vmatmul.bf16.gmra.mxu0 %v9125
  %v9577 = vpop.f32.mrf.mxu0
  %v9578 = vadd.f32 %v9529, %v9577
  %v9579 = vpop.f32.mrf.mxu0
  %v9580 = vadd.f32 %v9531, %v9579
  %9581 = vdwg.mxu0
  %9598 = vrot.lane.b32.xlu0 %v9543, 119
  %v9599 = vpop.permute.xlu0 %9598
  %9600 = vrot.lane.b32.xlu0 %v9545, 119
  %v9601 = vpop.permute.xlu0 %9600
  %9602 = vrot.lane.b32.xlu0 %v9548, 119
  %v9603 = vpop.permute.xlu0 %9602
  %9604 = vrot.lane.b32.xlu0 %v9550, 119
  %v9605 = vpop.permute.xlu0 %9604
  %9606 = vrot.lane.b32.xlu0 %v9553, 119
  %v9607 = vpop.permute.xlu0 %9606
  %9608 = vrot.lane.b32.xlu0 %v9555, 119
  %v9609 = vpop.permute.xlu0 %9608
  %9610 = vrot.lane.b32.xlu0 %v9558, 119
  %v9611 = vpop.permute.xlu0 %9610
  %9612 = vrot.lane.b32.xlu0 %v9560, 119
  %v9613 = vpop.permute.xlu0 %9612
  %9614 = vrot.lane.b32.xlu0 %v9563, 119
  %v9615 = vpop.permute.xlu0 %9614
  %9616 = vrot.lane.b32.xlu0 %v9565, 119
  %v9617 = vpop.permute.xlu0 %9616
  %9618 = vrot.lane.b32.xlu0 %v9568, 119
  %v9619 = vpop.permute.xlu0 %9618
  %9620 = vrot.lane.b32.xlu0 %v9570, 119
  %v9621 = vpop.permute.xlu0 %9620
  %9622 = vrot.lane.b32.xlu0 %v9573, 119
  %v9623 = vpop.permute.xlu0 %9622
  %9624 = vrot.lane.b32.xlu0 %v9575, 119
  %v9625 = vpop.permute.xlu0 %9624
  %9626 = vrot.lane.b32.xlu0 %v9578, 119
  %v9627 = vpop.permute.xlu0 %9626
  %9628 = vrot.lane.b32.xlu0 %v9580, 119
  %v9629 = vpop.permute.xlu0 %9628
  %v9646 = vmax.f32 %v9543, %v9599
  %v9647 = vmax.f32 %v9545, %v9601
  %v9648 = vmax.f32 %v9548, %v9603
  %v9649 = vmax.f32 %v9550, %v9605
  %v9650 = vmax.f32 %v9553, %v9607
  %v9651 = vmax.f32 %v9555, %v9609
  %v9652 = vmax.f32 %v9558, %v9611
  %v9653 = vmax.f32 %v9560, %v9613
  %v9654 = vmax.f32 %v9563, %v9615
  %v9655 = vmax.f32 %v9565, %v9617
  %v9656 = vmax.f32 %v9568, %v9619
  %v9657 = vmax.f32 %v9570, %v9621
  %v9658 = vmax.f32 %v9573, %v9623
  %v9659 = vmax.f32 %v9575, %v9625
  %v9660 = vmax.f32 %v9578, %v9627
  %v9661 = vmax.f32 %v9580, %v9629
  %v9662 = vsub.f32 %v9543, %v9646
  %v9663 = vsub.f32 %v9545, %v9647
  %v9664 = vsub.f32 %v9548, %v9648
  %v9665 = vsub.f32 %v9550, %v9649
  %v9666 = vsub.f32 %v9553, %v9650
  %v9667 = vsub.f32 %v9555, %v9651
  %v9668 = vsub.f32 %v9558, %v9652
  %v9669 = vsub.f32 %v9560, %v9653
  %v9670 = vsub.f32 %v9563, %v9654
  %v9671 = vsub.f32 %v9565, %v9655
  %v9672 = vsub.f32 %v9568, %v9656
  %v9673 = vsub.f32 %v9570, %v9657
  %v9674 = vsub.f32 %v9573, %v9658
  %v9675 = vsub.f32 %v9575, %v9659
  %v9676 = vsub.f32 %v9578, %v9660
  %v9677 = vsub.f32 %v9580, %v9661
  %v9678 = vmul.f32 %v9662, 1.442695
  %v9679 = vpow.pop %v9678
  %v9680 = vmul.f32 %v9663, 1.442695
  %v9681 = vpow.pop %v9680
  %v9682 = vmul.f32 %v9664, 1.442695
  %v9683 = vpow.pop %v9682
  %v9684 = vmul.f32 %v9665, 1.442695
  %v9685 = vpow.pop %v9684
  %v9686 = vmul.f32 %v9666, 1.442695
  %v9687 = vpow.pop %v9686
  %v9688 = vmul.f32 %v9667, 1.442695
  %v9689 = vpow.pop %v9688
  %v9690 = vmul.f32 %v9668, 1.442695
  %v9691 = vpow.pop %v9690
  %v9692 = vmul.f32 %v9669, 1.442695
  %v9693 = vpow.pop %v9692
  %v9694 = vmul.f32 %v9670, 1.442695
  %v9695 = vpow.pop %v9694
  %v9696 = vmul.f32 %v9671, 1.442695
  %v9697 = vpow.pop %v9696
  %v9698 = vmul.f32 %v9672, 1.442695
  %v9699 = vpow.pop %v9698
  %v9700 = vmul.f32 %v9673, 1.442695
  %v9701 = vpow.pop %v9700
  %v9702 = vmul.f32 %v9674, 1.442695
  %v9703 = vpow.pop %v9702
  %v9704 = vmul.f32 %v9675, 1.442695
  %v9705 = vpow.pop %v9704
  %v9706 = vmul.f32 %v9676, 1.442695
  %v9707 = vpow.pop %v9706
  %v9708 = vmul.f32 %v9677, 1.442695
  %v9709 = vpow.pop %v9708
  %9726 = vrot.lane.b32.xlu0 %v9646, 9
  %v9727 = vpop.permute.xlu0 %9726
  %9728 = vrot.lane.b32.xlu0 %v9647, 9
  %v9729 = vpop.permute.xlu0 %9728
  %9730 = vrot.lane.b32.xlu0 %v9648, 9
  %v9731 = vpop.permute.xlu0 %9730
  %9732 = vrot.lane.b32.xlu0 %v9649, 9
  %v9733 = vpop.permute.xlu0 %9732
  %9734 = vrot.lane.b32.xlu0 %v9650, 9
  %v9735 = vpop.permute.xlu0 %9734
  %9736 = vrot.lane.b32.xlu0 %v9651, 9
  %v9737 = vpop.permute.xlu0 %9736
  %9738 = vrot.lane.b32.xlu0 %v9652, 9
  %v9739 = vpop.permute.xlu0 %9738
  %9740 = vrot.lane.b32.xlu0 %v9653, 9
  %v9741 = vpop.permute.xlu0 %9740
  %9742 = vrot.lane.b32.xlu0 %v9654, 9
  %v9743 = vpop.permute.xlu0 %9742
  %9744 = vrot.lane.b32.xlu0 %v9655, 9
  %v9745 = vpop.permute.xlu0 %9744
  %9746 = vrot.lane.b32.xlu0 %v9656, 9
  %v9747 = vpop.permute.xlu0 %9746
  %9748 = vrot.lane.b32.xlu0 %v9657, 9
  %v9749 = vpop.permute.xlu0 %9748
  %9750 = vrot.lane.b32.xlu0 %v9658, 9
  %v9751 = vpop.permute.xlu0 %9750
  %9752 = vrot.lane.b32.xlu0 %v9659, 9
  %v9753 = vpop.permute.xlu0 %9752
  %9754 = vrot.lane.b32.xlu0 %v9660, 9
  %v9755 = vpop.permute.xlu0 %9754
  %9756 = vrot.lane.b32.xlu0 %v9661, 9
  %v9757 = vpop.permute.xlu0 %9756
  %v9774 = vsub.f32 %v9543, %v9727
  %v9775 = vsub.f32 %v9545, %v9729
  %v9776 = vsub.f32 %v9548, %v9731
  %v9777 = vsub.f32 %v9550, %v9733
  %v9778 = vsub.f32 %v9553, %v9735
  %v9779 = vsub.f32 %v9555, %v9737
  %v9780 = vsub.f32 %v9558, %v9739
  %v9781 = vsub.f32 %v9560, %v9741
  %v9782 = vsub.f32 %v9563, %v9743
  %v9783 = vsub.f32 %v9565, %v9745
  %v9784 = vsub.f32 %v9568, %v9747
  %v9785 = vsub.f32 %v9570, %v9749
  %v9786 = vsub.f32 %v9573, %v9751
  %v9787 = vsub.f32 %v9575, %v9753
  %v9788 = vsub.f32 %v9578, %v9755
  %v9789 = vsub.f32 %v9580, %v9757
  %v9790 = vmul.f32 %v9774, 1.442695
  %v9791 = vpow.pop %v9790
  %v9792 = vmul.f32 %v9775, 1.442695
  %v9793 = vpow.pop %v9792
  %v9794 = vmul.f32 %v9776, 1.442695
  %v9795 = vpow.pop %v9794
  %v9796 = vmul.f32 %v9777, 1.442695
  %v9797 = vpow.pop %v9796
  %v9798 = vmul.f32 %v9778, 1.442695
  %v9799 = vpow.pop %v9798
  %v9800 = vmul.f32 %v9779, 1.442695
  %v9801 = vpow.pop %v9800
  %v9802 = vmul.f32 %v9780, 1.442695
  %v9803 = vpow.pop %v9802
  %v9804 = vmul.f32 %v9781, 1.442695
  %v9805 = vpow.pop %v9804
  %v9806 = vmul.f32 %v9782, 1.442695
  %v9807 = vpow.pop %v9806
  %v9808 = vmul.f32 %v9783, 1.442695
  %v9809 = vpow.pop %v9808
  %v9810 = vmul.f32 %v9784, 1.442695
  %v9811 = vpow.pop %v9810
  %v9812 = vmul.f32 %v9785, 1.442695
  %v9813 = vpow.pop %v9812
  %v9814 = vmul.f32 %v9786, 1.442695
  %v9815 = vpow.pop %v9814
  %v9816 = vmul.f32 %v9787, 1.442695
  %v9817 = vpow.pop %v9816
  %v9818 = vmul.f32 %v9788, 1.442695
  %v9819 = vpow.pop %v9818
  %v9820 = vmul.f32 %v9789, 1.442695
  %v9821 = vpow.pop %v9820
  %9838 = vrot.lane.b32.xlu0 %v9791, 119
  %v9839 = vpop.permute.xlu0 %9838
  %9840 = vrot.lane.b32.xlu0 %v9793, 119
  %v9841 = vpop.permute.xlu0 %9840
  %9842 = vrot.lane.b32.xlu0 %v9795, 119
  %v9843 = vpop.permute.xlu0 %9842
  %9844 = vrot.lane.b32.xlu0 %v9797, 119
  %v9845 = vpop.permute.xlu0 %9844
  %9846 = vrot.lane.b32.xlu0 %v9799, 119
  %v9847 = vpop.permute.xlu0 %9846
  %9848 = vrot.lane.b32.xlu0 %v9801, 119
  %v9849 = vpop.permute.xlu0 %9848
  %9850 = vrot.lane.b32.xlu0 %v9803, 119
  %v9851 = vpop.permute.xlu0 %9850
  %9852 = vrot.lane.b32.xlu0 %v9805, 119
  %v9853 = vpop.permute.xlu0 %9852
  %9854 = vrot.lane.b32.xlu0 %v9807, 119
  %v9855 = vpop.permute.xlu0 %9854
  %9856 = vrot.lane.b32.xlu0 %v9809, 119
  %v9857 = vpop.permute.xlu0 %9856
  %9858 = vrot.lane.b32.xlu0 %v9811, 119
  %v9859 = vpop.permute.xlu0 %9858
  %9860 = vrot.lane.b32.xlu0 %v9813, 119
  %v9861 = vpop.permute.xlu0 %9860
  %9862 = vrot.lane.b32.xlu0 %v9815, 119
  %v9863 = vpop.permute.xlu0 %9862
  %9864 = vrot.lane.b32.xlu0 %v9817, 119
  %v9865 = vpop.permute.xlu0 %9864
  %9866 = vrot.lane.b32.xlu0 %v9819, 119
  %v9867 = vpop.permute.xlu0 %9866
  %9868 = vrot.lane.b32.xlu0 %v9821, 119
  %v9869 = vpop.permute.xlu0 %9868
  %v9886 = vadd.f32 %v9679, %v9839
  %v9887 = vadd.f32 %v9681, %v9841
  %v9888 = vadd.f32 %v9683, %v9843
  %v9889 = vadd.f32 %v9685, %v9845
  %v9890 = vadd.f32 %v9687, %v9847
  %v9891 = vadd.f32 %v9689, %v9849
  %v9892 = vadd.f32 %v9691, %v9851
  %v9893 = vadd.f32 %v9693, %v9853
  %v9894 = vadd.f32 %v9695, %v9855
  %v9895 = vadd.f32 %v9697, %v9857
  %v9896 = vadd.f32 %v9699, %v9859
  %v9897 = vadd.f32 %v9701, %v9861
  %v9898 = vadd.f32 %v9703, %v9863
  %v9899 = vadd.f32 %v9705, %v9865
  %v9900 = vadd.f32 %v9707, %v9867
  %v9901 = vadd.f32 %v9709, %v9869
  %v9902 = vrcp.pop %v9886
  %v9903 = vmul.f32 %v9886, %v9902
  %v9904 = vsub.f32 1.0, %v9903
  %v9905 = vmul.f32 %v9902, %v9904
  %v9906 = vadd.f32 %v9902, %v9905
  %vm9907 = vweird.f32 %v9886
  %vm9908 = vweird.f32 %v9902
  %vm9909 = vmor %vm9907, %vm9908
  %v9910 = vsel %vm9909, %v9902, %v9906
  %v9911 = vand.u32 2147483647, %v9886
  %vm9912 = vcmp.eq.f32.partialorder %v9911, 8.507059e+37
  %v9913 = vand.u32 %v9886, 2147483648
  %v9914 = vor.u32 1.1754944e-38, %v9913
  %v9915 = vsel %vm9912, %v9914, %v9910
  %v9916 = vmul.f32 1.0, %v9915
  %v9917 = vrcp.pop %v9887
  %v9918 = vmul.f32 %v9887, %v9917
  %v9919 = vsub.f32 1.0, %v9918
  %v9920 = vmul.f32 %v9917, %v9919
  %v9921 = vadd.f32 %v9917, %v9920
  %vm9922 = vweird.f32 %v9887
  %vm9923 = vweird.f32 %v9917
  %vm9924 = vmor %vm9922, %vm9923
  %v9925 = vsel %vm9924, %v9917, %v9921
  %v9926 = vand.u32 2147483647, %v9887
  %vm9927 = vcmp.eq.f32.partialorder %v9926, 8.507059e+37
  %v9928 = vand.u32 %v9887, 2147483648
  %v9929 = vor.u32 1.1754944e-38, %v9928
  %v9930 = vsel %vm9927, %v9929, %v9925
  %v9931 = vmul.f32 1.0, %v9930
  %v9932 = vrcp.pop %v9888
  %v9933 = vmul.f32 %v9888, %v9932
  %v9934 = vsub.f32 1.0, %v9933
  %v9935 = vmul.f32 %v9932, %v9934
  %v9936 = vadd.f32 %v9932, %v9935
  %vm9937 = vweird.f32 %v9888
  %vm9938 = vweird.f32 %v9932
  %vm9939 = vmor %vm9937, %vm9938
  %v9940 = vsel %vm9939, %v9932, %v9936
  %v9941 = vand.u32 2147483647, %v9888
  %vm9942 = vcmp.eq.f32.partialorder %v9941, 8.507059e+37
  %v9943 = vand.u32 %v9888, 2147483648
  %v9944 = vor.u32 1.1754944e-38, %v9943
  %v9945 = vsel %vm9942, %v9944, %v9940
  %v9946 = vmul.f32 1.0, %v9945
  %v9947 = vrcp.pop %v9889
  %v9948 = vmul.f32 %v9889, %v9947
  %v9949 = vsub.f32 1.0, %v9948
  %v9950 = vmul.f32 %v9947, %v9949
  %v9951 = vadd.f32 %v9947, %v9950
  %vm9952 = vweird.f32 %v9889
  %vm9953 = vweird.f32 %v9947
  %vm9954 = vmor %vm9952, %vm9953
  %v9955 = vsel %vm9954, %v9947, %v9951
  %v9956 = vand.u32 2147483647, %v9889
  %vm9957 = vcmp.eq.f32.partialorder %v9956, 8.507059e+37
  %v9958 = vand.u32 %v9889, 2147483648
  %v9959 = vor.u32 1.1754944e-38, %v9958
  %v9960 = vsel %vm9957, %v9959, %v9955
  %v9961 = vmul.f32 1.0, %v9960
  %v9962 = vrcp.pop %v9890
  %v9963 = vmul.f32 %v9890, %v9962
  %v9964 = vsub.f32 1.0, %v9963
  %v9965 = vmul.f32 %v9962, %v9964
  %v9966 = vadd.f32 %v9962, %v9965
  %vm9967 = vweird.f32 %v9890
  %vm9968 = vweird.f32 %v9962
  %vm9969 = vmor %vm9967, %vm9968
  %v9970 = vsel %vm9969, %v9962, %v9966
  %v9971 = vand.u32 2147483647, %v9890
  %vm9972 = vcmp.eq.f32.partialorder %v9971, 8.507059e+37
  %v9973 = vand.u32 %v9890, 2147483648
  %v9974 = vor.u32 1.1754944e-38, %v9973
  %v9975 = vsel %vm9972, %v9974, %v9970
  %v9976 = vmul.f32 1.0, %v9975
  %v9977 = vrcp.pop %v9891
  %v9978 = vmul.f32 %v9891, %v9977
  %v9979 = vsub.f32 1.0, %v9978
  %v9980 = vmul.f32 %v9977, %v9979
  %v9981 = vadd.f32 %v9977, %v9980
  %vm9982 = vweird.f32 %v9891
  %vm9983 = vweird.f32 %v9977
  %vm9984 = vmor %vm9982, %vm9983
  %v9985 = vsel %vm9984, %v9977, %v9981
  %v9986 = vand.u32 2147483647, %v9891
  %vm9987 = vcmp.eq.f32.partialorder %v9986, 8.507059e+37
  %v9988 = vand.u32 %v9891, 2147483648
  %v9989 = vor.u32 1.1754944e-38, %v9988
  %v9990 = vsel %vm9987, %v9989, %v9985
  %v9991 = vmul.f32 1.0, %v9990
  %v9992 = vrcp.pop %v9892
  %v9993 = vmul.f32 %v9892, %v9992
  %v9994 = vsub.f32 1.0, %v9993
  %v9995 = vmul.f32 %v9992, %v9994
  %v9996 = vadd.f32 %v9992, %v9995
  %vm9997 = vweird.f32 %v9892
  %vm9998 = vweird.f32 %v9992
  %vm9999 = vmor %vm9997, %vm9998
  %v10000 = vsel %vm9999, %v9992, %v9996
  %v10001 = vand.u32 2147483647, %v9892
  %vm10002 = vcmp.eq.f32.partialorder %v10001, 8.507059e+37
  %v10003 = vand.u32 %v9892, 2147483648
  %v10004 = vor.u32 1.1754944e-38, %v10003
  %v10005 = vsel %vm10002, %v10004, %v10000
  %v10006 = vmul.f32 1.0, %v10005
  %v10007 = vrcp.pop %v9893
  %v10008 = vmul.f32 %v9893, %v10007
  %v10009 = vsub.f32 1.0, %v10008
  %v10010 = vmul.f32 %v10007, %v10009
  %v10011 = vadd.f32 %v10007, %v10010
  %vm10012 = vweird.f32 %v9893
  %vm10013 = vweird.f32 %v10007
  %vm10014 = vmor %vm10012, %vm10013
  %v10015 = vsel %vm10014, %v10007, %v10011
  %v10016 = vand.u32 2147483647, %v9893
  %vm10017 = vcmp.eq.f32.partialorder %v10016, 8.507059e+37
  %v10018 = vand.u32 %v9893, 2147483648
  %v10019 = vor.u32 1.1754944e-38, %v10018
  %v10020 = vsel %vm10017, %v10019, %v10015
  %v10021 = vmul.f32 1.0, %v10020
  %v10022 = vrcp.pop %v9894
  %v10023 = vmul.f32 %v9894, %v10022
  %v10024 = vsub.f32 1.0, %v10023
  %v10025 = vmul.f32 %v10022, %v10024
  %v10026 = vadd.f32 %v10022, %v10025
  %vm10027 = vweird.f32 %v9894
  %vm10028 = vweird.f32 %v10022
  %vm10029 = vmor %vm10027, %vm10028
  %v10030 = vsel %vm10029, %v10022, %v10026
  %v10031 = vand.u32 2147483647, %v9894
  %vm10032 = vcmp.eq.f32.partialorder %v10031, 8.507059e+37
  %v10033 = vand.u32 %v9894, 2147483648
  %v10034 = vor.u32 1.1754944e-38, %v10033
  %v10035 = vsel %vm10032, %v10034, %v10030
  %v10036 = vmul.f32 1.0, %v10035
  %v10037 = vrcp.pop %v9895
  %v10038 = vmul.f32 %v9895, %v10037
  %v10039 = vsub.f32 1.0, %v10038
  %v10040 = vmul.f32 %v10037, %v10039
  %v10041 = vadd.f32 %v10037, %v10040
  %vm10042 = vweird.f32 %v9895
  %vm10043 = vweird.f32 %v10037
  %vm10044 = vmor %vm10042, %vm10043
  %v10045 = vsel %vm10044, %v10037, %v10041
  %v10046 = vand.u32 2147483647, %v9895
  %vm10047 = vcmp.eq.f32.partialorder %v10046, 8.507059e+37
  %v10048 = vand.u32 %v9895, 2147483648
  %v10049 = vor.u32 1.1754944e-38, %v10048
  %v10050 = vsel %vm10047, %v10049, %v10045
  %v10051 = vmul.f32 1.0, %v10050
  %v10052 = vrcp.pop %v9896
  %v10053 = vmul.f32 %v9896, %v10052
  %v10054 = vsub.f32 1.0, %v10053
  %v10055 = vmul.f32 %v10052, %v10054
  %v10056 = vadd.f32 %v10052, %v10055
  %vm10057 = vweird.f32 %v9896
  %vm10058 = vweird.f32 %v10052
  %vm10059 = vmor %vm10057, %vm10058
  %v10060 = vsel %vm10059, %v10052, %v10056
  %v10061 = vand.u32 2147483647, %v9896
  %vm10062 = vcmp.eq.f32.partialorder %v10061, 8.507059e+37
  %v10063 = vand.u32 %v9896, 2147483648
  %v10064 = vor.u32 1.1754944e-38, %v10063
  %v10065 = vsel %vm10062, %v10064, %v10060
  %v10066 = vmul.f32 1.0, %v10065
  %v10067 = vrcp.pop %v9897
  %v10068 = vmul.f32 %v9897, %v10067
  %v10069 = vsub.f32 1.0, %v10068
  %v10070 = vmul.f32 %v10067, %v10069
  %v10071 = vadd.f32 %v10067, %v10070
  %vm10072 = vweird.f32 %v9897
  %vm10073 = vweird.f32 %v10067
  %vm10074 = vmor %vm10072, %vm10073
  %v10075 = vsel %vm10074, %v10067, %v10071
  %v10076 = vand.u32 2147483647, %v9897
  %vm10077 = vcmp.eq.f32.partialorder %v10076, 8.507059e+37
  %v10078 = vand.u32 %v9897, 2147483648
  %v10079 = vor.u32 1.1754944e-38, %v10078
  %v10080 = vsel %vm10077, %v10079, %v10075
  %v10081 = vmul.f32 1.0, %v10080
  %v10082 = vrcp.pop %v9898
  %v10083 = vmul.f32 %v9898, %v10082
  %v10084 = vsub.f32 1.0, %v10083
  %v10085 = vmul.f32 %v10082, %v10084
  %v10086 = vadd.f32 %v10082, %v10085
  %vm10087 = vweird.f32 %v9898
  %vm10088 = vweird.f32 %v10082
  %vm10089 = vmor %vm10087, %vm10088
  %v10090 = vsel %vm10089, %v10082, %v10086
  %v10091 = vand.u32 2147483647, %v9898
  %vm10092 = vcmp.eq.f32.partialorder %v10091, 8.507059e+37
  %v10093 = vand.u32 %v9898, 2147483648
  %v10094 = vor.u32 1.1754944e-38, %v10093
  %v10095 = vsel %vm10092, %v10094, %v10090
  %v10096 = vmul.f32 1.0, %v10095
  %v10097 = vrcp.pop %v9899
  %v10098 = vmul.f32 %v9899, %v10097
  %v10099 = vsub.f32 1.0, %v10098
  %v10100 = vmul.f32 %v10097, %v10099
  %v10101 = vadd.f32 %v10097, %v10100
  %vm10102 = vweird.f32 %v9899
  %vm10103 = vweird.f32 %v10097
  %vm10104 = vmor %vm10102, %vm10103
  %v10105 = vsel %vm10104, %v10097, %v10101
  %v10106 = vand.u32 2147483647, %v9899
  %vm10107 = vcmp.eq.f32.partialorder %v10106, 8.507059e+37
  %v10108 = vand.u32 %v9899, 2147483648
  %v10109 = vor.u32 1.1754944e-38, %v10108
  %v10110 = vsel %vm10107, %v10109, %v10105
  %v10111 = vmul.f32 1.0, %v10110
  %v10112 = vrcp.pop %v9900
  %v10113 = vmul.f32 %v9900, %v10112
  %v10114 = vsub.f32 1.0, %v10113
  %v10115 = vmul.f32 %v10112, %v10114
  %v10116 = vadd.f32 %v10112, %v10115
  %vm10117 = vweird.f32 %v9900
  %vm10118 = vweird.f32 %v10112
  %vm10119 = vmor %vm10117, %vm10118
  %v10120 = vsel %vm10119, %v10112, %v10116
  %v10121 = vand.u32 2147483647, %v9900
  %vm10122 = vcmp.eq.f32.partialorder %v10121, 8.507059e+37
  %v10123 = vand.u32 %v9900, 2147483648
  %v10124 = vor.u32 1.1754944e-38, %v10123
  %v10125 = vsel %vm10122, %v10124, %v10120
  %v10126 = vmul.f32 1.0, %v10125
  %v10127 = vrcp.pop %v9901
  %v10128 = vmul.f32 %v9901, %v10127
  %v10129 = vsub.f32 1.0, %v10128
  %v10130 = vmul.f32 %v10127, %v10129
  %v10131 = vadd.f32 %v10127, %v10130
  %vm10132 = vweird.f32 %v9901
  %vm10133 = vweird.f32 %v10127
  %vm10134 = vmor %vm10132, %vm10133
  %v10135 = vsel %vm10134, %v10127, %v10131
  %v10136 = vand.u32 2147483647, %v9901
  %vm10137 = vcmp.eq.f32.partialorder %v10136, 8.507059e+37
  %v10138 = vand.u32 %v9901, 2147483648
  %v10139 = vor.u32 1.1754944e-38, %v10138
  %v10140 = vsel %vm10137, %v10139, %v10135
  %v10141 = vmul.f32 1.0, %v10140
  %v10142 = vmul.f32 %v9679, %v9916
  %v10143 = vmul.f32 %v9681, %v9931
  %v10144 = vmul.f32 %v9683, %v9946
  %v10145 = vmul.f32 %v9685, %v9961
  %v10146 = vmul.f32 %v9687, %v9976
  %v10147 = vmul.f32 %v9689, %v9991
  %v10148 = vmul.f32 %v9691, %v10006
  %v10149 = vmul.f32 %v9693, %v10021
  %v10150 = vmul.f32 %v9695, %v10036
  %v10151 = vmul.f32 %v9697, %v10051
  %v10152 = vmul.f32 %v9699, %v10066
  %v10153 = vmul.f32 %v9701, %v10081
  %v10154 = vmul.f32 %v9703, %v10096
  %v10155 = vmul.f32 %v9705, %v10111
  %v10156 = vmul.f32 %v9707, %v10126
  %v10157 = vmul.f32 %v9709, %v10141
  %10174 = vrot.lane.b32.xlu0 %v9916, 9
  %v10175 = vpop.permute.xlu0 %10174
  %10176 = vrot.lane.b32.xlu0 %v9931, 9
  %v10177 = vpop.permute.xlu0 %10176
  %10178 = vrot.lane.b32.xlu0 %v9946, 9
  %v10179 = vpop.permute.xlu0 %10178
  %10180 = vrot.lane.b32.xlu0 %v9961, 9
  %v10181 = vpop.permute.xlu0 %10180
  %10182 = vrot.lane.b32.xlu0 %v9976, 9
  %v10183 = vpop.permute.xlu0 %10182
  %10184 = vrot.lane.b32.xlu0 %v9991, 9
  %v10185 = vpop.permute.xlu0 %10184
  %10186 = vrot.lane.b32.xlu0 %v10006, 9
  %v10187 = vpop.permute.xlu0 %10186
  %10188 = vrot.lane.b32.xlu0 %v10021, 9
  %v10189 = vpop.permute.xlu0 %10188
  %10190 = vrot.lane.b32.xlu0 %v10036, 9
  %v10191 = vpop.permute.xlu0 %10190
  %10192 = vrot.lane.b32.xlu0 %v10051, 9
  %v10193 = vpop.permute.xlu0 %10192
  %10194 = vrot.lane.b32.xlu0 %v10066, 9
  %v10195 = vpop.permute.xlu0 %10194
  %10196 = vrot.lane.b32.xlu0 %v10081, 9
  %v10197 = vpop.permute.xlu0 %10196
  %10198 = vrot.lane.b32.xlu0 %v10096, 9
  %v10199 = vpop.permute.xlu0 %10198
  %10200 = vrot.lane.b32.xlu0 %v10111, 9
  %v10201 = vpop.permute.xlu0 %10200
  %10202 = vrot.lane.b32.xlu0 %v10126, 9
  %v10203 = vpop.permute.xlu0 %10202
  %10204 = vrot.lane.b32.xlu0 %v10141, 9
  %v10205 = vpop.permute.xlu0 %10204
  %v10222 = vmul.f32 %v9791, %v10175
  %v10223 = vmul.f32 %v9793, %v10177
  %v10224 = vmul.f32 %v9795, %v10179
  %v10225 = vmul.f32 %v9797, %v10181
  %v10226 = vmul.f32 %v9799, %v10183
  %v10227 = vmul.f32 %v9801, %v10185
  %v10228 = vmul.f32 %v9803, %v10187
  %v10229 = vmul.f32 %v9805, %v10189
  %v10230 = vmul.f32 %v9807, %v10191
  %v10231 = vmul.f32 %v9809, %v10193
  %v10232 = vmul.f32 %v9811, %v10195
  %v10233 = vmul.f32 %v9813, %v10197
  %v10234 = vmul.f32 %v9815, %v10199
  %v10235 = vmul.f32 %v9817, %v10201
  %v10236 = vmul.f32 %v9819, %v10203
  %v10237 = vmul.f32 %v9821, %v10205
  %10254 = vrot.lane.b32.xlu0 %v10142, 110
  %v10255 = vpop.permute.xlu0 %10254
  %10256 = vrot.lane.b32.xlu0 %v10143, 110
  %v10257 = vpop.permute.xlu0 %10256
  %10258 = vrot.lane.b32.xlu0 %v10144, 110
  %v10259 = vpop.permute.xlu0 %10258
  %10260 = vrot.lane.b32.xlu0 %v10145, 110
  %v10261 = vpop.permute.xlu0 %10260
  %10262 = vrot.lane.b32.xlu0 %v10146, 110
  %v10263 = vpop.permute.xlu0 %10262
  %10264 = vrot.lane.b32.xlu0 %v10147, 110
  %v10265 = vpop.permute.xlu0 %10264
  %10266 = vrot.lane.b32.xlu0 %v10148, 110
  %v10267 = vpop.permute.xlu0 %10266
  %10268 = vrot.lane.b32.xlu0 %v10149, 110
  %v10269 = vpop.permute.xlu0 %10268
  %10270 = vrot.lane.b32.xlu0 %v10150, 110
  %v10271 = vpop.permute.xlu0 %10270
  %10272 = vrot.lane.b32.xlu0 %v10151, 110
  %v10273 = vpop.permute.xlu0 %10272
  %10274 = vrot.lane.b32.xlu0 %v10152, 110
  %v10275 = vpop.permute.xlu0 %10274
  %10276 = vrot.lane.b32.xlu0 %v10153, 110
  %v10277 = vpop.permute.xlu0 %10276
  %10278 = vrot.lane.b32.xlu0 %v10154, 110
  %v10279 = vpop.permute.xlu0 %10278
  %10280 = vrot.lane.b32.xlu0 %v10155, 110
  %v10281 = vpop.permute.xlu0 %10280
  %10282 = vrot.lane.b32.xlu0 %v10156, 110
  %v10283 = vpop.permute.xlu0 %10282
  %10284 = vrot.lane.b32.xlu0 %v10157, 110
  %v10285 = vpop.permute.xlu0 %10284
  %10318 = vrot.lane.b32.xlu0 %v10222, 110
  %v10319 = vpop.permute.xlu0 %10318
  %10320 = vrot.lane.b32.xlu0 %v10223, 110
  %v10321 = vpop.permute.xlu0 %10320
  %10322 = vrot.lane.b32.xlu0 %v10224, 110
  %v10323 = vpop.permute.xlu0 %10322
  %10324 = vrot.lane.b32.xlu0 %v10225, 110
  %v10325 = vpop.permute.xlu0 %10324
  %10326 = vrot.lane.b32.xlu0 %v10226, 110
  %v10327 = vpop.permute.xlu0 %10326
  %10328 = vrot.lane.b32.xlu0 %v10227, 110
  %v10329 = vpop.permute.xlu0 %10328
  %10330 = vrot.lane.b32.xlu0 %v10228, 110
  %v10331 = vpop.permute.xlu0 %10330
  %10332 = vrot.lane.b32.xlu0 %v10229, 110
  %v10333 = vpop.permute.xlu0 %10332
  %10334 = vrot.lane.b32.xlu0 %v10230, 110
  %v10335 = vpop.permute.xlu0 %10334
  %10336 = vrot.lane.b32.xlu0 %v10231, 110
  %v10337 = vpop.permute.xlu0 %10336
  %10338 = vrot.lane.b32.xlu0 %v10232, 110
  %v10339 = vpop.permute.xlu0 %10338
  %10340 = vrot.lane.b32.xlu0 %v10233, 110
  %v10341 = vpop.permute.xlu0 %10340
  %10342 = vrot.lane.b32.xlu0 %v10234, 110
  %v10343 = vpop.permute.xlu0 %10342
  %10344 = vrot.lane.b32.xlu0 %v10235, 110
  %v10345 = vpop.permute.xlu0 %10344
  %10346 = vrot.lane.b32.xlu0 %v10236, 110
  %v10347 = vpop.permute.xlu0 %10346
  %10348 = vrot.lane.b32.xlu0 %v10237, 110
  %v10349 = vpop.permute.xlu0 %10348
  %vm10366 = vcmask 72704
  %v10367 = vsel %vm10366, %v10255, %v10319
  %v10368 = vsel %vm10366, %v10257, %v10321
  %v10369 = vsel %vm10366, %v10259, %v10323
  %v10370 = vsel %vm10366, %v10261, %v10325
  %v10371 = vsel %vm10366, %v10263, %v10327
  %v10372 = vsel %vm10366, %v10265, %v10329
  %v10373 = vsel %vm10366, %v10267, %v10331
  %v10374 = vsel %vm10366, %v10269, %v10333
  %v10375 = vsel %vm10366, %v10271, %v10335
  %v10376 = vsel %vm10366, %v10273, %v10337
  %v10377 = vsel %vm10366, %v10275, %v10339
  %v10378 = vsel %vm10366, %v10277, %v10341
  %v10379 = vsel %vm10366, %v10279, %v10343
  %v10380 = vsel %vm10366, %v10281, %v10345
  %v10381 = vsel %vm10366, %v10283, %v10347
  %v10382 = vsel %vm10366, %v10285, %v10349
  %vm10383 = vcmask 146432
  %v10384 = vsel %vm10383, %v10367, %v9543
  %v10385 = vsel %vm10383, %v10368, %v9545
  %v10386 = vsel %vm10383, %v10369, %v9548
  %v10387 = vsel %vm10383, %v10370, %v9550
  %v10388 = vsel %vm10383, %v10371, %v9553
  %v10389 = vsel %vm10383, %v10372, %v9555
  %v10390 = vsel %vm10383, %v10373, %v9558
  %v10391 = vsel %vm10383, %v10374, %v9560
  %v10392 = vsel %vm10383, %v10375, %v9563
  %v10393 = vsel %vm10383, %v10376, %v9565
  %v10394 = vsel %vm10383, %v10377, %v9568
  %v10395 = vsel %vm10383, %v10378, %v9570
  %v10396 = vsel %vm10383, %v10379, %v9573
  %v10397 = vsel %vm10383, %v10380, %v9575
  %v10398 = vsel %vm10383, %v10381, %v9578
  %v10399 = vsel %vm10383, %v10382, %v9580
  %10400 = vst [vmem:[%s8] sm:$0xff] %v10384
  %10401 = vst [vmem:[%s8 + $0x8] sm:$0xff] %v10385
  %10402 = vst [vmem:[%s8 + $0x10] sm:$0xff] %v10386
  %10403 = vst [vmem:[%s8 + $0x18] sm:$0xff] %v10387
  %10404 = vst [vmem:[%s8 + $0x20] sm:$0xff] %v10388
  %10405 = vst [vmem:[%s8 + $0x28] sm:$0xff] %v10389
  %10406 = vst [vmem:[%s8 + $0x30] sm:$0xff] %v10390
  %10407 = vst [vmem:[%s8 + $0x38] sm:$0xff] %v10391
  %10408 = vst [vmem:[%s8 + $0x40] sm:$0xff] %v10392
  %10409 = vst [vmem:[%s8 + $0x48] sm:$0xff] %v10393
  %10410 = vst [vmem:[%s8 + $0x50] sm:$0xff] %v10394
  %10411 = vst [vmem:[%s8 + $0x58] sm:$0xff] %v10395
  %10412 = vst [vmem:[%s8 + $0x60] sm:$0xff] %v10396
  %10413 = vst [vmem:[%s8 + $0x68] sm:$0xff] %v10397
  %10414 = vst [vmem:[%s8 + $0x70] sm:$0xff] %v10398
  %10415 = vst [vmem:[%s8 + $0x78] sm:$0xff] %v10399
  // Predicated region
  $region34: #{tdid_forward.1} parent=0 // pred_check
    _
  $region35: #{tdid_forward.1} parent=0 // pred_check_branch
    %10417 = sbr.rel (0) target = $region37
  $region36: #{tdid_forward.1} parent=0 // pred_region
    _
  $region37: #{tdid_forward.1} parent=0 // pred_fallthru
    _
  // Predicated region
  $region38: #{tdid_forward.1} parent=0 // pred_check
    _
  $region39: #{tdid_forward.1} parent=0 // pred_check_branch
    %10419 = sbr.rel (0) target = $region41
  $region40: #{tdid_forward.1} parent=0 // pred_region
    _
  $region41: #{tdid_forward.1} parent=0 // pred_fallthru
    _

</llo_original>
